<compile_context>
chip_gen: v6e
topology: v6e:2x2x1
jax: 0.10.0
libtpu: 0.0.40
codegen_flags: <defaults>
</compile_context>

<pallas_src>
import jax
import jax.numpy as jnp
from jax.experimental import pallas as pl
from jax.experimental.pallas import tpu as pltpu

NOISE_DIM = 100
EMB_DIM = 30
N_CLASSES = 10
IN_DIM = NOISE_DIM + EMB_DIM          # 130
IN_PAD = 256                          # lane-aligned K for the first matmul
H1, H2, H3 = 256, 512, 1024
N_OUT = 28 * 28                       # 784
N_OUT_PAD = 896                       # 7 * 128 -> lane-dense, unmasked stores
OUT_CHUNK = 128
N_CHUNKS = N_OUT_PAD // OUT_CHUNK     # 7
LEAKY_SLOPE = 0.2                     # matches nn.LeakyReLU(0.2) in the module


def _round_up(x, m):
    return (x + m - 1) // m * m


def generator_kernel(x_ref,
                     w1_ref, b1_ref,
                     w2_ref, b2_ref,
                     w3_ref, b3_ref,
                     w4_ref, b4_ref,
                     out_ref):
    """One batch tile per grid step: 4 bf16 MXU matmuls with f32 accumulation.

    Layers 1-3: bias + LeakyReLU epilogue in packed bf16 (halves the serial VPU work
    between matmuls on v6e/v7x; still correct — just unpacked — on v5e).
    Layer 4: output N is statically chunked into 128-lane slabs so the bias + tanh +
    bf16 store of one chunk overlaps the MXU work of the next chunk.
    """
    h = x_ref[...]                                                   # (TB, 256) bf16

    for w_ref, b_ref in ((w1_ref, b1_ref), (w2_ref, b2_ref), (w3_ref, b3_ref)):
        acc = jnp.dot(h, w_ref[...], preferred_element_type=jnp.float32)
        hb = acc.astype(jnp.bfloat16) + b_ref[...]                   # bf16 epilogue
        h = jnp.where(hb > 0, hb, LEAKY_SLOPE * hb)                  # LeakyReLU(0.2)

    for c in range(N_CHUNKS):                                        # static unroll
        lo, hi = c * OUT_CHUNK, (c + 1) * OUT_CHUNK
        o = jnp.dot(h, w4_ref[:, lo:hi], preferred_element_type=jnp.float32)
        o = (o + b4_ref[:, lo:hi]).astype(jnp.bfloat16)
        out_ref[:, lo:hi] = jnp.tanh(o)                              # bf16, lane-dense


def init_params(key):
    """PyTorch defaults: nn.Embedding ~ N(0,1); nn.Linear ~ U(+-1/sqrt(fan_in))."""
    key, ke = jax.random.split(key)
    emb_table = jax.random.normal(ke, (N_CLASSES, EMB_DIM), jnp.float32)

    dims = [(IN_DIM, H1), (H1, H2), (H2, H3), (H3, N_OUT)]
    layers = []
    for fan_in, fan_out in dims:
        key, kw, kb = jax.random.split(key, 3)
        bound = 1.0 / float(fan_in) ** 0.5
        w = jax.random.uniform(kw, (fan_in, fan_out), jnp.float32, -bound, bound)
        # biases kept 2D (1, fan_out) so they live on the lane axis in VMEM
        b = jax.random.uniform(kb, (1, fan_out), jnp.float32, -bound, bound)
        layers.append((w, b))
    return (emb_table, *layers)


def prepare_params(params):
    """One-time pad + bf16 cast of the MXU operands (hoisted out of the forward)."""
    emb_table, (w1, b1), (w2, b2), (w3, b3), (w4, b4) = params
    return {
        "emb": emb_table,
        "w1": jnp.pad(w1, ((0, IN_PAD - IN_DIM), (0, 0))).astype(jnp.bfloat16),
        "b1": b1.astype(jnp.bfloat16),
        "w2": w2.astype(jnp.bfloat16),
        "b2": b2.astype(jnp.bfloat16),
        "w3": w3.astype(jnp.bfloat16),
        "b3": b3.astype(jnp.bfloat16),
        "w4": jnp.pad(w4, ((0, 0), (0, N_OUT_PAD - N_OUT))).astype(jnp.bfloat16),
        "b4": jnp.pad(b4, ((0, 0), (0, N_OUT_PAD - N_OUT))),   # f32: added to f32 accum
    }


def _pick_batch_tile(B):
    if B < 32:
        return max(16, _round_up(B, 16))     # latency path: one 16-row-packed tile
    if B < 512:
        return _round_up((B + 1) // 2, 16)   # >= 2 tiles -> both v7x TensorCores busy
    if B < 2048:
        return 256
    return 512                               # big batch: amortize per-grid-step cost


@jax.jit
def ac_generator_forward(x, lbl, prep):
    """x: (B, NOISE_DIM) f32, lbl: (B,) int32 -> (B, 784) f32 in [-1, 1]."""
    B = x.shape[0]

    # Tiny gather + concat (torch: cat((x, emb), dim=1)); all FLOPs live in the kernel.
    emb = jnp.take(prep["emb"], lbl.reshape(-1), axis=0)             # (B, 30)
    xin = jnp.concatenate([x, emb], axis=1)                          # (B, 130)

    TB = _pick_batch_tile(B)
    B_pad = _round_up(B, TB)
    x_pad = jnp.pad(xin, ((0, B_pad - B), (0, IN_PAD - IN_DIM))).astype(jnp.bfloat16)

    # Weights/biases: constant block index -> DMA'd once, stay VMEM-resident;
    # single-buffered so no second ~3 MiB buffer set is allocated.
    def resident(shape):
        return pl.BlockSpec(shape, lambda i: (0, 0), pipeline_mode=pl.Buffered(1))

    out_pad = pl.pallas_call(
        generator_kernel,
        out_shape=jax.ShapeDtypeStruct((B_pad, N_OUT_PAD), jnp.bfloat16),
        grid=(B_pad // TB,),
        in_specs=[
            pl.BlockSpec((TB, IN_PAD), lambda i: (i, 0)),   # x: streamed per batch tile
            resident((IN_PAD, H1)), resident((1, H1)),
            resident((H1, H2)), resident((1, H2)),
            resident((H2, H3)), resident((1, H3)),
            resident((H3, N_OUT_PAD)), resident((1, N_OUT_PAD)),
        ],
        out_specs=pl.BlockSpec((TB, N_OUT_PAD), lambda i: (i, 0)),
        compiler_params=pltpu.CompilerParams(
            dimension_semantics=("parallel",),   # batch tiles shard across TCs on v7x
            vmem_limit_bytes=32 << 20,           # explicit: v5e scoped default is 16 MiB
        ),
    )(x_pad, prep["w1"], prep["b1"], prep["w2"], prep["b2"],
      prep["w3"], prep["b3"], prep["w4"], prep["b4"])

    # Slice off batch/feature padding; cast back to f32 for the module's interface.
    return out_pad[:B, :N_OUT].astype(jnp.float32)


def ac_generator_ref(x, lbl, params):
    """Pure-JAX reference mirroring the kernel numerics (bf16 operands / bf16 epilogue,
    f32 accumulation) so the check validates the Pallas plumbing itself."""
    emb_table, *layers = params
    emb = jnp.take(emb_table, lbl.reshape(-1), axis=0)
    h = jnp.concatenate([x, emb], axis=1).astype(jnp.bfloat16)
    for i, (w, b) in enumerate(layers):
        acc = jnp.dot(h, w.astype(jnp.bfloat16), preferred_element_type=jnp.float32)
        if i < 3:
            hb = acc.astype(jnp.bfloat16) + b.astype(jnp.bfloat16)
            h = jnp.where(hb > 0, hb, LEAKY_SLOPE * hb)
        else:
            h = jnp.tanh((acc + b).astype(jnp.bfloat16))
    return h.astype(jnp.float32)


if __name__ == "__main__":
    key = jax.random.PRNGKey(0)
    key, kx, kl = jax.random.split(key, 3)

    batch = 2
    x = jax.random.normal(kx, (batch, NOISE_DIM), jnp.float32)
    lbl = jax.random.randint(kl, (batch,), 0, N_CLASSES, jnp.int32)

    params = init_params(key)
    prep = prepare_params(params)        # one-time pad/cast, hoisted out of the forward

    out = ac_generator_forward(x, lbl, prep)
    out = jax.block_until_ready(out)

    ref = ac_generator_ref(x, lbl, params)
    assert out.shape == (batch, N_OUT), out.shape
    err = float(jnp.max(jnp.abs(out - ref)))
    assert err < 2e-2, err               # bf16 operands/epilogue -> loosened tolerance

    print("KERNEL_OK")
</pallas_src>

<mosaic_0001>
module attributes {stable_mosaic.version = 11 : i64} {
  func.func @generator_kernel(%arg0: i32, %arg1: memref<16x256xbf16, #tpu.memory_space<vmem>>, %arg2: memref<256x256xbf16, #tpu.memory_space<vmem>>, %arg3: memref<1x256xbf16, #tpu.memory_space<vmem>>, %arg4: memref<256x512xbf16, #tpu.memory_space<vmem>>, %arg5: memref<1x512xbf16, #tpu.memory_space<vmem>>, %arg6: memref<512x1024xbf16, #tpu.memory_space<vmem>>, %arg7: memref<1x1024xbf16, #tpu.memory_space<vmem>>, %arg8: memref<1024x896xbf16, #tpu.memory_space<vmem>>, %arg9: memref<1x896xf32, #tpu.memory_space<vmem>>, %arg10: memref<16x896xbf16, #tpu.memory_space<vmem>>) attributes {dimension_semantics = [#tpu.dimension_semantics<parallel>], iteration_bounds = array<i64: 1>, scalar_prefetch = 0 : i64, scratch_operands = 0 : i64, tpu.core_type = #tpu.core_type<tc>, window_params = [{transform_indices = @transform_0, window_bounds = array<i64: 16, 256>}, {pipeline_mode = #tpu.pipeline_mode<synchronous>, transform_indices = @transform_1, window_bounds = array<i64: 256, 256>}, {pipeline_mode = #tpu.pipeline_mode<synchronous>, transform_indices = @transform_2, window_bounds = array<i64: 1, 256>}, {pipeline_mode = #tpu.pipeline_mode<synchronous>, transform_indices = @transform_3, window_bounds = array<i64: 256, 512>}, {pipeline_mode = #tpu.pipeline_mode<synchronous>, transform_indices = @transform_4, window_bounds = array<i64: 1, 512>}, {pipeline_mode = #tpu.pipeline_mode<synchronous>, transform_indices = @transform_5, window_bounds = array<i64: 512, 1024>}, {pipeline_mode = #tpu.pipeline_mode<synchronous>, transform_indices = @transform_6, window_bounds = array<i64: 1, 1024>}, {pipeline_mode = #tpu.pipeline_mode<synchronous>, transform_indices = @transform_7, window_bounds = array<i64: 1024, 896>}, {pipeline_mode = #tpu.pipeline_mode<synchronous>, transform_indices = @transform_8, window_bounds = array<i64: 1, 896>}, {transform_indices = @transform_9, window_bounds = array<i64: 16, 896>}]} {
    %c0 = arith.constant 0 : index
    %c0_0 = arith.constant 0 : index
    %0 = vector.load %arg1[%c0, %c0_0] : memref<16x256xbf16, #tpu.memory_space<vmem>>, vector<16x256xbf16>
    %c0_1 = arith.constant 0 : index
    %c0_2 = arith.constant 0 : index
    %1 = vector.load %arg2[%c0_1, %c0_2] : memref<256x256xbf16, #tpu.memory_space<vmem>>, vector<256x256xbf16>
    %cst = arith.constant dense<0.000000e+00> : vector<16x256xf32>
    %2 = tpu.matmul %0, %1, %cst {dimension_numbers = #tpu.dot_dimension_numbers<[1], [0], [0], [1], [0, 0, 1, 1], [], []>} : vector<16x256xbf16>, vector<256x256xbf16>, vector<16x256xf32> -> vector<16x256xf32>
    %3 = arith.truncf %2 : vector<16x256xf32> to vector<16x256xbf16>
    %c0_3 = arith.constant 0 : index
    %c0_4 = arith.constant 0 : index
    %4 = vector.load %arg3[%c0_3, %c0_4] : memref<1x256xbf16, #tpu.memory_space<vmem>>, vector<1x256xbf16>
    %5 = vector.broadcast %4 : vector<1x256xbf16> to vector<16x256xbf16>
    %6 = arith.addf %3, %5 : vector<16x256xbf16>
    %cst_5 = arith.constant 0.000000e+00 : bf16
    %7 = vector.broadcast %cst_5 : bf16 to vector<16x256xbf16>
    %8 = arith.cmpf ogt, %6, %7 : vector<16x256xbf16>
    %cst_6 = arith.constant 2.001950e-01 : bf16
    %9 = vector.broadcast %cst_6 : bf16 to vector<16x256xbf16>
    %10 = arith.mulf %9, %6 : vector<16x256xbf16>
    %11 = arith.select %8, %6, %10 : vector<16x256xi1>, vector<16x256xbf16>
    %c0_7 = arith.constant 0 : index
    %c0_8 = arith.constant 0 : index
    %12 = vector.load %arg4[%c0_7, %c0_8] : memref<256x512xbf16, #tpu.memory_space<vmem>>, vector<256x512xbf16>
    %cst_9 = arith.constant dense<0.000000e+00> : vector<16x512xf32>
    %13 = tpu.matmul %11, %12, %cst_9 {dimension_numbers = #tpu.dot_dimension_numbers<[1], [0], [0], [1], [0, 0, 1, 1], [], []>} : vector<16x256xbf16>, vector<256x512xbf16>, vector<16x512xf32> -> vector<16x512xf32>
    %14 = arith.truncf %13 : vector<16x512xf32> to vector<16x512xbf16>
    %c0_10 = arith.constant 0 : index
    %c0_11 = arith.constant 0 : index
    %15 = vector.load %arg5[%c0_10, %c0_11] : memref<1x512xbf16, #tpu.memory_space<vmem>>, vector<1x512xbf16>
    %16 = vector.broadcast %15 : vector<1x512xbf16> to vector<16x512xbf16>
    %17 = arith.addf %14, %16 : vector<16x512xbf16>
    %cst_12 = arith.constant 0.000000e+00 : bf16
    %18 = vector.broadcast %cst_12 : bf16 to vector<16x512xbf16>
    %19 = arith.cmpf ogt, %17, %18 : vector<16x512xbf16>
    %cst_13 = arith.constant 2.001950e-01 : bf16
    %20 = vector.broadcast %cst_13 : bf16 to vector<16x512xbf16>
    %21 = arith.mulf %20, %17 : vector<16x512xbf16>
    %22 = arith.select %19, %17, %21 : vector<16x512xi1>, vector<16x512xbf16>
    %c0_14 = arith.constant 0 : index
    %c0_15 = arith.constant 0 : index
    %23 = vector.load %arg6[%c0_14, %c0_15] : memref<512x1024xbf16, #tpu.memory_space<vmem>>, vector<512x1024xbf16>
    %cst_16 = arith.constant dense<0.000000e+00> : vector<16x1024xf32>
    %24 = tpu.matmul %22, %23, %cst_16 {dimension_numbers = #tpu.dot_dimension_numbers<[1], [0], [0], [1], [0, 0, 1, 1], [], []>} : vector<16x512xbf16>, vector<512x1024xbf16>, vector<16x1024xf32> -> vector<16x1024xf32>
    %25 = arith.truncf %24 : vector<16x1024xf32> to vector<16x1024xbf16>
    %c0_17 = arith.constant 0 : index
    %c0_18 = arith.constant 0 : index
    %26 = vector.load %arg7[%c0_17, %c0_18] : memref<1x1024xbf16, #tpu.memory_space<vmem>>, vector<1x1024xbf16>
    %27 = vector.broadcast %26 : vector<1x1024xbf16> to vector<16x1024xbf16>
    %28 = arith.addf %25, %27 : vector<16x1024xbf16>
    %cst_19 = arith.constant 0.000000e+00 : bf16
    %29 = vector.broadcast %cst_19 : bf16 to vector<16x1024xbf16>
    %30 = arith.cmpf ogt, %28, %29 : vector<16x1024xbf16>
    %cst_20 = arith.constant 2.001950e-01 : bf16
    %31 = vector.broadcast %cst_20 : bf16 to vector<16x1024xbf16>
    %32 = arith.mulf %31, %28 : vector<16x1024xbf16>
    %33 = arith.select %30, %28, %32 : vector<16x1024xi1>, vector<16x1024xbf16>
    %c0_21 = arith.constant 0 : index
    %c0_22 = arith.constant 0 : index
    %34 = vector.load %arg8[%c0_21, %c0_22] : memref<1024x896xbf16, #tpu.memory_space<vmem>>, vector<1024x128xbf16>
    %cst_23 = arith.constant dense<0.000000e+00> : vector<16x128xf32>
    %35 = tpu.matmul %33, %34, %cst_23 {dimension_numbers = #tpu.dot_dimension_numbers<[1], [0], [0], [1], [0, 0, 1, 1], [], []>} : vector<16x1024xbf16>, vector<1024x128xbf16>, vector<16x128xf32> -> vector<16x128xf32>
    %c0_24 = arith.constant 0 : index
    %c0_25 = arith.constant 0 : index
    %36 = vector.load %arg9[%c0_24, %c0_25] : memref<1x896xf32, #tpu.memory_space<vmem>>, vector<1x128xf32>
    %37 = vector.broadcast %36 : vector<1x128xf32> to vector<16x128xf32>
    %38 = arith.addf %35, %37 : vector<16x128xf32>
    %39 = arith.truncf %38 : vector<16x128xf32> to vector<16x128xbf16>
    %40 = math.tanh %39 : vector<16x128xbf16>
    %c0_26 = arith.constant 0 : index
    %c0_27 = arith.constant 0 : index
    %41 = vector.load %arg10[%c0_26, %c0_27] : memref<16x896xbf16, #tpu.memory_space<vmem>>, vector<16x128xbf16>
    tpu.vector_store %arg10[%c0_26, %c0_27], %40 {strides = array<i32>} : memref<16x896xbf16, #tpu.memory_space<vmem>>, vector<16x128xbf16>,
    %c0_28 = arith.constant 0 : index
    %c128 = arith.constant 128 : index
    %42 = vector.load %arg8[%c0_28, %c128] : memref<1024x896xbf16, #tpu.memory_space<vmem>>, vector<1024x128xbf16>
    %cst_29 = arith.constant dense<0.000000e+00> : vector<16x128xf32>
    %43 = tpu.matmul %33, %42, %cst_29 {dimension_numbers = #tpu.dot_dimension_numbers<[1], [0], [0], [1], [0, 0, 1, 1], [], []>} : vector<16x1024xbf16>, vector<1024x128xbf16>, vector<16x128xf32> -> vector<16x128xf32>
    %c0_30 = arith.constant 0 : index
    %c128_31 = arith.constant 128 : index
    %44 = vector.load %arg9[%c0_30, %c128_31] : memref<1x896xf32, #tpu.memory_space<vmem>>, vector<1x128xf32>
    %45 = vector.broadcast %44 : vector<1x128xf32> to vector<16x128xf32>
    %46 = arith.addf %43, %45 : vector<16x128xf32>
    %47 = arith.truncf %46 : vector<16x128xf32> to vector<16x128xbf16>
    %48 = math.tanh %47 : vector<16x128xbf16>
    %c0_32 = arith.constant 0 : index
    %c128_33 = arith.constant 128 : index
    %49 = vector.load %arg10[%c0_32, %c128_33] : memref<16x896xbf16, #tpu.memory_space<vmem>>, vector<16x128xbf16>
    tpu.vector_store %arg10[%c0_32, %c128_33], %48 {strides = array<i32>} : memref<16x896xbf16, #tpu.memory_space<vmem>>, vector<16x128xbf16>,
    %c0_34 = arith.constant 0 : index
    %c256 = arith.constant 256 : index
    %50 = vector.load %arg8[%c0_34, %c256] : memref<1024x896xbf16, #tpu.memory_space<vmem>>, vector<1024x128xbf16>
    %cst_35 = arith.constant dense<0.000000e+00> : vector<16x128xf32>
    %51 = tpu.matmul %33, %50, %cst_35 {dimension_numbers = #tpu.dot_dimension_numbers<[1], [0], [0], [1], [0, 0, 1, 1], [], []>} : vector<16x1024xbf16>, vector<1024x128xbf16>, vector<16x128xf32> -> vector<16x128xf32>
    %c0_36 = arith.constant 0 : index
    %c256_37 = arith.constant 256 : index
    %52 = vector.load %arg9[%c0_36, %c256_37] : memref<1x896xf32, #tpu.memory_space<vmem>>, vector<1x128xf32>
    %53 = vector.broadcast %52 : vector<1x128xf32> to vector<16x128xf32>
    %54 = arith.addf %51, %53 : vector<16x128xf32>
    %55 = arith.truncf %54 : vector<16x128xf32> to vector<16x128xbf16>
    %56 = math.tanh %55 : vector<16x128xbf16>
    %c0_38 = arith.constant 0 : index
    %c256_39 = arith.constant 256 : index
    %57 = vector.load %arg10[%c0_38, %c256_39] : memref<16x896xbf16, #tpu.memory_space<vmem>>, vector<16x128xbf16>
    tpu.vector_store %arg10[%c0_38, %c256_39], %56 {strides = array<i32>} : memref<16x896xbf16, #tpu.memory_space<vmem>>, vector<16x128xbf16>,
    %c0_40 = arith.constant 0 : index
    %c384 = arith.constant 384 : index
    %58 = vector.load %arg8[%c0_40, %c384] : memref<1024x896xbf16, #tpu.memory_space<vmem>>, vector<1024x128xbf16>
    %cst_41 = arith.constant dense<0.000000e+00> : vector<16x128xf32>
    %59 = tpu.matmul %33, %58, %cst_41 {dimension_numbers = #tpu.dot_dimension_numbers<[1], [0], [0], [1], [0, 0, 1, 1], [], []>} : vector<16x1024xbf16>, vector<1024x128xbf16>, vector<16x128xf32> -> vector<16x128xf32>
    %c0_42 = arith.constant 0 : index
    %c384_43 = arith.constant 384 : index
    %60 = vector.load %arg9[%c0_42, %c384_43] : memref<1x896xf32, #tpu.memory_space<vmem>>, vector<1x128xf32>
    %61 = vector.broadcast %60 : vector<1x128xf32> to vector<16x128xf32>
    %62 = arith.addf %59, %61 : vector<16x128xf32>
    %63 = arith.truncf %62 : vector<16x128xf32> to vector<16x128xbf16>
    %64 = math.tanh %63 : vector<16x128xbf16>
    %c0_44 = arith.constant 0 : index
    %c384_45 = arith.constant 384 : index
    %65 = vector.load %arg10[%c0_44, %c384_45] : memref<16x896xbf16, #tpu.memory_space<vmem>>, vector<16x128xbf16>
    tpu.vector_store %arg10[%c0_44, %c384_45], %64 {strides = array<i32>} : memref<16x896xbf16, #tpu.memory_space<vmem>>, vector<16x128xbf16>,
    %c0_46 = arith.constant 0 : index
    %c512 = arith.constant 512 : index
    %66 = vector.load %arg8[%c0_46, %c512] : memref<1024x896xbf16, #tpu.memory_space<vmem>>, vector<1024x128xbf16>
    %cst_47 = arith.constant dense<0.000000e+00> : vector<16x128xf32>
    %67 = tpu.matmul %33, %66, %cst_47 {dimension_numbers = #tpu.dot_dimension_numbers<[1], [0], [0], [1], [0, 0, 1, 1], [], []>} : vector<16x1024xbf16>, vector<1024x128xbf16>, vector<16x128xf32> -> vector<16x128xf32>
    %c0_48 = arith.constant 0 : index
    %c512_49 = arith.constant 512 : index
    %68 = vector.load %arg9[%c0_48, %c512_49] : memref<1x896xf32, #tpu.memory_space<vmem>>, vector<1x128xf32>
    %69 = vector.broadcast %68 : vector<1x128xf32> to vector<16x128xf32>
    %70 = arith.addf %67, %69 : vector<16x128xf32>
    %71 = arith.truncf %70 : vector<16x128xf32> to vector<16x128xbf16>
    %72 = math.tanh %71 : vector<16x128xbf16>
    %c0_50 = arith.constant 0 : index
    %c512_51 = arith.constant 512 : index
    %73 = vector.load %arg10[%c0_50, %c512_51] : memref<16x896xbf16, #tpu.memory_space<vmem>>, vector<16x128xbf16>
    tpu.vector_store %arg10[%c0_50, %c512_51], %72 {strides = array<i32>} : memref<16x896xbf16, #tpu.memory_space<vmem>>, vector<16x128xbf16>,
    %c0_52 = arith.constant 0 : index
    %c640 = arith.constant 640 : index
    %74 = vector.load %arg8[%c0_52, %c640] : memref<1024x896xbf16, #tpu.memory_space<vmem>>, vector<1024x128xbf16>
    %cst_53 = arith.constant dense<0.000000e+00> : vector<16x128xf32>
    %75 = tpu.matmul %33, %74, %cst_53 {dimension_numbers = #tpu.dot_dimension_numbers<[1], [0], [0], [1], [0, 0, 1, 1], [], []>} : vector<16x1024xbf16>, vector<1024x128xbf16>, vector<16x128xf32> -> vector<16x128xf32>
    %c0_54 = arith.constant 0 : index
    %c640_55 = arith.constant 640 : index
    %76 = vector.load %arg9[%c0_54, %c640_55] : memref<1x896xf32, #tpu.memory_space<vmem>>, vector<1x128xf32>
    %77 = vector.broadcast %76 : vector<1x128xf32> to vector<16x128xf32>
    %78 = arith.addf %75, %77 : vector<16x128xf32>
    %79 = arith.truncf %78 : vector<16x128xf32> to vector<16x128xbf16>
    %80 = math.tanh %79 : vector<16x128xbf16>
    %c0_56 = arith.constant 0 : index
    %c640_57 = arith.constant 640 : index
    %81 = vector.load %arg10[%c0_56, %c640_57] : memref<16x896xbf16, #tpu.memory_space<vmem>>, vector<16x128xbf16>
    tpu.vector_store %arg10[%c0_56, %c640_57], %80 {strides = array<i32>} : memref<16x896xbf16, #tpu.memory_space<vmem>>, vector<16x128xbf16>,
    %c0_58 = arith.constant 0 : index
    %c768 = arith.constant 768 : index
    %82 = vector.load %arg8[%c0_58, %c768] : memref<1024x896xbf16, #tpu.memory_space<vmem>>, vector<1024x128xbf16>
    %cst_59 = arith.constant dense<0.000000e+00> : vector<16x128xf32>
    %83 = tpu.matmul %33, %82, %cst_59 {dimension_numbers = #tpu.dot_dimension_numbers<[1], [0], [0], [1], [0, 0, 1, 1], [], []>} : vector<16x1024xbf16>, vector<1024x128xbf16>, vector<16x128xf32> -> vector<16x128xf32>
    %c0_60 = arith.constant 0 : index
    %c768_61 = arith.constant 768 : index
    %84 = vector.load %arg9[%c0_60, %c768_61] : memref<1x896xf32, #tpu.memory_space<vmem>>, vector<1x128xf32>
    %85 = vector.broadcast %84 : vector<1x128xf32> to vector<16x128xf32>
    %86 = arith.addf %83, %85 : vector<16x128xf32>
    %87 = arith.truncf %86 : vector<16x128xf32> to vector<16x128xbf16>
    %88 = math.tanh %87 : vector<16x128xbf16>
    %c0_62 = arith.constant 0 : index
    %c768_63 = arith.constant 768 : index
    %89 = vector.load %arg10[%c0_62, %c768_63] : memref<16x896xbf16, #tpu.memory_space<vmem>>, vector<16x128xbf16>
    tpu.vector_store %arg10[%c0_62, %c768_63], %88 {strides = array<i32>} : memref<16x896xbf16, #tpu.memory_space<vmem>>, vector<16x128xbf16>,
    return
  }
  func.func @transform_0(%arg0: i32) -> (i32, i32) {
    %c0_i32 = arith.constant 0 : i32
    %c0_i32_0 = arith.constant 0 : i32
    return %arg0, %c0_i32 : i32, i32
  }
  func.func @transform_1(%arg0: i32) -> (i32, i32) {
    %c0_i32 = arith.constant 0 : i32
    %c0_i32_0 = arith.constant 0 : i32
    %c0_i32_1 = arith.constant 0 : i32
    return %c0_i32, %c0_i32_0 : i32, i32
  }
  func.func @transform_2(%arg0: i32) -> (i32, i32) {
    %c0_i32 = arith.constant 0 : i32
    %c0_i32_0 = arith.constant 0 : i32
    %c0_i32_1 = arith.constant 0 : i32
    return %c0_i32, %c0_i32_0 : i32, i32
  }
  func.func @transform_3(%arg0: i32) -> (i32, i32) {
    %c0_i32 = arith.constant 0 : i32
    %c0_i32_0 = arith.constant 0 : i32
    %c0_i32_1 = arith.constant 0 : i32
    return %c0_i32, %c0_i32_0 : i32, i32
  }
  func.func @transform_4(%arg0: i32) -> (i32, i32) {
    %c0_i32 = arith.constant 0 : i32
    %c0_i32_0 = arith.constant 0 : i32
    %c0_i32_1 = arith.constant 0 : i32
    return %c0_i32, %c0_i32_0 : i32, i32
  }
  func.func @transform_5(%arg0: i32) -> (i32, i32) {
    %c0_i32 = arith.constant 0 : i32
    %c0_i32_0 = arith.constant 0 : i32
    %c0_i32_1 = arith.constant 0 : i32
    return %c0_i32, %c0_i32_0 : i32, i32
  }
  func.func @transform_6(%arg0: i32) -> (i32, i32) {
    %c0_i32 = arith.constant 0 : i32
    %c0_i32_0 = arith.constant 0 : i32
    %c0_i32_1 = arith.constant 0 : i32
    return %c0_i32, %c0_i32_0 : i32, i32
  }
  func.func @transform_7(%arg0: i32) -> (i32, i32) {
    %c0_i32 = arith.constant 0 : i32
    %c0_i32_0 = arith.constant 0 : i32
    %c0_i32_1 = arith.constant 0 : i32
    return %c0_i32, %c0_i32_0 : i32, i32
  }
  func.func @transform_8(%arg0: i32) -> (i32, i32) {
    %c0_i32 = arith.constant 0 : i32
    %c0_i32_0 = arith.constant 0 : i32
    %c0_i32_1 = arith.constant 0 : i32
    return %c0_i32, %c0_i32_0 : i32, i32
  }
  func.func @transform_9(%arg0: i32) -> (i32, i32) {
    %c0_i32 = arith.constant 0 : i32
    %c0_i32_0 = arith.constant 0 : i32
    return %arg0, %c0_i32 : i32, i32
  }
}

</mosaic_0001>

<llo_original>
// kernel: ac_generator_forward.1
$region0: #{ac_generator_forward.1}
  #allocation0 [shape = 'u32[]', space=smem, size = 0x4, offset = 0x4, fixed_abs, tag = 'smem constant byte address 0x4 - core index']
  #allocation1 [shape = 'u32[144,128]{1,0:T(1,128)}', space=vmem, size = 0x12000, scoped, tag = 'internal scratch']
  %s0 = inlined_call_operand.vmem [shape: bf16[16,256], index: 0, kind: input, shape index: {}]
  %s1 = inlined_call_operand.hbm [shape: bf16[256,256], index: 1, kind: input, shape index: {}]
  %s2 = inlined_call_operand.hbm [shape: bf16[1,256], index: 2, kind: input, shape index: {}]
  %s3 = inlined_call_operand.hbm [shape: bf16[256,512], index: 3, kind: input, shape index: {}]
  %s4 = inlined_call_operand.hbm [shape: bf16[1,512], index: 4, kind: input, shape index: {}]
  %s5 = inlined_call_operand.hbm [shape: bf16[512,1024], index: 5, kind: input, shape index: {}]
  %s6 = inlined_call_operand.hbm [shape: bf16[1,1024], index: 6, kind: input, shape index: {}]
  %s7 = inlined_call_operand.hbm [shape: bf16[1024,896], index: 7, kind: input, shape index: {}]
  %s8 = inlined_call_operand.hbm [shape: f32[1,896], index: 8, kind: input, shape index: {}]
  %s9 = inlined_call_operand.vmem [shape: bf16[16,896], index: 9, kind: output, shape index: {}]
  %s10 = sld [smem:[#allocation0]]
  $region78: #{ac_generator_forward.1} parent=0
    _
  %s12 = ssub.s32 1, %s10
  %s13 = scalar_select 0, %s12, %s10
  $region1: #{ac_generator_forward.1} parent=0
    #allocation2 [shape = 'u8[131072]{0}', space=vmem, size = 0x20000, scoped, tag = 'input window, operand 1, single buffered']
    #allocation3 [shape = 's32[1]{0}', space=sflag, size = 0x4, scoped, tag = 'scoped memory for ac_generator_forward.1']
    #allocation4 [shape = 'u8[1024]{0}', space=vmem, size = 0x400, scoped, tag = 'input window, operand 2, single buffered']
    #allocation5 [shape = 's32[1]{0}', space=sflag, size = 0x4, scoped, tag = 'scoped memory for ac_generator_forward.1']
    #allocation6 [shape = 'u8[262144]{0}', space=vmem, size = 0x40000, scoped, tag = 'input window, operand 3, single buffered']
    #allocation7 [shape = 'u8[2048]{0}', space=vmem, size = 0x800, scoped, tag = 'input window, operand 4, single buffered']
    #allocation8 [shape = 's32[1]{0}', space=sflag, size = 0x4, scoped, tag = 'scoped memory for ac_generator_forward.1']
    #allocation9 [shape = 'u8[1048576]{0}', space=vmem, size = 0x100000, scoped, tag = 'input window, operand 5, single buffered']
    #allocation10 [shape = 'u8[4096]{0}', space=vmem, size = 0x1000, scoped, tag = 'input window, operand 6, single buffered']
    #allocation11 [shape = 's32[1]{0}', space=sflag, size = 0x4, scoped, tag = 'scoped memory for ac_generator_forward.1']
    #allocation12 [shape = 'u8[1835008]{0}', space=vmem, size = 0x1c0000, scoped, tag = 'input window, operand 7, single buffered']
    #allocation13 [shape = 'u8[3584]{0}', space=vmem, size = 0x1000, scoped, tag = 'input window, operand 8, single buffered']
    #allocation14 [shape = 's32[1]{0}', space=sflag, size = 0x4, scoped, tag = 'scoped memory for ac_generator_forward.1']
    %14 = vsyncpa [#allocation3], 0
    %15 = vsyncpa [#allocation5], 0
    %16 = vsyncpa [#allocation8], 0
    %17 = vsyncpa [#allocation11], 0
    %18 = vsyncpa [#allocation14], 0
    // Predicated region
    $region2: #{ac_generator_forward.1} parent=1 // pred_check
      _
    $region3: #{ac_generator_forward.1} parent=1 // pred_check_branch
      %20 = sbr.rel (0) target = $region5
    $region4: #{ac_generator_forward.1} parent=1 // pred_region
      _
    $region5: #{ac_generator_forward.1} parent=1 // pred_fallthru
      _
    // Predicated region
    $region6: #{ac_generator_forward.1} parent=1 // pred_check
      _
    $region7: #{ac_generator_forward.1} parent=1 // pred_check_branch
      %22 = sbr.rel (0) target = $region9
    $region8: #{ac_generator_forward.1} parent=1 // pred_region
      %s24 = ssub.s32 4096, 4096
      %25 = vsyncadd [#allocation3], %s24
      %s26 = sshll.u32 [#allocation2], 4
      %s27 = int_to_ptr.vmem [resolvable:$true] %s26
      %32 = dma.hbm_to_vmem [thread:$0]  %s1, 4096, %s27, [#allocation3], 128, 128, 8
    $region9: #{ac_generator_forward.1} parent=1 // pred_fallthru
      _
    // Predicated region
    $region10: #{ac_generator_forward.1} parent=1 // pred_check
      _
    $region11: #{ac_generator_forward.1} parent=1 // pred_check_branch
      %34 = sbr.rel (0) target = $region13
    $region12: #{ac_generator_forward.1} parent=1 // pred_region
      %s36 = ssub.s32 32, 32
      %37 = vsyncadd [#allocation5], %s36
      %s39 = sshll.u32 [#allocation4], 4
      %s40 = int_to_ptr.vmem [resolvable:$true] %s39
      %42 = dma.hbm_to_vmem [thread:$0]  %s2, 32, %s40, [#allocation5]
    $region13: #{ac_generator_forward.1} parent=1 // pred_fallthru
      _
    // Predicated region
    $region14: #{ac_generator_forward.1} parent=1 // pred_check
      _
    $region15: #{ac_generator_forward.1} parent=1 // pred_check_branch
      %44 = sbr.rel (0) target = $region17
    $region16: #{ac_generator_forward.1} parent=1 // pred_region
      %s46 = ssub.s32 8192, 8192
      %47 = vsyncadd [#allocation5], %s46
      %s48 = sshll.u32 [#allocation6], 4
      %s49 = int_to_ptr.vmem [resolvable:$true] %s48
      %54 = dma.hbm_to_vmem [thread:$0]  %s3, 8192, %s49, [#allocation5], 256, 256, 16
    $region17: #{ac_generator_forward.1} parent=1 // pred_fallthru
      _
    // Predicated region
    $region18: #{ac_generator_forward.1} parent=1 // pred_check
      _
    $region19: #{ac_generator_forward.1} parent=1 // pred_check_branch
      %56 = sbr.rel (0) target = $region21
    $region20: #{ac_generator_forward.1} parent=1 // pred_region
      %s58 = ssub.s32 64, 64
      %59 = vsyncadd [#allocation8], %s58
      %s61 = sshll.u32 [#allocation7], 4
      %s62 = int_to_ptr.vmem [resolvable:$true] %s61
      %64 = dma.hbm_to_vmem [thread:$0]  %s4, 64, %s62, [#allocation8]
    $region21: #{ac_generator_forward.1} parent=1 // pred_fallthru
      _
    // Predicated region
    $region22: #{ac_generator_forward.1} parent=1 // pred_check
      _
    $region23: #{ac_generator_forward.1} parent=1 // pred_check_branch
      %66 = sbr.rel (0) target = $region25
    $region24: #{ac_generator_forward.1} parent=1 // pred_region
      %s68 = ssub.s32 32768, 32768
      %69 = vsyncadd [#allocation8], %s68
      %s70 = sshll.u32 [#allocation9], 4
      %s71 = int_to_ptr.vmem [resolvable:$true] %s70
      %76 = dma.hbm_to_vmem [thread:$0]  %s5, 32768, %s71, [#allocation8], 512, 512, 32
    $region25: #{ac_generator_forward.1} parent=1 // pred_fallthru
      _
    // Predicated region
    $region26: #{ac_generator_forward.1} parent=1 // pred_check
      _
    $region27: #{ac_generator_forward.1} parent=1 // pred_check_branch
      %78 = sbr.rel (0) target = $region29
    $region28: #{ac_generator_forward.1} parent=1 // pred_region
      %s80 = ssub.s32 128, 128
      %81 = vsyncadd [#allocation11], %s80
      %s83 = sshll.u32 [#allocation10], 4
      %s84 = int_to_ptr.vmem [resolvable:$true] %s83
      %86 = dma.hbm_to_vmem [thread:$0]  %s6, 128, %s84, [#allocation11]
    $region29: #{ac_generator_forward.1} parent=1 // pred_fallthru
      _
    // Predicated region
    $region30: #{ac_generator_forward.1} parent=1 // pred_check
      _
    $region31: #{ac_generator_forward.1} parent=1 // pred_check_branch
      %88 = sbr.rel (0) target = $region33
    $region32: #{ac_generator_forward.1} parent=1 // pred_region
      %s90 = ssub.s32 57344, 57344
      %91 = vsyncadd [#allocation11], %s90
      %s92 = sshll.u32 [#allocation12], 4
      %s93 = int_to_ptr.vmem [resolvable:$true] %s92
      %98 = dma.hbm_to_vmem [thread:$0]  %s7, 57344, %s93, [#allocation11], 448, 448, 28
    $region33: #{ac_generator_forward.1} parent=1 // pred_fallthru
      _
    // Predicated region
    $region34: #{ac_generator_forward.1} parent=1 // pred_check
      _
    $region35: #{ac_generator_forward.1} parent=1 // pred_check_branch
      %100 = sbr.rel (0) target = $region37
    $region36: #{ac_generator_forward.1} parent=1 // pred_region
      %s102 = ssub.s32 112, 112
      %103 = vsyncadd [#allocation14], %s102
      %s105 = sshll.u32 [#allocation13], 4
      %s106 = int_to_ptr.vmem [resolvable:$true] %s105
      %108 = dma.hbm_to_vmem [thread:$0]  %s8, 112, %s106, [#allocation14]
    $region37: #{ac_generator_forward.1} parent=1 // pred_fallthru
      _
    // Predicated region
    $region38: #{ac_generator_forward.1} parent=1 // pred_check
      _
    $region39: #{ac_generator_forward.1} parent=1 // pred_check_branch
      %110 = sbr.rel (0) target = $region41
    $region40: #{ac_generator_forward.1} parent=1 // pred_region
      %111 = dma.done [#allocation3], 4096
    $region41: #{ac_generator_forward.1} parent=1 // pred_fallthru
      _
    // Predicated region
    $region42: #{ac_generator_forward.1} parent=1 // pred_check
      _
    $region43: #{ac_generator_forward.1} parent=1 // pred_check_branch
      %113 = sbr.rel (0) target = $region45
    $region44: #{ac_generator_forward.1} parent=1 // pred_region
      %114 = dma.done [#allocation5], 32
    $region45: #{ac_generator_forward.1} parent=1 // pred_fallthru
      _
    // Predicated region
    $region46: #{ac_generator_forward.1} parent=1 // pred_check
      _
    $region47: #{ac_generator_forward.1} parent=1 // pred_check_branch
      %116 = sbr.rel (0) target = $region49
    $region48: #{ac_generator_forward.1} parent=1 // pred_region
      %117 = dma.done [#allocation5], 8192
    $region49: #{ac_generator_forward.1} parent=1 // pred_fallthru
      _
    // Predicated region
    $region50: #{ac_generator_forward.1} parent=1 // pred_check
      _
    $region51: #{ac_generator_forward.1} parent=1 // pred_check_branch
      %119 = sbr.rel (0) target = $region53
    $region52: #{ac_generator_forward.1} parent=1 // pred_region
      %120 = dma.done [#allocation8], 64
    $region53: #{ac_generator_forward.1} parent=1 // pred_fallthru
      _
    // Predicated region
    $region54: #{ac_generator_forward.1} parent=1 // pred_check
      _
    $region55: #{ac_generator_forward.1} parent=1 // pred_check_branch
      %122 = sbr.rel (0) target = $region57
    $region56: #{ac_generator_forward.1} parent=1 // pred_region
      %123 = dma.done [#allocation8], 32768
    $region57: #{ac_generator_forward.1} parent=1 // pred_fallthru
      _
    // Predicated region
    $region58: #{ac_generator_forward.1} parent=1 // pred_check
      _
    $region59: #{ac_generator_forward.1} parent=1 // pred_check_branch
      %125 = sbr.rel (0) target = $region61
    $region60: #{ac_generator_forward.1} parent=1 // pred_region
      %126 = dma.done [#allocation11], 128
    $region61: #{ac_generator_forward.1} parent=1 // pred_fallthru
      _
    // Predicated region
    $region62: #{ac_generator_forward.1} parent=1 // pred_check
      _
    $region63: #{ac_generator_forward.1} parent=1 // pred_check_branch
      %128 = sbr.rel (0) target = $region65
    $region64: #{ac_generator_forward.1} parent=1 // pred_region
      %129 = dma.done [#allocation11], 57344
    $region65: #{ac_generator_forward.1} parent=1 // pred_fallthru
      _
    // Predicated region
    $region66: #{ac_generator_forward.1} parent=1 // pred_check
      _
    $region67: #{ac_generator_forward.1} parent=1 // pred_check_branch
      %131 = sbr.rel (0) target = $region69
    $region68: #{ac_generator_forward.1} parent=1 // pred_region
      %132 = dma.done [#allocation14], 112
    $region69: #{ac_generator_forward.1} parent=1 // pred_fallthru
      _
    %v135 = vld [vmem:[%s0] sm:$0xff]
    %v136 = vld [vmem:[%s0 + $0x8] sm:$0xff]
    %v137 = vld [vmem:[#allocation2] sm:$0xff]
    %v138 = vld [vmem:[#allocation2 + $0x8] sm:$0xff]
    %v139 = vld [vmem:[#allocation2 + $0x10] sm:$0xff]
    %v140 = vld [vmem:[#allocation2 + $0x18] sm:$0xff]
    %v141 = vld [vmem:[#allocation2 + $0x20] sm:$0xff]
    %v142 = vld [vmem:[#allocation2 + $0x28] sm:$0xff]
    %v143 = vld [vmem:[#allocation2 + $0x30] sm:$0xff]
    %v144 = vld [vmem:[#allocation2 + $0x38] sm:$0xff]
    %v145 = vld [vmem:[#allocation2 + $0x40] sm:$0xff]
    %v146 = vld [vmem:[#allocation2 + $0x48] sm:$0xff]
    %v147 = vld [vmem:[#allocation2 + $0x50] sm:$0xff]
    %v148 = vld [vmem:[#allocation2 + $0x58] sm:$0xff]
    %v149 = vld [vmem:[#allocation2 + $0x60] sm:$0xff]
    %v150 = vld [vmem:[#allocation2 + $0x68] sm:$0xff]
    %v151 = vld [vmem:[#allocation2 + $0x70] sm:$0xff]
    %v152 = vld [vmem:[#allocation2 + $0x78] sm:$0xff]
    %v153 = vld [vmem:[#allocation2 + $0x80] sm:$0xff]
    %v154 = vld [vmem:[#allocation2 + $0x88] sm:$0xff]
    %v155 = vld [vmem:[#allocation2 + $0x90] sm:$0xff]
    %v156 = vld [vmem:[#allocation2 + $0x98] sm:$0xff]
    %v157 = vld [vmem:[#allocation2 + $0xa0] sm:$0xff]
    %v158 = vld [vmem:[#allocation2 + $0xa8] sm:$0xff]
    %v159 = vld [vmem:[#allocation2 + $0xb0] sm:$0xff]
    %v160 = vld [vmem:[#allocation2 + $0xb8] sm:$0xff]
    %v161 = vld [vmem:[#allocation2 + $0xc0] sm:$0xff]
    %v162 = vld [vmem:[#allocation2 + $0xc8] sm:$0xff]
    %v163 = vld [vmem:[#allocation2 + $0xd0] sm:$0xff]
    %v164 = vld [vmem:[#allocation2 + $0xd8] sm:$0xff]
    %v165 = vld [vmem:[#allocation2 + $0xe0] sm:$0xff]
    %v166 = vld [vmem:[#allocation2 + $0xe8] sm:$0xff]
    %v167 = vld [vmem:[#allocation2 + $0xf0] sm:$0xff]
    %v168 = vld [vmem:[#allocation2 + $0xf8] sm:$0xff]
    %v171 = vunpack.c.l.b16 %v135
    %v172 = vunpack.c.h.b16 %v135
    %v173 = vunpack.c.l.b16 %v136
    %v174 = vunpack.c.h.b16 %v136
    %v175 = vpack.c.b16 %v173, %v171
    %v176 = vpack.c.b16 %v174, %v172
    %v211 = vunpack.c.l.b16 %v137
    %v212 = vunpack.c.h.b16 %v137
    %v213 = vunpack.c.l.b16 %v138
    %v214 = vunpack.c.h.b16 %v138
    %v215 = vunpack.c.l.b16 %v139
    %v216 = vunpack.c.h.b16 %v139
    %v217 = vunpack.c.l.b16 %v140
    %v218 = vunpack.c.h.b16 %v140
    %v219 = vunpack.c.l.b16 %v141
    %v220 = vunpack.c.h.b16 %v141
    %v221 = vunpack.c.l.b16 %v142
    %v222 = vunpack.c.h.b16 %v142
    %v223 = vunpack.c.l.b16 %v143
    %v224 = vunpack.c.h.b16 %v143
    %v225 = vunpack.c.l.b16 %v144
    %v226 = vunpack.c.h.b16 %v144
    %v227 = vunpack.c.l.b16 %v145
    %v228 = vunpack.c.h.b16 %v145
    %v229 = vunpack.c.l.b16 %v146
    %v230 = vunpack.c.h.b16 %v146
    %v231 = vunpack.c.l.b16 %v147
    %v232 = vunpack.c.h.b16 %v147
    %v233 = vunpack.c.l.b16 %v148
    %v234 = vunpack.c.h.b16 %v148
    %v235 = vunpack.c.l.b16 %v149
    %v236 = vunpack.c.h.b16 %v149
    %v237 = vunpack.c.l.b16 %v150
    %v238 = vunpack.c.h.b16 %v150
    %v239 = vunpack.c.l.b16 %v151
    %v240 = vunpack.c.h.b16 %v151
    %v241 = vunpack.c.l.b16 %v152
    %v242 = vunpack.c.h.b16 %v152
    %v243 = vunpack.c.l.b16 %v153
    %v244 = vunpack.c.h.b16 %v153
    %v245 = vunpack.c.l.b16 %v154
    %v246 = vunpack.c.h.b16 %v154
    %v247 = vunpack.c.l.b16 %v155
    %v248 = vunpack.c.h.b16 %v155
    %v249 = vunpack.c.l.b16 %v156
    %v250 = vunpack.c.h.b16 %v156
    %v251 = vunpack.c.l.b16 %v157
    %v252 = vunpack.c.h.b16 %v157
    %v253 = vunpack.c.l.b16 %v158
    %v254 = vunpack.c.h.b16 %v158
    %v255 = vunpack.c.l.b16 %v159
    %v256 = vunpack.c.h.b16 %v159
    %v257 = vunpack.c.l.b16 %v160
    %v258 = vunpack.c.h.b16 %v160
    %v259 = vunpack.c.l.b16 %v161
    %v260 = vunpack.c.h.b16 %v161
    %v261 = vunpack.c.l.b16 %v162
    %v262 = vunpack.c.h.b16 %v162
    %v263 = vunpack.c.l.b16 %v163
    %v264 = vunpack.c.h.b16 %v163
    %v265 = vunpack.c.l.b16 %v164
    %v266 = vunpack.c.h.b16 %v164
    %v267 = vunpack.c.l.b16 %v165
    %v268 = vunpack.c.h.b16 %v165
    %v269 = vunpack.c.l.b16 %v166
    %v270 = vunpack.c.h.b16 %v166
    %v271 = vunpack.c.l.b16 %v167
    %v272 = vunpack.c.h.b16 %v167
    %v273 = vunpack.c.l.b16 %v168
    %v274 = vunpack.c.h.b16 %v168
    %v275 = vpack.c.b16 %v213, %v211
    %v276 = vpack.c.b16 %v214, %v212
    %v277 = vpack.c.b16 %v217, %v215
    %v278 = vpack.c.b16 %v218, %v216
    %v279 = vpack.c.b16 %v221, %v219
    %v280 = vpack.c.b16 %v222, %v220
    %v281 = vpack.c.b16 %v225, %v223
    %v282 = vpack.c.b16 %v226, %v224
    %v283 = vpack.c.b16 %v229, %v227
    %v284 = vpack.c.b16 %v230, %v228
    %v285 = vpack.c.b16 %v233, %v231
    %v286 = vpack.c.b16 %v234, %v232
    %v287 = vpack.c.b16 %v237, %v235
    %v288 = vpack.c.b16 %v238, %v236
    %v289 = vpack.c.b16 %v241, %v239
    %v290 = vpack.c.b16 %v242, %v240
    %v291 = vpack.c.b16 %v245, %v243
    %v292 = vpack.c.b16 %v246, %v244
    %v293 = vpack.c.b16 %v249, %v247
    %v294 = vpack.c.b16 %v250, %v248
    %v295 = vpack.c.b16 %v253, %v251
    %v296 = vpack.c.b16 %v254, %v252
    %v297 = vpack.c.b16 %v257, %v255
    %v298 = vpack.c.b16 %v258, %v256
    %v299 = vpack.c.b16 %v261, %v259
    %v300 = vpack.c.b16 %v262, %v260
    %v301 = vpack.c.b16 %v265, %v263
    %v302 = vpack.c.b16 %v266, %v264
    %v303 = vpack.c.b16 %v269, %v267
    %v304 = vpack.c.b16 %v270, %v268
    %v305 = vpack.c.b16 %v273, %v271
    %v306 = vpack.c.b16 %v274, %v272
    %339 = vmatprep.subr.bf16.mxu0 %v290
    %340 = vmatpush1.bf16.msra.mxu0 %v289
    %341 = vmatprep.subr.bf16.mxu0 %v288
    %342 = vmatpush1.bf16.msra.mxu0 %v287
    %343 = vmatprep.subr.bf16.mxu0 %v286
    %344 = vmatpush1.bf16.msra.mxu0 %v285
    %345 = vmatprep.subr.bf16.mxu0 %v284
    %346 = vmatpush1.bf16.msra.mxu0 %v283
    %347 = vmatprep.subr.bf16.mxu0 %v282
    %348 = vmatpush1.bf16.msra.mxu0 %v281
    %349 = vmatprep.subr.bf16.mxu0 %v280
    %350 = vmatpush1.bf16.msra.mxu0 %v279
    %351 = vmatprep.subr.bf16.mxu0 %v278
    %352 = vmatpush1.bf16.msra.mxu0 %v277
    %353 = vmatprep.subr.bf16.mxu0 %v276
    %354 = vmatpush1.bf16.msra.mxu0 %v275
    %355 = vmatprep.subr.bf16.mxu0 %v306
    %356 = vmatpush2.bf16.msra.mxu0 %v305
    %357 = vmatprep.subr.bf16.mxu0 %v304
    %358 = vmatpush2.bf16.msra.mxu0 %v303
    %359 = vmatprep.subr.bf16.mxu0 %v302
    %360 = vmatpush2.bf16.msra.mxu0 %v301
    %361 = vmatprep.subr.bf16.mxu0 %v300
    %362 = vmatpush2.bf16.msra.mxu0 %v299
    %363 = vmatprep.subr.bf16.mxu0 %v298
    %364 = vmatpush2.bf16.msra.mxu0 %v297
    %365 = vmatprep.subr.bf16.mxu0 %v296
    %366 = vmatpush2.bf16.msra.mxu0 %v295
    %367 = vmatprep.subr.bf16.mxu0 %v294
    %368 = vmatpush2.bf16.msra.mxu0 %v293
    %369 = vmatprep.subr.bf16.mxu0 %v292
    %370 = vmatpush2.bf16.msra.mxu0 %v291
    %371 = vmatprep.mubr.bf16.mxu0 %v176
    %372 = vmatmul.mubr.bf16.gmra.mxu0 %v175
    %v373 = vpop.f32.mrf.mxu0
    %v374 = vadd.f32 0.0, %v373
    %v375 = vpop.f32.mrf.mxu0
    %v376 = vadd.f32 0.0, %v375
    %v377 = vpop.f32.mrf.mxu0
    %v378 = vadd.f32 0.0, %v377
    %v379 = vpop.f32.mrf.mxu0
    %v380 = vadd.f32 0.0, %v379
    %381 = vdwg.mxu0
    %v382 = vpack.c.bf16 %v378, %v374
    %v383 = vpack.c.bf16 %v380, %v376
    %v384 = vld [vmem:[#allocation4] sm:$0x3]
    %v387 = vunpack.c.l.s4 1966171168
    %v388 = vunpack.c.0.s8 %v387
    %v389 = vlaneseq
    %v390 = vshrl.u32 %v389, 7
    %v391 = vsub.s32 %v388, %v390
    %v392 = vrot.slane %v384, %v391
    %v393 = vcombine.high %v392, %v392
    %v395 = vunpack.c.l.s4 1966171168
    %v396 = vunpack.c.0.s8 %v395
    %v397 = vlaneseq
    %v398 = vshrl.u32 %v397, 7
    %v399 = vsub.s32 %v396, %v398
    %v400 = vrot.slane %v392, %v399
    %v402 = vunpack.c.l.s4 1966171168
    %v403 = vunpack.c.0.s8 %v402
    %v404 = vlaneseq
    %v405 = vshrl.u32 %v404, 7
    %v406 = vsub.s32 %v403, %v405
    %v407 = vrot.slane %v393, %v406
    %v409 = vpack.i.b16 %v400, %v400
    %v411 = vlaneseq
    %v412 = vshrl.u32 %v411, 7
    %v413 = vsub.s32 0, %v412
    %v414 = vrot.slane %v409, %v413
    %v416 = vpack.i.b16 %v407, %v407
    %v418 = vlaneseq
    %v419 = vshrl.u32 %v418, 7
    %v420 = vsub.s32 0, %v419
    %v421 = vrot.slane %v416, %v420
    %v422 = vadd.bf16 %v382, %v414
    %v423 = vadd.bf16 %v383, %v421
    %vm424 = vcmp.gt.bf16.partialorder %v422, 0
    %vm425 = vcmp.gt.bf16.partialorder %v423, 0
    %v426 = vmul.bf16 %v422, 1045249613
    %v427 = vmul.bf16 %v423, 1045249613
    %v428 = vsel %vm424, %v422, %v426
    %v429 = vsel %vm425, %v423, %v427
    %v430 = vld [vmem:[#allocation6] sm:$0xff]
    %v431 = vld [vmem:[#allocation6 + $0x8] sm:$0xff]
    %v432 = vld [vmem:[#allocation6 + $0x10] sm:$0xff]
    %v433 = vld [vmem:[#allocation6 + $0x18] sm:$0xff]
    %v434 = vld [vmem:[#allocation6 + $0x20] sm:$0xff]
    %v435 = vld [vmem:[#allocation6 + $0x28] sm:$0xff]
    %v436 = vld [vmem:[#allocation6 + $0x30] sm:$0xff]
    %v437 = vld [vmem:[#allocation6 + $0x38] sm:$0xff]
    %v438 = vld [vmem:[#allocation6 + $0x40] sm:$0xff]
    %v439 = vld [vmem:[#allocation6 + $0x48] sm:$0xff]
    %v440 = vld [vmem:[#allocation6 + $0x50] sm:$0xff]
    %v441 = vld [vmem:[#allocation6 + $0x58] sm:$0xff]
    %v442 = vld [vmem:[#allocation6 + $0x60] sm:$0xff]
    %v443 = vld [vmem:[#allocation6 + $0x68] sm:$0xff]
    %v444 = vld [vmem:[#allocation6 + $0x70] sm:$0xff]
    %v445 = vld [vmem:[#allocation6 + $0x78] sm:$0xff]
    %v446 = vld [vmem:[#allocation6 + $0x80] sm:$0xff]
    %v447 = vld [vmem:[#allocation6 + $0x88] sm:$0xff]
    %v448 = vld [vmem:[#allocation6 + $0x90] sm:$0xff]
    %v449 = vld [vmem:[#allocation6 + $0x98] sm:$0xff]
    %v450 = vld [vmem:[#allocation6 + $0xa0] sm:$0xff]
    %v451 = vld [vmem:[#allocation6 + $0xa8] sm:$0xff]
    %v452 = vld [vmem:[#allocation6 + $0xb0] sm:$0xff]
    %v453 = vld [vmem:[#allocation6 + $0xb8] sm:$0xff]
    %v454 = vld [vmem:[#allocation6 + $0xc0] sm:$0xff]
    %v455 = vld [vmem:[#allocation6 + $0xc8] sm:$0xff]
    %v456 = vld [vmem:[#allocation6 + $0xd0] sm:$0xff]
    %v457 = vld [vmem:[#allocation6 + $0xd8] sm:$0xff]
    %v458 = vld [vmem:[#allocation6 + $0xe0] sm:$0xff]
    %v459 = vld [vmem:[#allocation6 + $0xe8] sm:$0xff]
    %v460 = vld [vmem:[#allocation6 + $0xf0] sm:$0xff]
    %v461 = vld [vmem:[#allocation6 + $0xf8] sm:$0xff]
    %v462 = vld [vmem:[#allocation6 + $0x100] sm:$0xff]
    %v463 = vld [vmem:[#allocation6 + $0x108] sm:$0xff]
    %v464 = vld [vmem:[#allocation6 + $0x110] sm:$0xff]
    %v465 = vld [vmem:[#allocation6 + $0x118] sm:$0xff]
    %v466 = vld [vmem:[#allocation6 + $0x120] sm:$0xff]
    %v467 = vld [vmem:[#allocation6 + $0x128] sm:$0xff]
    %v468 = vld [vmem:[#allocation6 + $0x130] sm:$0xff]
    %v469 = vld [vmem:[#allocation6 + $0x138] sm:$0xff]
    %v470 = vld [vmem:[#allocation6 + $0x140] sm:$0xff]
    %v471 = vld [vmem:[#allocation6 + $0x148] sm:$0xff]
    %v472 = vld [vmem:[#allocation6 + $0x150] sm:$0xff]
    %v473 = vld [vmem:[#allocation6 + $0x158] sm:$0xff]
    %v474 = vld [vmem:[#allocation6 + $0x160] sm:$0xff]
    %v475 = vld [vmem:[#allocation6 + $0x168] sm:$0xff]
    %v476 = vld [vmem:[#allocation6 + $0x170] sm:$0xff]
    %v477 = vld [vmem:[#allocation6 + $0x178] sm:$0xff]
    %v478 = vld [vmem:[#allocation6 + $0x180] sm:$0xff]
    %v479 = vld [vmem:[#allocation6 + $0x188] sm:$0xff]
    %v480 = vld [vmem:[#allocation6 + $0x190] sm:$0xff]
    %v481 = vld [vmem:[#allocation6 + $0x198] sm:$0xff]
    %v482 = vld [vmem:[#allocation6 + $0x1a0] sm:$0xff]
    %v483 = vld [vmem:[#allocation6 + $0x1a8] sm:$0xff]
    %v484 = vld [vmem:[#allocation6 + $0x1b0] sm:$0xff]
    %v485 = vld [vmem:[#allocation6 + $0x1b8] sm:$0xff]
    %v486 = vld [vmem:[#allocation6 + $0x1c0] sm:$0xff]
    %v487 = vld [vmem:[#allocation6 + $0x1c8] sm:$0xff]
    %v488 = vld [vmem:[#allocation6 + $0x1d0] sm:$0xff]
    %v489 = vld [vmem:[#allocation6 + $0x1d8] sm:$0xff]
    %v490 = vld [vmem:[#allocation6 + $0x1e0] sm:$0xff]
    %v491 = vld [vmem:[#allocation6 + $0x1e8] sm:$0xff]
    %v492 = vld [vmem:[#allocation6 + $0x1f0] sm:$0xff]
    %v493 = vld [vmem:[#allocation6 + $0x1f8] sm:$0xff]
    %v558 = vunpack.c.l.b16 %v430
    %v559 = vunpack.c.h.b16 %v430
    %v560 = vunpack.c.l.b16 %v431
    %v561 = vunpack.c.h.b16 %v431
    %v562 = vunpack.c.l.b16 %v432
    %v563 = vunpack.c.h.b16 %v432
    %v564 = vunpack.c.l.b16 %v433
    %v565 = vunpack.c.h.b16 %v433
    %v566 = vunpack.c.l.b16 %v434
    %v567 = vunpack.c.h.b16 %v434
    %v568 = vunpack.c.l.b16 %v435
    %v569 = vunpack.c.h.b16 %v435
    %v570 = vunpack.c.l.b16 %v436
    %v571 = vunpack.c.h.b16 %v436
    %v572 = vunpack.c.l.b16 %v437
    %v573 = vunpack.c.h.b16 %v437
    %v574 = vunpack.c.l.b16 %v438
    %v575 = vunpack.c.h.b16 %v438
    %v576 = vunpack.c.l.b16 %v439
    %v577 = vunpack.c.h.b16 %v439
    %v578 = vunpack.c.l.b16 %v440
    %v579 = vunpack.c.h.b16 %v440
    %v580 = vunpack.c.l.b16 %v441
    %v581 = vunpack.c.h.b16 %v441
    %v582 = vunpack.c.l.b16 %v442
    %v583 = vunpack.c.h.b16 %v442
    %v584 = vunpack.c.l.b16 %v443
    %v585 = vunpack.c.h.b16 %v443
    %v586 = vunpack.c.l.b16 %v444
    %v587 = vunpack.c.h.b16 %v444
    %v588 = vunpack.c.l.b16 %v445
    %v589 = vunpack.c.h.b16 %v445
    %v590 = vunpack.c.l.b16 %v446
    %v591 = vunpack.c.h.b16 %v446
    %v592 = vunpack.c.l.b16 %v447
    %v593 = vunpack.c.h.b16 %v447
    %v594 = vunpack.c.l.b16 %v448
    %v595 = vunpack.c.h.b16 %v448
    %v596 = vunpack.c.l.b16 %v449
    %v597 = vunpack.c.h.b16 %v449
    %v598 = vunpack.c.l.b16 %v450
    %v599 = vunpack.c.h.b16 %v450
    %v600 = vunpack.c.l.b16 %v451
    %v601 = vunpack.c.h.b16 %v451
    %v602 = vunpack.c.l.b16 %v452
    %v603 = vunpack.c.h.b16 %v452
    %v604 = vunpack.c.l.b16 %v453
    %v605 = vunpack.c.h.b16 %v453
    %v606 = vunpack.c.l.b16 %v454
    %v607 = vunpack.c.h.b16 %v454
    %v608 = vunpack.c.l.b16 %v455
    %v609 = vunpack.c.h.b16 %v455
    %v610 = vunpack.c.l.b16 %v456
    %v611 = vunpack.c.h.b16 %v456
    %v612 = vunpack.c.l.b16 %v457
    %v613 = vunpack.c.h.b16 %v457
    %v614 = vunpack.c.l.b16 %v458
    %v615 = vunpack.c.h.b16 %v458
    %v616 = vunpack.c.l.b16 %v459
    %v617 = vunpack.c.h.b16 %v459
    %v618 = vunpack.c.l.b16 %v460
    %v619 = vunpack.c.h.b16 %v460
    %v620 = vunpack.c.l.b16 %v461
    %v621 = vunpack.c.h.b16 %v461
    %v622 = vunpack.c.l.b16 %v462
    %v623 = vunpack.c.h.b16 %v462
    %v624 = vunpack.c.l.b16 %v463
    %v625 = vunpack.c.h.b16 %v463
    %v626 = vunpack.c.l.b16 %v464
    %v627 = vunpack.c.h.b16 %v464
    %v628 = vunpack.c.l.b16 %v465
    %v629 = vunpack.c.h.b16 %v465
    %v630 = vunpack.c.l.b16 %v466
    %v631 = vunpack.c.h.b16 %v466
    %v632 = vunpack.c.l.b16 %v467
    %v633 = vunpack.c.h.b16 %v467
    %v634 = vunpack.c.l.b16 %v468
    %v635 = vunpack.c.h.b16 %v468
    %v636 = vunpack.c.l.b16 %v469
    %v637 = vunpack.c.h.b16 %v469
    %v638 = vunpack.c.l.b16 %v470
    %v639 = vunpack.c.h.b16 %v470
    %v640 = vunpack.c.l.b16 %v471
    %v641 = vunpack.c.h.b16 %v471
    %v642 = vunpack.c.l.b16 %v472
    %v643 = vunpack.c.h.b16 %v472
    %v644 = vunpack.c.l.b16 %v473
    %v645 = vunpack.c.h.b16 %v473
    %v646 = vunpack.c.l.b16 %v474
    %v647 = vunpack.c.h.b16 %v474
    %v648 = vunpack.c.l.b16 %v475
    %v649 = vunpack.c.h.b16 %v475
    %v650 = vunpack.c.l.b16 %v476
    %v651 = vunpack.c.h.b16 %v476
    %v652 = vunpack.c.l.b16 %v477
    %v653 = vunpack.c.h.b16 %v477
    %v654 = vunpack.c.l.b16 %v478
    %v655 = vunpack.c.h.b16 %v478
    %v656 = vunpack.c.l.b16 %v479
    %v657 = vunpack.c.h.b16 %v479
    %v658 = vunpack.c.l.b16 %v480
    %v659 = vunpack.c.h.b16 %v480
    %v660 = vunpack.c.l.b16 %v481
    %v661 = vunpack.c.h.b16 %v481
    %v662 = vunpack.c.l.b16 %v482
    %v663 = vunpack.c.h.b16 %v482
    %v664 = vunpack.c.l.b16 %v483
    %v665 = vunpack.c.h.b16 %v483
    %v666 = vunpack.c.l.b16 %v484
    %v667 = vunpack.c.h.b16 %v484
    %v668 = vunpack.c.l.b16 %v485
    %v669 = vunpack.c.h.b16 %v485
    %v670 = vunpack.c.l.b16 %v486
    %v671 = vunpack.c.h.b16 %v486
    %v672 = vunpack.c.l.b16 %v487
    %v673 = vunpack.c.h.b16 %v487
    %v674 = vunpack.c.l.b16 %v488
    %v675 = vunpack.c.h.b16 %v488
    %v676 = vunpack.c.l.b16 %v489
    %v677 = vunpack.c.h.b16 %v489
    %v678 = vunpack.c.l.b16 %v490
    %v679 = vunpack.c.h.b16 %v490
    %v680 = vunpack.c.l.b16 %v491
    %v681 = vunpack.c.h.b16 %v491
    %v682 = vunpack.c.l.b16 %v492
    %v683 = vunpack.c.h.b16 %v492
    %v684 = vunpack.c.l.b16 %v493
    %v685 = vunpack.c.h.b16 %v493
    %v686 = vpack.c.b16 %v562, %v558
    %v687 = vpack.c.b16 %v563, %v559
    %v688 = vpack.c.b16 %v564, %v560
    %v689 = vpack.c.b16 %v565, %v561
    %v690 = vpack.c.b16 %v570, %v566
    %v691 = vpack.c.b16 %v571, %v567
    %v692 = vpack.c.b16 %v572, %v568
    %v693 = vpack.c.b16 %v573, %v569
    %v694 = vpack.c.b16 %v578, %v574
    %v695 = vpack.c.b16 %v579, %v575
    %v696 = vpack.c.b16 %v580, %v576
    %v697 = vpack.c.b16 %v581, %v577
    %v698 = vpack.c.b16 %v586, %v582
    %v699 = vpack.c.b16 %v587, %v583
    %v700 = vpack.c.b16 %v588, %v584
    %v701 = vpack.c.b16 %v589, %v585
    %v702 = vpack.c.b16 %v594, %v590
    %v703 = vpack.c.b16 %v595, %v591
    %v704 = vpack.c.b16 %v596, %v592
    %v705 = vpack.c.b16 %v597, %v593
    %v706 = vpack.c.b16 %v602, %v598
    %v707 = vpack.c.b16 %v603, %v599
    %v708 = vpack.c.b16 %v604, %v600
    %v709 = vpack.c.b16 %v605, %v601
    %v710 = vpack.c.b16 %v610, %v606
    %v711 = vpack.c.b16 %v611, %v607
    %v712 = vpack.c.b16 %v612, %v608
    %v713 = vpack.c.b16 %v613, %v609
    %v714 = vpack.c.b16 %v618, %v614
    %v715 = vpack.c.b16 %v619, %v615
    %v716 = vpack.c.b16 %v620, %v616
    %v717 = vpack.c.b16 %v621, %v617
    %v718 = vpack.c.b16 %v626, %v622
    %v719 = vpack.c.b16 %v627, %v623
    %v720 = vpack.c.b16 %v628, %v624
    %v721 = vpack.c.b16 %v629, %v625
    %v722 = vpack.c.b16 %v634, %v630
    %v723 = vpack.c.b16 %v635, %v631
    %v724 = vpack.c.b16 %v636, %v632
    %v725 = vpack.c.b16 %v637, %v633
    %v726 = vpack.c.b16 %v642, %v638
    %v727 = vpack.c.b16 %v643, %v639
    %v728 = vpack.c.b16 %v644, %v640
    %v729 = vpack.c.b16 %v645, %v641
    %v730 = vpack.c.b16 %v650, %v646
    %v731 = vpack.c.b16 %v651, %v647
    %v732 = vpack.c.b16 %v652, %v648
    %v733 = vpack.c.b16 %v653, %v649
    %v734 = vpack.c.b16 %v658, %v654
    %v735 = vpack.c.b16 %v659, %v655
    %v736 = vpack.c.b16 %v660, %v656
    %v737 = vpack.c.b16 %v661, %v657
    %v738 = vpack.c.b16 %v666, %v662
    %v739 = vpack.c.b16 %v667, %v663
    %v740 = vpack.c.b16 %v668, %v664
    %v741 = vpack.c.b16 %v669, %v665
    %v742 = vpack.c.b16 %v674, %v670
    %v743 = vpack.c.b16 %v675, %v671
    %v744 = vpack.c.b16 %v676, %v672
    %v745 = vpack.c.b16 %v677, %v673
    %v746 = vpack.c.b16 %v682, %v678
    %v747 = vpack.c.b16 %v683, %v679
    %v748 = vpack.c.b16 %v684, %v680
    %v749 = vpack.c.b16 %v685, %v681
    %814 = vmatprep.subr.bf16.mxu0 %v715
    %815 = vmatpush1.bf16.msra.mxu0 %v714
    %816 = vmatprep.subr.bf16.mxu0 %v711
    %817 = vmatpush1.bf16.msra.mxu0 %v710
    %818 = vmatprep.subr.bf16.mxu0 %v707
    %819 = vmatpush1.bf16.msra.mxu0 %v706
    %820 = vmatprep.subr.bf16.mxu0 %v703
    %821 = vmatpush1.bf16.msra.mxu0 %v702
    %822 = vmatprep.subr.bf16.mxu0 %v699
    %823 = vmatpush1.bf16.msra.mxu0 %v698
    %824 = vmatprep.subr.bf16.mxu0 %v695
    %825 = vmatpush1.bf16.msra.mxu0 %v694
    %826 = vmatprep.subr.bf16.mxu0 %v691
    %827 = vmatpush1.bf16.msra.mxu0 %v690
    %828 = vmatprep.subr.bf16.mxu0 %v687
    %829 = vmatpush1.bf16.msra.mxu0 %v686
    %830 = vmatprep.subr.bf16.mxu0 %v747
    %831 = vmatpush2.bf16.msra.mxu0 %v746
    %832 = vmatprep.subr.bf16.mxu0 %v743
    %833 = vmatpush2.bf16.msra.mxu0 %v742
    %834 = vmatprep.subr.bf16.mxu0 %v739
    %835 = vmatpush2.bf16.msra.mxu0 %v738
    %836 = vmatprep.subr.bf16.mxu0 %v735
    %837 = vmatpush2.bf16.msra.mxu0 %v734
    %838 = vmatprep.subr.bf16.mxu0 %v731
    %839 = vmatpush2.bf16.msra.mxu0 %v730
    %840 = vmatprep.subr.bf16.mxu0 %v727
    %841 = vmatpush2.bf16.msra.mxu0 %v726
    %842 = vmatprep.subr.bf16.mxu0 %v723
    %843 = vmatpush2.bf16.msra.mxu0 %v722
    %844 = vmatprep.subr.bf16.mxu0 %v719
    %845 = vmatpush2.bf16.msra.mxu0 %v718
    %846 = vmatprep.mubr.bf16.mxu0 %v429
    %847 = vmatmul.mubr.bf16.gmra.mxu0 %v428
    %v848 = vpop.f32.mrf.mxu0
    %v849 = vadd.f32 0.0, %v848
    %v850 = vpop.f32.mrf.mxu0
    %v851 = vadd.f32 0.0, %v850
    %v852 = vpop.f32.mrf.mxu0
    %v853 = vadd.f32 0.0, %v852
    %v854 = vpop.f32.mrf.mxu0
    %v855 = vadd.f32 0.0, %v854
    %856 = vdwg.mxu0
    %857 = vmatprep.subr.bf16.mxu0 %v717
    %858 = vmatpush1.bf16.msra.mxu0 %v716
    %859 = vmatprep.subr.bf16.mxu0 %v713
    %860 = vmatpush1.bf16.msra.mxu0 %v712
    %861 = vmatprep.subr.bf16.mxu0 %v709
    %862 = vmatpush1.bf16.msra.mxu0 %v708
    %863 = vmatprep.subr.bf16.mxu0 %v705
    %864 = vmatpush1.bf16.msra.mxu0 %v704
    %865 = vmatprep.subr.bf16.mxu0 %v701
    %866 = vmatpush1.bf16.msra.mxu0 %v700
    %867 = vmatprep.subr.bf16.mxu0 %v697
    %868 = vmatpush1.bf16.msra.mxu0 %v696
    %869 = vmatprep.subr.bf16.mxu0 %v693
    %870 = vmatpush1.bf16.msra.mxu0 %v692
    %871 = vmatprep.subr.bf16.mxu0 %v689
    %872 = vmatpush1.bf16.msra.mxu0 %v688
    %873 = vmatprep.subr.bf16.mxu0 %v749
    %874 = vmatpush2.bf16.msra.mxu0 %v748
    %875 = vmatprep.subr.bf16.mxu0 %v745
    %876 = vmatpush2.bf16.msra.mxu0 %v744
    %877 = vmatprep.subr.bf16.mxu0 %v741
    %878 = vmatpush2.bf16.msra.mxu0 %v740
    %879 = vmatprep.subr.bf16.mxu0 %v737
    %880 = vmatpush2.bf16.msra.mxu0 %v736
    %881 = vmatprep.subr.bf16.mxu0 %v733
    %882 = vmatpush2.bf16.msra.mxu0 %v732
    %883 = vmatprep.subr.bf16.mxu0 %v729
    %884 = vmatpush2.bf16.msra.mxu0 %v728
    %885 = vmatprep.subr.bf16.mxu0 %v725
    %886 = vmatpush2.bf16.msra.mxu0 %v724
    %887 = vmatprep.subr.bf16.mxu0 %v721
    %888 = vmatpush2.bf16.msra.mxu0 %v720
    %889 = vmatprep.mubr.bf16.mxu0 %v429
    %890 = vmatmul.mubr.bf16.gmra.mxu0 %v428
    %v891 = vpop.f32.mrf.mxu0
    %v892 = vadd.f32 0.0, %v891
    %v893 = vpop.f32.mrf.mxu0
    %v894 = vadd.f32 0.0, %v893
    %v895 = vpop.f32.mrf.mxu0
    %v896 = vadd.f32 0.0, %v895
    %v897 = vpop.f32.mrf.mxu0
    %v898 = vadd.f32 0.0, %v897
    %899 = vdwg.mxu0
    %v900 = vpack.c.bf16 %v853, %v849
    %v901 = vpack.c.bf16 %v855, %v851
    %v902 = vpack.c.bf16 %v896, %v892
    %v903 = vpack.c.bf16 %v898, %v894
    %v904 = vld [vmem:[#allocation7] sm:$0xf]
    %v907 = vunpack.c.l.s4 1966171168
    %v908 = vunpack.c.0.s8 %v907
    %v909 = vlaneseq
    %v910 = vshrl.u32 %v909, 7
    %v911 = vsub.s32 %v908, %v910
    %v912 = vrot.slane %v904, %v911
    %v913 = vcombine.high %v912, %v912
    %v915 = vunpack.c.l.s4 1966171168
    %v916 = vunpack.c.0.s8 %v915
    %v917 = vlaneseq
    %v918 = vshrl.u32 %v917, 7
    %v919 = vsub.s32 %v916, %v918
    %v920 = vrot.slane %v912, %v919
    %v922 = vunpack.c.l.s4 1966171168
    %v923 = vunpack.c.0.s8 %v922
    %v924 = vlaneseq
    %v925 = vshrl.u32 %v924, 7
    %v926 = vsub.s32 %v923, %v925
    %v927 = vrot.slane %v913, %v926
    %v928 = vcombine.high %v920, %v920
    %v929 = vcombine.high %v927, %v927
    %v931 = vpack.i.b16 %v920, %v920
    %v933 = vlaneseq
    %v934 = vshrl.u32 %v933, 7
    %v935 = vsub.s32 0, %v934
    %v936 = vrot.slane %v931, %v935
    %v938 = vpack.i.b16 %v927, %v927
    %v940 = vlaneseq
    %v941 = vshrl.u32 %v940, 7
    %v942 = vsub.s32 0, %v941
    %v943 = vrot.slane %v938, %v942
    %v945 = vpack.i.b16 %v928, %v928
    %v947 = vlaneseq
    %v948 = vshrl.u32 %v947, 7
    %v949 = vsub.s32 0, %v948
    %v950 = vrot.slane %v945, %v949
    %v952 = vpack.i.b16 %v929, %v929
    %v954 = vlaneseq
    %v955 = vshrl.u32 %v954, 7
    %v956 = vsub.s32 0, %v955
    %v957 = vrot.slane %v952, %v956
    %v958 = vadd.bf16 %v900, %v936
    %v959 = vadd.bf16 %v901, %v943
    %v960 = vadd.bf16 %v902, %v950
    %v961 = vadd.bf16 %v903, %v957
    %vm962 = vcmp.gt.bf16.partialorder %v958, 0
    %vm963 = vcmp.gt.bf16.partialorder %v959, 0
    %vm964 = vcmp.gt.bf16.partialorder %v960, 0
    %vm965 = vcmp.gt.bf16.partialorder %v961, 0
    %v966 = vmul.bf16 %v958, 1045249613
    %v967 = vmul.bf16 %v959, 1045249613
    %v968 = vmul.bf16 %v960, 1045249613
    %v969 = vmul.bf16 %v961, 1045249613
    %v970 = vsel %vm962, %v958, %v966
    %v971 = vsel %vm963, %v959, %v967
    %v972 = vsel %vm964, %v960, %v968
    %v973 = vsel %vm965, %v961, %v969
    %v974 = vld [vmem:[#allocation9] sm:$0xff]
    %v975 = vld [vmem:[#allocation9 + $0x8] sm:$0xff]
    %v976 = vld [vmem:[#allocation9 + $0x10] sm:$0xff]
    %v977 = vld [vmem:[#allocation9 + $0x18] sm:$0xff]
    %v978 = vld [vmem:[#allocation9 + $0x20] sm:$0xff]
    %v979 = vld [vmem:[#allocation9 + $0x28] sm:$0xff]
    %v980 = vld [vmem:[#allocation9 + $0x30] sm:$0xff]
    %v981 = vld [vmem:[#allocation9 + $0x38] sm:$0xff]
    %v982 = vld [vmem:[#allocation9 + $0x40] sm:$0xff]
    %v983 = vld [vmem:[#allocation9 + $0x48] sm:$0xff]
    %v984 = vld [vmem:[#allocation9 + $0x50] sm:$0xff]
    %v985 = vld [vmem:[#allocation9 + $0x58] sm:$0xff]
    %v986 = vld [vmem:[#allocation9 + $0x60] sm:$0xff]
    %v987 = vld [vmem:[#allocation9 + $0x68] sm:$0xff]
    %v988 = vld [vmem:[#allocation9 + $0x70] sm:$0xff]
    %v989 = vld [vmem:[#allocation9 + $0x78] sm:$0xff]
    %v990 = vld [vmem:[#allocation9 + $0x80] sm:$0xff]
    %v991 = vld [vmem:[#allocation9 + $0x88] sm:$0xff]
    %v992 = vld [vmem:[#allocation9 + $0x90] sm:$0xff]
    %v993 = vld [vmem:[#allocation9 + $0x98] sm:$0xff]
    %v994 = vld [vmem:[#allocation9 + $0xa0] sm:$0xff]
    %v995 = vld [vmem:[#allocation9 + $0xa8] sm:$0xff]
    %v996 = vld [vmem:[#allocation9 + $0xb0] sm:$0xff]
    %v997 = vld [vmem:[#allocation9 + $0xb8] sm:$0xff]
    %v998 = vld [vmem:[#allocation9 + $0xc0] sm:$0xff]
    %v999 = vld [vmem:[#allocation9 + $0xc8] sm:$0xff]
    %v1000 = vld [vmem:[#allocation9 + $0xd0] sm:$0xff]
    %v1001 = vld [vmem:[#allocation9 + $0xd8] sm:$0xff]
    %v1002 = vld [vmem:[#allocation9 + $0xe0] sm:$0xff]
    %v1003 = vld [vmem:[#allocation9 + $0xe8] sm:$0xff]
    %v1004 = vld [vmem:[#allocation9 + $0xf0] sm:$0xff]
    %v1005 = vld [vmem:[#allocation9 + $0xf8] sm:$0xff]
    %v1006 = vld [vmem:[#allocation9 + $0x100] sm:$0xff]
    %v1007 = vld [vmem:[#allocation9 + $0x108] sm:$0xff]
    %v1008 = vld [vmem:[#allocation9 + $0x110] sm:$0xff]
    %v1009 = vld [vmem:[#allocation9 + $0x118] sm:$0xff]
    %v1010 = vld [vmem:[#allocation9 + $0x120] sm:$0xff]
    %v1011 = vld [vmem:[#allocation9 + $0x128] sm:$0xff]
    %v1012 = vld [vmem:[#allocation9 + $0x130] sm:$0xff]
    %v1013 = vld [vmem:[#allocation9 + $0x138] sm:$0xff]
    %v1014 = vld [vmem:[#allocation9 + $0x140] sm:$0xff]
    %v1015 = vld [vmem:[#allocation9 + $0x148] sm:$0xff]
    %v1016 = vld [vmem:[#allocation9 + $0x150] sm:$0xff]
    %v1017 = vld [vmem:[#allocation9 + $0x158] sm:$0xff]
    %v1018 = vld [vmem:[#allocation9 + $0x160] sm:$0xff]
    %v1019 = vld [vmem:[#allocation9 + $0x168] sm:$0xff]
    %v1020 = vld [vmem:[#allocation9 + $0x170] sm:$0xff]
    %v1021 = vld [vmem:[#allocation9 + $0x178] sm:$0xff]
    %v1022 = vld [vmem:[#allocation9 + $0x180] sm:$0xff]
    %v1023 = vld [vmem:[#allocation9 + $0x188] sm:$0xff]
    %v1024 = vld [vmem:[#allocation9 + $0x190] sm:$0xff]
    %v1025 = vld [vmem:[#allocation9 + $0x198] sm:$0xff]
    %v1026 = vld [vmem:[#allocation9 + $0x1a0] sm:$0xff]
    %v1027 = vld [vmem:[#allocation9 + $0x1a8] sm:$0xff]
    %v1028 = vld [vmem:[#allocation9 + $0x1b0] sm:$0xff]
    %v1029 = vld [vmem:[#allocation9 + $0x1b8] sm:$0xff]
    %v1030 = vld [vmem:[#allocation9 + $0x1c0] sm:$0xff]
    %v1031 = vld [vmem:[#allocation9 + $0x1c8] sm:$0xff]
    %v1032 = vld [vmem:[#allocation9 + $0x1d0] sm:$0xff]
    %v1033 = vld [vmem:[#allocation9 + $0x1d8] sm:$0xff]
    %v1034 = vld [vmem:[#allocation9 + $0x1e0] sm:$0xff]
    %v1035 = vld [vmem:[#allocation9 + $0x1e8] sm:$0xff]
    %v1036 = vld [vmem:[#allocation9 + $0x1f0] sm:$0xff]
    %v1037 = vld [vmem:[#allocation9 + $0x1f8] sm:$0xff]
    %v1038 = vld [vmem:[#allocation9 + $0x200] sm:$0xff]
    %v1039 = vld [vmem:[#allocation9 + $0x208] sm:$0xff]
    %v1040 = vld [vmem:[#allocation9 + $0x210] sm:$0xff]
    %v1041 = vld [vmem:[#allocation9 + $0x218] sm:$0xff]
    %v1042 = vld [vmem:[#allocation9 + $0x220] sm:$0xff]
    %v1043 = vld [vmem:[#allocation9 + $0x228] sm:$0xff]
    %v1044 = vld [vmem:[#allocation9 + $0x230] sm:$0xff]
    %v1045 = vld [vmem:[#allocation9 + $0x238] sm:$0xff]
    %v1046 = vld [vmem:[#allocation9 + $0x240] sm:$0xff]
    %v1047 = vld [vmem:[#allocation9 + $0x248] sm:$0xff]
    %v1048 = vld [vmem:[#allocation9 + $0x250] sm:$0xff]
    %v1049 = vld [vmem:[#allocation9 + $0x258] sm:$0xff]
    %v1050 = vld [vmem:[#allocation9 + $0x260] sm:$0xff]
    %v1051 = vld [vmem:[#allocation9 + $0x268] sm:$0xff]
    %v1052 = vld [vmem:[#allocation9 + $0x270] sm:$0xff]
    %v1053 = vld [vmem:[#allocation9 + $0x278] sm:$0xff]
    %v1054 = vld [vmem:[#allocation9 + $0x280] sm:$0xff]
    %v1055 = vld [vmem:[#allocation9 + $0x288] sm:$0xff]
    %v1056 = vld [vmem:[#allocation9 + $0x290] sm:$0xff]
    %v1057 = vld [vmem:[#allocation9 + $0x298] sm:$0xff]
    %v1058 = vld [vmem:[#allocation9 + $0x2a0] sm:$0xff]
    %v1059 = vld [vmem:[#allocation9 + $0x2a8] sm:$0xff]
    %v1060 = vld [vmem:[#allocation9 + $0x2b0] sm:$0xff]
    %v1061 = vld [vmem:[#allocation9 + $0x2b8] sm:$0xff]
    %v1062 = vld [vmem:[#allocation9 + $0x2c0] sm:$0xff]
    %v1063 = vld [vmem:[#allocation9 + $0x2c8] sm:$0xff]
    %v1064 = vld [vmem:[#allocation9 + $0x2d0] sm:$0xff]
    %v1065 = vld [vmem:[#allocation9 + $0x2d8] sm:$0xff]
    %v1066 = vld [vmem:[#allocation9 + $0x2e0] sm:$0xff]
    %v1067 = vld [vmem:[#allocation9 + $0x2e8] sm:$0xff]
    %v1068 = vld [vmem:[#allocation9 + $0x2f0] sm:$0xff]
    %v1069 = vld [vmem:[#allocation9 + $0x2f8] sm:$0xff]
    %v1070 = vld [vmem:[#allocation9 + $0x300] sm:$0xff]
    %v1071 = vld [vmem:[#allocation9 + $0x308] sm:$0xff]
    %v1072 = vld [vmem:[#allocation9 + $0x310] sm:$0xff]
    %v1073 = vld [vmem:[#allocation9 + $0x318] sm:$0xff]
    %v1074 = vld [vmem:[#allocation9 + $0x320] sm:$0xff]
    %v1075 = vld [vmem:[#allocation9 + $0x328] sm:$0xff]
    %v1076 = vld [vmem:[#allocation9 + $0x330] sm:$0xff]
    %v1077 = vld [vmem:[#allocation9 + $0x338] sm:$0xff]
    %v1078 = vld [vmem:[#allocation9 + $0x340] sm:$0xff]
    %v1079 = vld [vmem:[#allocation9 + $0x348] sm:$0xff]
    %v1080 = vld [vmem:[#allocation9 + $0x350] sm:$0xff]
    %v1081 = vld [vmem:[#allocation9 + $0x358] sm:$0xff]
    %v1082 = vld [vmem:[#allocation9 + $0x360] sm:$0xff]
    %v1083 = vld [vmem:[#allocation9 + $0x368] sm:$0xff]
    %v1084 = vld [vmem:[#allocation9 + $0x370] sm:$0xff]
    %v1085 = vld [vmem:[#allocation9 + $0x378] sm:$0xff]
    %v1086 = vld [vmem:[#allocation9 + $0x380] sm:$0xff]
    %v1087 = vld [vmem:[#allocation9 + $0x388] sm:$0xff]
    %v1088 = vld [vmem:[#allocation9 + $0x390] sm:$0xff]
    %v1089 = vld [vmem:[#allocation9 + $0x398] sm:$0xff]
    %v1090 = vld [vmem:[#allocation9 + $0x3a0] sm:$0xff]
    %v1091 = vld [vmem:[#allocation9 + $0x3a8] sm:$0xff]
    %v1092 = vld [vmem:[#allocation9 + $0x3b0] sm:$0xff]
    %v1093 = vld [vmem:[#allocation9 + $0x3b8] sm:$0xff]
    %v1094 = vld [vmem:[#allocation9 + $0x3c0] sm:$0xff]
    %v1095 = vld [vmem:[#allocation9 + $0x3c8] sm:$0xff]
    %v1096 = vld [vmem:[#allocation9 + $0x3d0] sm:$0xff]
    %v1097 = vld [vmem:[#allocation9 + $0x3d8] sm:$0xff]
    %v1098 = vld [vmem:[#allocation9 + $0x3e0] sm:$0xff]
    %v1099 = vld [vmem:[#allocation9 + $0x3e8] sm:$0xff]
    %v1100 = vld [vmem:[#allocation9 + $0x3f0] sm:$0xff]
    %v1101 = vld [vmem:[#allocation9 + $0x3f8] sm:$0xff]
    %v1102 = vld [vmem:[#allocation9 + $0x400] sm:$0xff]
    %v1103 = vld [vmem:[#allocation9 + $0x408] sm:$0xff]
    %v1104 = vld [vmem:[#allocation9 + $0x410] sm:$0xff]
    %v1105 = vld [vmem:[#allocation9 + $0x418] sm:$0xff]
    %v1106 = vld [vmem:[#allocation9 + $0x420] sm:$0xff]
    %v1107 = vld [vmem:[#allocation9 + $0x428] sm:$0xff]
    %v1108 = vld [vmem:[#allocation9 + $0x430] sm:$0xff]
    %v1109 = vld [vmem:[#allocation9 + $0x438] sm:$0xff]
    %v1110 = vld [vmem:[#allocation9 + $0x440] sm:$0xff]
    %v1111 = vld [vmem:[#allocation9 + $0x448] sm:$0xff]
    %v1112 = vld [vmem:[#allocation9 + $0x450] sm:$0xff]
    %v1113 = vld [vmem:[#allocation9 + $0x458] sm:$0xff]
    %v1114 = vld [vmem:[#allocation9 + $0x460] sm:$0xff]
    %v1115 = vld [vmem:[#allocation9 + $0x468] sm:$0xff]
    %v1116 = vld [vmem:[#allocation9 + $0x470] sm:$0xff]
    %v1117 = vld [vmem:[#allocation9 + $0x478] sm:$0xff]
    %v1118 = vld [vmem:[#allocation9 + $0x480] sm:$0xff]
    %v1119 = vld [vmem:[#allocation9 + $0x488] sm:$0xff]
    %v1120 = vld [vmem:[#allocation9 + $0x490] sm:$0xff]
    %v1121 = vld [vmem:[#allocation9 + $0x498] sm:$0xff]
    %v1122 = vld [vmem:[#allocation9 + $0x4a0] sm:$0xff]
    %v1123 = vld [vmem:[#allocation9 + $0x4a8] sm:$0xff]
    %v1124 = vld [vmem:[#allocation9 + $0x4b0] sm:$0xff]
    %v1125 = vld [vmem:[#allocation9 + $0x4b8] sm:$0xff]
    %v1126 = vld [vmem:[#allocation9 + $0x4c0] sm:$0xff]
    %v1127 = vld [vmem:[#allocation9 + $0x4c8] sm:$0xff]
    %v1128 = vld [vmem:[#allocation9 + $0x4d0] sm:$0xff]
    %v1129 = vld [vmem:[#allocation9 + $0x4d8] sm:$0xff]
    %v1130 = vld [vmem:[#allocation9 + $0x4e0] sm:$0xff]
    %v1131 = vld [vmem:[#allocation9 + $0x4e8] sm:$0xff]
    %v1132 = vld [vmem:[#allocation9 + $0x4f0] sm:$0xff]
    %v1133 = vld [vmem:[#allocation9 + $0x4f8] sm:$0xff]
    %v1134 = vld [vmem:[#allocation9 + $0x500] sm:$0xff]
    %v1135 = vld [vmem:[#allocation9 + $0x508] sm:$0xff]
    %v1136 = vld [vmem:[#allocation9 + $0x510] sm:$0xff]
    %v1137 = vld [vmem:[#allocation9 + $0x518] sm:$0xff]
    %v1138 = vld [vmem:[#allocation9 + $0x520] sm:$0xff]
    %v1139 = vld [vmem:[#allocation9 + $0x528] sm:$0xff]
    %v1140 = vld [vmem:[#allocation9 + $0x530] sm:$0xff]
    %v1141 = vld [vmem:[#allocation9 + $0x538] sm:$0xff]
    %v1142 = vld [vmem:[#allocation9 + $0x540] sm:$0xff]
    %v1143 = vld [vmem:[#allocation9 + $0x548] sm:$0xff]
    %v1144 = vld [vmem:[#allocation9 + $0x550] sm:$0xff]
    %v1145 = vld [vmem:[#allocation9 + $0x558] sm:$0xff]
    %v1146 = vld [vmem:[#allocation9 + $0x560] sm:$0xff]
    %v1147 = vld [vmem:[#allocation9 + $0x568] sm:$0xff]
    %v1148 = vld [vmem:[#allocation9 + $0x570] sm:$0xff]
    %v1149 = vld [vmem:[#allocation9 + $0x578] sm:$0xff]
    %v1150 = vld [vmem:[#allocation9 + $0x580] sm:$0xff]
    %v1151 = vld [vmem:[#allocation9 + $0x588] sm:$0xff]
    %v1152 = vld [vmem:[#allocation9 + $0x590] sm:$0xff]
    %v1153 = vld [vmem:[#allocation9 + $0x598] sm:$0xff]
    %v1154 = vld [vmem:[#allocation9 + $0x5a0] sm:$0xff]
    %v1155 = vld [vmem:[#allocation9 + $0x5a8] sm:$0xff]
    %v1156 = vld [vmem:[#allocation9 + $0x5b0] sm:$0xff]
    %v1157 = vld [vmem:[#allocation9 + $0x5b8] sm:$0xff]
    %v1158 = vld [vmem:[#allocation9 + $0x5c0] sm:$0xff]
    %v1159 = vld [vmem:[#allocation9 + $0x5c8] sm:$0xff]
    %v1160 = vld [vmem:[#allocation9 + $0x5d0] sm:$0xff]
    %v1161 = vld [vmem:[#allocation9 + $0x5d8] sm:$0xff]
    %v1162 = vld [vmem:[#allocation9 + $0x5e0] sm:$0xff]
    %v1163 = vld [vmem:[#allocation9 + $0x5e8] sm:$0xff]
    %v1164 = vld [vmem:[#allocation9 + $0x5f0] sm:$0xff]
    %v1165 = vld [vmem:[#allocation9 + $0x5f8] sm:$0xff]
    %v1166 = vld [vmem:[#allocation9 + $0x600] sm:$0xff]
    %v1167 = vld [vmem:[#allocation9 + $0x608] sm:$0xff]
    %v1168 = vld [vmem:[#allocation9 + $0x610] sm:$0xff]
    %v1169 = vld [vmem:[#allocation9 + $0x618] sm:$0xff]
    %v1170 = vld [vmem:[#allocation9 + $0x620] sm:$0xff]
    %v1171 = vld [vmem:[#allocation9 + $0x628] sm:$0xff]
    %v1172 = vld [vmem:[#allocation9 + $0x630] sm:$0xff]
    %v1173 = vld [vmem:[#allocation9 + $0x638] sm:$0xff]
    %v1174 = vld [vmem:[#allocation9 + $0x640] sm:$0xff]
    %v1175 = vld [vmem:[#allocation9 + $0x648] sm:$0xff]
    %v1176 = vld [vmem:[#allocation9 + $0x650] sm:$0xff]
    %v1177 = vld [vmem:[#allocation9 + $0x658] sm:$0xff]
    %v1178 = vld [vmem:[#allocation9 + $0x660] sm:$0xff]
    %v1179 = vld [vmem:[#allocation9 + $0x668] sm:$0xff]
    %v1180 = vld [vmem:[#allocation9 + $0x670] sm:$0xff]
    %v1181 = vld [vmem:[#allocation9 + $0x678] sm:$0xff]
    %v1182 = vld [vmem:[#allocation9 + $0x680] sm:$0xff]
    %v1183 = vld [vmem:[#allocation9 + $0x688] sm:$0xff]
    %v1184 = vld [vmem:[#allocation9 + $0x690] sm:$0xff]
    %v1185 = vld [vmem:[#allocation9 + $0x698] sm:$0xff]
    %v1186 = vld [vmem:[#allocation9 + $0x6a0] sm:$0xff]
    %v1187 = vld [vmem:[#allocation9 + $0x6a8] sm:$0xff]
    %v1188 = vld [vmem:[#allocation9 + $0x6b0] sm:$0xff]
    %v1189 = vld [vmem:[#allocation9 + $0x6b8] sm:$0xff]
    %v1190 = vld [vmem:[#allocation9 + $0x6c0] sm:$0xff]
    %v1191 = vld [vmem:[#allocation9 + $0x6c8] sm:$0xff]
    %v1192 = vld [vmem:[#allocation9 + $0x6d0] sm:$0xff]
    %v1193 = vld [vmem:[#allocation9 + $0x6d8] sm:$0xff]
    %v1194 = vld [vmem:[#allocation9 + $0x6e0] sm:$0xff]
    %v1195 = vld [vmem:[#allocation9 + $0x6e8] sm:$0xff]
    %v1196 = vld [vmem:[#allocation9 + $0x6f0] sm:$0xff]
    %v1197 = vld [vmem:[#allocation9 + $0x6f8] sm:$0xff]
    %v1198 = vld [vmem:[#allocation9 + $0x700] sm:$0xff]
    %v1199 = vld [vmem:[#allocation9 + $0x708] sm:$0xff]
    %v1200 = vld [vmem:[#allocation9 + $0x710] sm:$0xff]
    %v1201 = vld [vmem:[#allocation9 + $0x718] sm:$0xff]
    %v1202 = vld [vmem:[#allocation9 + $0x720] sm:$0xff]
    %v1203 = vld [vmem:[#allocation9 + $0x728] sm:$0xff]
    %v1204 = vld [vmem:[#allocation9 + $0x730] sm:$0xff]
    %v1205 = vld [vmem:[#allocation9 + $0x738] sm:$0xff]
    %v1206 = vld [vmem:[#allocation9 + $0x740] sm:$0xff]
    %v1207 = vld [vmem:[#allocation9 + $0x748] sm:$0xff]
    %v1208 = vld [vmem:[#allocation9 + $0x750] sm:$0xff]
    %v1209 = vld [vmem:[#allocation9 + $0x758] sm:$0xff]
    %v1210 = vld [vmem:[#allocation9 + $0x760] sm:$0xff]
    %v1211 = vld [vmem:[#allocation9 + $0x768] sm:$0xff]
    %v1212 = vld [vmem:[#allocation9 + $0x770] sm:$0xff]
    %v1213 = vld [vmem:[#allocation9 + $0x778] sm:$0xff]
    %v1214 = vld [vmem:[#allocation9 + $0x780] sm:$0xff]
    %v1215 = vld [vmem:[#allocation9 + $0x788] sm:$0xff]
    %v1216 = vld [vmem:[#allocation9 + $0x790] sm:$0xff]
    %v1217 = vld [vmem:[#allocation9 + $0x798] sm:$0xff]
    %v1218 = vld [vmem:[#allocation9 + $0x7a0] sm:$0xff]
    %v1219 = vld [vmem:[#allocation9 + $0x7a8] sm:$0xff]
    %v1220 = vld [vmem:[#allocation9 + $0x7b0] sm:$0xff]
    %v1221 = vld [vmem:[#allocation9 + $0x7b8] sm:$0xff]
    %v1222 = vld [vmem:[#allocation9 + $0x7c0] sm:$0xff]
    %v1223 = vld [vmem:[#allocation9 + $0x7c8] sm:$0xff]
    %v1224 = vld [vmem:[#allocation9 + $0x7d0] sm:$0xff]
    %v1225 = vld [vmem:[#allocation9 + $0x7d8] sm:$0xff]
    %v1226 = vld [vmem:[#allocation9 + $0x7e0] sm:$0xff]
    %v1227 = vld [vmem:[#allocation9 + $0x7e8] sm:$0xff]
    %v1228 = vld [vmem:[#allocation9 + $0x7f0] sm:$0xff]
    %v1229 = vld [vmem:[#allocation9 + $0x7f8] sm:$0xff]
    %v1486 = vunpack.c.l.b16 %v974
    %v1487 = vunpack.c.h.b16 %v974
    %v1488 = vunpack.c.l.b16 %v975
    %v1489 = vunpack.c.h.b16 %v975
    %v1490 = vunpack.c.l.b16 %v976
    %v1491 = vunpack.c.h.b16 %v976
    %v1492 = vunpack.c.l.b16 %v977
    %v1493 = vunpack.c.h.b16 %v977
    %v1494 = vunpack.c.l.b16 %v978
    %v1495 = vunpack.c.h.b16 %v978
    %v1496 = vunpack.c.l.b16 %v979
    %v1497 = vunpack.c.h.b16 %v979
    %v1498 = vunpack.c.l.b16 %v980
    %v1499 = vunpack.c.h.b16 %v980
    %v1500 = vunpack.c.l.b16 %v981
    %v1501 = vunpack.c.h.b16 %v981
    %v1502 = vunpack.c.l.b16 %v982
    %v1503 = vunpack.c.h.b16 %v982
    %v1504 = vunpack.c.l.b16 %v983
    %v1505 = vunpack.c.h.b16 %v983
    %v1506 = vunpack.c.l.b16 %v984
    %v1507 = vunpack.c.h.b16 %v984
    %v1508 = vunpack.c.l.b16 %v985
    %v1509 = vunpack.c.h.b16 %v985
    %v1510 = vunpack.c.l.b16 %v986
    %v1511 = vunpack.c.h.b16 %v986
    %v1512 = vunpack.c.l.b16 %v987
    %v1513 = vunpack.c.h.b16 %v987
    %v1514 = vunpack.c.l.b16 %v988
    %v1515 = vunpack.c.h.b16 %v988
    %v1516 = vunpack.c.l.b16 %v989
    %v1517 = vunpack.c.h.b16 %v989
    %v1518 = vunpack.c.l.b16 %v990
    %v1519 = vunpack.c.h.b16 %v990
    %v1520 = vunpack.c.l.b16 %v991
    %v1521 = vunpack.c.h.b16 %v991
    %v1522 = vunpack.c.l.b16 %v992
    %v1523 = vunpack.c.h.b16 %v992
    %v1524 = vunpack.c.l.b16 %v993
    %v1525 = vunpack.c.h.b16 %v993
    %v1526 = vunpack.c.l.b16 %v994
    %v1527 = vunpack.c.h.b16 %v994
    %v1528 = vunpack.c.l.b16 %v995
    %v1529 = vunpack.c.h.b16 %v995
    %v1530 = vunpack.c.l.b16 %v996
    %v1531 = vunpack.c.h.b16 %v996
    %v1532 = vunpack.c.l.b16 %v997
    %v1533 = vunpack.c.h.b16 %v997
    %v1534 = vunpack.c.l.b16 %v998
    %v1535 = vunpack.c.h.b16 %v998
    %v1536 = vunpack.c.l.b16 %v999
    %v1537 = vunpack.c.h.b16 %v999
    %v1538 = vunpack.c.l.b16 %v1000
    %v1539 = vunpack.c.h.b16 %v1000
    %v1540 = vunpack.c.l.b16 %v1001
    %v1541 = vunpack.c.h.b16 %v1001
    %v1542 = vunpack.c.l.b16 %v1002
    %v1543 = vunpack.c.h.b16 %v1002
    %v1544 = vunpack.c.l.b16 %v1003
    %v1545 = vunpack.c.h.b16 %v1003
    %v1546 = vunpack.c.l.b16 %v1004
    %v1547 = vunpack.c.h.b16 %v1004
    %v1548 = vunpack.c.l.b16 %v1005
    %v1549 = vunpack.c.h.b16 %v1005
    %v1550 = vunpack.c.l.b16 %v1006
    %v1551 = vunpack.c.h.b16 %v1006
    %v1552 = vunpack.c.l.b16 %v1007
    %v1553 = vunpack.c.h.b16 %v1007
    %v1554 = vunpack.c.l.b16 %v1008
    %v1555 = vunpack.c.h.b16 %v1008
    %v1556 = vunpack.c.l.b16 %v1009
    %v1557 = vunpack.c.h.b16 %v1009
    %v1558 = vunpack.c.l.b16 %v1010
    %v1559 = vunpack.c.h.b16 %v1010
    %v1560 = vunpack.c.l.b16 %v1011
    %v1561 = vunpack.c.h.b16 %v1011
    %v1562 = vunpack.c.l.b16 %v1012
    %v1563 = vunpack.c.h.b16 %v1012
    %v1564 = vunpack.c.l.b16 %v1013
    %v1565 = vunpack.c.h.b16 %v1013
    %v1566 = vunpack.c.l.b16 %v1014
    %v1567 = vunpack.c.h.b16 %v1014
    %v1568 = vunpack.c.l.b16 %v1015
    %v1569 = vunpack.c.h.b16 %v1015
    %v1570 = vunpack.c.l.b16 %v1016
    %v1571 = vunpack.c.h.b16 %v1016
    %v1572 = vunpack.c.l.b16 %v1017
    %v1573 = vunpack.c.h.b16 %v1017
    %v1574 = vunpack.c.l.b16 %v1018
    %v1575 = vunpack.c.h.b16 %v1018
    %v1576 = vunpack.c.l.b16 %v1019
    %v1577 = vunpack.c.h.b16 %v1019
    %v1578 = vunpack.c.l.b16 %v1020
    %v1579 = vunpack.c.h.b16 %v1020
    %v1580 = vunpack.c.l.b16 %v1021
    %v1581 = vunpack.c.h.b16 %v1021
    %v1582 = vunpack.c.l.b16 %v1022
    %v1583 = vunpack.c.h.b16 %v1022
    %v1584 = vunpack.c.l.b16 %v1023
    %v1585 = vunpack.c.h.b16 %v1023
    %v1586 = vunpack.c.l.b16 %v1024
    %v1587 = vunpack.c.h.b16 %v1024
    %v1588 = vunpack.c.l.b16 %v1025
    %v1589 = vunpack.c.h.b16 %v1025
    %v1590 = vunpack.c.l.b16 %v1026
    %v1591 = vunpack.c.h.b16 %v1026
    %v1592 = vunpack.c.l.b16 %v1027
    %v1593 = vunpack.c.h.b16 %v1027
    %v1594 = vunpack.c.l.b16 %v1028
    %v1595 = vunpack.c.h.b16 %v1028
    %v1596 = vunpack.c.l.b16 %v1029
    %v1597 = vunpack.c.h.b16 %v1029
    %v1598 = vunpack.c.l.b16 %v1030
    %v1599 = vunpack.c.h.b16 %v1030
    %v1600 = vunpack.c.l.b16 %v1031
    %v1601 = vunpack.c.h.b16 %v1031
    %v1602 = vunpack.c.l.b16 %v1032
    %v1603 = vunpack.c.h.b16 %v1032
    %v1604 = vunpack.c.l.b16 %v1033
    %v1605 = vunpack.c.h.b16 %v1033
    %v1606 = vunpack.c.l.b16 %v1034
    %v1607 = vunpack.c.h.b16 %v1034
    %v1608 = vunpack.c.l.b16 %v1035
    %v1609 = vunpack.c.h.b16 %v1035
    %v1610 = vunpack.c.l.b16 %v1036
    %v1611 = vunpack.c.h.b16 %v1036
    %v1612 = vunpack.c.l.b16 %v1037
    %v1613 = vunpack.c.h.b16 %v1037
    %v1614 = vunpack.c.l.b16 %v1038
    %v1615 = vunpack.c.h.b16 %v1038
    %v1616 = vunpack.c.l.b16 %v1039
    %v1617 = vunpack.c.h.b16 %v1039
    %v1618 = vunpack.c.l.b16 %v1040
    %v1619 = vunpack.c.h.b16 %v1040
    %v1620 = vunpack.c.l.b16 %v1041
    %v1621 = vunpack.c.h.b16 %v1041
    %v1622 = vunpack.c.l.b16 %v1042
    %v1623 = vunpack.c.h.b16 %v1042
    %v1624 = vunpack.c.l.b16 %v1043
    %v1625 = vunpack.c.h.b16 %v1043
    %v1626 = vunpack.c.l.b16 %v1044
    %v1627 = vunpack.c.h.b16 %v1044
    %v1628 = vunpack.c.l.b16 %v1045
    %v1629 = vunpack.c.h.b16 %v1045
    %v1630 = vunpack.c.l.b16 %v1046
    %v1631 = vunpack.c.h.b16 %v1046
    %v1632 = vunpack.c.l.b16 %v1047
    %v1633 = vunpack.c.h.b16 %v1047
    %v1634 = vunpack.c.l.b16 %v1048
    %v1635 = vunpack.c.h.b16 %v1048
    %v1636 = vunpack.c.l.b16 %v1049
    %v1637 = vunpack.c.h.b16 %v1049
    %v1638 = vunpack.c.l.b16 %v1050
    %v1639 = vunpack.c.h.b16 %v1050
    %v1640 = vunpack.c.l.b16 %v1051
    %v1641 = vunpack.c.h.b16 %v1051
    %v1642 = vunpack.c.l.b16 %v1052
    %v1643 = vunpack.c.h.b16 %v1052
    %v1644 = vunpack.c.l.b16 %v1053
    %v1645 = vunpack.c.h.b16 %v1053
    %v1646 = vunpack.c.l.b16 %v1054
    %v1647 = vunpack.c.h.b16 %v1054
    %v1648 = vunpack.c.l.b16 %v1055
    %v1649 = vunpack.c.h.b16 %v1055
    %v1650 = vunpack.c.l.b16 %v1056
    %v1651 = vunpack.c.h.b16 %v1056
    %v1652 = vunpack.c.l.b16 %v1057
    %v1653 = vunpack.c.h.b16 %v1057
    %v1654 = vunpack.c.l.b16 %v1058
    %v1655 = vunpack.c.h.b16 %v1058
    %v1656 = vunpack.c.l.b16 %v1059
    %v1657 = vunpack.c.h.b16 %v1059
    %v1658 = vunpack.c.l.b16 %v1060
    %v1659 = vunpack.c.h.b16 %v1060
    %v1660 = vunpack.c.l.b16 %v1061
    %v1661 = vunpack.c.h.b16 %v1061
    %v1662 = vunpack.c.l.b16 %v1062
    %v1663 = vunpack.c.h.b16 %v1062
    %v1664 = vunpack.c.l.b16 %v1063
    %v1665 = vunpack.c.h.b16 %v1063
    %v1666 = vunpack.c.l.b16 %v1064
    %v1667 = vunpack.c.h.b16 %v1064
    %v1668 = vunpack.c.l.b16 %v1065
    %v1669 = vunpack.c.h.b16 %v1065
    %v1670 = vunpack.c.l.b16 %v1066
    %v1671 = vunpack.c.h.b16 %v1066
    %v1672 = vunpack.c.l.b16 %v1067
    %v1673 = vunpack.c.h.b16 %v1067
    %v1674 = vunpack.c.l.b16 %v1068
    %v1675 = vunpack.c.h.b16 %v1068
    %v1676 = vunpack.c.l.b16 %v1069
    %v1677 = vunpack.c.h.b16 %v1069
    %v1678 = vunpack.c.l.b16 %v1070
    %v1679 = vunpack.c.h.b16 %v1070
    %v1680 = vunpack.c.l.b16 %v1071
    %v1681 = vunpack.c.h.b16 %v1071
    %v1682 = vunpack.c.l.b16 %v1072
    %v1683 = vunpack.c.h.b16 %v1072
    %v1684 = vunpack.c.l.b16 %v1073
    %v1685 = vunpack.c.h.b16 %v1073
    %v1686 = vunpack.c.l.b16 %v1074
    %v1687 = vunpack.c.h.b16 %v1074
    %v1688 = vunpack.c.l.b16 %v1075
    %v1689 = vunpack.c.h.b16 %v1075
    %v1690 = vunpack.c.l.b16 %v1076
    %v1691 = vunpack.c.h.b16 %v1076
    %v1692 = vunpack.c.l.b16 %v1077
    %v1693 = vunpack.c.h.b16 %v1077
    %v1694 = vunpack.c.l.b16 %v1078
    %v1695 = vunpack.c.h.b16 %v1078
    %v1696 = vunpack.c.l.b16 %v1079
    %v1697 = vunpack.c.h.b16 %v1079
    %v1698 = vunpack.c.l.b16 %v1080
    %v1699 = vunpack.c.h.b16 %v1080
    %v1700 = vunpack.c.l.b16 %v1081
    %v1701 = vunpack.c.h.b16 %v1081
    %v1702 = vunpack.c.l.b16 %v1082
    %v1703 = vunpack.c.h.b16 %v1082
    %v1704 = vunpack.c.l.b16 %v1083
    %v1705 = vunpack.c.h.b16 %v1083
    %v1706 = vunpack.c.l.b16 %v1084
    %v1707 = vunpack.c.h.b16 %v1084
    %v1708 = vunpack.c.l.b16 %v1085
    %v1709 = vunpack.c.h.b16 %v1085
    %v1710 = vunpack.c.l.b16 %v1086
    %v1711 = vunpack.c.h.b16 %v1086
    %v1712 = vunpack.c.l.b16 %v1087
    %v1713 = vunpack.c.h.b16 %v1087
    %v1714 = vunpack.c.l.b16 %v1088
    %v1715 = vunpack.c.h.b16 %v1088
    %v1716 = vunpack.c.l.b16 %v1089
    %v1717 = vunpack.c.h.b16 %v1089
    %v1718 = vunpack.c.l.b16 %v1090
    %v1719 = vunpack.c.h.b16 %v1090
    %v1720 = vunpack.c.l.b16 %v1091
    %v1721 = vunpack.c.h.b16 %v1091
    %v1722 = vunpack.c.l.b16 %v1092
    %v1723 = vunpack.c.h.b16 %v1092
    %v1724 = vunpack.c.l.b16 %v1093
    %v1725 = vunpack.c.h.b16 %v1093
    %v1726 = vunpack.c.l.b16 %v1094
    %v1727 = vunpack.c.h.b16 %v1094
    %v1728 = vunpack.c.l.b16 %v1095
    %v1729 = vunpack.c.h.b16 %v1095
    %v1730 = vunpack.c.l.b16 %v1096
    %v1731 = vunpack.c.h.b16 %v1096
    %v1732 = vunpack.c.l.b16 %v1097
    %v1733 = vunpack.c.h.b16 %v1097
    %v1734 = vunpack.c.l.b16 %v1098
    %v1735 = vunpack.c.h.b16 %v1098
    %v1736 = vunpack.c.l.b16 %v1099
    %v1737 = vunpack.c.h.b16 %v1099
    %v1738 = vunpack.c.l.b16 %v1100
    %v1739 = vunpack.c.h.b16 %v1100
    %v1740 = vunpack.c.l.b16 %v1101
    %v1741 = vunpack.c.h.b16 %v1101
    %v1742 = vunpack.c.l.b16 %v1102
    %v1743 = vunpack.c.h.b16 %v1102
    %v1744 = vunpack.c.l.b16 %v1103
    %v1745 = vunpack.c.h.b16 %v1103
    %v1746 = vunpack.c.l.b16 %v1104
    %v1747 = vunpack.c.h.b16 %v1104
    %v1748 = vunpack.c.l.b16 %v1105
    %v1749 = vunpack.c.h.b16 %v1105
    %v1750 = vunpack.c.l.b16 %v1106
    %v1751 = vunpack.c.h.b16 %v1106
    %v1752 = vunpack.c.l.b16 %v1107
    %v1753 = vunpack.c.h.b16 %v1107
    %v1754 = vunpack.c.l.b16 %v1108
    %v1755 = vunpack.c.h.b16 %v1108
    %v1756 = vunpack.c.l.b16 %v1109
    %v1757 = vunpack.c.h.b16 %v1109
    %v1758 = vunpack.c.l.b16 %v1110
    %v1759 = vunpack.c.h.b16 %v1110
    %v1760 = vunpack.c.l.b16 %v1111
    %v1761 = vunpack.c.h.b16 %v1111
    %v1762 = vunpack.c.l.b16 %v1112
    %v1763 = vunpack.c.h.b16 %v1112
    %v1764 = vunpack.c.l.b16 %v1113
    %v1765 = vunpack.c.h.b16 %v1113
    %v1766 = vunpack.c.l.b16 %v1114
    %v1767 = vunpack.c.h.b16 %v1114
    %v1768 = vunpack.c.l.b16 %v1115
    %v1769 = vunpack.c.h.b16 %v1115
    %v1770 = vunpack.c.l.b16 %v1116
    %v1771 = vunpack.c.h.b16 %v1116
    %v1772 = vunpack.c.l.b16 %v1117
    %v1773 = vunpack.c.h.b16 %v1117
    %v1774 = vunpack.c.l.b16 %v1118
    %v1775 = vunpack.c.h.b16 %v1118
    %v1776 = vunpack.c.l.b16 %v1119
    %v1777 = vunpack.c.h.b16 %v1119
    %v1778 = vunpack.c.l.b16 %v1120
    %v1779 = vunpack.c.h.b16 %v1120
    %v1780 = vunpack.c.l.b16 %v1121
    %v1781 = vunpack.c.h.b16 %v1121
    %v1782 = vunpack.c.l.b16 %v1122
    %v1783 = vunpack.c.h.b16 %v1122
    %v1784 = vunpack.c.l.b16 %v1123
    %v1785 = vunpack.c.h.b16 %v1123
    %v1786 = vunpack.c.l.b16 %v1124
    %v1787 = vunpack.c.h.b16 %v1124
    %v1788 = vunpack.c.l.b16 %v1125
    %v1789 = vunpack.c.h.b16 %v1125
    %v1790 = vunpack.c.l.b16 %v1126
    %v1791 = vunpack.c.h.b16 %v1126
    %v1792 = vunpack.c.l.b16 %v1127
    %v1793 = vunpack.c.h.b16 %v1127
    %v1794 = vunpack.c.l.b16 %v1128
    %v1795 = vunpack.c.h.b16 %v1128
    %v1796 = vunpack.c.l.b16 %v1129
    %v1797 = vunpack.c.h.b16 %v1129
    %v1798 = vunpack.c.l.b16 %v1130
    %v1799 = vunpack.c.h.b16 %v1130
    %v1800 = vunpack.c.l.b16 %v1131
    %v1801 = vunpack.c.h.b16 %v1131
    %v1802 = vunpack.c.l.b16 %v1132
    %v1803 = vunpack.c.h.b16 %v1132
    %v1804 = vunpack.c.l.b16 %v1133
    %v1805 = vunpack.c.h.b16 %v1133
    %v1806 = vunpack.c.l.b16 %v1134
    %v1807 = vunpack.c.h.b16 %v1134
    %v1808 = vunpack.c.l.b16 %v1135
    %v1809 = vunpack.c.h.b16 %v1135
    %v1810 = vunpack.c.l.b16 %v1136
    %v1811 = vunpack.c.h.b16 %v1136
    %v1812 = vunpack.c.l.b16 %v1137
    %v1813 = vunpack.c.h.b16 %v1137
    %v1814 = vunpack.c.l.b16 %v1138
    %v1815 = vunpack.c.h.b16 %v1138
    %v1816 = vunpack.c.l.b16 %v1139
    %v1817 = vunpack.c.h.b16 %v1139
    %v1818 = vunpack.c.l.b16 %v1140
    %v1819 = vunpack.c.h.b16 %v1140
    %v1820 = vunpack.c.l.b16 %v1141
    %v1821 = vunpack.c.h.b16 %v1141
    %v1822 = vunpack.c.l.b16 %v1142
    %v1823 = vunpack.c.h.b16 %v1142
    %v1824 = vunpack.c.l.b16 %v1143
    %v1825 = vunpack.c.h.b16 %v1143
    %v1826 = vunpack.c.l.b16 %v1144
    %v1827 = vunpack.c.h.b16 %v1144
    %v1828 = vunpack.c.l.b16 %v1145
    %v1829 = vunpack.c.h.b16 %v1145
    %v1830 = vunpack.c.l.b16 %v1146
    %v1831 = vunpack.c.h.b16 %v1146
    %v1832 = vunpack.c.l.b16 %v1147
    %v1833 = vunpack.c.h.b16 %v1147
    %v1834 = vunpack.c.l.b16 %v1148
    %v1835 = vunpack.c.h.b16 %v1148
    %v1836 = vunpack.c.l.b16 %v1149
    %v1837 = vunpack.c.h.b16 %v1149
    %v1838 = vunpack.c.l.b16 %v1150
    %v1839 = vunpack.c.h.b16 %v1150
    %v1840 = vunpack.c.l.b16 %v1151
    %v1841 = vunpack.c.h.b16 %v1151
    %v1842 = vunpack.c.l.b16 %v1152
    %v1843 = vunpack.c.h.b16 %v1152
    %v1844 = vunpack.c.l.b16 %v1153
    %v1845 = vunpack.c.h.b16 %v1153
    %v1846 = vunpack.c.l.b16 %v1154
    %v1847 = vunpack.c.h.b16 %v1154
    %v1848 = vunpack.c.l.b16 %v1155
    %v1849 = vunpack.c.h.b16 %v1155
    %v1850 = vunpack.c.l.b16 %v1156
    %v1851 = vunpack.c.h.b16 %v1156
    %v1852 = vunpack.c.l.b16 %v1157
    %v1853 = vunpack.c.h.b16 %v1157
    %v1854 = vunpack.c.l.b16 %v1158
    %v1855 = vunpack.c.h.b16 %v1158
    %v1856 = vunpack.c.l.b16 %v1159
    %v1857 = vunpack.c.h.b16 %v1159
    %v1858 = vunpack.c.l.b16 %v1160
    %v1859 = vunpack.c.h.b16 %v1160
    %v1860 = vunpack.c.l.b16 %v1161
    %v1861 = vunpack.c.h.b16 %v1161
    %v1862 = vunpack.c.l.b16 %v1162
    %v1863 = vunpack.c.h.b16 %v1162
    %v1864 = vunpack.c.l.b16 %v1163
    %v1865 = vunpack.c.h.b16 %v1163
    %v1866 = vunpack.c.l.b16 %v1164
    %v1867 = vunpack.c.h.b16 %v1164
    %v1868 = vunpack.c.l.b16 %v1165
    %v1869 = vunpack.c.h.b16 %v1165
    %v1870 = vunpack.c.l.b16 %v1166
    %v1871 = vunpack.c.h.b16 %v1166
    %v1872 = vunpack.c.l.b16 %v1167
    %v1873 = vunpack.c.h.b16 %v1167
    %v1874 = vunpack.c.l.b16 %v1168
    %v1875 = vunpack.c.h.b16 %v1168
    %v1876 = vunpack.c.l.b16 %v1169
    %v1877 = vunpack.c.h.b16 %v1169
    %v1878 = vunpack.c.l.b16 %v1170
    %v1879 = vunpack.c.h.b16 %v1170
    %v1880 = vunpack.c.l.b16 %v1171
    %v1881 = vunpack.c.h.b16 %v1171
    %v1882 = vunpack.c.l.b16 %v1172
    %v1883 = vunpack.c.h.b16 %v1172
    %v1884 = vunpack.c.l.b16 %v1173
    %v1885 = vunpack.c.h.b16 %v1173
    %v1886 = vunpack.c.l.b16 %v1174
    %v1887 = vunpack.c.h.b16 %v1174
    %v1888 = vunpack.c.l.b16 %v1175
    %v1889 = vunpack.c.h.b16 %v1175
    %v1890 = vunpack.c.l.b16 %v1176
    %v1891 = vunpack.c.h.b16 %v1176
    %v1892 = vunpack.c.l.b16 %v1177
    %v1893 = vunpack.c.h.b16 %v1177
    %v1894 = vunpack.c.l.b16 %v1178
    %v1895 = vunpack.c.h.b16 %v1178
    %v1896 = vunpack.c.l.b16 %v1179
    %v1897 = vunpack.c.h.b16 %v1179
    %v1898 = vunpack.c.l.b16 %v1180
    %v1899 = vunpack.c.h.b16 %v1180
    %v1900 = vunpack.c.l.b16 %v1181
    %v1901 = vunpack.c.h.b16 %v1181
    %v1902 = vunpack.c.l.b16 %v1182
    %v1903 = vunpack.c.h.b16 %v1182
    %v1904 = vunpack.c.l.b16 %v1183
    %v1905 = vunpack.c.h.b16 %v1183
    %v1906 = vunpack.c.l.b16 %v1184
    %v1907 = vunpack.c.h.b16 %v1184
    %v1908 = vunpack.c.l.b16 %v1185
    %v1909 = vunpack.c.h.b16 %v1185
    %v1910 = vunpack.c.l.b16 %v1186
    %v1911 = vunpack.c.h.b16 %v1186
    %v1912 = vunpack.c.l.b16 %v1187
    %v1913 = vunpack.c.h.b16 %v1187
    %v1914 = vunpack.c.l.b16 %v1188
    %v1915 = vunpack.c.h.b16 %v1188
    %v1916 = vunpack.c.l.b16 %v1189
    %v1917 = vunpack.c.h.b16 %v1189
    %v1918 = vunpack.c.l.b16 %v1190
    %v1919 = vunpack.c.h.b16 %v1190
    %v1920 = vunpack.c.l.b16 %v1191
    %v1921 = vunpack.c.h.b16 %v1191
    %v1922 = vunpack.c.l.b16 %v1192
    %v1923 = vunpack.c.h.b16 %v1192
    %v1924 = vunpack.c.l.b16 %v1193
    %v1925 = vunpack.c.h.b16 %v1193
    %v1926 = vunpack.c.l.b16 %v1194
    %v1927 = vunpack.c.h.b16 %v1194
    %v1928 = vunpack.c.l.b16 %v1195
    %v1929 = vunpack.c.h.b16 %v1195
    %v1930 = vunpack.c.l.b16 %v1196
    %v1931 = vunpack.c.h.b16 %v1196
    %v1932 = vunpack.c.l.b16 %v1197
    %v1933 = vunpack.c.h.b16 %v1197
    %v1934 = vunpack.c.l.b16 %v1198
    %v1935 = vunpack.c.h.b16 %v1198
    %v1936 = vunpack.c.l.b16 %v1199
    %v1937 = vunpack.c.h.b16 %v1199
    %v1938 = vunpack.c.l.b16 %v1200
    %v1939 = vunpack.c.h.b16 %v1200
    %v1940 = vunpack.c.l.b16 %v1201
    %v1941 = vunpack.c.h.b16 %v1201
    %v1942 = vunpack.c.l.b16 %v1202
    %v1943 = vunpack.c.h.b16 %v1202
    %v1944 = vunpack.c.l.b16 %v1203
    %v1945 = vunpack.c.h.b16 %v1203
    %v1946 = vunpack.c.l.b16 %v1204
    %v1947 = vunpack.c.h.b16 %v1204
    %v1948 = vunpack.c.l.b16 %v1205
    %v1949 = vunpack.c.h.b16 %v1205
    %v1950 = vunpack.c.l.b16 %v1206
    %v1951 = vunpack.c.h.b16 %v1206
    %v1952 = vunpack.c.l.b16 %v1207
    %v1953 = vunpack.c.h.b16 %v1207
    %v1954 = vunpack.c.l.b16 %v1208
    %v1955 = vunpack.c.h.b16 %v1208
    %v1956 = vunpack.c.l.b16 %v1209
    %v1957 = vunpack.c.h.b16 %v1209
    %v1958 = vunpack.c.l.b16 %v1210
    %v1959 = vunpack.c.h.b16 %v1210
    %v1960 = vunpack.c.l.b16 %v1211
    %v1961 = vunpack.c.h.b16 %v1211
    %v1962 = vunpack.c.l.b16 %v1212
    %v1963 = vunpack.c.h.b16 %v1212
    %v1964 = vunpack.c.l.b16 %v1213
    %v1965 = vunpack.c.h.b16 %v1213
    %v1966 = vunpack.c.l.b16 %v1214
    %v1967 = vunpack.c.h.b16 %v1214
    %v1968 = vunpack.c.l.b16 %v1215
    %v1969 = vunpack.c.h.b16 %v1215
    %v1970 = vunpack.c.l.b16 %v1216
    %v1971 = vunpack.c.h.b16 %v1216
    %v1972 = vunpack.c.l.b16 %v1217
    %v1973 = vunpack.c.h.b16 %v1217
    %v1974 = vunpack.c.l.b16 %v1218
    %v1975 = vunpack.c.h.b16 %v1218
    %v1976 = vunpack.c.l.b16 %v1219
    %v1977 = vunpack.c.h.b16 %v1219
    %v1978 = vunpack.c.l.b16 %v1220
    %v1979 = vunpack.c.h.b16 %v1220
    %v1980 = vunpack.c.l.b16 %v1221
    %v1981 = vunpack.c.h.b16 %v1221
    %v1982 = vunpack.c.l.b16 %v1222
    %v1983 = vunpack.c.h.b16 %v1222
    %v1984 = vunpack.c.l.b16 %v1223
    %v1985 = vunpack.c.h.b16 %v1223
    %v1986 = vunpack.c.l.b16 %v1224
    %v1987 = vunpack.c.h.b16 %v1224
    %v1988 = vunpack.c.l.b16 %v1225
    %v1989 = vunpack.c.h.b16 %v1225
    %v1990 = vunpack.c.l.b16 %v1226
    %v1991 = vunpack.c.h.b16 %v1226
    %v1992 = vunpack.c.l.b16 %v1227
    %v1993 = vunpack.c.h.b16 %v1227
    %v1994 = vunpack.c.l.b16 %v1228
    %v1995 = vunpack.c.h.b16 %v1228
    %v1996 = vunpack.c.l.b16 %v1229
    %v1997 = vunpack.c.h.b16 %v1229
    %v1998 = vpack.c.b16 %v1494, %v1486
    %v1999 = vpack.c.b16 %v1495, %v1487
    %v2000 = vpack.c.b16 %v1496, %v1488
    %v2001 = vpack.c.b16 %v1497, %v1489
    %v2002 = vpack.c.b16 %v1498, %v1490
    %v2003 = vpack.c.b16 %v1499, %v1491
    %v2004 = vpack.c.b16 %v1500, %v1492
    %v2005 = vpack.c.b16 %v1501, %v1493
    %v2006 = vpack.c.b16 %v1510, %v1502
    %v2007 = vpack.c.b16 %v1511, %v1503
    %v2008 = vpack.c.b16 %v1512, %v1504
    %v2009 = vpack.c.b16 %v1513, %v1505
    %v2010 = vpack.c.b16 %v1514, %v1506
    %v2011 = vpack.c.b16 %v1515, %v1507
    %v2012 = vpack.c.b16 %v1516, %v1508
    %v2013 = vpack.c.b16 %v1517, %v1509
    %v2014 = vpack.c.b16 %v1526, %v1518
    %v2015 = vpack.c.b16 %v1527, %v1519
    %v2016 = vpack.c.b16 %v1528, %v1520
    %v2017 = vpack.c.b16 %v1529, %v1521
    %v2018 = vpack.c.b16 %v1530, %v1522
    %v2019 = vpack.c.b16 %v1531, %v1523
    %v2020 = vpack.c.b16 %v1532, %v1524
    %v2021 = vpack.c.b16 %v1533, %v1525
    %v2022 = vpack.c.b16 %v1542, %v1534
    %v2023 = vpack.c.b16 %v1543, %v1535
    %v2024 = vpack.c.b16 %v1544, %v1536
    %v2025 = vpack.c.b16 %v1545, %v1537
    %v2026 = vpack.c.b16 %v1546, %v1538
    %v2027 = vpack.c.b16 %v1547, %v1539
    %v2028 = vpack.c.b16 %v1548, %v1540
    %v2029 = vpack.c.b16 %v1549, %v1541
    %v2030 = vpack.c.b16 %v1558, %v1550
    %v2031 = vpack.c.b16 %v1559, %v1551
    %v2032 = vpack.c.b16 %v1560, %v1552
    %v2033 = vpack.c.b16 %v1561, %v1553
    %v2034 = vpack.c.b16 %v1562, %v1554
    %v2035 = vpack.c.b16 %v1563, %v1555
    %v2036 = vpack.c.b16 %v1564, %v1556
    %v2037 = vpack.c.b16 %v1565, %v1557
    %v2038 = vpack.c.b16 %v1574, %v1566
    %v2039 = vpack.c.b16 %v1575, %v1567
    %v2040 = vpack.c.b16 %v1576, %v1568
    %v2041 = vpack.c.b16 %v1577, %v1569
    %v2042 = vpack.c.b16 %v1578, %v1570
    %v2043 = vpack.c.b16 %v1579, %v1571
    %v2044 = vpack.c.b16 %v1580, %v1572
    %v2045 = vpack.c.b16 %v1581, %v1573
    %v2046 = vpack.c.b16 %v1590, %v1582
    %v2047 = vpack.c.b16 %v1591, %v1583
    %v2048 = vpack.c.b16 %v1592, %v1584
    %v2049 = vpack.c.b16 %v1593, %v1585
    %v2050 = vpack.c.b16 %v1594, %v1586
    %v2051 = vpack.c.b16 %v1595, %v1587
    %v2052 = vpack.c.b16 %v1596, %v1588
    %v2053 = vpack.c.b16 %v1597, %v1589
    %v2054 = vpack.c.b16 %v1606, %v1598
    %v2055 = vpack.c.b16 %v1607, %v1599
    %v2056 = vpack.c.b16 %v1608, %v1600
    %v2057 = vpack.c.b16 %v1609, %v1601
    %v2058 = vpack.c.b16 %v1610, %v1602
    %v2059 = vpack.c.b16 %v1611, %v1603
    %v2060 = vpack.c.b16 %v1612, %v1604
    %v2061 = vpack.c.b16 %v1613, %v1605
    %v2062 = vpack.c.b16 %v1622, %v1614
    %v2063 = vpack.c.b16 %v1623, %v1615
    %v2064 = vpack.c.b16 %v1624, %v1616
    %v2065 = vpack.c.b16 %v1625, %v1617
    %v2066 = vpack.c.b16 %v1626, %v1618
    %v2067 = vpack.c.b16 %v1627, %v1619
    %v2068 = vpack.c.b16 %v1628, %v1620
    %v2069 = vpack.c.b16 %v1629, %v1621
    %v2070 = vpack.c.b16 %v1638, %v1630
    %v2071 = vpack.c.b16 %v1639, %v1631
    %v2072 = vpack.c.b16 %v1640, %v1632
    %v2073 = vpack.c.b16 %v1641, %v1633
    %v2074 = vpack.c.b16 %v1642, %v1634
    %v2075 = vpack.c.b16 %v1643, %v1635
    %v2076 = vpack.c.b16 %v1644, %v1636
    %v2077 = vpack.c.b16 %v1645, %v1637
    %v2078 = vpack.c.b16 %v1654, %v1646
    %v2079 = vpack.c.b16 %v1655, %v1647
    %v2080 = vpack.c.b16 %v1656, %v1648
    %v2081 = vpack.c.b16 %v1657, %v1649
    %v2082 = vpack.c.b16 %v1658, %v1650
    %v2083 = vpack.c.b16 %v1659, %v1651
    %v2084 = vpack.c.b16 %v1660, %v1652
    %v2085 = vpack.c.b16 %v1661, %v1653
    %v2086 = vpack.c.b16 %v1670, %v1662
    %v2087 = vpack.c.b16 %v1671, %v1663
    %v2088 = vpack.c.b16 %v1672, %v1664
    %v2089 = vpack.c.b16 %v1673, %v1665
    %v2090 = vpack.c.b16 %v1674, %v1666
    %v2091 = vpack.c.b16 %v1675, %v1667
    %v2092 = vpack.c.b16 %v1676, %v1668
    %v2093 = vpack.c.b16 %v1677, %v1669
    %v2094 = vpack.c.b16 %v1686, %v1678
    %v2095 = vpack.c.b16 %v1687, %v1679
    %v2096 = vpack.c.b16 %v1688, %v1680
    %v2097 = vpack.c.b16 %v1689, %v1681
    %v2098 = vpack.c.b16 %v1690, %v1682
    %v2099 = vpack.c.b16 %v1691, %v1683
    %v2100 = vpack.c.b16 %v1692, %v1684
    %v2101 = vpack.c.b16 %v1693, %v1685
    %v2102 = vpack.c.b16 %v1702, %v1694
    %v2103 = vpack.c.b16 %v1703, %v1695
    %v2104 = vpack.c.b16 %v1704, %v1696
    %v2105 = vpack.c.b16 %v1705, %v1697
    %v2106 = vpack.c.b16 %v1706, %v1698
    %v2107 = vpack.c.b16 %v1707, %v1699
    %v2108 = vpack.c.b16 %v1708, %v1700
    %v2109 = vpack.c.b16 %v1709, %v1701
    %v2110 = vpack.c.b16 %v1718, %v1710
    %v2111 = vpack.c.b16 %v1719, %v1711
    %v2112 = vpack.c.b16 %v1720, %v1712
    %v2113 = vpack.c.b16 %v1721, %v1713
    %v2114 = vpack.c.b16 %v1722, %v1714
    %v2115 = vpack.c.b16 %v1723, %v1715
    %v2116 = vpack.c.b16 %v1724, %v1716
    %v2117 = vpack.c.b16 %v1725, %v1717
    %v2118 = vpack.c.b16 %v1734, %v1726
    %v2119 = vpack.c.b16 %v1735, %v1727
    %v2120 = vpack.c.b16 %v1736, %v1728
    %v2121 = vpack.c.b16 %v1737, %v1729
    %v2122 = vpack.c.b16 %v1738, %v1730
    %v2123 = vpack.c.b16 %v1739, %v1731
    %v2124 = vpack.c.b16 %v1740, %v1732
    %v2125 = vpack.c.b16 %v1741, %v1733
    %v2126 = vpack.c.b16 %v1750, %v1742
    %v2127 = vpack.c.b16 %v1751, %v1743
    %v2128 = vpack.c.b16 %v1752, %v1744
    %v2129 = vpack.c.b16 %v1753, %v1745
    %v2130 = vpack.c.b16 %v1754, %v1746
    %v2131 = vpack.c.b16 %v1755, %v1747
    %v2132 = vpack.c.b16 %v1756, %v1748
    %v2133 = vpack.c.b16 %v1757, %v1749
    %v2134 = vpack.c.b16 %v1766, %v1758
    %v2135 = vpack.c.b16 %v1767, %v1759
    %v2136 = vpack.c.b16 %v1768, %v1760
    %v2137 = vpack.c.b16 %v1769, %v1761
    %v2138 = vpack.c.b16 %v1770, %v1762
    %v2139 = vpack.c.b16 %v1771, %v1763
    %v2140 = vpack.c.b16 %v1772, %v1764
    %v2141 = vpack.c.b16 %v1773, %v1765
    %v2142 = vpack.c.b16 %v1782, %v1774
    %v2143 = vpack.c.b16 %v1783, %v1775
    %v2144 = vpack.c.b16 %v1784, %v1776
    %v2145 = vpack.c.b16 %v1785, %v1777
    %v2146 = vpack.c.b16 %v1786, %v1778
    %v2147 = vpack.c.b16 %v1787, %v1779
    %v2148 = vpack.c.b16 %v1788, %v1780
    %v2149 = vpack.c.b16 %v1789, %v1781
    %v2150 = vpack.c.b16 %v1798, %v1790
    %v2151 = vpack.c.b16 %v1799, %v1791
    %v2152 = vpack.c.b16 %v1800, %v1792
    %v2153 = vpack.c.b16 %v1801, %v1793
    %v2154 = vpack.c.b16 %v1802, %v1794
    %v2155 = vpack.c.b16 %v1803, %v1795
    %v2156 = vpack.c.b16 %v1804, %v1796
    %v2157 = vpack.c.b16 %v1805, %v1797
    %v2158 = vpack.c.b16 %v1814, %v1806
    %v2159 = vpack.c.b16 %v1815, %v1807
    %v2160 = vpack.c.b16 %v1816, %v1808
    %v2161 = vpack.c.b16 %v1817, %v1809
    %v2162 = vpack.c.b16 %v1818, %v1810
    %v2163 = vpack.c.b16 %v1819, %v1811
    %v2164 = vpack.c.b16 %v1820, %v1812
    %v2165 = vpack.c.b16 %v1821, %v1813
    %v2166 = vpack.c.b16 %v1830, %v1822
    %v2167 = vpack.c.b16 %v1831, %v1823
    %v2168 = vpack.c.b16 %v1832, %v1824
    %v2169 = vpack.c.b16 %v1833, %v1825
    %v2170 = vpack.c.b16 %v1834, %v1826
    %v2171 = vpack.c.b16 %v1835, %v1827
    %v2172 = vpack.c.b16 %v1836, %v1828
    %v2173 = vpack.c.b16 %v1837, %v1829
    %v2174 = vpack.c.b16 %v1846, %v1838
    %v2175 = vpack.c.b16 %v1847, %v1839
    %v2176 = vpack.c.b16 %v1848, %v1840
    %v2177 = vpack.c.b16 %v1849, %v1841
    %v2178 = vpack.c.b16 %v1850, %v1842
    %v2179 = vpack.c.b16 %v1851, %v1843
    %v2180 = vpack.c.b16 %v1852, %v1844
    %v2181 = vpack.c.b16 %v1853, %v1845
    %v2182 = vpack.c.b16 %v1862, %v1854
    %v2183 = vpack.c.b16 %v1863, %v1855
    %v2184 = vpack.c.b16 %v1864, %v1856
    %v2185 = vpack.c.b16 %v1865, %v1857
    %v2186 = vpack.c.b16 %v1866, %v1858
    %v2187 = vpack.c.b16 %v1867, %v1859
    %v2188 = vpack.c.b16 %v1868, %v1860
    %v2189 = vpack.c.b16 %v1869, %v1861
    %v2190 = vpack.c.b16 %v1878, %v1870
    %v2191 = vpack.c.b16 %v1879, %v1871
    %v2192 = vpack.c.b16 %v1880, %v1872
    %v2193 = vpack.c.b16 %v1881, %v1873
    %v2194 = vpack.c.b16 %v1882, %v1874
    %v2195 = vpack.c.b16 %v1883, %v1875
    %v2196 = vpack.c.b16 %v1884, %v1876
    %v2197 = vpack.c.b16 %v1885, %v1877
    %v2198 = vpack.c.b16 %v1894, %v1886
    %v2199 = vpack.c.b16 %v1895, %v1887
    %v2200 = vpack.c.b16 %v1896, %v1888
    %v2201 = vpack.c.b16 %v1897, %v1889
    %v2202 = vpack.c.b16 %v1898, %v1890
    %v2203 = vpack.c.b16 %v1899, %v1891
    %v2204 = vpack.c.b16 %v1900, %v1892
    %v2205 = vpack.c.b16 %v1901, %v1893
    %v2206 = vpack.c.b16 %v1910, %v1902
    %v2207 = vpack.c.b16 %v1911, %v1903
    %v2208 = vpack.c.b16 %v1912, %v1904
    %v2209 = vpack.c.b16 %v1913, %v1905
    %v2210 = vpack.c.b16 %v1914, %v1906
    %v2211 = vpack.c.b16 %v1915, %v1907
    %v2212 = vpack.c.b16 %v1916, %v1908
    %v2213 = vpack.c.b16 %v1917, %v1909
    %v2214 = vpack.c.b16 %v1926, %v1918
    %v2215 = vpack.c.b16 %v1927, %v1919
    %v2216 = vpack.c.b16 %v1928, %v1920
    %v2217 = vpack.c.b16 %v1929, %v1921
    %v2218 = vpack.c.b16 %v1930, %v1922
    %v2219 = vpack.c.b16 %v1931, %v1923
    %v2220 = vpack.c.b16 %v1932, %v1924
    %v2221 = vpack.c.b16 %v1933, %v1925
    %v2222 = vpack.c.b16 %v1942, %v1934
    %v2223 = vpack.c.b16 %v1943, %v1935
    %v2224 = vpack.c.b16 %v1944, %v1936
    %v2225 = vpack.c.b16 %v1945, %v1937
    %v2226 = vpack.c.b16 %v1946, %v1938
    %v2227 = vpack.c.b16 %v1947, %v1939
    %v2228 = vpack.c.b16 %v1948, %v1940
    %v2229 = vpack.c.b16 %v1949, %v1941
    %v2230 = vpack.c.b16 %v1958, %v1950
    %v2231 = vpack.c.b16 %v1959, %v1951
    %v2232 = vpack.c.b16 %v1960, %v1952
    %v2233 = vpack.c.b16 %v1961, %v1953
    %v2234 = vpack.c.b16 %v1962, %v1954
    %v2235 = vpack.c.b16 %v1963, %v1955
    %v2236 = vpack.c.b16 %v1964, %v1956
    %v2237 = vpack.c.b16 %v1965, %v1957
    %v2238 = vpack.c.b16 %v1974, %v1966
    %v2239 = vpack.c.b16 %v1975, %v1967
    %v2240 = vpack.c.b16 %v1976, %v1968
    %v2241 = vpack.c.b16 %v1977, %v1969
    %v2242 = vpack.c.b16 %v1978, %v1970
    %v2243 = vpack.c.b16 %v1979, %v1971
    %v2244 = vpack.c.b16 %v1980, %v1972
    %v2245 = vpack.c.b16 %v1981, %v1973
    %v2246 = vpack.c.b16 %v1990, %v1982
    %v2247 = vpack.c.b16 %v1991, %v1983
    %v2248 = vpack.c.b16 %v1992, %v1984
    %v2249 = vpack.c.b16 %v1993, %v1985
    %v2250 = vpack.c.b16 %v1994, %v1986
    %v2251 = vpack.c.b16 %v1995, %v1987
    %v2252 = vpack.c.b16 %v1996, %v1988
    %v2253 = vpack.c.b16 %v1997, %v1989
    %2510 = vmatprep.subr.bf16.mxu0 %v2055
    %2511 = vmatpush1.bf16.msra.mxu0 %v2054
    %2512 = vmatprep.subr.bf16.mxu0 %v2047
    %2513 = vmatpush1.bf16.msra.mxu0 %v2046
    %2514 = vmatprep.subr.bf16.mxu0 %v2039
    %2515 = vmatpush1.bf16.msra.mxu0 %v2038
    %2516 = vmatprep.subr.bf16.mxu0 %v2031
    %2517 = vmatpush1.bf16.msra.mxu0 %v2030
    %2518 = vmatprep.subr.bf16.mxu0 %v2023
    %2519 = vmatpush1.bf16.msra.mxu0 %v2022
    %2520 = vmatprep.subr.bf16.mxu0 %v2015
    %2521 = vmatpush1.bf16.msra.mxu0 %v2014
    %2522 = vmatprep.subr.bf16.mxu0 %v2007
    %2523 = vmatpush1.bf16.msra.mxu0 %v2006
    %2524 = vmatprep.subr.bf16.mxu0 %v1999
    %2525 = vmatpush1.bf16.msra.mxu0 %v1998
    %2526 = vmatprep.subr.bf16.mxu0 %v2119
    %2527 = vmatpush2.bf16.msra.mxu0 %v2118
    %2528 = vmatprep.subr.bf16.mxu0 %v2111
    %2529 = vmatpush2.bf16.msra.mxu0 %v2110
    %2530 = vmatprep.subr.bf16.mxu0 %v2103
    %2531 = vmatpush2.bf16.msra.mxu0 %v2102
    %2532 = vmatprep.subr.bf16.mxu0 %v2095
    %2533 = vmatpush2.bf16.msra.mxu0 %v2094
    %2534 = vmatprep.subr.bf16.mxu0 %v2087
    %2535 = vmatpush2.bf16.msra.mxu0 %v2086
    %2536 = vmatprep.subr.bf16.mxu0 %v2079
    %2537 = vmatpush2.bf16.msra.mxu0 %v2078
    %2538 = vmatprep.subr.bf16.mxu0 %v2071
    %2539 = vmatpush2.bf16.msra.mxu0 %v2070
    %2540 = vmatprep.subr.bf16.mxu0 %v2063
    %2541 = vmatpush2.bf16.msra.mxu0 %v2062
    %2542 = vmatprep.mubr.bf16.mxu0 %v971
    %2543 = vmatmul.mubr.bf16.gmra.mxu0 %v970
    %v2544 = vpop.f32.mrf.mxu0
    %v2545 = vadd.f32 0.0, %v2544
    %v2546 = vpop.f32.mrf.mxu0
    %v2547 = vadd.f32 0.0, %v2546
    %v2548 = vpop.f32.mrf.mxu0
    %v2549 = vadd.f32 0.0, %v2548
    %v2550 = vpop.f32.mrf.mxu0
    %v2551 = vadd.f32 0.0, %v2550
    %2552 = vdwg.mxu0
    %2553 = vmatprep.subr.bf16.mxu0 %v2183
    %2554 = vmatpush1.bf16.msra.mxu0 %v2182
    %2555 = vmatprep.subr.bf16.mxu0 %v2175
    %2556 = vmatpush1.bf16.msra.mxu0 %v2174
    %2557 = vmatprep.subr.bf16.mxu0 %v2167
    %2558 = vmatpush1.bf16.msra.mxu0 %v2166
    %2559 = vmatprep.subr.bf16.mxu0 %v2159
    %2560 = vmatpush1.bf16.msra.mxu0 %v2158
    %2561 = vmatprep.subr.bf16.mxu0 %v2151
    %2562 = vmatpush1.bf16.msra.mxu0 %v2150
    %2563 = vmatprep.subr.bf16.mxu0 %v2143
    %2564 = vmatpush1.bf16.msra.mxu0 %v2142
    %2565 = vmatprep.subr.bf16.mxu0 %v2135
    %2566 = vmatpush1.bf16.msra.mxu0 %v2134
    %2567 = vmatprep.subr.bf16.mxu0 %v2127
    %2568 = vmatpush1.bf16.msra.mxu0 %v2126
    %2569 = vmatprep.subr.bf16.mxu0 %v2247
    %2570 = vmatpush2.bf16.msra.mxu0 %v2246
    %2571 = vmatprep.subr.bf16.mxu0 %v2239
    %2572 = vmatpush2.bf16.msra.mxu0 %v2238
    %2573 = vmatprep.subr.bf16.mxu0 %v2231
    %2574 = vmatpush2.bf16.msra.mxu0 %v2230
    %2575 = vmatprep.subr.bf16.mxu0 %v2223
    %2576 = vmatpush2.bf16.msra.mxu0 %v2222
    %2577 = vmatprep.subr.bf16.mxu0 %v2215
    %2578 = vmatpush2.bf16.msra.mxu0 %v2214
    %2579 = vmatprep.subr.bf16.mxu0 %v2207
    %2580 = vmatpush2.bf16.msra.mxu0 %v2206
    %2581 = vmatprep.subr.bf16.mxu0 %v2199
    %2582 = vmatpush2.bf16.msra.mxu0 %v2198
    %2583 = vmatprep.subr.bf16.mxu0 %v2191
    %2584 = vmatpush2.bf16.msra.mxu0 %v2190
    %2585 = vmatprep.mubr.bf16.mxu0 %v973
    %2586 = vmatmul.mubr.bf16.gmra.mxu0 %v972
    %v2587 = vpop.f32.mrf.mxu0
    %v2588 = vadd.f32 %v2545, %v2587
    %v2589 = vpop.f32.mrf.mxu0
    %v2590 = vadd.f32 %v2547, %v2589
    %v2591 = vpop.f32.mrf.mxu0
    %v2592 = vadd.f32 %v2549, %v2591
    %v2593 = vpop.f32.mrf.mxu0
    %v2594 = vadd.f32 %v2551, %v2593
    %2595 = vdwg.mxu0
    %2596 = vmatprep.subr.bf16.mxu0 %v2057
    %2597 = vmatpush1.bf16.msra.mxu0 %v2056
    %2598 = vmatprep.subr.bf16.mxu0 %v2049
    %2599 = vmatpush1.bf16.msra.mxu0 %v2048
    %2600 = vmatprep.subr.bf16.mxu0 %v2041
    %2601 = vmatpush1.bf16.msra.mxu0 %v2040
    %2602 = vmatprep.subr.bf16.mxu0 %v2033
    %2603 = vmatpush1.bf16.msra.mxu0 %v2032
    %2604 = vmatprep.subr.bf16.mxu0 %v2025
    %2605 = vmatpush1.bf16.msra.mxu0 %v2024
    %2606 = vmatprep.subr.bf16.mxu0 %v2017
    %2607 = vmatpush1.bf16.msra.mxu0 %v2016
    %2608 = vmatprep.subr.bf16.mxu0 %v2009
    %2609 = vmatpush1.bf16.msra.mxu0 %v2008
    %2610 = vmatprep.subr.bf16.mxu0 %v2001
    %2611 = vmatpush1.bf16.msra.mxu0 %v2000
    %2612 = vmatprep.subr.bf16.mxu0 %v2121
    %2613 = vmatpush2.bf16.msra.mxu0 %v2120
    %2614 = vmatprep.subr.bf16.mxu0 %v2113
    %2615 = vmatpush2.bf16.msra.mxu0 %v2112
    %2616 = vmatprep.subr.bf16.mxu0 %v2105
    %2617 = vmatpush2.bf16.msra.mxu0 %v2104
    %2618 = vmatprep.subr.bf16.mxu0 %v2097
    %2619 = vmatpush2.bf16.msra.mxu0 %v2096
    %2620 = vmatprep.subr.bf16.mxu0 %v2089
    %2621 = vmatpush2.bf16.msra.mxu0 %v2088
    %2622 = vmatprep.subr.bf16.mxu0 %v2081
    %2623 = vmatpush2.bf16.msra.mxu0 %v2080
    %2624 = vmatprep.subr.bf16.mxu0 %v2073
    %2625 = vmatpush2.bf16.msra.mxu0 %v2072
    %2626 = vmatprep.subr.bf16.mxu0 %v2065
    %2627 = vmatpush2.bf16.msra.mxu0 %v2064
    %2628 = vmatprep.mubr.bf16.mxu0 %v971
    %2629 = vmatmul.mubr.bf16.gmra.mxu0 %v970
    %v2630 = vpop.f32.mrf.mxu0
    %v2631 = vadd.f32 0.0, %v2630
    %v2632 = vpop.f32.mrf.mxu0
    %v2633 = vadd.f32 0.0, %v2632
    %v2634 = vpop.f32.mrf.mxu0
    %v2635 = vadd.f32 0.0, %v2634
    %v2636 = vpop.f32.mrf.mxu0
    %v2637 = vadd.f32 0.0, %v2636
    %2638 = vdwg.mxu0
    %2639 = vmatprep.subr.bf16.mxu0 %v2185
    %2640 = vmatpush1.bf16.msra.mxu0 %v2184
    %2641 = vmatprep.subr.bf16.mxu0 %v2177
    %2642 = vmatpush1.bf16.msra.mxu0 %v2176
    %2643 = vmatprep.subr.bf16.mxu0 %v2169
    %2644 = vmatpush1.bf16.msra.mxu0 %v2168
    %2645 = vmatprep.subr.bf16.mxu0 %v2161
    %2646 = vmatpush1.bf16.msra.mxu0 %v2160
    %2647 = vmatprep.subr.bf16.mxu0 %v2153
    %2648 = vmatpush1.bf16.msra.mxu0 %v2152
    %2649 = vmatprep.subr.bf16.mxu0 %v2145
    %2650 = vmatpush1.bf16.msra.mxu0 %v2144
    %2651 = vmatprep.subr.bf16.mxu0 %v2137
    %2652 = vmatpush1.bf16.msra.mxu0 %v2136
    %2653 = vmatprep.subr.bf16.mxu0 %v2129
    %2654 = vmatpush1.bf16.msra.mxu0 %v2128
    %2655 = vmatprep.subr.bf16.mxu0 %v2249
    %2656 = vmatpush2.bf16.msra.mxu0 %v2248
    %2657 = vmatprep.subr.bf16.mxu0 %v2241
    %2658 = vmatpush2.bf16.msra.mxu0 %v2240
    %2659 = vmatprep.subr.bf16.mxu0 %v2233
    %2660 = vmatpush2.bf16.msra.mxu0 %v2232
    %2661 = vmatprep.subr.bf16.mxu0 %v2225
    %2662 = vmatpush2.bf16.msra.mxu0 %v2224
    %2663 = vmatprep.subr.bf16.mxu0 %v2217
    %2664 = vmatpush2.bf16.msra.mxu0 %v2216
    %2665 = vmatprep.subr.bf16.mxu0 %v2209
    %2666 = vmatpush2.bf16.msra.mxu0 %v2208
    %2667 = vmatprep.subr.bf16.mxu0 %v2201
    %2668 = vmatpush2.bf16.msra.mxu0 %v2200
    %2669 = vmatprep.subr.bf16.mxu0 %v2193
    %2670 = vmatpush2.bf16.msra.mxu0 %v2192
    %2671 = vmatprep.mubr.bf16.mxu0 %v973
    %2672 = vmatmul.mubr.bf16.gmra.mxu0 %v972
    %v2673 = vpop.f32.mrf.mxu0
    %v2674 = vadd.f32 %v2631, %v2673
    %v2675 = vpop.f32.mrf.mxu0
    %v2676 = vadd.f32 %v2633, %v2675
    %v2677 = vpop.f32.mrf.mxu0
    %v2678 = vadd.f32 %v2635, %v2677
    %v2679 = vpop.f32.mrf.mxu0
    %v2680 = vadd.f32 %v2637, %v2679
    %2681 = vdwg.mxu0
    %2682 = vmatprep.subr.bf16.mxu0 %v2059
    %2683 = vmatpush1.bf16.msra.mxu0 %v2058
    %2684 = vmatprep.subr.bf16.mxu0 %v2051
    %2685 = vmatpush1.bf16.msra.mxu0 %v2050
    %2686 = vmatprep.subr.bf16.mxu0 %v2043
    %2687 = vmatpush1.bf16.msra.mxu0 %v2042
    %2688 = vmatprep.subr.bf16.mxu0 %v2035
    %2689 = vmatpush1.bf16.msra.mxu0 %v2034
    %2690 = vmatprep.subr.bf16.mxu0 %v2027
    %2691 = vmatpush1.bf16.msra.mxu0 %v2026
    %2692 = vmatprep.subr.bf16.mxu0 %v2019
    %2693 = vmatpush1.bf16.msra.mxu0 %v2018
    %2694 = vmatprep.subr.bf16.mxu0 %v2011
    %2695 = vmatpush1.bf16.msra.mxu0 %v2010
    %2696 = vmatprep.subr.bf16.mxu0 %v2003
    %2697 = vmatpush1.bf16.msra.mxu0 %v2002
    %2698 = vmatprep.subr.bf16.mxu0 %v2123
    %2699 = vmatpush2.bf16.msra.mxu0 %v2122
    %2700 = vmatprep.subr.bf16.mxu0 %v2115
    %2701 = vmatpush2.bf16.msra.mxu0 %v2114
    %2702 = vmatprep.subr.bf16.mxu0 %v2107
    %2703 = vmatpush2.bf16.msra.mxu0 %v2106
    %2704 = vmatprep.subr.bf16.mxu0 %v2099
    %2705 = vmatpush2.bf16.msra.mxu0 %v2098
    %2706 = vmatprep.subr.bf16.mxu0 %v2091
    %2707 = vmatpush2.bf16.msra.mxu0 %v2090
    %2708 = vmatprep.subr.bf16.mxu0 %v2083
    %2709 = vmatpush2.bf16.msra.mxu0 %v2082
    %2710 = vmatprep.subr.bf16.mxu0 %v2075
    %2711 = vmatpush2.bf16.msra.mxu0 %v2074
    %2712 = vmatprep.subr.bf16.mxu0 %v2067
    %2713 = vmatpush2.bf16.msra.mxu0 %v2066
    %2714 = vmatprep.mubr.bf16.mxu0 %v971
    %2715 = vmatmul.mubr.bf16.gmra.mxu0 %v970
    %v2716 = vpop.f32.mrf.mxu0
    %v2717 = vadd.f32 0.0, %v2716
    %v2718 = vpop.f32.mrf.mxu0
    %v2719 = vadd.f32 0.0, %v2718
    %v2720 = vpop.f32.mrf.mxu0
    %v2721 = vadd.f32 0.0, %v2720
    %v2722 = vpop.f32.mrf.mxu0
    %v2723 = vadd.f32 0.0, %v2722
    %2724 = vdwg.mxu0
    %2725 = vmatprep.subr.bf16.mxu0 %v2187
    %2726 = vmatpush1.bf16.msra.mxu0 %v2186
    %2727 = vmatprep.subr.bf16.mxu0 %v2179
    %2728 = vmatpush1.bf16.msra.mxu0 %v2178
    %2729 = vmatprep.subr.bf16.mxu0 %v2171
    %2730 = vmatpush1.bf16.msra.mxu0 %v2170
    %2731 = vmatprep.subr.bf16.mxu0 %v2163
    %2732 = vmatpush1.bf16.msra.mxu0 %v2162
    %2733 = vmatprep.subr.bf16.mxu0 %v2155
    %2734 = vmatpush1.bf16.msra.mxu0 %v2154
    %2735 = vmatprep.subr.bf16.mxu0 %v2147
    %2736 = vmatpush1.bf16.msra.mxu0 %v2146
    %2737 = vmatprep.subr.bf16.mxu0 %v2139
    %2738 = vmatpush1.bf16.msra.mxu0 %v2138
    %2739 = vmatprep.subr.bf16.mxu0 %v2131
    %2740 = vmatpush1.bf16.msra.mxu0 %v2130
    %2741 = vmatprep.subr.bf16.mxu0 %v2251
    %2742 = vmatpush2.bf16.msra.mxu0 %v2250
    %2743 = vmatprep.subr.bf16.mxu0 %v2243
    %2744 = vmatpush2.bf16.msra.mxu0 %v2242
    %2745 = vmatprep.subr.bf16.mxu0 %v2235
    %2746 = vmatpush2.bf16.msra.mxu0 %v2234
    %2747 = vmatprep.subr.bf16.mxu0 %v2227
    %2748 = vmatpush2.bf16.msra.mxu0 %v2226
    %2749 = vmatprep.subr.bf16.mxu0 %v2219
    %2750 = vmatpush2.bf16.msra.mxu0 %v2218
    %2751 = vmatprep.subr.bf16.mxu0 %v2211
    %2752 = vmatpush2.bf16.msra.mxu0 %v2210
    %2753 = vmatprep.subr.bf16.mxu0 %v2203
    %2754 = vmatpush2.bf16.msra.mxu0 %v2202
    %2755 = vmatprep.subr.bf16.mxu0 %v2195
    %2756 = vmatpush2.bf16.msra.mxu0 %v2194
    %2757 = vmatprep.mubr.bf16.mxu0 %v973
    %2758 = vmatmul.mubr.bf16.gmra.mxu0 %v972
    %v2759 = vpop.f32.mrf.mxu0
    %v2760 = vadd.f32 %v2717, %v2759
    %v2761 = vpop.f32.mrf.mxu0
    %v2762 = vadd.f32 %v2719, %v2761
    %v2763 = vpop.f32.mrf.mxu0
    %v2764 = vadd.f32 %v2721, %v2763
    %v2765 = vpop.f32.mrf.mxu0
    %v2766 = vadd.f32 %v2723, %v2765
    %2767 = vdwg.mxu0
    %2768 = vmatprep.subr.bf16.mxu0 %v2061
    %2769 = vmatpush1.bf16.msra.mxu0 %v2060
    %2770 = vmatprep.subr.bf16.mxu0 %v2053
    %2771 = vmatpush1.bf16.msra.mxu0 %v2052
    %2772 = vmatprep.subr.bf16.mxu0 %v2045
    %2773 = vmatpush1.bf16.msra.mxu0 %v2044
    %2774 = vmatprep.subr.bf16.mxu0 %v2037
    %2775 = vmatpush1.bf16.msra.mxu0 %v2036
    %2776 = vmatprep.subr.bf16.mxu0 %v2029
    %2777 = vmatpush1.bf16.msra.mxu0 %v2028
    %2778 = vmatprep.subr.bf16.mxu0 %v2021
    %2779 = vmatpush1.bf16.msra.mxu0 %v2020
    %2780 = vmatprep.subr.bf16.mxu0 %v2013
    %2781 = vmatpush1.bf16.msra.mxu0 %v2012
    %2782 = vmatprep.subr.bf16.mxu0 %v2005
    %2783 = vmatpush1.bf16.msra.mxu0 %v2004
    %2784 = vmatprep.subr.bf16.mxu0 %v2125
    %2785 = vmatpush2.bf16.msra.mxu0 %v2124
    %2786 = vmatprep.subr.bf16.mxu0 %v2117
    %2787 = vmatpush2.bf16.msra.mxu0 %v2116
    %2788 = vmatprep.subr.bf16.mxu0 %v2109
    %2789 = vmatpush2.bf16.msra.mxu0 %v2108
    %2790 = vmatprep.subr.bf16.mxu0 %v2101
    %2791 = vmatpush2.bf16.msra.mxu0 %v2100
    %2792 = vmatprep.subr.bf16.mxu0 %v2093
    %2793 = vmatpush2.bf16.msra.mxu0 %v2092
    %2794 = vmatprep.subr.bf16.mxu0 %v2085
    %2795 = vmatpush2.bf16.msra.mxu0 %v2084
    %2796 = vmatprep.subr.bf16.mxu0 %v2077
    %2797 = vmatpush2.bf16.msra.mxu0 %v2076
    %2798 = vmatprep.subr.bf16.mxu0 %v2069
    %2799 = vmatpush2.bf16.msra.mxu0 %v2068
    %2800 = vmatprep.mubr.bf16.mxu0 %v971
    %2801 = vmatmul.mubr.bf16.gmra.mxu0 %v970
    %v2802 = vpop.f32.mrf.mxu0
    %v2803 = vadd.f32 0.0, %v2802
    %v2804 = vpop.f32.mrf.mxu0
    %v2805 = vadd.f32 0.0, %v2804
    %v2806 = vpop.f32.mrf.mxu0
    %v2807 = vadd.f32 0.0, %v2806
    %v2808 = vpop.f32.mrf.mxu0
    %v2809 = vadd.f32 0.0, %v2808
    %2810 = vdwg.mxu0
    %2811 = vmatprep.subr.bf16.mxu0 %v2189
    %2812 = vmatpush1.bf16.msra.mxu0 %v2188
    %2813 = vmatprep.subr.bf16.mxu0 %v2181
    %2814 = vmatpush1.bf16.msra.mxu0 %v2180
    %2815 = vmatprep.subr.bf16.mxu0 %v2173
    %2816 = vmatpush1.bf16.msra.mxu0 %v2172
    %2817 = vmatprep.subr.bf16.mxu0 %v2165
    %2818 = vmatpush1.bf16.msra.mxu0 %v2164
    %2819 = vmatprep.subr.bf16.mxu0 %v2157
    %2820 = vmatpush1.bf16.msra.mxu0 %v2156
    %2821 = vmatprep.subr.bf16.mxu0 %v2149
    %2822 = vmatpush1.bf16.msra.mxu0 %v2148
    %2823 = vmatprep.subr.bf16.mxu0 %v2141
    %2824 = vmatpush1.bf16.msra.mxu0 %v2140
    %2825 = vmatprep.subr.bf16.mxu0 %v2133
    %2826 = vmatpush1.bf16.msra.mxu0 %v2132
    %2827 = vmatprep.subr.bf16.mxu0 %v2253
    %2828 = vmatpush2.bf16.msra.mxu0 %v2252
    %2829 = vmatprep.subr.bf16.mxu0 %v2245
    %2830 = vmatpush2.bf16.msra.mxu0 %v2244
    %2831 = vmatprep.subr.bf16.mxu0 %v2237
    %2832 = vmatpush2.bf16.msra.mxu0 %v2236
    %2833 = vmatprep.subr.bf16.mxu0 %v2229
    %2834 = vmatpush2.bf16.msra.mxu0 %v2228
    %2835 = vmatprep.subr.bf16.mxu0 %v2221
    %2836 = vmatpush2.bf16.msra.mxu0 %v2220
    %2837 = vmatprep.subr.bf16.mxu0 %v2213
    %2838 = vmatpush2.bf16.msra.mxu0 %v2212
    %2839 = vmatprep.subr.bf16.mxu0 %v2205
    %2840 = vmatpush2.bf16.msra.mxu0 %v2204
    %2841 = vmatprep.subr.bf16.mxu0 %v2197
    %2842 = vmatpush2.bf16.msra.mxu0 %v2196
    %2843 = vmatprep.mubr.bf16.mxu0 %v973
    %2844 = vmatmul.mubr.bf16.gmra.mxu0 %v972
    %v2845 = vpop.f32.mrf.mxu0
    %v2846 = vadd.f32 %v2803, %v2845
    %v2847 = vpop.f32.mrf.mxu0
    %v2848 = vadd.f32 %v2805, %v2847
    %v2849 = vpop.f32.mrf.mxu0
    %v2850 = vadd.f32 %v2807, %v2849
    %v2851 = vpop.f32.mrf.mxu0
    %v2852 = vadd.f32 %v2809, %v2851
    %2853 = vdwg.mxu0
    %v2854 = vpack.c.bf16 %v2592, %v2588
    %v2855 = vpack.c.bf16 %v2594, %v2590
    %v2856 = vpack.c.bf16 %v2678, %v2674
    %v2857 = vpack.c.bf16 %v2680, %v2676
    %v2858 = vpack.c.bf16 %v2764, %v2760
    %v2859 = vpack.c.bf16 %v2766, %v2762
    %v2860 = vpack.c.bf16 %v2850, %v2846
    %v2861 = vpack.c.bf16 %v2852, %v2848
    %v2862 = vld [vmem:[#allocation10] sm:$0xff]
    %v2864 = vcombine.high %v2862, %v2862
    %v2866 = vunpack.c.l.s4 1966171168
    %v2867 = vunpack.c.0.s8 %v2866
    %v2868 = vlaneseq
    %v2869 = vshrl.u32 %v2868, 7
    %v2870 = vsub.s32 %v2867, %v2869
    %v2871 = vrot.slane %v2862, %v2870
    %v2873 = vunpack.c.l.s4 1966171168
    %v2874 = vunpack.c.0.s8 %v2873
    %v2875 = vlaneseq
    %v2876 = vshrl.u32 %v2875, 7
    %v2877 = vsub.s32 %v2874, %v2876
    %v2878 = vrot.slane %v2864, %v2877
    %v2879 = vcombine.high %v2871, %v2871
    %v2880 = vcombine.high %v2878, %v2878
    %v2882 = vunpack.c.l.s4 1966171168
    %v2883 = vunpack.c.0.s8 %v2882
    %v2884 = vlaneseq
    %v2885 = vshrl.u32 %v2884, 7
    %v2886 = vsub.s32 %v2883, %v2885
    %v2887 = vrot.slane %v2871, %v2886
    %v2889 = vunpack.c.l.s4 1966171168
    %v2890 = vunpack.c.0.s8 %v2889
    %v2891 = vlaneseq
    %v2892 = vshrl.u32 %v2891, 7
    %v2893 = vsub.s32 %v2890, %v2892
    %v2894 = vrot.slane %v2878, %v2893
    %v2896 = vunpack.c.l.s4 1966171168
    %v2897 = vunpack.c.0.s8 %v2896
    %v2898 = vlaneseq
    %v2899 = vshrl.u32 %v2898, 7
    %v2900 = vsub.s32 %v2897, %v2899
    %v2901 = vrot.slane %v2879, %v2900
    %v2903 = vunpack.c.l.s4 1966171168
    %v2904 = vunpack.c.0.s8 %v2903
    %v2905 = vlaneseq
    %v2906 = vshrl.u32 %v2905, 7
    %v2907 = vsub.s32 %v2904, %v2906
    %v2908 = vrot.slane %v2880, %v2907
    %v2909 = vcombine.high %v2887, %v2887
    %v2910 = vcombine.high %v2894, %v2894
    %v2911 = vcombine.high %v2901, %v2901
    %v2912 = vcombine.high %v2908, %v2908
    %v2914 = vpack.i.b16 %v2887, %v2887
    %v2916 = vlaneseq
    %v2917 = vshrl.u32 %v2916, 7
    %v2918 = vsub.s32 0, %v2917
    %v2919 = vrot.slane %v2914, %v2918
    %v2921 = vpack.i.b16 %v2901, %v2901
    %v2923 = vlaneseq
    %v2924 = vshrl.u32 %v2923, 7
    %v2925 = vsub.s32 0, %v2924
    %v2926 = vrot.slane %v2921, %v2925
    %v2928 = vpack.i.b16 %v2909, %v2909
    %v2930 = vlaneseq
    %v2931 = vshrl.u32 %v2930, 7
    %v2932 = vsub.s32 0, %v2931
    %v2933 = vrot.slane %v2928, %v2932
    %v2935 = vpack.i.b16 %v2911, %v2911
    %v2937 = vlaneseq
    %v2938 = vshrl.u32 %v2937, 7
    %v2939 = vsub.s32 0, %v2938
    %v2940 = vrot.slane %v2935, %v2939
    %v2942 = vpack.i.b16 %v2894, %v2894
    %v2944 = vlaneseq
    %v2945 = vshrl.u32 %v2944, 7
    %v2946 = vsub.s32 0, %v2945
    %v2947 = vrot.slane %v2942, %v2946
    %v2949 = vpack.i.b16 %v2908, %v2908
    %v2951 = vlaneseq
    %v2952 = vshrl.u32 %v2951, 7
    %v2953 = vsub.s32 0, %v2952
    %v2954 = vrot.slane %v2949, %v2953
    %v2956 = vpack.i.b16 %v2910, %v2910
    %v2958 = vlaneseq
    %v2959 = vshrl.u32 %v2958, 7
    %v2960 = vsub.s32 0, %v2959
    %v2961 = vrot.slane %v2956, %v2960
    %v2963 = vpack.i.b16 %v2912, %v2912
    %v2965 = vlaneseq
    %v2966 = vshrl.u32 %v2965, 7
    %v2967 = vsub.s32 0, %v2966
    %v2968 = vrot.slane %v2963, %v2967
    %v2969 = vadd.bf16 %v2854, %v2919
    %v2970 = vadd.bf16 %v2855, %v2926
    %v2971 = vadd.bf16 %v2856, %v2933
    %v2972 = vadd.bf16 %v2857, %v2940
    %v2973 = vadd.bf16 %v2858, %v2947
    %v2974 = vadd.bf16 %v2859, %v2954
    %v2975 = vadd.bf16 %v2860, %v2961
    %v2976 = vadd.bf16 %v2861, %v2968
    %vm2977 = vcmp.gt.bf16.partialorder %v2969, 0
    %vm2978 = vcmp.gt.bf16.partialorder %v2970, 0
    %vm2979 = vcmp.gt.bf16.partialorder %v2971, 0
    %vm2980 = vcmp.gt.bf16.partialorder %v2972, 0
    %vm2981 = vcmp.gt.bf16.partialorder %v2973, 0
    %vm2982 = vcmp.gt.bf16.partialorder %v2974, 0
    %vm2983 = vcmp.gt.bf16.partialorder %v2975, 0
    %vm2984 = vcmp.gt.bf16.partialorder %v2976, 0
    %v2985 = vmul.bf16 %v2969, 1045249613
    %v2986 = vmul.bf16 %v2970, 1045249613
    %v2987 = vmul.bf16 %v2971, 1045249613
    %v2988 = vmul.bf16 %v2972, 1045249613
    %v2989 = vmul.bf16 %v2973, 1045249613
    %v2990 = vmul.bf16 %v2974, 1045249613
    %v2991 = vmul.bf16 %v2975, 1045249613
    %v2992 = vmul.bf16 %v2976, 1045249613
    %v2993 = vsel %vm2977, %v2969, %v2985
    %v2994 = vsel %vm2978, %v2970, %v2986
    %v2995 = vsel %vm2979, %v2971, %v2987
    %v2996 = vsel %vm2980, %v2972, %v2988
    %v2997 = vsel %vm2981, %v2973, %v2989
    %v2998 = vsel %vm2982, %v2974, %v2990
    %v2999 = vsel %vm2983, %v2975, %v2991
    %v3000 = vsel %vm2984, %v2976, %v2992
    %v3001 = vld [vmem:[#allocation12] sm:$0xf]
    %v3002 = vld [vmem:[#allocation12 + $0x1c] sm:$0xf]
    %v3003 = vld [vmem:[#allocation12 + $0x38] sm:$0xf]
    %v3004 = vld [vmem:[#allocation12 + $0x54] sm:$0xf]
    %v3005 = vld [vmem:[#allocation12 + $0x70] sm:$0xf]
    %v3006 = vld [vmem:[#allocation12 + $0x8c] sm:$0xf]
    %v3007 = vld [vmem:[#allocation12 + $0xa8] sm:$0xf]
    %v3008 = vld [vmem:[#allocation12 + $0xc4] sm:$0xf]
    %v3009 = vld [vmem:[#allocation12 + $0xe0] sm:$0xf]
    %v3010 = vld [vmem:[#allocation12 + $0xfc] sm:$0xf]
    %v3011 = vld [vmem:[#allocation12 + $0x118] sm:$0xf]
    %v3012 = vld [vmem:[#allocation12 + $0x134] sm:$0xf]
    %v3013 = vld [vmem:[#allocation12 + $0x150] sm:$0xf]
    %v3014 = vld [vmem:[#allocation12 + $0x16c] sm:$0xf]
    %v3015 = vld [vmem:[#allocation12 + $0x188] sm:$0xf]
    %v3016 = vld [vmem:[#allocation12 + $0x1a4] sm:$0xf]
    %v3017 = vld [vmem:[#allocation12 + $0x1c0] sm:$0xf]
    %v3018 = vld [vmem:[#allocation12 + $0x1dc] sm:$0xf]
    %v3019 = vld [vmem:[#allocation12 + $0x1f8] sm:$0xf]
    %v3020 = vld [vmem:[#allocation12 + $0x214] sm:$0xf]
    %v3021 = vld [vmem:[#allocation12 + $0x230] sm:$0xf]
    %v3022 = vld [vmem:[#allocation12 + $0x24c] sm:$0xf]
    %v3023 = vld [vmem:[#allocation12 + $0x268] sm:$0xf]
    %v3024 = vld [vmem:[#allocation12 + $0x284] sm:$0xf]
    %v3025 = vld [vmem:[#allocation12 + $0x2a0] sm:$0xf]
    %v3026 = vld [vmem:[#allocation12 + $0x2bc] sm:$0xf]
    %v3027 = vld [vmem:[#allocation12 + $0x2d8] sm:$0xf]
    %v3028 = vld [vmem:[#allocation12 + $0x2f4] sm:$0xf]
    %v3029 = vld [vmem:[#allocation12 + $0x310] sm:$0xf]
    %v3030 = vld [vmem:[#allocation12 + $0x32c] sm:$0xf]
    %v3031 = vld [vmem:[#allocation12 + $0x348] sm:$0xf]
    %v3032 = vld [vmem:[#allocation12 + $0x364] sm:$0xf]
    %v3033 = vld [vmem:[#allocation12 + $0x380] sm:$0xf]
    %v3034 = vld [vmem:[#allocation12 + $0x39c] sm:$0xf]
    %v3035 = vld [vmem:[#allocation12 + $0x3b8] sm:$0xf]
    %v3036 = vld [vmem:[#allocation12 + $0x3d4] sm:$0xf]
    %v3037 = vld [vmem:[#allocation12 + $0x3f0] sm:$0xf]
    %v3038 = vld [vmem:[#allocation12 + $0x40c] sm:$0xf]
    %v3039 = vld [vmem:[#allocation12 + $0x428] sm:$0xf]
    %v3040 = vld [vmem:[#allocation12 + $0x444] sm:$0xf]
    %v3041 = vld [vmem:[#allocation12 + $0x460] sm:$0xf]
    %v3042 = vld [vmem:[#allocation12 + $0x47c] sm:$0xf]
    %v3043 = vld [vmem:[#allocation12 + $0x498] sm:$0xf]
    %v3044 = vld [vmem:[#allocation12 + $0x4b4] sm:$0xf]
    %v3045 = vld [vmem:[#allocation12 + $0x4d0] sm:$0xf]
    %v3046 = vld [vmem:[#allocation12 + $0x4ec] sm:$0xf]
    %v3047 = vld [vmem:[#allocation12 + $0x508] sm:$0xf]
    %v3048 = vld [vmem:[#allocation12 + $0x524] sm:$0xf]
    %v3049 = vld [vmem:[#allocation12 + $0x540] sm:$0xf]
    %v3050 = vld [vmem:[#allocation12 + $0x55c] sm:$0xf]
    %v3051 = vld [vmem:[#allocation12 + $0x578] sm:$0xf]
    %v3052 = vld [vmem:[#allocation12 + $0x594] sm:$0xf]
    %v3053 = vld [vmem:[#allocation12 + $0x5b0] sm:$0xf]
    %v3054 = vld [vmem:[#allocation12 + $0x5cc] sm:$0xf]
    %v3055 = vld [vmem:[#allocation12 + $0x5e8] sm:$0xf]
    %v3056 = vld [vmem:[#allocation12 + $0x604] sm:$0xf]
    %v3057 = vld [vmem:[#allocation12 + $0x620] sm:$0xf]
    %v3058 = vld [vmem:[#allocation12 + $0x63c] sm:$0xf]
    %v3059 = vld [vmem:[#allocation12 + $0x658] sm:$0xf]
    %v3060 = vld [vmem:[#allocation12 + $0x674] sm:$0xf]
    %v3061 = vld [vmem:[#allocation12 + $0x690] sm:$0xf]
    %v3062 = vld [vmem:[#allocation12 + $0x6ac] sm:$0xf]
    %v3063 = vld [vmem:[#allocation12 + $0x6c8] sm:$0xf]
    %v3064 = vld [vmem:[#allocation12 + $0x6e4] sm:$0xf]
    %v3065 = vld [vmem:[#allocation12 + $0x700] sm:$0xf]
    %v3066 = vld [vmem:[#allocation12 + $0x71c] sm:$0xf]
    %v3067 = vld [vmem:[#allocation12 + $0x738] sm:$0xf]
    %v3068 = vld [vmem:[#allocation12 + $0x754] sm:$0xf]
    %v3069 = vld [vmem:[#allocation12 + $0x770] sm:$0xf]
    %v3070 = vld [vmem:[#allocation12 + $0x78c] sm:$0xf]
    %v3071 = vld [vmem:[#allocation12 + $0x7a8] sm:$0xf]
    %v3072 = vld [vmem:[#allocation12 + $0x7c4] sm:$0xf]
    %v3073 = vld [vmem:[#allocation12 + $0x7e0] sm:$0xf]
    %v3074 = vld [vmem:[#allocation12 + $0x7fc] sm:$0xf]
    %v3075 = vld [vmem:[#allocation12 + $0x818] sm:$0xf]
    %v3076 = vld [vmem:[#allocation12 + $0x834] sm:$0xf]
    %v3077 = vld [vmem:[#allocation12 + $0x850] sm:$0xf]
    %v3078 = vld [vmem:[#allocation12 + $0x86c] sm:$0xf]
    %v3079 = vld [vmem:[#allocation12 + $0x888] sm:$0xf]
    %v3080 = vld [vmem:[#allocation12 + $0x8a4] sm:$0xf]
    %v3081 = vld [vmem:[#allocation12 + $0x8c0] sm:$0xf]
    %v3082 = vld [vmem:[#allocation12 + $0x8dc] sm:$0xf]
    %v3083 = vld [vmem:[#allocation12 + $0x8f8] sm:$0xf]
    %v3084 = vld [vmem:[#allocation12 + $0x914] sm:$0xf]
    %v3085 = vld [vmem:[#allocation12 + $0x930] sm:$0xf]
    %v3086 = vld [vmem:[#allocation12 + $0x94c] sm:$0xf]
    %v3087 = vld [vmem:[#allocation12 + $0x968] sm:$0xf]
    %v3088 = vld [vmem:[#allocation12 + $0x984] sm:$0xf]
    %v3089 = vld [vmem:[#allocation12 + $0x9a0] sm:$0xf]
    %v3090 = vld [vmem:[#allocation12 + $0x9bc] sm:$0xf]
    %v3091 = vld [vmem:[#allocation12 + $0x9d8] sm:$0xf]
    %v3092 = vld [vmem:[#allocation12 + $0x9f4] sm:$0xf]
    %v3093 = vld [vmem:[#allocation12 + $0xa10] sm:$0xf]
    %v3094 = vld [vmem:[#allocation12 + $0xa2c] sm:$0xf]
    %v3095 = vld [vmem:[#allocation12 + $0xa48] sm:$0xf]
    %v3096 = vld [vmem:[#allocation12 + $0xa64] sm:$0xf]
    %v3097 = vld [vmem:[#allocation12 + $0xa80] sm:$0xf]
    %v3098 = vld [vmem:[#allocation12 + $0xa9c] sm:$0xf]
    %v3099 = vld [vmem:[#allocation12 + $0xab8] sm:$0xf]
    %v3100 = vld [vmem:[#allocation12 + $0xad4] sm:$0xf]
    %v3101 = vld [vmem:[#allocation12 + $0xaf0] sm:$0xf]
    %v3102 = vld [vmem:[#allocation12 + $0xb0c] sm:$0xf]
    %v3103 = vld [vmem:[#allocation12 + $0xb28] sm:$0xf]
    %v3104 = vld [vmem:[#allocation12 + $0xb44] sm:$0xf]
    %v3105 = vld [vmem:[#allocation12 + $0xb60] sm:$0xf]
    %v3106 = vld [vmem:[#allocation12 + $0xb7c] sm:$0xf]
    %v3107 = vld [vmem:[#allocation12 + $0xb98] sm:$0xf]
    %v3108 = vld [vmem:[#allocation12 + $0xbb4] sm:$0xf]
    %v3109 = vld [vmem:[#allocation12 + $0xbd0] sm:$0xf]
    %v3110 = vld [vmem:[#allocation12 + $0xbec] sm:$0xf]
    %v3111 = vld [vmem:[#allocation12 + $0xc08] sm:$0xf]
    %v3112 = vld [vmem:[#allocation12 + $0xc24] sm:$0xf]
    %v3113 = vld [vmem:[#allocation12 + $0xc40] sm:$0xf]
    %v3114 = vld [vmem:[#allocation12 + $0xc5c] sm:$0xf]
    %v3115 = vld [vmem:[#allocation12 + $0xc78] sm:$0xf]
    %v3116 = vld [vmem:[#allocation12 + $0xc94] sm:$0xf]
    %v3117 = vld [vmem:[#allocation12 + $0xcb0] sm:$0xf]
    %v3118 = vld [vmem:[#allocation12 + $0xccc] sm:$0xf]
    %v3119 = vld [vmem:[#allocation12 + $0xce8] sm:$0xf]
    %v3120 = vld [vmem:[#allocation12 + $0xd04] sm:$0xf]
    %v3121 = vld [vmem:[#allocation12 + $0xd20] sm:$0xf]
    %v3122 = vld [vmem:[#allocation12 + $0xd3c] sm:$0xf]
    %v3123 = vld [vmem:[#allocation12 + $0xd58] sm:$0xf]
    %v3124 = vld [vmem:[#allocation12 + $0xd74] sm:$0xf]
    %v3125 = vld [vmem:[#allocation12 + $0xd90] sm:$0xf]
    %v3126 = vld [vmem:[#allocation12 + $0xdac] sm:$0xf]
    %v3127 = vld [vmem:[#allocation12 + $0xdc8] sm:$0xf]
    %v3128 = vld [vmem:[#allocation12 + $0xde4] sm:$0xf]
    %v3129 = vld [vmem:[#allocation13] sm:$0x1]
    %v3131 = vlaneseq
    %v3132 = vshrl.u32 %v3131, 7
    %v3133 = vsub.s32 0, %v3132
    %v3134 = vrot.slane %v3129, %v3133
    %v3264 = vunpack.c.l.b16 %v3001
    %v3265 = vunpack.c.l.b16 %v3002
    %v3266 = vunpack.c.l.b16 %v3003
    %v3267 = vunpack.c.l.b16 %v3004
    %v3268 = vunpack.c.l.b16 %v3005
    %v3269 = vunpack.c.l.b16 %v3006
    %v3270 = vunpack.c.l.b16 %v3007
    %v3271 = vunpack.c.l.b16 %v3008
    %v3272 = vunpack.c.l.b16 %v3009
    %v3273 = vunpack.c.l.b16 %v3010
    %v3274 = vunpack.c.l.b16 %v3011
    %v3275 = vunpack.c.l.b16 %v3012
    %v3276 = vunpack.c.l.b16 %v3013
    %v3277 = vunpack.c.l.b16 %v3014
    %v3278 = vunpack.c.l.b16 %v3015
    %v3279 = vunpack.c.l.b16 %v3016
    %v3280 = vunpack.c.l.b16 %v3017
    %v3281 = vunpack.c.l.b16 %v3018
    %v3282 = vunpack.c.l.b16 %v3019
    %v3283 = vunpack.c.l.b16 %v3020
    %v3284 = vunpack.c.l.b16 %v3021
    %v3285 = vunpack.c.l.b16 %v3022
    %v3286 = vunpack.c.l.b16 %v3023
    %v3287 = vunpack.c.l.b16 %v3024
    %v3288 = vunpack.c.l.b16 %v3025
    %v3289 = vunpack.c.l.b16 %v3026
    %v3290 = vunpack.c.l.b16 %v3027
    %v3291 = vunpack.c.l.b16 %v3028
    %v3292 = vunpack.c.l.b16 %v3029
    %v3293 = vunpack.c.l.b16 %v3030
    %v3294 = vunpack.c.l.b16 %v3031
    %v3295 = vunpack.c.l.b16 %v3032
    %v3296 = vunpack.c.l.b16 %v3033
    %v3297 = vunpack.c.l.b16 %v3034
    %v3298 = vunpack.c.l.b16 %v3035
    %v3299 = vunpack.c.l.b16 %v3036
    %v3300 = vunpack.c.l.b16 %v3037
    %v3301 = vunpack.c.l.b16 %v3038
    %v3302 = vunpack.c.l.b16 %v3039
    %v3303 = vunpack.c.l.b16 %v3040
    %v3304 = vunpack.c.l.b16 %v3041
    %v3305 = vunpack.c.l.b16 %v3042
    %v3306 = vunpack.c.l.b16 %v3043
    %v3307 = vunpack.c.l.b16 %v3044
    %v3308 = vunpack.c.l.b16 %v3045
    %v3309 = vunpack.c.l.b16 %v3046
    %v3310 = vunpack.c.l.b16 %v3047
    %v3311 = vunpack.c.l.b16 %v3048
    %v3312 = vunpack.c.l.b16 %v3049
    %v3313 = vunpack.c.l.b16 %v3050
    %v3314 = vunpack.c.l.b16 %v3051
    %v3315 = vunpack.c.l.b16 %v3052
    %v3316 = vunpack.c.l.b16 %v3053
    %v3317 = vunpack.c.l.b16 %v3054
    %v3318 = vunpack.c.l.b16 %v3055
    %v3319 = vunpack.c.l.b16 %v3056
    %v3320 = vunpack.c.l.b16 %v3057
    %v3321 = vunpack.c.l.b16 %v3058
    %v3322 = vunpack.c.l.b16 %v3059
    %v3323 = vunpack.c.l.b16 %v3060
    %v3324 = vunpack.c.l.b16 %v3061
    %v3325 = vunpack.c.l.b16 %v3062
    %v3326 = vunpack.c.l.b16 %v3063
    %v3327 = vunpack.c.l.b16 %v3064
    %v3328 = vunpack.c.l.b16 %v3065
    %v3329 = vunpack.c.l.b16 %v3066
    %v3330 = vunpack.c.l.b16 %v3067
    %v3331 = vunpack.c.l.b16 %v3068
    %v3332 = vunpack.c.l.b16 %v3069
    %v3333 = vunpack.c.l.b16 %v3070
    %v3334 = vunpack.c.l.b16 %v3071
    %v3335 = vunpack.c.l.b16 %v3072
    %v3336 = vunpack.c.l.b16 %v3073
    %v3337 = vunpack.c.l.b16 %v3074
    %v3338 = vunpack.c.l.b16 %v3075
    %v3339 = vunpack.c.l.b16 %v3076
    %v3340 = vunpack.c.l.b16 %v3077
    %v3341 = vunpack.c.l.b16 %v3078
    %v3342 = vunpack.c.l.b16 %v3079
    %v3343 = vunpack.c.l.b16 %v3080
    %v3344 = vunpack.c.l.b16 %v3081
    %v3345 = vunpack.c.l.b16 %v3082
    %v3346 = vunpack.c.l.b16 %v3083
    %v3347 = vunpack.c.l.b16 %v3084
    %v3348 = vunpack.c.l.b16 %v3085
    %v3349 = vunpack.c.l.b16 %v3086
    %v3350 = vunpack.c.l.b16 %v3087
    %v3351 = vunpack.c.l.b16 %v3088
    %v3352 = vunpack.c.l.b16 %v3089
    %v3353 = vunpack.c.l.b16 %v3090
    %v3354 = vunpack.c.l.b16 %v3091
    %v3355 = vunpack.c.l.b16 %v3092
    %v3356 = vunpack.c.l.b16 %v3093
    %v3357 = vunpack.c.l.b16 %v3094
    %v3358 = vunpack.c.l.b16 %v3095
    %v3359 = vunpack.c.l.b16 %v3096
    %v3360 = vunpack.c.l.b16 %v3097
    %v3361 = vunpack.c.l.b16 %v3098
    %v3362 = vunpack.c.l.b16 %v3099
    %v3363 = vunpack.c.l.b16 %v3100
    %v3364 = vunpack.c.l.b16 %v3101
    %v3365 = vunpack.c.l.b16 %v3102
    %v3366 = vunpack.c.l.b16 %v3103
    %v3367 = vunpack.c.l.b16 %v3104
    %v3368 = vunpack.c.l.b16 %v3105
    %v3369 = vunpack.c.l.b16 %v3106
    %v3370 = vunpack.c.l.b16 %v3107
    %v3371 = vunpack.c.l.b16 %v3108
    %v3372 = vunpack.c.l.b16 %v3109
    %v3373 = vunpack.c.l.b16 %v3110
    %v3374 = vunpack.c.l.b16 %v3111
    %v3375 = vunpack.c.l.b16 %v3112
    %v3376 = vunpack.c.l.b16 %v3113
    %v3377 = vunpack.c.l.b16 %v3114
    %v3378 = vunpack.c.l.b16 %v3115
    %v3379 = vunpack.c.l.b16 %v3116
    %v3380 = vunpack.c.l.b16 %v3117
    %v3381 = vunpack.c.l.b16 %v3118
    %v3382 = vunpack.c.l.b16 %v3119
    %v3383 = vunpack.c.l.b16 %v3120
    %v3384 = vunpack.c.l.b16 %v3121
    %v3385 = vunpack.c.l.b16 %v3122
    %v3386 = vunpack.c.l.b16 %v3123
    %v3387 = vunpack.c.l.b16 %v3124
    %v3388 = vunpack.c.l.b16 %v3125
    %v3389 = vunpack.c.l.b16 %v3126
    %v3390 = vunpack.c.l.b16 %v3127
    %v3391 = vunpack.c.l.b16 %v3128
    %v3392 = vpack.c.b16 %v3265, %v3264
    %v3393 = vpack.c.b16 %v3267, %v3266
    %v3394 = vpack.c.b16 %v3269, %v3268
    %v3395 = vpack.c.b16 %v3271, %v3270
    %v3396 = vpack.c.b16 %v3273, %v3272
    %v3397 = vpack.c.b16 %v3275, %v3274
    %v3398 = vpack.c.b16 %v3277, %v3276
    %v3399 = vpack.c.b16 %v3279, %v3278
    %v3400 = vpack.c.b16 %v3281, %v3280
    %v3401 = vpack.c.b16 %v3283, %v3282
    %v3402 = vpack.c.b16 %v3285, %v3284
    %v3403 = vpack.c.b16 %v3287, %v3286
    %v3404 = vpack.c.b16 %v3289, %v3288
    %v3405 = vpack.c.b16 %v3291, %v3290
    %v3406 = vpack.c.b16 %v3293, %v3292
    %v3407 = vpack.c.b16 %v3295, %v3294
    %v3408 = vpack.c.b16 %v3297, %v3296
    %v3409 = vpack.c.b16 %v3299, %v3298
    %v3410 = vpack.c.b16 %v3301, %v3300
    %v3411 = vpack.c.b16 %v3303, %v3302
    %v3412 = vpack.c.b16 %v3305, %v3304
    %v3413 = vpack.c.b16 %v3307, %v3306
    %v3414 = vpack.c.b16 %v3309, %v3308
    %v3415 = vpack.c.b16 %v3311, %v3310
    %v3416 = vpack.c.b16 %v3313, %v3312
    %v3417 = vpack.c.b16 %v3315, %v3314
    %v3418 = vpack.c.b16 %v3317, %v3316
    %v3419 = vpack.c.b16 %v3319, %v3318
    %v3420 = vpack.c.b16 %v3321, %v3320
    %v3421 = vpack.c.b16 %v3323, %v3322
    %v3422 = vpack.c.b16 %v3325, %v3324
    %v3423 = vpack.c.b16 %v3327, %v3326
    %v3424 = vpack.c.b16 %v3329, %v3328
    %v3425 = vpack.c.b16 %v3331, %v3330
    %v3426 = vpack.c.b16 %v3333, %v3332
    %v3427 = vpack.c.b16 %v3335, %v3334
    %v3428 = vpack.c.b16 %v3337, %v3336
    %v3429 = vpack.c.b16 %v3339, %v3338
    %v3430 = vpack.c.b16 %v3341, %v3340
    %v3431 = vpack.c.b16 %v3343, %v3342
    %v3432 = vpack.c.b16 %v3345, %v3344
    %v3433 = vpack.c.b16 %v3347, %v3346
    %v3434 = vpack.c.b16 %v3349, %v3348
    %v3435 = vpack.c.b16 %v3351, %v3350
    %v3436 = vpack.c.b16 %v3353, %v3352
    %v3437 = vpack.c.b16 %v3355, %v3354
    %v3438 = vpack.c.b16 %v3357, %v3356
    %v3439 = vpack.c.b16 %v3359, %v3358
    %v3440 = vpack.c.b16 %v3361, %v3360
    %v3441 = vpack.c.b16 %v3363, %v3362
    %v3442 = vpack.c.b16 %v3365, %v3364
    %v3443 = vpack.c.b16 %v3367, %v3366
    %v3444 = vpack.c.b16 %v3369, %v3368
    %v3445 = vpack.c.b16 %v3371, %v3370
    %v3446 = vpack.c.b16 %v3373, %v3372
    %v3447 = vpack.c.b16 %v3375, %v3374
    %v3448 = vpack.c.b16 %v3377, %v3376
    %v3449 = vpack.c.b16 %v3379, %v3378
    %v3450 = vpack.c.b16 %v3381, %v3380
    %v3451 = vpack.c.b16 %v3383, %v3382
    %v3452 = vpack.c.b16 %v3385, %v3384
    %v3453 = vpack.c.b16 %v3387, %v3386
    %v3454 = vpack.c.b16 %v3389, %v3388
    %v3455 = vpack.c.b16 %v3391, %v3390
    %3520 = vmatprep.subr.bf16.mxu0 0
    %3521 = vmatpush1.bf16.msra.mxu0 %v3399
    %3522 = vmatprep.subr.bf16.mxu0 0
    %3523 = vmatpush1.bf16.msra.mxu0 %v3398
    %3524 = vmatprep.subr.bf16.mxu0 0
    %3525 = vmatpush1.bf16.msra.mxu0 %v3397
    %3526 = vmatprep.subr.bf16.mxu0 0
    %3527 = vmatpush1.bf16.msra.mxu0 %v3396
    %3528 = vmatprep.subr.bf16.mxu0 0
    %3529 = vmatpush1.bf16.msra.mxu0 %v3395
    %3530 = vmatprep.subr.bf16.mxu0 0
    %3531 = vmatpush1.bf16.msra.mxu0 %v3394
    %3532 = vmatprep.subr.bf16.mxu0 0
    %3533 = vmatpush1.bf16.msra.mxu0 %v3393
    %3534 = vmatprep.subr.bf16.mxu0 0
    %3535 = vmatpush1.bf16.msra.mxu0 %v3392
    %3536 = vmatprep.subr.bf16.mxu0 0
    %3537 = vmatpush2.bf16.msra.mxu0 %v3407
    %3538 = vmatprep.subr.bf16.mxu0 0
    %3539 = vmatpush2.bf16.msra.mxu0 %v3406
    %3540 = vmatprep.subr.bf16.mxu0 0
    %3541 = vmatpush2.bf16.msra.mxu0 %v3405
    %3542 = vmatprep.subr.bf16.mxu0 0
    %3543 = vmatpush2.bf16.msra.mxu0 %v3404
    %3544 = vmatprep.subr.bf16.mxu0 0
    %3545 = vmatpush2.bf16.msra.mxu0 %v3403
    %3546 = vmatprep.subr.bf16.mxu0 0
    %3547 = vmatpush2.bf16.msra.mxu0 %v3402
    %3548 = vmatprep.subr.bf16.mxu0 0
    %3549 = vmatpush2.bf16.msra.mxu0 %v3401
    %3550 = vmatprep.subr.bf16.mxu0 0
    %3551 = vmatpush2.bf16.msra.mxu0 %v3400
    %3552 = vmatprep.mubr.bf16.mxu0 %v2994
    %3553 = vmatmul.mubr.bf16.gmra.mxu0 %v2993
    %v3554 = vpop.f32.mrf.mxu0
    %v3555 = vadd.f32 %v3134, %v3554
    %v3556 = vpop.f32.mrf.mxu0
    %v3557 = vpop.f32.mrf.mxu0
    %v3558 = vadd.f32 %v3134, %v3557
    %v3559 = vpop.f32.mrf.mxu0
    %3560 = vdwg.mxu0
    %3561 = vmatprep.subr.bf16.mxu0 0
    %3562 = vmatpush1.bf16.msra.mxu0 %v3415
    %3563 = vmatprep.subr.bf16.mxu0 0
    %3564 = vmatpush1.bf16.msra.mxu0 %v3414
    %3565 = vmatprep.subr.bf16.mxu0 0
    %3566 = vmatpush1.bf16.msra.mxu0 %v3413
    %3567 = vmatprep.subr.bf16.mxu0 0
    %3568 = vmatpush1.bf16.msra.mxu0 %v3412
    %3569 = vmatprep.subr.bf16.mxu0 0
    %3570 = vmatpush1.bf16.msra.mxu0 %v3411
    %3571 = vmatprep.subr.bf16.mxu0 0
    %3572 = vmatpush1.bf16.msra.mxu0 %v3410
    %3573 = vmatprep.subr.bf16.mxu0 0
    %3574 = vmatpush1.bf16.msra.mxu0 %v3409
    %3575 = vmatprep.subr.bf16.mxu0 0
    %3576 = vmatpush1.bf16.msra.mxu0 %v3408
    %3577 = vmatprep.subr.bf16.mxu0 0
    %3578 = vmatpush2.bf16.msra.mxu0 %v3423
    %3579 = vmatprep.subr.bf16.mxu0 0
    %3580 = vmatpush2.bf16.msra.mxu0 %v3422
    %3581 = vmatprep.subr.bf16.mxu0 0
    %3582 = vmatpush2.bf16.msra.mxu0 %v3421
    %3583 = vmatprep.subr.bf16.mxu0 0
    %3584 = vmatpush2.bf16.msra.mxu0 %v3420
    %3585 = vmatprep.subr.bf16.mxu0 0
    %3586 = vmatpush2.bf16.msra.mxu0 %v3419
    %3587 = vmatprep.subr.bf16.mxu0 0
    %3588 = vmatpush2.bf16.msra.mxu0 %v3418
    %3589 = vmatprep.subr.bf16.mxu0 0
    %3590 = vmatpush2.bf16.msra.mxu0 %v3417
    %3591 = vmatprep.subr.bf16.mxu0 0
    %3592 = vmatpush2.bf16.msra.mxu0 %v3416
    %3593 = vmatprep.mubr.bf16.mxu0 %v2996
    %3594 = vmatmul.mubr.bf16.gmra.mxu0 %v2995
    %v3595 = vpop.f32.mrf.mxu0
    %v3596 = vadd.f32 %v3555, %v3595
    %v3597 = vpop.f32.mrf.mxu0
    %v3598 = vpop.f32.mrf.mxu0
    %v3599 = vadd.f32 %v3558, %v3598
    %v3600 = vpop.f32.mrf.mxu0
    %3601 = vdwg.mxu0
    %3602 = vmatprep.subr.bf16.mxu0 0
    %3603 = vmatpush1.bf16.msra.mxu0 %v3431
    %3604 = vmatprep.subr.bf16.mxu0 0
    %3605 = vmatpush1.bf16.msra.mxu0 %v3430
    %3606 = vmatprep.subr.bf16.mxu0 0
    %3607 = vmatpush1.bf16.msra.mxu0 %v3429
    %3608 = vmatprep.subr.bf16.mxu0 0
    %3609 = vmatpush1.bf16.msra.mxu0 %v3428
    %3610 = vmatprep.subr.bf16.mxu0 0
    %3611 = vmatpush1.bf16.msra.mxu0 %v3427
    %3612 = vmatprep.subr.bf16.mxu0 0
    %3613 = vmatpush1.bf16.msra.mxu0 %v3426
    %3614 = vmatprep.subr.bf16.mxu0 0
    %3615 = vmatpush1.bf16.msra.mxu0 %v3425
    %3616 = vmatprep.subr.bf16.mxu0 0
    %3617 = vmatpush1.bf16.msra.mxu0 %v3424
    %3618 = vmatprep.subr.bf16.mxu0 0
    %3619 = vmatpush2.bf16.msra.mxu0 %v3439
    %3620 = vmatprep.subr.bf16.mxu0 0
    %3621 = vmatpush2.bf16.msra.mxu0 %v3438
    %3622 = vmatprep.subr.bf16.mxu0 0
    %3623 = vmatpush2.bf16.msra.mxu0 %v3437
    %3624 = vmatprep.subr.bf16.mxu0 0
    %3625 = vmatpush2.bf16.msra.mxu0 %v3436
    %3626 = vmatprep.subr.bf16.mxu0 0
    %3627 = vmatpush2.bf16.msra.mxu0 %v3435
    %3628 = vmatprep.subr.bf16.mxu0 0
    %3629 = vmatpush2.bf16.msra.mxu0 %v3434
    %3630 = vmatprep.subr.bf16.mxu0 0
    %3631 = vmatpush2.bf16.msra.mxu0 %v3433
    %3632 = vmatprep.subr.bf16.mxu0 0
    %3633 = vmatpush2.bf16.msra.mxu0 %v3432
    %3634 = vmatprep.mubr.bf16.mxu0 %v2998
    %3635 = vmatmul.mubr.bf16.gmra.mxu0 %v2997
    %v3636 = vpop.f32.mrf.mxu0
    %v3637 = vadd.f32 %v3596, %v3636
    %v3638 = vpop.f32.mrf.mxu0
    %v3639 = vpop.f32.mrf.mxu0
    %v3640 = vadd.f32 %v3599, %v3639
    %v3641 = vpop.f32.mrf.mxu0
    %3642 = vdwg.mxu0
    %3643 = vmatprep.subr.bf16.mxu0 0
    %3644 = vmatpush1.bf16.msra.mxu0 %v3447
    %3645 = vmatprep.subr.bf16.mxu0 0
    %3646 = vmatpush1.bf16.msra.mxu0 %v3446
    %3647 = vmatprep.subr.bf16.mxu0 0
    %3648 = vmatpush1.bf16.msra.mxu0 %v3445
    %3649 = vmatprep.subr.bf16.mxu0 0
    %3650 = vmatpush1.bf16.msra.mxu0 %v3444
    %3651 = vmatprep.subr.bf16.mxu0 0
    %3652 = vmatpush1.bf16.msra.mxu0 %v3443
    %3653 = vmatprep.subr.bf16.mxu0 0
    %3654 = vmatpush1.bf16.msra.mxu0 %v3442
    %3655 = vmatprep.subr.bf16.mxu0 0
    %3656 = vmatpush1.bf16.msra.mxu0 %v3441
    %3657 = vmatprep.subr.bf16.mxu0 0
    %3658 = vmatpush1.bf16.msra.mxu0 %v3440
    %3659 = vmatprep.subr.bf16.mxu0 0
    %3660 = vmatpush2.bf16.msra.mxu0 %v3455
    %3661 = vmatprep.subr.bf16.mxu0 0
    %3662 = vmatpush2.bf16.msra.mxu0 %v3454
    %3663 = vmatprep.subr.bf16.mxu0 0
    %3664 = vmatpush2.bf16.msra.mxu0 %v3453
    %3665 = vmatprep.subr.bf16.mxu0 0
    %3666 = vmatpush2.bf16.msra.mxu0 %v3452
    %3667 = vmatprep.subr.bf16.mxu0 0
    %3668 = vmatpush2.bf16.msra.mxu0 %v3451
    %3669 = vmatprep.subr.bf16.mxu0 0
    %3670 = vmatpush2.bf16.msra.mxu0 %v3450
    %3671 = vmatprep.subr.bf16.mxu0 0
    %3672 = vmatpush2.bf16.msra.mxu0 %v3449
    %3673 = vmatprep.subr.bf16.mxu0 0
    %3674 = vmatpush2.bf16.msra.mxu0 %v3448
    %3675 = vmatprep.mubr.bf16.mxu0 %v3000
    %3676 = vmatmul.mubr.bf16.gmra.mxu0 %v2999
    %v3677 = vpop.f32.mrf.mxu0
    %v3678 = vadd.f32 %v3637, %v3677
    %v3679 = vpop.f32.mrf.mxu0
    %v3680 = vpop.f32.mrf.mxu0
    %v3681 = vadd.f32 %v3640, %v3680
    %v3682 = vpop.f32.mrf.mxu0
    %3683 = vdwg.mxu0
    %v3684 = vpack.c.bf16 %v3681, %v3678
    %v3685 = vtanh.bf16.pop %v3684
    %v3687 = vunpack.c.l.b16 %v3685
    %v3688 = vunpack.c.h.b16 %v3685
    %v3689 = vpack.c.b16 %v3687, %v3687
    %v3690 = vpack.c.b16 %v3688, %v3688
    %3693 = vst [vmem:[%s9] sm:$0xf] %v3689
    %3694 = vst [vmem:[%s9 + $0x1c] sm:$0xf] %v3690
    %v3695 = vld [vmem:[#allocation12 + $0x4] sm:$0xf]
    %v3696 = vld [vmem:[#allocation12 + $0x20] sm:$0xf]
    %v3697 = vld [vmem:[#allocation12 + $0x3c] sm:$0xf]
    %v3698 = vld [vmem:[#allocation12 + $0x58] sm:$0xf]
    %v3699 = vld [vmem:[#allocation12 + $0x74] sm:$0xf]
    %v3700 = vld [vmem:[#allocation12 + $0x90] sm:$0xf]
    %v3701 = vld [vmem:[#allocation12 + $0xac] sm:$0xf]
    %v3702 = vld [vmem:[#allocation12 + $0xc8] sm:$0xf]
    %v3703 = vld [vmem:[#allocation12 + $0xe4] sm:$0xf]
    %v3704 = vld [vmem:[#allocation12 + $0x100] sm:$0xf]
    %v3705 = vld [vmem:[#allocation12 + $0x11c] sm:$0xf]
    %v3706 = vld [vmem:[#allocation12 + $0x138] sm:$0xf]
    %v3707 = vld [vmem:[#allocation12 + $0x154] sm:$0xf]
    %v3708 = vld [vmem:[#allocation12 + $0x170] sm:$0xf]
    %v3709 = vld [vmem:[#allocation12 + $0x18c] sm:$0xf]
    %v3710 = vld [vmem:[#allocation12 + $0x1a8] sm:$0xf]
    %v3711 = vld [vmem:[#allocation12 + $0x1c4] sm:$0xf]
    %v3712 = vld [vmem:[#allocation12 + $0x1e0] sm:$0xf]
    %v3713 = vld [vmem:[#allocation12 + $0x1fc] sm:$0xf]
    %v3714 = vld [vmem:[#allocation12 + $0x218] sm:$0xf]
    %v3715 = vld [vmem:[#allocation12 + $0x234] sm:$0xf]
    %v3716 = vld [vmem:[#allocation12 + $0x250] sm:$0xf]
    %v3717 = vld [vmem:[#allocation12 + $0x26c] sm:$0xf]
    %v3718 = vld [vmem:[#allocation12 + $0x288] sm:$0xf]
    %v3719 = vld [vmem:[#allocation12 + $0x2a4] sm:$0xf]
    %v3720 = vld [vmem:[#allocation12 + $0x2c0] sm:$0xf]
    %v3721 = vld [vmem:[#allocation12 + $0x2dc] sm:$0xf]
    %v3722 = vld [vmem:[#allocation12 + $0x2f8] sm:$0xf]
    %v3723 = vld [vmem:[#allocation12 + $0x314] sm:$0xf]
    %v3724 = vld [vmem:[#allocation12 + $0x330] sm:$0xf]
    %v3725 = vld [vmem:[#allocation12 + $0x34c] sm:$0xf]
    %v3726 = vld [vmem:[#allocation12 + $0x368] sm:$0xf]
    %v3727 = vld [vmem:[#allocation12 + $0x384] sm:$0xf]
    %v3728 = vld [vmem:[#allocation12 + $0x3a0] sm:$0xf]
    %v3729 = vld [vmem:[#allocation12 + $0x3bc] sm:$0xf]
    %v3730 = vld [vmem:[#allocation12 + $0x3d8] sm:$0xf]
    %v3731 = vld [vmem:[#allocation12 + $0x3f4] sm:$0xf]
    %v3732 = vld [vmem:[#allocation12 + $0x410] sm:$0xf]
    %v3733 = vld [vmem:[#allocation12 + $0x42c] sm:$0xf]
    %v3734 = vld [vmem:[#allocation12 + $0x448] sm:$0xf]
    %v3735 = vld [vmem:[#allocation12 + $0x464] sm:$0xf]
    %v3736 = vld [vmem:[#allocation12 + $0x480] sm:$0xf]
    %v3737 = vld [vmem:[#allocation12 + $0x49c] sm:$0xf]
    %v3738 = vld [vmem:[#allocation12 + $0x4b8] sm:$0xf]
    %v3739 = vld [vmem:[#allocation12 + $0x4d4] sm:$0xf]
    %v3740 = vld [vmem:[#allocation12 + $0x4f0] sm:$0xf]
    %v3741 = vld [vmem:[#allocation12 + $0x50c] sm:$0xf]
    %v3742 = vld [vmem:[#allocation12 + $0x528] sm:$0xf]
    %v3743 = vld [vmem:[#allocation12 + $0x544] sm:$0xf]
    %v3744 = vld [vmem:[#allocation12 + $0x560] sm:$0xf]
    %v3745 = vld [vmem:[#allocation12 + $0x57c] sm:$0xf]
    %v3746 = vld [vmem:[#allocation12 + $0x598] sm:$0xf]
    %v3747 = vld [vmem:[#allocation12 + $0x5b4] sm:$0xf]
    %v3748 = vld [vmem:[#allocation12 + $0x5d0] sm:$0xf]
    %v3749 = vld [vmem:[#allocation12 + $0x5ec] sm:$0xf]
    %v3750 = vld [vmem:[#allocation12 + $0x608] sm:$0xf]
    %v3751 = vld [vmem:[#allocation12 + $0x624] sm:$0xf]
    %v3752 = vld [vmem:[#allocation12 + $0x640] sm:$0xf]
    %v3753 = vld [vmem:[#allocation12 + $0x65c] sm:$0xf]
    %v3754 = vld [vmem:[#allocation12 + $0x678] sm:$0xf]
    %v3755 = vld [vmem:[#allocation12 + $0x694] sm:$0xf]
    %v3756 = vld [vmem:[#allocation12 + $0x6b0] sm:$0xf]
    %v3757 = vld [vmem:[#allocation12 + $0x6cc] sm:$0xf]
    %v3758 = vld [vmem:[#allocation12 + $0x6e8] sm:$0xf]
    %v3759 = vld [vmem:[#allocation12 + $0x704] sm:$0xf]
    %v3760 = vld [vmem:[#allocation12 + $0x720] sm:$0xf]
    %v3761 = vld [vmem:[#allocation12 + $0x73c] sm:$0xf]
    %v3762 = vld [vmem:[#allocation12 + $0x758] sm:$0xf]
    %v3763 = vld [vmem:[#allocation12 + $0x774] sm:$0xf]
    %v3764 = vld [vmem:[#allocation12 + $0x790] sm:$0xf]
    %v3765 = vld [vmem:[#allocation12 + $0x7ac] sm:$0xf]
    %v3766 = vld [vmem:[#allocation12 + $0x7c8] sm:$0xf]
    %v3767 = vld [vmem:[#allocation12 + $0x7e4] sm:$0xf]
    %v3768 = vld [vmem:[#allocation12 + $0x800] sm:$0xf]
    %v3769 = vld [vmem:[#allocation12 + $0x81c] sm:$0xf]
    %v3770 = vld [vmem:[#allocation12 + $0x838] sm:$0xf]
    %v3771 = vld [vmem:[#allocation12 + $0x854] sm:$0xf]
    %v3772 = vld [vmem:[#allocation12 + $0x870] sm:$0xf]
    %v3773 = vld [vmem:[#allocation12 + $0x88c] sm:$0xf]
    %v3774 = vld [vmem:[#allocation12 + $0x8a8] sm:$0xf]
    %v3775 = vld [vmem:[#allocation12 + $0x8c4] sm:$0xf]
    %v3776 = vld [vmem:[#allocation12 + $0x8e0] sm:$0xf]
    %v3777 = vld [vmem:[#allocation12 + $0x8fc] sm:$0xf]
    %v3778 = vld [vmem:[#allocation12 + $0x918] sm:$0xf]
    %v3779 = vld [vmem:[#allocation12 + $0x934] sm:$0xf]
    %v3780 = vld [vmem:[#allocation12 + $0x950] sm:$0xf]
    %v3781 = vld [vmem:[#allocation12 + $0x96c] sm:$0xf]
    %v3782 = vld [vmem:[#allocation12 + $0x988] sm:$0xf]
    %v3783 = vld [vmem:[#allocation12 + $0x9a4] sm:$0xf]
    %v3784 = vld [vmem:[#allocation12 + $0x9c0] sm:$0xf]
    %v3785 = vld [vmem:[#allocation12 + $0x9dc] sm:$0xf]
    %v3786 = vld [vmem:[#allocation12 + $0x9f8] sm:$0xf]
    %v3787 = vld [vmem:[#allocation12 + $0xa14] sm:$0xf]
    %v3788 = vld [vmem:[#allocation12 + $0xa30] sm:$0xf]
    %v3789 = vld [vmem:[#allocation12 + $0xa4c] sm:$0xf]
    %v3790 = vld [vmem:[#allocation12 + $0xa68] sm:$0xf]
    %v3791 = vld [vmem:[#allocation12 + $0xa84] sm:$0xf]
    %v3792 = vld [vmem:[#allocation12 + $0xaa0] sm:$0xf]
    %v3793 = vld [vmem:[#allocation12 + $0xabc] sm:$0xf]
    %v3794 = vld [vmem:[#allocation12 + $0xad8] sm:$0xf]
    %v3795 = vld [vmem:[#allocation12 + $0xaf4] sm:$0xf]
    %v3796 = vld [vmem:[#allocation12 + $0xb10] sm:$0xf]
    %v3797 = vld [vmem:[#allocation12 + $0xb2c] sm:$0xf]
    %v3798 = vld [vmem:[#allocation12 + $0xb48] sm:$0xf]
    %v3799 = vld [vmem:[#allocation12 + $0xb64] sm:$0xf]
    %v3800 = vld [vmem:[#allocation12 + $0xb80] sm:$0xf]
    %v3801 = vld [vmem:[#allocation12 + $0xb9c] sm:$0xf]
    %v3802 = vld [vmem:[#allocation12 + $0xbb8] sm:$0xf]
    %v3803 = vld [vmem:[#allocation12 + $0xbd4] sm:$0xf]
    %v3804 = vld [vmem:[#allocation12 + $0xbf0] sm:$0xf]
    %v3805 = vld [vmem:[#allocation12 + $0xc0c] sm:$0xf]
    %v3806 = vld [vmem:[#allocation12 + $0xc28] sm:$0xf]
    %v3807 = vld [vmem:[#allocation12 + $0xc44] sm:$0xf]
    %v3808 = vld [vmem:[#allocation12 + $0xc60] sm:$0xf]
    %v3809 = vld [vmem:[#allocation12 + $0xc7c] sm:$0xf]
    %v3810 = vld [vmem:[#allocation12 + $0xc98] sm:$0xf]
    %v3811 = vld [vmem:[#allocation12 + $0xcb4] sm:$0xf]
    %v3812 = vld [vmem:[#allocation12 + $0xcd0] sm:$0xf]
    %v3813 = vld [vmem:[#allocation12 + $0xcec] sm:$0xf]
    %v3814 = vld [vmem:[#allocation12 + $0xd08] sm:$0xf]
    %v3815 = vld [vmem:[#allocation12 + $0xd24] sm:$0xf]
    %v3816 = vld [vmem:[#allocation12 + $0xd40] sm:$0xf]
    %v3817 = vld [vmem:[#allocation12 + $0xd5c] sm:$0xf]
    %v3818 = vld [vmem:[#allocation12 + $0xd78] sm:$0xf]
    %v3819 = vld [vmem:[#allocation12 + $0xd94] sm:$0xf]
    %v3820 = vld [vmem:[#allocation12 + $0xdb0] sm:$0xf]
    %v3821 = vld [vmem:[#allocation12 + $0xdcc] sm:$0xf]
    %v3822 = vld [vmem:[#allocation12 + $0xde8] sm:$0xf]
    %v3823 = vld [vmem:[#allocation13 + $0x1] sm:$0x1]
    %v3825 = vlaneseq
    %v3826 = vshrl.u32 %v3825, 7
    %v3827 = vsub.s32 0, %v3826
    %v3828 = vrot.slane %v3823, %v3827
    %v3958 = vunpack.c.l.b16 %v3695
    %v3959 = vunpack.c.l.b16 %v3696
    %v3960 = vunpack.c.l.b16 %v3697
    %v3961 = vunpack.c.l.b16 %v3698
    %v3962 = vunpack.c.l.b16 %v3699
    %v3963 = vunpack.c.l.b16 %v3700
    %v3964 = vunpack.c.l.b16 %v3701
    %v3965 = vunpack.c.l.b16 %v3702
    %v3966 = vunpack.c.l.b16 %v3703
    %v3967 = vunpack.c.l.b16 %v3704
    %v3968 = vunpack.c.l.b16 %v3705
    %v3969 = vunpack.c.l.b16 %v3706
    %v3970 = vunpack.c.l.b16 %v3707
    %v3971 = vunpack.c.l.b16 %v3708
    %v3972 = vunpack.c.l.b16 %v3709
    %v3973 = vunpack.c.l.b16 %v3710
    %v3974 = vunpack.c.l.b16 %v3711
    %v3975 = vunpack.c.l.b16 %v3712
    %v3976 = vunpack.c.l.b16 %v3713
    %v3977 = vunpack.c.l.b16 %v3714
    %v3978 = vunpack.c.l.b16 %v3715
    %v3979 = vunpack.c.l.b16 %v3716
    %v3980 = vunpack.c.l.b16 %v3717
    %v3981 = vunpack.c.l.b16 %v3718
    %v3982 = vunpack.c.l.b16 %v3719
    %v3983 = vunpack.c.l.b16 %v3720
    %v3984 = vunpack.c.l.b16 %v3721
    %v3985 = vunpack.c.l.b16 %v3722
    %v3986 = vunpack.c.l.b16 %v3723
    %v3987 = vunpack.c.l.b16 %v3724
    %v3988 = vunpack.c.l.b16 %v3725
    %v3989 = vunpack.c.l.b16 %v3726
    %v3990 = vunpack.c.l.b16 %v3727
    %v3991 = vunpack.c.l.b16 %v3728
    %v3992 = vunpack.c.l.b16 %v3729
    %v3993 = vunpack.c.l.b16 %v3730
    %v3994 = vunpack.c.l.b16 %v3731
    %v3995 = vunpack.c.l.b16 %v3732
    %v3996 = vunpack.c.l.b16 %v3733
    %v3997 = vunpack.c.l.b16 %v3734
    %v3998 = vunpack.c.l.b16 %v3735
    %v3999 = vunpack.c.l.b16 %v3736
    %v4000 = vunpack.c.l.b16 %v3737
    %v4001 = vunpack.c.l.b16 %v3738
    %v4002 = vunpack.c.l.b16 %v3739
    %v4003 = vunpack.c.l.b16 %v3740
    %v4004 = vunpack.c.l.b16 %v3741
    %v4005 = vunpack.c.l.b16 %v3742
    %v4006 = vunpack.c.l.b16 %v3743
    %v4007 = vunpack.c.l.b16 %v3744
    %v4008 = vunpack.c.l.b16 %v3745
    %v4009 = vunpack.c.l.b16 %v3746
    %v4010 = vunpack.c.l.b16 %v3747
    %v4011 = vunpack.c.l.b16 %v3748
    %v4012 = vunpack.c.l.b16 %v3749
    %v4013 = vunpack.c.l.b16 %v3750
    %v4014 = vunpack.c.l.b16 %v3751
    %v4015 = vunpack.c.l.b16 %v3752
    %v4016 = vunpack.c.l.b16 %v3753
    %v4017 = vunpack.c.l.b16 %v3754
    %v4018 = vunpack.c.l.b16 %v3755
    %v4019 = vunpack.c.l.b16 %v3756
    %v4020 = vunpack.c.l.b16 %v3757
    %v4021 = vunpack.c.l.b16 %v3758
    %v4022 = vunpack.c.l.b16 %v3759
    %v4023 = vunpack.c.l.b16 %v3760
    %v4024 = vunpack.c.l.b16 %v3761
    %v4025 = vunpack.c.l.b16 %v3762
    %v4026 = vunpack.c.l.b16 %v3763
    %v4027 = vunpack.c.l.b16 %v3764
    %v4028 = vunpack.c.l.b16 %v3765
    %v4029 = vunpack.c.l.b16 %v3766
    %v4030 = vunpack.c.l.b16 %v3767
    %v4031 = vunpack.c.l.b16 %v3768
    %v4032 = vunpack.c.l.b16 %v3769
    %v4033 = vunpack.c.l.b16 %v3770
    %v4034 = vunpack.c.l.b16 %v3771
    %v4035 = vunpack.c.l.b16 %v3772
    %v4036 = vunpack.c.l.b16 %v3773
    %v4037 = vunpack.c.l.b16 %v3774
    %v4038 = vunpack.c.l.b16 %v3775
    %v4039 = vunpack.c.l.b16 %v3776
    %v4040 = vunpack.c.l.b16 %v3777
    %v4041 = vunpack.c.l.b16 %v3778
    %v4042 = vunpack.c.l.b16 %v3779
    %v4043 = vunpack.c.l.b16 %v3780
    %v4044 = vunpack.c.l.b16 %v3781
    %v4045 = vunpack.c.l.b16 %v3782
    %v4046 = vunpack.c.l.b16 %v3783
    %v4047 = vunpack.c.l.b16 %v3784
    %v4048 = vunpack.c.l.b16 %v3785
    %v4049 = vunpack.c.l.b16 %v3786
    %v4050 = vunpack.c.l.b16 %v3787
    %v4051 = vunpack.c.l.b16 %v3788
    %v4052 = vunpack.c.l.b16 %v3789
    %v4053 = vunpack.c.l.b16 %v3790
    %v4054 = vunpack.c.l.b16 %v3791
    %v4055 = vunpack.c.l.b16 %v3792
    %v4056 = vunpack.c.l.b16 %v3793
    %v4057 = vunpack.c.l.b16 %v3794
    %v4058 = vunpack.c.l.b16 %v3795
    %v4059 = vunpack.c.l.b16 %v3796
    %v4060 = vunpack.c.l.b16 %v3797
    %v4061 = vunpack.c.l.b16 %v3798
    %v4062 = vunpack.c.l.b16 %v3799
    %v4063 = vunpack.c.l.b16 %v3800
    %v4064 = vunpack.c.l.b16 %v3801
    %v4065 = vunpack.c.l.b16 %v3802
    %v4066 = vunpack.c.l.b16 %v3803
    %v4067 = vunpack.c.l.b16 %v3804
    %v4068 = vunpack.c.l.b16 %v3805
    %v4069 = vunpack.c.l.b16 %v3806
    %v4070 = vunpack.c.l.b16 %v3807
    %v4071 = vunpack.c.l.b16 %v3808
    %v4072 = vunpack.c.l.b16 %v3809
    %v4073 = vunpack.c.l.b16 %v3810
    %v4074 = vunpack.c.l.b16 %v3811
    %v4075 = vunpack.c.l.b16 %v3812
    %v4076 = vunpack.c.l.b16 %v3813
    %v4077 = vunpack.c.l.b16 %v3814
    %v4078 = vunpack.c.l.b16 %v3815
    %v4079 = vunpack.c.l.b16 %v3816
    %v4080 = vunpack.c.l.b16 %v3817
    %v4081 = vunpack.c.l.b16 %v3818
    %v4082 = vunpack.c.l.b16 %v3819
    %v4083 = vunpack.c.l.b16 %v3820
    %v4084 = vunpack.c.l.b16 %v3821
    %v4085 = vunpack.c.l.b16 %v3822
    %v4086 = vpack.c.b16 %v3959, %v3958
    %v4087 = vpack.c.b16 %v3961, %v3960
    %v4088 = vpack.c.b16 %v3963, %v3962
    %v4089 = vpack.c.b16 %v3965, %v3964
    %v4090 = vpack.c.b16 %v3967, %v3966
    %v4091 = vpack.c.b16 %v3969, %v3968
    %v4092 = vpack.c.b16 %v3971, %v3970
    %v4093 = vpack.c.b16 %v3973, %v3972
    %v4094 = vpack.c.b16 %v3975, %v3974
    %v4095 = vpack.c.b16 %v3977, %v3976
    %v4096 = vpack.c.b16 %v3979, %v3978
    %v4097 = vpack.c.b16 %v3981, %v3980
    %v4098 = vpack.c.b16 %v3983, %v3982
    %v4099 = vpack.c.b16 %v3985, %v3984
    %v4100 = vpack.c.b16 %v3987, %v3986
    %v4101 = vpack.c.b16 %v3989, %v3988
    %v4102 = vpack.c.b16 %v3991, %v3990
    %v4103 = vpack.c.b16 %v3993, %v3992
    %v4104 = vpack.c.b16 %v3995, %v3994
    %v4105 = vpack.c.b16 %v3997, %v3996
    %v4106 = vpack.c.b16 %v3999, %v3998
    %v4107 = vpack.c.b16 %v4001, %v4000
    %v4108 = vpack.c.b16 %v4003, %v4002
    %v4109 = vpack.c.b16 %v4005, %v4004
    %v4110 = vpack.c.b16 %v4007, %v4006
    %v4111 = vpack.c.b16 %v4009, %v4008
    %v4112 = vpack.c.b16 %v4011, %v4010
    %v4113 = vpack.c.b16 %v4013, %v4012
    %v4114 = vpack.c.b16 %v4015, %v4014
    %v4115 = vpack.c.b16 %v4017, %v4016
    %v4116 = vpack.c.b16 %v4019, %v4018
    %v4117 = vpack.c.b16 %v4021, %v4020
    %v4118 = vpack.c.b16 %v4023, %v4022
    %v4119 = vpack.c.b16 %v4025, %v4024
    %v4120 = vpack.c.b16 %v4027, %v4026
    %v4121 = vpack.c.b16 %v4029, %v4028
    %v4122 = vpack.c.b16 %v4031, %v4030
    %v4123 = vpack.c.b16 %v4033, %v4032
    %v4124 = vpack.c.b16 %v4035, %v4034
    %v4125 = vpack.c.b16 %v4037, %v4036
    %v4126 = vpack.c.b16 %v4039, %v4038
    %v4127 = vpack.c.b16 %v4041, %v4040
    %v4128 = vpack.c.b16 %v4043, %v4042
    %v4129 = vpack.c.b16 %v4045, %v4044
    %v4130 = vpack.c.b16 %v4047, %v4046
    %v4131 = vpack.c.b16 %v4049, %v4048
    %v4132 = vpack.c.b16 %v4051, %v4050
    %v4133 = vpack.c.b16 %v4053, %v4052
    %v4134 = vpack.c.b16 %v4055, %v4054
    %v4135 = vpack.c.b16 %v4057, %v4056
    %v4136 = vpack.c.b16 %v4059, %v4058
    %v4137 = vpack.c.b16 %v4061, %v4060
    %v4138 = vpack.c.b16 %v4063, %v4062
    %v4139 = vpack.c.b16 %v4065, %v4064
    %v4140 = vpack.c.b16 %v4067, %v4066
    %v4141 = vpack.c.b16 %v4069, %v4068
    %v4142 = vpack.c.b16 %v4071, %v4070
    %v4143 = vpack.c.b16 %v4073, %v4072
    %v4144 = vpack.c.b16 %v4075, %v4074
    %v4145 = vpack.c.b16 %v4077, %v4076
    %v4146 = vpack.c.b16 %v4079, %v4078
    %v4147 = vpack.c.b16 %v4081, %v4080
    %v4148 = vpack.c.b16 %v4083, %v4082
    %v4149 = vpack.c.b16 %v4085, %v4084
    %4214 = vmatprep.subr.bf16.mxu0 0
    %4215 = vmatpush1.bf16.msra.mxu0 %v4093
    %4216 = vmatprep.subr.bf16.mxu0 0
    %4217 = vmatpush1.bf16.msra.mxu0 %v4092
    %4218 = vmatprep.subr.bf16.mxu0 0
    %4219 = vmatpush1.bf16.msra.mxu0 %v4091
    %4220 = vmatprep.subr.bf16.mxu0 0
    %4221 = vmatpush1.bf16.msra.mxu0 %v4090
    %4222 = vmatprep.subr.bf16.mxu0 0
    %4223 = vmatpush1.bf16.msra.mxu0 %v4089
    %4224 = vmatprep.subr.bf16.mxu0 0
    %4225 = vmatpush1.bf16.msra.mxu0 %v4088
    %4226 = vmatprep.subr.bf16.mxu0 0
    %4227 = vmatpush1.bf16.msra.mxu0 %v4087
    %4228 = vmatprep.subr.bf16.mxu0 0
    %4229 = vmatpush1.bf16.msra.mxu0 %v4086
    %4230 = vmatprep.subr.bf16.mxu0 0
    %4231 = vmatpush2.bf16.msra.mxu0 %v4101
    %4232 = vmatprep.subr.bf16.mxu0 0
    %4233 = vmatpush2.bf16.msra.mxu0 %v4100
    %4234 = vmatprep.subr.bf16.mxu0 0
    %4235 = vmatpush2.bf16.msra.mxu0 %v4099
    %4236 = vmatprep.subr.bf16.mxu0 0
    %4237 = vmatpush2.bf16.msra.mxu0 %v4098
    %4238 = vmatprep.subr.bf16.mxu0 0
    %4239 = vmatpush2.bf16.msra.mxu0 %v4097
    %4240 = vmatprep.subr.bf16.mxu0 0
    %4241 = vmatpush2.bf16.msra.mxu0 %v4096
    %4242 = vmatprep.subr.bf16.mxu0 0
    %4243 = vmatpush2.bf16.msra.mxu0 %v4095
    %4244 = vmatprep.subr.bf16.mxu0 0
    %4245 = vmatpush2.bf16.msra.mxu0 %v4094
    %4246 = vmatprep.mubr.bf16.mxu0 %v2994
    %4247 = vmatmul.mubr.bf16.gmra.mxu0 %v2993
    %v4248 = vpop.f32.mrf.mxu0
    %v4249 = vadd.f32 %v3828, %v4248
    %v4250 = vpop.f32.mrf.mxu0
    %v4251 = vpop.f32.mrf.mxu0
    %v4252 = vadd.f32 %v3828, %v4251
    %v4253 = vpop.f32.mrf.mxu0
    %4254 = vdwg.mxu0
    %4255 = vmatprep.subr.bf16.mxu0 0
    %4256 = vmatpush1.bf16.msra.mxu0 %v4109
    %4257 = vmatprep.subr.bf16.mxu0 0
    %4258 = vmatpush1.bf16.msra.mxu0 %v4108
    %4259 = vmatprep.subr.bf16.mxu0 0
    %4260 = vmatpush1.bf16.msra.mxu0 %v4107
    %4261 = vmatprep.subr.bf16.mxu0 0
    %4262 = vmatpush1.bf16.msra.mxu0 %v4106
    %4263 = vmatprep.subr.bf16.mxu0 0
    %4264 = vmatpush1.bf16.msra.mxu0 %v4105
    %4265 = vmatprep.subr.bf16.mxu0 0
    %4266 = vmatpush1.bf16.msra.mxu0 %v4104
    %4267 = vmatprep.subr.bf16.mxu0 0
    %4268 = vmatpush1.bf16.msra.mxu0 %v4103
    %4269 = vmatprep.subr.bf16.mxu0 0
    %4270 = vmatpush1.bf16.msra.mxu0 %v4102
    %4271 = vmatprep.subr.bf16.mxu0 0
    %4272 = vmatpush2.bf16.msra.mxu0 %v4117
    %4273 = vmatprep.subr.bf16.mxu0 0
    %4274 = vmatpush2.bf16.msra.mxu0 %v4116
    %4275 = vmatprep.subr.bf16.mxu0 0
    %4276 = vmatpush2.bf16.msra.mxu0 %v4115
    %4277 = vmatprep.subr.bf16.mxu0 0
    %4278 = vmatpush2.bf16.msra.mxu0 %v4114
    %4279 = vmatprep.subr.bf16.mxu0 0
    %4280 = vmatpush2.bf16.msra.mxu0 %v4113
    %4281 = vmatprep.subr.bf16.mxu0 0
    %4282 = vmatpush2.bf16.msra.mxu0 %v4112
    %4283 = vmatprep.subr.bf16.mxu0 0
    %4284 = vmatpush2.bf16.msra.mxu0 %v4111
    %4285 = vmatprep.subr.bf16.mxu0 0
    %4286 = vmatpush2.bf16.msra.mxu0 %v4110
    %4287 = vmatprep.mubr.bf16.mxu0 %v2996
    %4288 = vmatmul.mubr.bf16.gmra.mxu0 %v2995
    %v4289 = vpop.f32.mrf.mxu0
    %v4290 = vadd.f32 %v4249, %v4289
    %v4291 = vpop.f32.mrf.mxu0
    %v4292 = vpop.f32.mrf.mxu0
    %v4293 = vadd.f32 %v4252, %v4292
    %v4294 = vpop.f32.mrf.mxu0
    %4295 = vdwg.mxu0
    %4296 = vmatprep.subr.bf16.mxu0 0
    %4297 = vmatpush1.bf16.msra.mxu0 %v4125
    %4298 = vmatprep.subr.bf16.mxu0 0
    %4299 = vmatpush1.bf16.msra.mxu0 %v4124
    %4300 = vmatprep.subr.bf16.mxu0 0
    %4301 = vmatpush1.bf16.msra.mxu0 %v4123
    %4302 = vmatprep.subr.bf16.mxu0 0
    %4303 = vmatpush1.bf16.msra.mxu0 %v4122
    %4304 = vmatprep.subr.bf16.mxu0 0
    %4305 = vmatpush1.bf16.msra.mxu0 %v4121
    %4306 = vmatprep.subr.bf16.mxu0 0
    %4307 = vmatpush1.bf16.msra.mxu0 %v4120
    %4308 = vmatprep.subr.bf16.mxu0 0
    %4309 = vmatpush1.bf16.msra.mxu0 %v4119
    %4310 = vmatprep.subr.bf16.mxu0 0
    %4311 = vmatpush1.bf16.msra.mxu0 %v4118
    %4312 = vmatprep.subr.bf16.mxu0 0
    %4313 = vmatpush2.bf16.msra.mxu0 %v4133
    %4314 = vmatprep.subr.bf16.mxu0 0
    %4315 = vmatpush2.bf16.msra.mxu0 %v4132
    %4316 = vmatprep.subr.bf16.mxu0 0
    %4317 = vmatpush2.bf16.msra.mxu0 %v4131
    %4318 = vmatprep.subr.bf16.mxu0 0
    %4319 = vmatpush2.bf16.msra.mxu0 %v4130
    %4320 = vmatprep.subr.bf16.mxu0 0
    %4321 = vmatpush2.bf16.msra.mxu0 %v4129
    %4322 = vmatprep.subr.bf16.mxu0 0
    %4323 = vmatpush2.bf16.msra.mxu0 %v4128
    %4324 = vmatprep.subr.bf16.mxu0 0
    %4325 = vmatpush2.bf16.msra.mxu0 %v4127
    %4326 = vmatprep.subr.bf16.mxu0 0
    %4327 = vmatpush2.bf16.msra.mxu0 %v4126
    %4328 = vmatprep.mubr.bf16.mxu0 %v2998
    %4329 = vmatmul.mubr.bf16.gmra.mxu0 %v2997
    %v4330 = vpop.f32.mrf.mxu0
    %v4331 = vadd.f32 %v4290, %v4330
    %v4332 = vpop.f32.mrf.mxu0
    %v4333 = vpop.f32.mrf.mxu0
    %v4334 = vadd.f32 %v4293, %v4333
    %v4335 = vpop.f32.mrf.mxu0
    %4336 = vdwg.mxu0
    %4337 = vmatprep.subr.bf16.mxu0 0
    %4338 = vmatpush1.bf16.msra.mxu0 %v4141
    %4339 = vmatprep.subr.bf16.mxu0 0
    %4340 = vmatpush1.bf16.msra.mxu0 %v4140
    %4341 = vmatprep.subr.bf16.mxu0 0
    %4342 = vmatpush1.bf16.msra.mxu0 %v4139
    %4343 = vmatprep.subr.bf16.mxu0 0
    %4344 = vmatpush1.bf16.msra.mxu0 %v4138
    %4345 = vmatprep.subr.bf16.mxu0 0
    %4346 = vmatpush1.bf16.msra.mxu0 %v4137
    %4347 = vmatprep.subr.bf16.mxu0 0
    %4348 = vmatpush1.bf16.msra.mxu0 %v4136
    %4349 = vmatprep.subr.bf16.mxu0 0
    %4350 = vmatpush1.bf16.msra.mxu0 %v4135
    %4351 = vmatprep.subr.bf16.mxu0 0
    %4352 = vmatpush1.bf16.msra.mxu0 %v4134
    %4353 = vmatprep.subr.bf16.mxu0 0
    %4354 = vmatpush2.bf16.msra.mxu0 %v4149
    %4355 = vmatprep.subr.bf16.mxu0 0
    %4356 = vmatpush2.bf16.msra.mxu0 %v4148
    %4357 = vmatprep.subr.bf16.mxu0 0
    %4358 = vmatpush2.bf16.msra.mxu0 %v4147
    %4359 = vmatprep.subr.bf16.mxu0 0
    %4360 = vmatpush2.bf16.msra.mxu0 %v4146
    %4361 = vmatprep.subr.bf16.mxu0 0
    %4362 = vmatpush2.bf16.msra.mxu0 %v4145
    %4363 = vmatprep.subr.bf16.mxu0 0
    %4364 = vmatpush2.bf16.msra.mxu0 %v4144
    %4365 = vmatprep.subr.bf16.mxu0 0
    %4366 = vmatpush2.bf16.msra.mxu0 %v4143
    %4367 = vmatprep.subr.bf16.mxu0 0
    %4368 = vmatpush2.bf16.msra.mxu0 %v4142
    %4369 = vmatprep.mubr.bf16.mxu0 %v3000
    %4370 = vmatmul.mubr.bf16.gmra.mxu0 %v2999
    %v4371 = vpop.f32.mrf.mxu0
    %v4372 = vadd.f32 %v4331, %v4371
    %v4373 = vpop.f32.mrf.mxu0
    %v4374 = vpop.f32.mrf.mxu0
    %v4375 = vadd.f32 %v4334, %v4374
    %v4376 = vpop.f32.mrf.mxu0
    %4377 = vdwg.mxu0
    %v4378 = vpack.c.bf16 %v4375, %v4372
    %v4379 = vtanh.bf16.pop %v4378
    %v4381 = vunpack.c.l.b16 %v4379
    %v4382 = vunpack.c.h.b16 %v4379
    %v4383 = vpack.c.b16 %v4381, %v4381
    %v4384 = vpack.c.b16 %v4382, %v4382
    %4387 = vst [vmem:[%s9 + $0x4] sm:$0xf] %v4383
    %4388 = vst [vmem:[%s9 + $0x20] sm:$0xf] %v4384
    %v4389 = vld [vmem:[#allocation12 + $0x8] sm:$0xf]
    %v4390 = vld [vmem:[#allocation12 + $0x24] sm:$0xf]
    %v4391 = vld [vmem:[#allocation12 + $0x40] sm:$0xf]
    %v4392 = vld [vmem:[#allocation12 + $0x5c] sm:$0xf]
    %v4393 = vld [vmem:[#allocation12 + $0x78] sm:$0xf]
    %v4394 = vld [vmem:[#allocation12 + $0x94] sm:$0xf]
    %v4395 = vld [vmem:[#allocation12 + $0xb0] sm:$0xf]
    %v4396 = vld [vmem:[#allocation12 + $0xcc] sm:$0xf]
    %v4397 = vld [vmem:[#allocation12 + $0xe8] sm:$0xf]
    %v4398 = vld [vmem:[#allocation12 + $0x104] sm:$0xf]
    %v4399 = vld [vmem:[#allocation12 + $0x120] sm:$0xf]
    %v4400 = vld [vmem:[#allocation12 + $0x13c] sm:$0xf]
    %v4401 = vld [vmem:[#allocation12 + $0x158] sm:$0xf]
    %v4402 = vld [vmem:[#allocation12 + $0x174] sm:$0xf]
    %v4403 = vld [vmem:[#allocation12 + $0x190] sm:$0xf]
    %v4404 = vld [vmem:[#allocation12 + $0x1ac] sm:$0xf]
    %v4405 = vld [vmem:[#allocation12 + $0x1c8] sm:$0xf]
    %v4406 = vld [vmem:[#allocation12 + $0x1e4] sm:$0xf]
    %v4407 = vld [vmem:[#allocation12 + $0x200] sm:$0xf]
    %v4408 = vld [vmem:[#allocation12 + $0x21c] sm:$0xf]
    %v4409 = vld [vmem:[#allocation12 + $0x238] sm:$0xf]
    %v4410 = vld [vmem:[#allocation12 + $0x254] sm:$0xf]
    %v4411 = vld [vmem:[#allocation12 + $0x270] sm:$0xf]
    %v4412 = vld [vmem:[#allocation12 + $0x28c] sm:$0xf]
    %v4413 = vld [vmem:[#allocation12 + $0x2a8] sm:$0xf]
    %v4414 = vld [vmem:[#allocation12 + $0x2c4] sm:$0xf]
    %v4415 = vld [vmem:[#allocation12 + $0x2e0] sm:$0xf]
    %v4416 = vld [vmem:[#allocation12 + $0x2fc] sm:$0xf]
    %v4417 = vld [vmem:[#allocation12 + $0x318] sm:$0xf]
    %v4418 = vld [vmem:[#allocation12 + $0x334] sm:$0xf]
    %v4419 = vld [vmem:[#allocation12 + $0x350] sm:$0xf]
    %v4420 = vld [vmem:[#allocation12 + $0x36c] sm:$0xf]
    %v4421 = vld [vmem:[#allocation12 + $0x388] sm:$0xf]
    %v4422 = vld [vmem:[#allocation12 + $0x3a4] sm:$0xf]
    %v4423 = vld [vmem:[#allocation12 + $0x3c0] sm:$0xf]
    %v4424 = vld [vmem:[#allocation12 + $0x3dc] sm:$0xf]
    %v4425 = vld [vmem:[#allocation12 + $0x3f8] sm:$0xf]
    %v4426 = vld [vmem:[#allocation12 + $0x414] sm:$0xf]
    %v4427 = vld [vmem:[#allocation12 + $0x430] sm:$0xf]
    %v4428 = vld [vmem:[#allocation12 + $0x44c] sm:$0xf]
    %v4429 = vld [vmem:[#allocation12 + $0x468] sm:$0xf]
    %v4430 = vld [vmem:[#allocation12 + $0x484] sm:$0xf]
    %v4431 = vld [vmem:[#allocation12 + $0x4a0] sm:$0xf]
    %v4432 = vld [vmem:[#allocation12 + $0x4bc] sm:$0xf]
    %v4433 = vld [vmem:[#allocation12 + $0x4d8] sm:$0xf]
    %v4434 = vld [vmem:[#allocation12 + $0x4f4] sm:$0xf]
    %v4435 = vld [vmem:[#allocation12 + $0x510] sm:$0xf]
    %v4436 = vld [vmem:[#allocation12 + $0x52c] sm:$0xf]
    %v4437 = vld [vmem:[#allocation12 + $0x548] sm:$0xf]
    %v4438 = vld [vmem:[#allocation12 + $0x564] sm:$0xf]
    %v4439 = vld [vmem:[#allocation12 + $0x580] sm:$0xf]
    %v4440 = vld [vmem:[#allocation12 + $0x59c] sm:$0xf]
    %v4441 = vld [vmem:[#allocation12 + $0x5b8] sm:$0xf]
    %v4442 = vld [vmem:[#allocation12 + $0x5d4] sm:$0xf]
    %v4443 = vld [vmem:[#allocation12 + $0x5f0] sm:$0xf]
    %v4444 = vld [vmem:[#allocation12 + $0x60c] sm:$0xf]
    %v4445 = vld [vmem:[#allocation12 + $0x628] sm:$0xf]
    %v4446 = vld [vmem:[#allocation12 + $0x644] sm:$0xf]
    %v4447 = vld [vmem:[#allocation12 + $0x660] sm:$0xf]
    %v4448 = vld [vmem:[#allocation12 + $0x67c] sm:$0xf]
    %v4449 = vld [vmem:[#allocation12 + $0x698] sm:$0xf]
    %v4450 = vld [vmem:[#allocation12 + $0x6b4] sm:$0xf]
    %v4451 = vld [vmem:[#allocation12 + $0x6d0] sm:$0xf]
    %v4452 = vld [vmem:[#allocation12 + $0x6ec] sm:$0xf]
    %v4453 = vld [vmem:[#allocation12 + $0x708] sm:$0xf]
    %v4454 = vld [vmem:[#allocation12 + $0x724] sm:$0xf]
    %v4455 = vld [vmem:[#allocation12 + $0x740] sm:$0xf]
    %v4456 = vld [vmem:[#allocation12 + $0x75c] sm:$0xf]
    %v4457 = vld [vmem:[#allocation12 + $0x778] sm:$0xf]
    %v4458 = vld [vmem:[#allocation12 + $0x794] sm:$0xf]
    %v4459 = vld [vmem:[#allocation12 + $0x7b0] sm:$0xf]
    %v4460 = vld [vmem:[#allocation12 + $0x7cc] sm:$0xf]
    %v4461 = vld [vmem:[#allocation12 + $0x7e8] sm:$0xf]
    %v4462 = vld [vmem:[#allocation12 + $0x804] sm:$0xf]
    %v4463 = vld [vmem:[#allocation12 + $0x820] sm:$0xf]
    %v4464 = vld [vmem:[#allocation12 + $0x83c] sm:$0xf]
    %v4465 = vld [vmem:[#allocation12 + $0x858] sm:$0xf]
    %v4466 = vld [vmem:[#allocation12 + $0x874] sm:$0xf]
    %v4467 = vld [vmem:[#allocation12 + $0x890] sm:$0xf]
    %v4468 = vld [vmem:[#allocation12 + $0x8ac] sm:$0xf]
    %v4469 = vld [vmem:[#allocation12 + $0x8c8] sm:$0xf]
    %v4470 = vld [vmem:[#allocation12 + $0x8e4] sm:$0xf]
    %v4471 = vld [vmem:[#allocation12 + $0x900] sm:$0xf]
    %v4472 = vld [vmem:[#allocation12 + $0x91c] sm:$0xf]
    %v4473 = vld [vmem:[#allocation12 + $0x938] sm:$0xf]
    %v4474 = vld [vmem:[#allocation12 + $0x954] sm:$0xf]
    %v4475 = vld [vmem:[#allocation12 + $0x970] sm:$0xf]
    %v4476 = vld [vmem:[#allocation12 + $0x98c] sm:$0xf]
    %v4477 = vld [vmem:[#allocation12 + $0x9a8] sm:$0xf]
    %v4478 = vld [vmem:[#allocation12 + $0x9c4] sm:$0xf]
    %v4479 = vld [vmem:[#allocation12 + $0x9e0] sm:$0xf]
    %v4480 = vld [vmem:[#allocation12 + $0x9fc] sm:$0xf]
    %v4481 = vld [vmem:[#allocation12 + $0xa18] sm:$0xf]
    %v4482 = vld [vmem:[#allocation12 + $0xa34] sm:$0xf]
    %v4483 = vld [vmem:[#allocation12 + $0xa50] sm:$0xf]
    %v4484 = vld [vmem:[#allocation12 + $0xa6c] sm:$0xf]
    %v4485 = vld [vmem:[#allocation12 + $0xa88] sm:$0xf]
    %v4486 = vld [vmem:[#allocation12 + $0xaa4] sm:$0xf]
    %v4487 = vld [vmem:[#allocation12 + $0xac0] sm:$0xf]
    %v4488 = vld [vmem:[#allocation12 + $0xadc] sm:$0xf]
    %v4489 = vld [vmem:[#allocation12 + $0xaf8] sm:$0xf]
    %v4490 = vld [vmem:[#allocation12 + $0xb14] sm:$0xf]
    %v4491 = vld [vmem:[#allocation12 + $0xb30] sm:$0xf]
    %v4492 = vld [vmem:[#allocation12 + $0xb4c] sm:$0xf]
    %v4493 = vld [vmem:[#allocation12 + $0xb68] sm:$0xf]
    %v4494 = vld [vmem:[#allocation12 + $0xb84] sm:$0xf]
    %v4495 = vld [vmem:[#allocation12 + $0xba0] sm:$0xf]
    %v4496 = vld [vmem:[#allocation12 + $0xbbc] sm:$0xf]
    %v4497 = vld [vmem:[#allocation12 + $0xbd8] sm:$0xf]
    %v4498 = vld [vmem:[#allocation12 + $0xbf4] sm:$0xf]
    %v4499 = vld [vmem:[#allocation12 + $0xc10] sm:$0xf]
    %v4500 = vld [vmem:[#allocation12 + $0xc2c] sm:$0xf]
    %v4501 = vld [vmem:[#allocation12 + $0xc48] sm:$0xf]
    %v4502 = vld [vmem:[#allocation12 + $0xc64] sm:$0xf]
    %v4503 = vld [vmem:[#allocation12 + $0xc80] sm:$0xf]
    %v4504 = vld [vmem:[#allocation12 + $0xc9c] sm:$0xf]
    %v4505 = vld [vmem:[#allocation12 + $0xcb8] sm:$0xf]
    %v4506 = vld [vmem:[#allocation12 + $0xcd4] sm:$0xf]
    %v4507 = vld [vmem:[#allocation12 + $0xcf0] sm:$0xf]
    %v4508 = vld [vmem:[#allocation12 + $0xd0c] sm:$0xf]
    %v4509 = vld [vmem:[#allocation12 + $0xd28] sm:$0xf]
    %v4510 = vld [vmem:[#allocation12 + $0xd44] sm:$0xf]
    %v4511 = vld [vmem:[#allocation12 + $0xd60] sm:$0xf]
    %v4512 = vld [vmem:[#allocation12 + $0xd7c] sm:$0xf]
    %v4513 = vld [vmem:[#allocation12 + $0xd98] sm:$0xf]
    %v4514 = vld [vmem:[#allocation12 + $0xdb4] sm:$0xf]
    %v4515 = vld [vmem:[#allocation12 + $0xdd0] sm:$0xf]
    %v4516 = vld [vmem:[#allocation12 + $0xdec] sm:$0xf]
    %v4517 = vld [vmem:[#allocation13 + $0x2] sm:$0x1]
    %v4519 = vlaneseq
    %v4520 = vshrl.u32 %v4519, 7
    %v4521 = vsub.s32 0, %v4520
    %v4522 = vrot.slane %v4517, %v4521
    %v4652 = vunpack.c.l.b16 %v4389
    %v4653 = vunpack.c.l.b16 %v4390
    %v4654 = vunpack.c.l.b16 %v4391
    %v4655 = vunpack.c.l.b16 %v4392
    %v4656 = vunpack.c.l.b16 %v4393
    %v4657 = vunpack.c.l.b16 %v4394
    %v4658 = vunpack.c.l.b16 %v4395
    %v4659 = vunpack.c.l.b16 %v4396
    %v4660 = vunpack.c.l.b16 %v4397
    %v4661 = vunpack.c.l.b16 %v4398
    %v4662 = vunpack.c.l.b16 %v4399
    %v4663 = vunpack.c.l.b16 %v4400
    %v4664 = vunpack.c.l.b16 %v4401
    %v4665 = vunpack.c.l.b16 %v4402
    %v4666 = vunpack.c.l.b16 %v4403
    %v4667 = vunpack.c.l.b16 %v4404
    %v4668 = vunpack.c.l.b16 %v4405
    %v4669 = vunpack.c.l.b16 %v4406
    %v4670 = vunpack.c.l.b16 %v4407
    %v4671 = vunpack.c.l.b16 %v4408
    %v4672 = vunpack.c.l.b16 %v4409
    %v4673 = vunpack.c.l.b16 %v4410
    %v4674 = vunpack.c.l.b16 %v4411
    %v4675 = vunpack.c.l.b16 %v4412
    %v4676 = vunpack.c.l.b16 %v4413
    %v4677 = vunpack.c.l.b16 %v4414
    %v4678 = vunpack.c.l.b16 %v4415
    %v4679 = vunpack.c.l.b16 %v4416
    %v4680 = vunpack.c.l.b16 %v4417
    %v4681 = vunpack.c.l.b16 %v4418
    %v4682 = vunpack.c.l.b16 %v4419
    %v4683 = vunpack.c.l.b16 %v4420
    %v4684 = vunpack.c.l.b16 %v4421
    %v4685 = vunpack.c.l.b16 %v4422
    %v4686 = vunpack.c.l.b16 %v4423
    %v4687 = vunpack.c.l.b16 %v4424
    %v4688 = vunpack.c.l.b16 %v4425
    %v4689 = vunpack.c.l.b16 %v4426
    %v4690 = vunpack.c.l.b16 %v4427
    %v4691 = vunpack.c.l.b16 %v4428
    %v4692 = vunpack.c.l.b16 %v4429
    %v4693 = vunpack.c.l.b16 %v4430
    %v4694 = vunpack.c.l.b16 %v4431
    %v4695 = vunpack.c.l.b16 %v4432
    %v4696 = vunpack.c.l.b16 %v4433
    %v4697 = vunpack.c.l.b16 %v4434
    %v4698 = vunpack.c.l.b16 %v4435
    %v4699 = vunpack.c.l.b16 %v4436
    %v4700 = vunpack.c.l.b16 %v4437
    %v4701 = vunpack.c.l.b16 %v4438
    %v4702 = vunpack.c.l.b16 %v4439
    %v4703 = vunpack.c.l.b16 %v4440
    %v4704 = vunpack.c.l.b16 %v4441
    %v4705 = vunpack.c.l.b16 %v4442
    %v4706 = vunpack.c.l.b16 %v4443
    %v4707 = vunpack.c.l.b16 %v4444
    %v4708 = vunpack.c.l.b16 %v4445
    %v4709 = vunpack.c.l.b16 %v4446
    %v4710 = vunpack.c.l.b16 %v4447
    %v4711 = vunpack.c.l.b16 %v4448
    %v4712 = vunpack.c.l.b16 %v4449
    %v4713 = vunpack.c.l.b16 %v4450
    %v4714 = vunpack.c.l.b16 %v4451
    %v4715 = vunpack.c.l.b16 %v4452
    %v4716 = vunpack.c.l.b16 %v4453
    %v4717 = vunpack.c.l.b16 %v4454
    %v4718 = vunpack.c.l.b16 %v4455
    %v4719 = vunpack.c.l.b16 %v4456
    %v4720 = vunpack.c.l.b16 %v4457
    %v4721 = vunpack.c.l.b16 %v4458
    %v4722 = vunpack.c.l.b16 %v4459
    %v4723 = vunpack.c.l.b16 %v4460
    %v4724 = vunpack.c.l.b16 %v4461
    %v4725 = vunpack.c.l.b16 %v4462
    %v4726 = vunpack.c.l.b16 %v4463
    %v4727 = vunpack.c.l.b16 %v4464
    %v4728 = vunpack.c.l.b16 %v4465
    %v4729 = vunpack.c.l.b16 %v4466
    %v4730 = vunpack.c.l.b16 %v4467
    %v4731 = vunpack.c.l.b16 %v4468
    %v4732 = vunpack.c.l.b16 %v4469
    %v4733 = vunpack.c.l.b16 %v4470
    %v4734 = vunpack.c.l.b16 %v4471
    %v4735 = vunpack.c.l.b16 %v4472
    %v4736 = vunpack.c.l.b16 %v4473
    %v4737 = vunpack.c.l.b16 %v4474
    %v4738 = vunpack.c.l.b16 %v4475
    %v4739 = vunpack.c.l.b16 %v4476
    %v4740 = vunpack.c.l.b16 %v4477
    %v4741 = vunpack.c.l.b16 %v4478
    %v4742 = vunpack.c.l.b16 %v4479
    %v4743 = vunpack.c.l.b16 %v4480
    %v4744 = vunpack.c.l.b16 %v4481
    %v4745 = vunpack.c.l.b16 %v4482
    %v4746 = vunpack.c.l.b16 %v4483
    %v4747 = vunpack.c.l.b16 %v4484
    %v4748 = vunpack.c.l.b16 %v4485
    %v4749 = vunpack.c.l.b16 %v4486
    %v4750 = vunpack.c.l.b16 %v4487
    %v4751 = vunpack.c.l.b16 %v4488
    %v4752 = vunpack.c.l.b16 %v4489
    %v4753 = vunpack.c.l.b16 %v4490
    %v4754 = vunpack.c.l.b16 %v4491
    %v4755 = vunpack.c.l.b16 %v4492
    %v4756 = vunpack.c.l.b16 %v4493
    %v4757 = vunpack.c.l.b16 %v4494
    %v4758 = vunpack.c.l.b16 %v4495
    %v4759 = vunpack.c.l.b16 %v4496
    %v4760 = vunpack.c.l.b16 %v4497
    %v4761 = vunpack.c.l.b16 %v4498
    %v4762 = vunpack.c.l.b16 %v4499
    %v4763 = vunpack.c.l.b16 %v4500
    %v4764 = vunpack.c.l.b16 %v4501
    %v4765 = vunpack.c.l.b16 %v4502
    %v4766 = vunpack.c.l.b16 %v4503
    %v4767 = vunpack.c.l.b16 %v4504
    %v4768 = vunpack.c.l.b16 %v4505
    %v4769 = vunpack.c.l.b16 %v4506
    %v4770 = vunpack.c.l.b16 %v4507
    %v4771 = vunpack.c.l.b16 %v4508
    %v4772 = vunpack.c.l.b16 %v4509
    %v4773 = vunpack.c.l.b16 %v4510
    %v4774 = vunpack.c.l.b16 %v4511
    %v4775 = vunpack.c.l.b16 %v4512
    %v4776 = vunpack.c.l.b16 %v4513
    %v4777 = vunpack.c.l.b16 %v4514
    %v4778 = vunpack.c.l.b16 %v4515
    %v4779 = vunpack.c.l.b16 %v4516
    %v4780 = vpack.c.b16 %v4653, %v4652
    %v4781 = vpack.c.b16 %v4655, %v4654
    %v4782 = vpack.c.b16 %v4657, %v4656
    %v4783 = vpack.c.b16 %v4659, %v4658
    %v4784 = vpack.c.b16 %v4661, %v4660
    %v4785 = vpack.c.b16 %v4663, %v4662
    %v4786 = vpack.c.b16 %v4665, %v4664
    %v4787 = vpack.c.b16 %v4667, %v4666
    %v4788 = vpack.c.b16 %v4669, %v4668
    %v4789 = vpack.c.b16 %v4671, %v4670
    %v4790 = vpack.c.b16 %v4673, %v4672
    %v4791 = vpack.c.b16 %v4675, %v4674
    %v4792 = vpack.c.b16 %v4677, %v4676
    %v4793 = vpack.c.b16 %v4679, %v4678
    %v4794 = vpack.c.b16 %v4681, %v4680
    %v4795 = vpack.c.b16 %v4683, %v4682
    %v4796 = vpack.c.b16 %v4685, %v4684
    %v4797 = vpack.c.b16 %v4687, %v4686
    %v4798 = vpack.c.b16 %v4689, %v4688
    %v4799 = vpack.c.b16 %v4691, %v4690
    %v4800 = vpack.c.b16 %v4693, %v4692
    %v4801 = vpack.c.b16 %v4695, %v4694
    %v4802 = vpack.c.b16 %v4697, %v4696
    %v4803 = vpack.c.b16 %v4699, %v4698
    %v4804 = vpack.c.b16 %v4701, %v4700
    %v4805 = vpack.c.b16 %v4703, %v4702
    %v4806 = vpack.c.b16 %v4705, %v4704
    %v4807 = vpack.c.b16 %v4707, %v4706
    %v4808 = vpack.c.b16 %v4709, %v4708
    %v4809 = vpack.c.b16 %v4711, %v4710
    %v4810 = vpack.c.b16 %v4713, %v4712
    %v4811 = vpack.c.b16 %v4715, %v4714
    %v4812 = vpack.c.b16 %v4717, %v4716
    %v4813 = vpack.c.b16 %v4719, %v4718
    %v4814 = vpack.c.b16 %v4721, %v4720
    %v4815 = vpack.c.b16 %v4723, %v4722
    %v4816 = vpack.c.b16 %v4725, %v4724
    %v4817 = vpack.c.b16 %v4727, %v4726
    %v4818 = vpack.c.b16 %v4729, %v4728
    %v4819 = vpack.c.b16 %v4731, %v4730
    %v4820 = vpack.c.b16 %v4733, %v4732
    %v4821 = vpack.c.b16 %v4735, %v4734
    %v4822 = vpack.c.b16 %v4737, %v4736
    %v4823 = vpack.c.b16 %v4739, %v4738
    %v4824 = vpack.c.b16 %v4741, %v4740
    %v4825 = vpack.c.b16 %v4743, %v4742
    %v4826 = vpack.c.b16 %v4745, %v4744
    %v4827 = vpack.c.b16 %v4747, %v4746
    %v4828 = vpack.c.b16 %v4749, %v4748
    %v4829 = vpack.c.b16 %v4751, %v4750
    %v4830 = vpack.c.b16 %v4753, %v4752
    %v4831 = vpack.c.b16 %v4755, %v4754
    %v4832 = vpack.c.b16 %v4757, %v4756
    %v4833 = vpack.c.b16 %v4759, %v4758
    %v4834 = vpack.c.b16 %v4761, %v4760
    %v4835 = vpack.c.b16 %v4763, %v4762
    %v4836 = vpack.c.b16 %v4765, %v4764
    %v4837 = vpack.c.b16 %v4767, %v4766
    %v4838 = vpack.c.b16 %v4769, %v4768
    %v4839 = vpack.c.b16 %v4771, %v4770
    %v4840 = vpack.c.b16 %v4773, %v4772
    %v4841 = vpack.c.b16 %v4775, %v4774
    %v4842 = vpack.c.b16 %v4777, %v4776
    %v4843 = vpack.c.b16 %v4779, %v4778
    %4908 = vmatprep.subr.bf16.mxu0 0
    %4909 = vmatpush1.bf16.msra.mxu0 %v4787
    %4910 = vmatprep.subr.bf16.mxu0 0
    %4911 = vmatpush1.bf16.msra.mxu0 %v4786
    %4912 = vmatprep.subr.bf16.mxu0 0
    %4913 = vmatpush1.bf16.msra.mxu0 %v4785
    %4914 = vmatprep.subr.bf16.mxu0 0
    %4915 = vmatpush1.bf16.msra.mxu0 %v4784
    %4916 = vmatprep.subr.bf16.mxu0 0
    %4917 = vmatpush1.bf16.msra.mxu0 %v4783
    %4918 = vmatprep.subr.bf16.mxu0 0
    %4919 = vmatpush1.bf16.msra.mxu0 %v4782
    %4920 = vmatprep.subr.bf16.mxu0 0
    %4921 = vmatpush1.bf16.msra.mxu0 %v4781
    %4922 = vmatprep.subr.bf16.mxu0 0
    %4923 = vmatpush1.bf16.msra.mxu0 %v4780
    %4924 = vmatprep.subr.bf16.mxu0 0
    %4925 = vmatpush2.bf16.msra.mxu0 %v4795
    %4926 = vmatprep.subr.bf16.mxu0 0
    %4927 = vmatpush2.bf16.msra.mxu0 %v4794
    %4928 = vmatprep.subr.bf16.mxu0 0
    %4929 = vmatpush2.bf16.msra.mxu0 %v4793
    %4930 = vmatprep.subr.bf16.mxu0 0
    %4931 = vmatpush2.bf16.msra.mxu0 %v4792
    %4932 = vmatprep.subr.bf16.mxu0 0
    %4933 = vmatpush2.bf16.msra.mxu0 %v4791
    %4934 = vmatprep.subr.bf16.mxu0 0
    %4935 = vmatpush2.bf16.msra.mxu0 %v4790
    %4936 = vmatprep.subr.bf16.mxu0 0
    %4937 = vmatpush2.bf16.msra.mxu0 %v4789
    %4938 = vmatprep.subr.bf16.mxu0 0
    %4939 = vmatpush2.bf16.msra.mxu0 %v4788
    %4940 = vmatprep.mubr.bf16.mxu0 %v2994
    %4941 = vmatmul.mubr.bf16.gmra.mxu0 %v2993
    %v4942 = vpop.f32.mrf.mxu0
    %v4943 = vadd.f32 %v4522, %v4942
    %v4944 = vpop.f32.mrf.mxu0
    %v4945 = vpop.f32.mrf.mxu0
    %v4946 = vadd.f32 %v4522, %v4945
    %v4947 = vpop.f32.mrf.mxu0
    %4948 = vdwg.mxu0
    %4949 = vmatprep.subr.bf16.mxu0 0
    %4950 = vmatpush1.bf16.msra.mxu0 %v4803
    %4951 = vmatprep.subr.bf16.mxu0 0
    %4952 = vmatpush1.bf16.msra.mxu0 %v4802
    %4953 = vmatprep.subr.bf16.mxu0 0
    %4954 = vmatpush1.bf16.msra.mxu0 %v4801
    %4955 = vmatprep.subr.bf16.mxu0 0
    %4956 = vmatpush1.bf16.msra.mxu0 %v4800
    %4957 = vmatprep.subr.bf16.mxu0 0
    %4958 = vmatpush1.bf16.msra.mxu0 %v4799
    %4959 = vmatprep.subr.bf16.mxu0 0
    %4960 = vmatpush1.bf16.msra.mxu0 %v4798
    %4961 = vmatprep.subr.bf16.mxu0 0
    %4962 = vmatpush1.bf16.msra.mxu0 %v4797
    %4963 = vmatprep.subr.bf16.mxu0 0
    %4964 = vmatpush1.bf16.msra.mxu0 %v4796
    %4965 = vmatprep.subr.bf16.mxu0 0
    %4966 = vmatpush2.bf16.msra.mxu0 %v4811
    %4967 = vmatprep.subr.bf16.mxu0 0
    %4968 = vmatpush2.bf16.msra.mxu0 %v4810
    %4969 = vmatprep.subr.bf16.mxu0 0
    %4970 = vmatpush2.bf16.msra.mxu0 %v4809
    %4971 = vmatprep.subr.bf16.mxu0 0
    %4972 = vmatpush2.bf16.msra.mxu0 %v4808
    %4973 = vmatprep.subr.bf16.mxu0 0
    %4974 = vmatpush2.bf16.msra.mxu0 %v4807
    %4975 = vmatprep.subr.bf16.mxu0 0
    %4976 = vmatpush2.bf16.msra.mxu0 %v4806
    %4977 = vmatprep.subr.bf16.mxu0 0
    %4978 = vmatpush2.bf16.msra.mxu0 %v4805
    %4979 = vmatprep.subr.bf16.mxu0 0
    %4980 = vmatpush2.bf16.msra.mxu0 %v4804
    %4981 = vmatprep.mubr.bf16.mxu0 %v2996
    %4982 = vmatmul.mubr.bf16.gmra.mxu0 %v2995
    %v4983 = vpop.f32.mrf.mxu0
    %v4984 = vadd.f32 %v4943, %v4983
    %v4985 = vpop.f32.mrf.mxu0
    %v4986 = vpop.f32.mrf.mxu0
    %v4987 = vadd.f32 %v4946, %v4986
    %v4988 = vpop.f32.mrf.mxu0
    %4989 = vdwg.mxu0
    %4990 = vmatprep.subr.bf16.mxu0 0
    %4991 = vmatpush1.bf16.msra.mxu0 %v4819
    %4992 = vmatprep.subr.bf16.mxu0 0
    %4993 = vmatpush1.bf16.msra.mxu0 %v4818
    %4994 = vmatprep.subr.bf16.mxu0 0
    %4995 = vmatpush1.bf16.msra.mxu0 %v4817
    %4996 = vmatprep.subr.bf16.mxu0 0
    %4997 = vmatpush1.bf16.msra.mxu0 %v4816
    %4998 = vmatprep.subr.bf16.mxu0 0
    %4999 = vmatpush1.bf16.msra.mxu0 %v4815
    %5000 = vmatprep.subr.bf16.mxu0 0
    %5001 = vmatpush1.bf16.msra.mxu0 %v4814
    %5002 = vmatprep.subr.bf16.mxu0 0
    %5003 = vmatpush1.bf16.msra.mxu0 %v4813
    %5004 = vmatprep.subr.bf16.mxu0 0
    %5005 = vmatpush1.bf16.msra.mxu0 %v4812
    %5006 = vmatprep.subr.bf16.mxu0 0
    %5007 = vmatpush2.bf16.msra.mxu0 %v4827
    %5008 = vmatprep.subr.bf16.mxu0 0
    %5009 = vmatpush2.bf16.msra.mxu0 %v4826
    %5010 = vmatprep.subr.bf16.mxu0 0
    %5011 = vmatpush2.bf16.msra.mxu0 %v4825
    %5012 = vmatprep.subr.bf16.mxu0 0
    %5013 = vmatpush2.bf16.msra.mxu0 %v4824
    %5014 = vmatprep.subr.bf16.mxu0 0
    %5015 = vmatpush2.bf16.msra.mxu0 %v4823
    %5016 = vmatprep.subr.bf16.mxu0 0
    %5017 = vmatpush2.bf16.msra.mxu0 %v4822
    %5018 = vmatprep.subr.bf16.mxu0 0
    %5019 = vmatpush2.bf16.msra.mxu0 %v4821
    %5020 = vmatprep.subr.bf16.mxu0 0
    %5021 = vmatpush2.bf16.msra.mxu0 %v4820
    %5022 = vmatprep.mubr.bf16.mxu0 %v2998
    %5023 = vmatmul.mubr.bf16.gmra.mxu0 %v2997
    %v5024 = vpop.f32.mrf.mxu0
    %v5025 = vadd.f32 %v4984, %v5024
    %v5026 = vpop.f32.mrf.mxu0
    %v5027 = vpop.f32.mrf.mxu0
    %v5028 = vadd.f32 %v4987, %v5027
    %v5029 = vpop.f32.mrf.mxu0
    %5030 = vdwg.mxu0
    %5031 = vmatprep.subr.bf16.mxu0 0
    %5032 = vmatpush1.bf16.msra.mxu0 %v4835
    %5033 = vmatprep.subr.bf16.mxu0 0
    %5034 = vmatpush1.bf16.msra.mxu0 %v4834
    %5035 = vmatprep.subr.bf16.mxu0 0
    %5036 = vmatpush1.bf16.msra.mxu0 %v4833
    %5037 = vmatprep.subr.bf16.mxu0 0
    %5038 = vmatpush1.bf16.msra.mxu0 %v4832
    %5039 = vmatprep.subr.bf16.mxu0 0
    %5040 = vmatpush1.bf16.msra.mxu0 %v4831
    %5041 = vmatprep.subr.bf16.mxu0 0
    %5042 = vmatpush1.bf16.msra.mxu0 %v4830
    %5043 = vmatprep.subr.bf16.mxu0 0
    %5044 = vmatpush1.bf16.msra.mxu0 %v4829
    %5045 = vmatprep.subr.bf16.mxu0 0
    %5046 = vmatpush1.bf16.msra.mxu0 %v4828
    %5047 = vmatprep.subr.bf16.mxu0 0
    %5048 = vmatpush2.bf16.msra.mxu0 %v4843
    %5049 = vmatprep.subr.bf16.mxu0 0
    %5050 = vmatpush2.bf16.msra.mxu0 %v4842
    %5051 = vmatprep.subr.bf16.mxu0 0
    %5052 = vmatpush2.bf16.msra.mxu0 %v4841
    %5053 = vmatprep.subr.bf16.mxu0 0
    %5054 = vmatpush2.bf16.msra.mxu0 %v4840
    %5055 = vmatprep.subr.bf16.mxu0 0
    %5056 = vmatpush2.bf16.msra.mxu0 %v4839
    %5057 = vmatprep.subr.bf16.mxu0 0
    %5058 = vmatpush2.bf16.msra.mxu0 %v4838
    %5059 = vmatprep.subr.bf16.mxu0 0
    %5060 = vmatpush2.bf16.msra.mxu0 %v4837
    %5061 = vmatprep.subr.bf16.mxu0 0
    %5062 = vmatpush2.bf16.msra.mxu0 %v4836
    %5063 = vmatprep.mubr.bf16.mxu0 %v3000
    %5064 = vmatmul.mubr.bf16.gmra.mxu0 %v2999
    %v5065 = vpop.f32.mrf.mxu0
    %v5066 = vadd.f32 %v5025, %v5065
    %v5067 = vpop.f32.mrf.mxu0
    %v5068 = vpop.f32.mrf.mxu0
    %v5069 = vadd.f32 %v5028, %v5068
    %v5070 = vpop.f32.mrf.mxu0
    %5071 = vdwg.mxu0
    %v5072 = vpack.c.bf16 %v5069, %v5066
    %v5073 = vtanh.bf16.pop %v5072
    %v5075 = vunpack.c.l.b16 %v5073
    %v5076 = vunpack.c.h.b16 %v5073
    %v5077 = vpack.c.b16 %v5075, %v5075
    %v5078 = vpack.c.b16 %v5076, %v5076
    %5081 = vst [vmem:[%s9 + $0x8] sm:$0xf] %v5077
    %5082 = vst [vmem:[%s9 + $0x24] sm:$0xf] %v5078
    %v5083 = vld [vmem:[#allocation12 + $0xc] sm:$0xf]
    %v5084 = vld [vmem:[#allocation12 + $0x28] sm:$0xf]
    %v5085 = vld [vmem:[#allocation12 + $0x44] sm:$0xf]
    %v5086 = vld [vmem:[#allocation12 + $0x60] sm:$0xf]
    %v5087 = vld [vmem:[#allocation12 + $0x7c] sm:$0xf]
    %v5088 = vld [vmem:[#allocation12 + $0x98] sm:$0xf]
    %v5089 = vld [vmem:[#allocation12 + $0xb4] sm:$0xf]
    %v5090 = vld [vmem:[#allocation12 + $0xd0] sm:$0xf]
    %v5091 = vld [vmem:[#allocation12 + $0xec] sm:$0xf]
    %v5092 = vld [vmem:[#allocation12 + $0x108] sm:$0xf]
    %v5093 = vld [vmem:[#allocation12 + $0x124] sm:$0xf]
    %v5094 = vld [vmem:[#allocation12 + $0x140] sm:$0xf]
    %v5095 = vld [vmem:[#allocation12 + $0x15c] sm:$0xf]
    %v5096 = vld [vmem:[#allocation12 + $0x178] sm:$0xf]
    %v5097 = vld [vmem:[#allocation12 + $0x194] sm:$0xf]
    %v5098 = vld [vmem:[#allocation12 + $0x1b0] sm:$0xf]
    %v5099 = vld [vmem:[#allocation12 + $0x1cc] sm:$0xf]
    %v5100 = vld [vmem:[#allocation12 + $0x1e8] sm:$0xf]
    %v5101 = vld [vmem:[#allocation12 + $0x204] sm:$0xf]
    %v5102 = vld [vmem:[#allocation12 + $0x220] sm:$0xf]
    %v5103 = vld [vmem:[#allocation12 + $0x23c] sm:$0xf]
    %v5104 = vld [vmem:[#allocation12 + $0x258] sm:$0xf]
    %v5105 = vld [vmem:[#allocation12 + $0x274] sm:$0xf]
    %v5106 = vld [vmem:[#allocation12 + $0x290] sm:$0xf]
    %v5107 = vld [vmem:[#allocation12 + $0x2ac] sm:$0xf]
    %v5108 = vld [vmem:[#allocation12 + $0x2c8] sm:$0xf]
    %v5109 = vld [vmem:[#allocation12 + $0x2e4] sm:$0xf]
    %v5110 = vld [vmem:[#allocation12 + $0x300] sm:$0xf]
    %v5111 = vld [vmem:[#allocation12 + $0x31c] sm:$0xf]
    %v5112 = vld [vmem:[#allocation12 + $0x338] sm:$0xf]
    %v5113 = vld [vmem:[#allocation12 + $0x354] sm:$0xf]
    %v5114 = vld [vmem:[#allocation12 + $0x370] sm:$0xf]
    %v5115 = vld [vmem:[#allocation12 + $0x38c] sm:$0xf]
    %v5116 = vld [vmem:[#allocation12 + $0x3a8] sm:$0xf]
    %v5117 = vld [vmem:[#allocation12 + $0x3c4] sm:$0xf]
    %v5118 = vld [vmem:[#allocation12 + $0x3e0] sm:$0xf]
    %v5119 = vld [vmem:[#allocation12 + $0x3fc] sm:$0xf]
    %v5120 = vld [vmem:[#allocation12 + $0x418] sm:$0xf]
    %v5121 = vld [vmem:[#allocation12 + $0x434] sm:$0xf]
    %v5122 = vld [vmem:[#allocation12 + $0x450] sm:$0xf]
    %v5123 = vld [vmem:[#allocation12 + $0x46c] sm:$0xf]
    %v5124 = vld [vmem:[#allocation12 + $0x488] sm:$0xf]
    %v5125 = vld [vmem:[#allocation12 + $0x4a4] sm:$0xf]
    %v5126 = vld [vmem:[#allocation12 + $0x4c0] sm:$0xf]
    %v5127 = vld [vmem:[#allocation12 + $0x4dc] sm:$0xf]
    %v5128 = vld [vmem:[#allocation12 + $0x4f8] sm:$0xf]
    %v5129 = vld [vmem:[#allocation12 + $0x514] sm:$0xf]
    %v5130 = vld [vmem:[#allocation12 + $0x530] sm:$0xf]
    %v5131 = vld [vmem:[#allocation12 + $0x54c] sm:$0xf]
    %v5132 = vld [vmem:[#allocation12 + $0x568] sm:$0xf]
    %v5133 = vld [vmem:[#allocation12 + $0x584] sm:$0xf]
    %v5134 = vld [vmem:[#allocation12 + $0x5a0] sm:$0xf]
    %v5135 = vld [vmem:[#allocation12 + $0x5bc] sm:$0xf]
    %v5136 = vld [vmem:[#allocation12 + $0x5d8] sm:$0xf]
    %v5137 = vld [vmem:[#allocation12 + $0x5f4] sm:$0xf]
    %v5138 = vld [vmem:[#allocation12 + $0x610] sm:$0xf]
    %v5139 = vld [vmem:[#allocation12 + $0x62c] sm:$0xf]
    %v5140 = vld [vmem:[#allocation12 + $0x648] sm:$0xf]
    %v5141 = vld [vmem:[#allocation12 + $0x664] sm:$0xf]
    %v5142 = vld [vmem:[#allocation12 + $0x680] sm:$0xf]
    %v5143 = vld [vmem:[#allocation12 + $0x69c] sm:$0xf]
    %v5144 = vld [vmem:[#allocation12 + $0x6b8] sm:$0xf]
    %v5145 = vld [vmem:[#allocation12 + $0x6d4] sm:$0xf]
    %v5146 = vld [vmem:[#allocation12 + $0x6f0] sm:$0xf]
    %v5147 = vld [vmem:[#allocation12 + $0x70c] sm:$0xf]
    %v5148 = vld [vmem:[#allocation12 + $0x728] sm:$0xf]
    %v5149 = vld [vmem:[#allocation12 + $0x744] sm:$0xf]
    %v5150 = vld [vmem:[#allocation12 + $0x760] sm:$0xf]
    %v5151 = vld [vmem:[#allocation12 + $0x77c] sm:$0xf]
    %v5152 = vld [vmem:[#allocation12 + $0x798] sm:$0xf]
    %v5153 = vld [vmem:[#allocation12 + $0x7b4] sm:$0xf]
    %v5154 = vld [vmem:[#allocation12 + $0x7d0] sm:$0xf]
    %v5155 = vld [vmem:[#allocation12 + $0x7ec] sm:$0xf]
    %v5156 = vld [vmem:[#allocation12 + $0x808] sm:$0xf]
    %v5157 = vld [vmem:[#allocation12 + $0x824] sm:$0xf]
    %v5158 = vld [vmem:[#allocation12 + $0x840] sm:$0xf]
    %v5159 = vld [vmem:[#allocation12 + $0x85c] sm:$0xf]
    %v5160 = vld [vmem:[#allocation12 + $0x878] sm:$0xf]
    %v5161 = vld [vmem:[#allocation12 + $0x894] sm:$0xf]
    %v5162 = vld [vmem:[#allocation12 + $0x8b0] sm:$0xf]
    %v5163 = vld [vmem:[#allocation12 + $0x8cc] sm:$0xf]
    %v5164 = vld [vmem:[#allocation12 + $0x8e8] sm:$0xf]
    %v5165 = vld [vmem:[#allocation12 + $0x904] sm:$0xf]
    %v5166 = vld [vmem:[#allocation12 + $0x920] sm:$0xf]
    %v5167 = vld [vmem:[#allocation12 + $0x93c] sm:$0xf]
    %v5168 = vld [vmem:[#allocation12 + $0x958] sm:$0xf]
    %v5169 = vld [vmem:[#allocation12 + $0x974] sm:$0xf]
    %v5170 = vld [vmem:[#allocation12 + $0x990] sm:$0xf]
    %v5171 = vld [vmem:[#allocation12 + $0x9ac] sm:$0xf]
    %v5172 = vld [vmem:[#allocation12 + $0x9c8] sm:$0xf]
    %v5173 = vld [vmem:[#allocation12 + $0x9e4] sm:$0xf]
    %v5174 = vld [vmem:[#allocation12 + $0xa00] sm:$0xf]
    %v5175 = vld [vmem:[#allocation12 + $0xa1c] sm:$0xf]
    %v5176 = vld [vmem:[#allocation12 + $0xa38] sm:$0xf]
    %v5177 = vld [vmem:[#allocation12 + $0xa54] sm:$0xf]
    %v5178 = vld [vmem:[#allocation12 + $0xa70] sm:$0xf]
    %v5179 = vld [vmem:[#allocation12 + $0xa8c] sm:$0xf]
    %v5180 = vld [vmem:[#allocation12 + $0xaa8] sm:$0xf]
    %v5181 = vld [vmem:[#allocation12 + $0xac4] sm:$0xf]
    %v5182 = vld [vmem:[#allocation12 + $0xae0] sm:$0xf]
    %v5183 = vld [vmem:[#allocation12 + $0xafc] sm:$0xf]
    %v5184 = vld [vmem:[#allocation12 + $0xb18] sm:$0xf]
    %v5185 = vld [vmem:[#allocation12 + $0xb34] sm:$0xf]
    %v5186 = vld [vmem:[#allocation12 + $0xb50] sm:$0xf]
    %v5187 = vld [vmem:[#allocation12 + $0xb6c] sm:$0xf]
    %v5188 = vld [vmem:[#allocation12 + $0xb88] sm:$0xf]
    %v5189 = vld [vmem:[#allocation12 + $0xba4] sm:$0xf]
    %v5190 = vld [vmem:[#allocation12 + $0xbc0] sm:$0xf]
    %v5191 = vld [vmem:[#allocation12 + $0xbdc] sm:$0xf]
    %v5192 = vld [vmem:[#allocation12 + $0xbf8] sm:$0xf]
    %v5193 = vld [vmem:[#allocation12 + $0xc14] sm:$0xf]
    %v5194 = vld [vmem:[#allocation12 + $0xc30] sm:$0xf]
    %v5195 = vld [vmem:[#allocation12 + $0xc4c] sm:$0xf]
    %v5196 = vld [vmem:[#allocation12 + $0xc68] sm:$0xf]
    %v5197 = vld [vmem:[#allocation12 + $0xc84] sm:$0xf]
    %v5198 = vld [vmem:[#allocation12 + $0xca0] sm:$0xf]
    %v5199 = vld [vmem:[#allocation12 + $0xcbc] sm:$0xf]
    %v5200 = vld [vmem:[#allocation12 + $0xcd8] sm:$0xf]
    %v5201 = vld [vmem:[#allocation12 + $0xcf4] sm:$0xf]
    %v5202 = vld [vmem:[#allocation12 + $0xd10] sm:$0xf]
    %v5203 = vld [vmem:[#allocation12 + $0xd2c] sm:$0xf]
    %v5204 = vld [vmem:[#allocation12 + $0xd48] sm:$0xf]
    %v5205 = vld [vmem:[#allocation12 + $0xd64] sm:$0xf]
    %v5206 = vld [vmem:[#allocation12 + $0xd80] sm:$0xf]
    %v5207 = vld [vmem:[#allocation12 + $0xd9c] sm:$0xf]
    %v5208 = vld [vmem:[#allocation12 + $0xdb8] sm:$0xf]
    %v5209 = vld [vmem:[#allocation12 + $0xdd4] sm:$0xf]
    %v5210 = vld [vmem:[#allocation12 + $0xdf0] sm:$0xf]
    %v5211 = vld [vmem:[#allocation13 + $0x3] sm:$0x1]
    %v5213 = vlaneseq
    %v5214 = vshrl.u32 %v5213, 7
    %v5215 = vsub.s32 0, %v5214
    %v5216 = vrot.slane %v5211, %v5215
    %v5346 = vunpack.c.l.b16 %v5083
    %v5347 = vunpack.c.l.b16 %v5084
    %v5348 = vunpack.c.l.b16 %v5085
    %v5349 = vunpack.c.l.b16 %v5086
    %v5350 = vunpack.c.l.b16 %v5087
    %v5351 = vunpack.c.l.b16 %v5088
    %v5352 = vunpack.c.l.b16 %v5089
    %v5353 = vunpack.c.l.b16 %v5090
    %v5354 = vunpack.c.l.b16 %v5091
    %v5355 = vunpack.c.l.b16 %v5092
    %v5356 = vunpack.c.l.b16 %v5093
    %v5357 = vunpack.c.l.b16 %v5094
    %v5358 = vunpack.c.l.b16 %v5095
    %v5359 = vunpack.c.l.b16 %v5096
    %v5360 = vunpack.c.l.b16 %v5097
    %v5361 = vunpack.c.l.b16 %v5098
    %v5362 = vunpack.c.l.b16 %v5099
    %v5363 = vunpack.c.l.b16 %v5100
    %v5364 = vunpack.c.l.b16 %v5101
    %v5365 = vunpack.c.l.b16 %v5102
    %v5366 = vunpack.c.l.b16 %v5103
    %v5367 = vunpack.c.l.b16 %v5104
    %v5368 = vunpack.c.l.b16 %v5105
    %v5369 = vunpack.c.l.b16 %v5106
    %v5370 = vunpack.c.l.b16 %v5107
    %v5371 = vunpack.c.l.b16 %v5108
    %v5372 = vunpack.c.l.b16 %v5109
    %v5373 = vunpack.c.l.b16 %v5110
    %v5374 = vunpack.c.l.b16 %v5111
    %v5375 = vunpack.c.l.b16 %v5112
    %v5376 = vunpack.c.l.b16 %v5113
    %v5377 = vunpack.c.l.b16 %v5114
    %v5378 = vunpack.c.l.b16 %v5115
    %v5379 = vunpack.c.l.b16 %v5116
    %v5380 = vunpack.c.l.b16 %v5117
    %v5381 = vunpack.c.l.b16 %v5118
    %v5382 = vunpack.c.l.b16 %v5119
    %v5383 = vunpack.c.l.b16 %v5120
    %v5384 = vunpack.c.l.b16 %v5121
    %v5385 = vunpack.c.l.b16 %v5122
    %v5386 = vunpack.c.l.b16 %v5123
    %v5387 = vunpack.c.l.b16 %v5124
    %v5388 = vunpack.c.l.b16 %v5125
    %v5389 = vunpack.c.l.b16 %v5126
    %v5390 = vunpack.c.l.b16 %v5127
    %v5391 = vunpack.c.l.b16 %v5128
    %v5392 = vunpack.c.l.b16 %v5129
    %v5393 = vunpack.c.l.b16 %v5130
    %v5394 = vunpack.c.l.b16 %v5131
    %v5395 = vunpack.c.l.b16 %v5132
    %v5396 = vunpack.c.l.b16 %v5133
    %v5397 = vunpack.c.l.b16 %v5134
    %v5398 = vunpack.c.l.b16 %v5135
    %v5399 = vunpack.c.l.b16 %v5136
    %v5400 = vunpack.c.l.b16 %v5137
    %v5401 = vunpack.c.l.b16 %v5138
    %v5402 = vunpack.c.l.b16 %v5139
    %v5403 = vunpack.c.l.b16 %v5140
    %v5404 = vunpack.c.l.b16 %v5141
    %v5405 = vunpack.c.l.b16 %v5142
    %v5406 = vunpack.c.l.b16 %v5143
    %v5407 = vunpack.c.l.b16 %v5144
    %v5408 = vunpack.c.l.b16 %v5145
    %v5409 = vunpack.c.l.b16 %v5146
    %v5410 = vunpack.c.l.b16 %v5147
    %v5411 = vunpack.c.l.b16 %v5148
    %v5412 = vunpack.c.l.b16 %v5149
    %v5413 = vunpack.c.l.b16 %v5150
    %v5414 = vunpack.c.l.b16 %v5151
    %v5415 = vunpack.c.l.b16 %v5152
    %v5416 = vunpack.c.l.b16 %v5153
    %v5417 = vunpack.c.l.b16 %v5154
    %v5418 = vunpack.c.l.b16 %v5155
    %v5419 = vunpack.c.l.b16 %v5156
    %v5420 = vunpack.c.l.b16 %v5157
    %v5421 = vunpack.c.l.b16 %v5158
    %v5422 = vunpack.c.l.b16 %v5159
    %v5423 = vunpack.c.l.b16 %v5160
    %v5424 = vunpack.c.l.b16 %v5161
    %v5425 = vunpack.c.l.b16 %v5162
    %v5426 = vunpack.c.l.b16 %v5163
    %v5427 = vunpack.c.l.b16 %v5164
    %v5428 = vunpack.c.l.b16 %v5165
    %v5429 = vunpack.c.l.b16 %v5166
    %v5430 = vunpack.c.l.b16 %v5167
    %v5431 = vunpack.c.l.b16 %v5168
    %v5432 = vunpack.c.l.b16 %v5169
    %v5433 = vunpack.c.l.b16 %v5170
    %v5434 = vunpack.c.l.b16 %v5171
    %v5435 = vunpack.c.l.b16 %v5172
    %v5436 = vunpack.c.l.b16 %v5173
    %v5437 = vunpack.c.l.b16 %v5174
    %v5438 = vunpack.c.l.b16 %v5175
    %v5439 = vunpack.c.l.b16 %v5176
    %v5440 = vunpack.c.l.b16 %v5177
    %v5441 = vunpack.c.l.b16 %v5178
    %v5442 = vunpack.c.l.b16 %v5179
    %v5443 = vunpack.c.l.b16 %v5180
    %v5444 = vunpack.c.l.b16 %v5181
    %v5445 = vunpack.c.l.b16 %v5182
    %v5446 = vunpack.c.l.b16 %v5183
    %v5447 = vunpack.c.l.b16 %v5184
    %v5448 = vunpack.c.l.b16 %v5185
    %v5449 = vunpack.c.l.b16 %v5186
    %v5450 = vunpack.c.l.b16 %v5187
    %v5451 = vunpack.c.l.b16 %v5188
    %v5452 = vunpack.c.l.b16 %v5189
    %v5453 = vunpack.c.l.b16 %v5190
    %v5454 = vunpack.c.l.b16 %v5191
    %v5455 = vunpack.c.l.b16 %v5192
    %v5456 = vunpack.c.l.b16 %v5193
    %v5457 = vunpack.c.l.b16 %v5194
    %v5458 = vunpack.c.l.b16 %v5195
    %v5459 = vunpack.c.l.b16 %v5196
    %v5460 = vunpack.c.l.b16 %v5197
    %v5461 = vunpack.c.l.b16 %v5198
    %v5462 = vunpack.c.l.b16 %v5199
    %v5463 = vunpack.c.l.b16 %v5200
    %v5464 = vunpack.c.l.b16 %v5201
    %v5465 = vunpack.c.l.b16 %v5202
    %v5466 = vunpack.c.l.b16 %v5203
    %v5467 = vunpack.c.l.b16 %v5204
    %v5468 = vunpack.c.l.b16 %v5205
    %v5469 = vunpack.c.l.b16 %v5206
    %v5470 = vunpack.c.l.b16 %v5207
    %v5471 = vunpack.c.l.b16 %v5208
    %v5472 = vunpack.c.l.b16 %v5209
    %v5473 = vunpack.c.l.b16 %v5210
    %v5474 = vpack.c.b16 %v5347, %v5346
    %v5475 = vpack.c.b16 %v5349, %v5348
    %v5476 = vpack.c.b16 %v5351, %v5350
    %v5477 = vpack.c.b16 %v5353, %v5352
    %v5478 = vpack.c.b16 %v5355, %v5354
    %v5479 = vpack.c.b16 %v5357, %v5356
    %v5480 = vpack.c.b16 %v5359, %v5358
    %v5481 = vpack.c.b16 %v5361, %v5360
    %v5482 = vpack.c.b16 %v5363, %v5362
    %v5483 = vpack.c.b16 %v5365, %v5364
    %v5484 = vpack.c.b16 %v5367, %v5366
    %v5485 = vpack.c.b16 %v5369, %v5368
    %v5486 = vpack.c.b16 %v5371, %v5370
    %v5487 = vpack.c.b16 %v5373, %v5372
    %v5488 = vpack.c.b16 %v5375, %v5374
    %v5489 = vpack.c.b16 %v5377, %v5376
    %v5490 = vpack.c.b16 %v5379, %v5378
    %v5491 = vpack.c.b16 %v5381, %v5380
    %v5492 = vpack.c.b16 %v5383, %v5382
    %v5493 = vpack.c.b16 %v5385, %v5384
    %v5494 = vpack.c.b16 %v5387, %v5386
    %v5495 = vpack.c.b16 %v5389, %v5388
    %v5496 = vpack.c.b16 %v5391, %v5390
    %v5497 = vpack.c.b16 %v5393, %v5392
    %v5498 = vpack.c.b16 %v5395, %v5394
    %v5499 = vpack.c.b16 %v5397, %v5396
    %v5500 = vpack.c.b16 %v5399, %v5398
    %v5501 = vpack.c.b16 %v5401, %v5400
    %v5502 = vpack.c.b16 %v5403, %v5402
    %v5503 = vpack.c.b16 %v5405, %v5404
    %v5504 = vpack.c.b16 %v5407, %v5406
    %v5505 = vpack.c.b16 %v5409, %v5408
    %v5506 = vpack.c.b16 %v5411, %v5410
    %v5507 = vpack.c.b16 %v5413, %v5412
    %v5508 = vpack.c.b16 %v5415, %v5414
    %v5509 = vpack.c.b16 %v5417, %v5416
    %v5510 = vpack.c.b16 %v5419, %v5418
    %v5511 = vpack.c.b16 %v5421, %v5420
    %v5512 = vpack.c.b16 %v5423, %v5422
    %v5513 = vpack.c.b16 %v5425, %v5424
    %v5514 = vpack.c.b16 %v5427, %v5426
    %v5515 = vpack.c.b16 %v5429, %v5428
    %v5516 = vpack.c.b16 %v5431, %v5430
    %v5517 = vpack.c.b16 %v5433, %v5432
    %v5518 = vpack.c.b16 %v5435, %v5434
    %v5519 = vpack.c.b16 %v5437, %v5436
    %v5520 = vpack.c.b16 %v5439, %v5438
    %v5521 = vpack.c.b16 %v5441, %v5440
    %v5522 = vpack.c.b16 %v5443, %v5442
    %v5523 = vpack.c.b16 %v5445, %v5444
    %v5524 = vpack.c.b16 %v5447, %v5446
    %v5525 = vpack.c.b16 %v5449, %v5448
    %v5526 = vpack.c.b16 %v5451, %v5450
    %v5527 = vpack.c.b16 %v5453, %v5452
    %v5528 = vpack.c.b16 %v5455, %v5454
    %v5529 = vpack.c.b16 %v5457, %v5456
    %v5530 = vpack.c.b16 %v5459, %v5458
    %v5531 = vpack.c.b16 %v5461, %v5460
    %v5532 = vpack.c.b16 %v5463, %v5462
    %v5533 = vpack.c.b16 %v5465, %v5464
    %v5534 = vpack.c.b16 %v5467, %v5466
    %v5535 = vpack.c.b16 %v5469, %v5468
    %v5536 = vpack.c.b16 %v5471, %v5470
    %v5537 = vpack.c.b16 %v5473, %v5472
    %5602 = vmatprep.subr.bf16.mxu0 0
    %5603 = vmatpush1.bf16.msra.mxu0 %v5481
    %5604 = vmatprep.subr.bf16.mxu0 0
    %5605 = vmatpush1.bf16.msra.mxu0 %v5480
    %5606 = vmatprep.subr.bf16.mxu0 0
    %5607 = vmatpush1.bf16.msra.mxu0 %v5479
    %5608 = vmatprep.subr.bf16.mxu0 0
    %5609 = vmatpush1.bf16.msra.mxu0 %v5478
    %5610 = vmatprep.subr.bf16.mxu0 0
    %5611 = vmatpush1.bf16.msra.mxu0 %v5477
    %5612 = vmatprep.subr.bf16.mxu0 0
    %5613 = vmatpush1.bf16.msra.mxu0 %v5476
    %5614 = vmatprep.subr.bf16.mxu0 0
    %5615 = vmatpush1.bf16.msra.mxu0 %v5475
    %5616 = vmatprep.subr.bf16.mxu0 0
    %5617 = vmatpush1.bf16.msra.mxu0 %v5474
    %5618 = vmatprep.subr.bf16.mxu0 0
    %5619 = vmatpush2.bf16.msra.mxu0 %v5489
    %5620 = vmatprep.subr.bf16.mxu0 0
    %5621 = vmatpush2.bf16.msra.mxu0 %v5488
    %5622 = vmatprep.subr.bf16.mxu0 0
    %5623 = vmatpush2.bf16.msra.mxu0 %v5487
    %5624 = vmatprep.subr.bf16.mxu0 0
    %5625 = vmatpush2.bf16.msra.mxu0 %v5486
    %5626 = vmatprep.subr.bf16.mxu0 0
    %5627 = vmatpush2.bf16.msra.mxu0 %v5485
    %5628 = vmatprep.subr.bf16.mxu0 0
    %5629 = vmatpush2.bf16.msra.mxu0 %v5484
    %5630 = vmatprep.subr.bf16.mxu0 0
    %5631 = vmatpush2.bf16.msra.mxu0 %v5483
    %5632 = vmatprep.subr.bf16.mxu0 0
    %5633 = vmatpush2.bf16.msra.mxu0 %v5482
    %5634 = vmatprep.mubr.bf16.mxu0 %v2994
    %5635 = vmatmul.mubr.bf16.gmra.mxu0 %v2993
    %v5636 = vpop.f32.mrf.mxu0
    %v5637 = vadd.f32 %v5216, %v5636
    %v5638 = vpop.f32.mrf.mxu0
    %v5639 = vpop.f32.mrf.mxu0
    %v5640 = vadd.f32 %v5216, %v5639
    %v5641 = vpop.f32.mrf.mxu0
    %5642 = vdwg.mxu0
    %5643 = vmatprep.subr.bf16.mxu0 0
    %5644 = vmatpush1.bf16.msra.mxu0 %v5497
    %5645 = vmatprep.subr.bf16.mxu0 0
    %5646 = vmatpush1.bf16.msra.mxu0 %v5496
    %5647 = vmatprep.subr.bf16.mxu0 0
    %5648 = vmatpush1.bf16.msra.mxu0 %v5495
    %5649 = vmatprep.subr.bf16.mxu0 0
    %5650 = vmatpush1.bf16.msra.mxu0 %v5494
    %5651 = vmatprep.subr.bf16.mxu0 0
    %5652 = vmatpush1.bf16.msra.mxu0 %v5493
    %5653 = vmatprep.subr.bf16.mxu0 0
    %5654 = vmatpush1.bf16.msra.mxu0 %v5492
    %5655 = vmatprep.subr.bf16.mxu0 0
    %5656 = vmatpush1.bf16.msra.mxu0 %v5491
    %5657 = vmatprep.subr.bf16.mxu0 0
    %5658 = vmatpush1.bf16.msra.mxu0 %v5490
    %5659 = vmatprep.subr.bf16.mxu0 0
    %5660 = vmatpush2.bf16.msra.mxu0 %v5505
    %5661 = vmatprep.subr.bf16.mxu0 0
    %5662 = vmatpush2.bf16.msra.mxu0 %v5504
    %5663 = vmatprep.subr.bf16.mxu0 0
    %5664 = vmatpush2.bf16.msra.mxu0 %v5503
    %5665 = vmatprep.subr.bf16.mxu0 0
    %5666 = vmatpush2.bf16.msra.mxu0 %v5502
    %5667 = vmatprep.subr.bf16.mxu0 0
    %5668 = vmatpush2.bf16.msra.mxu0 %v5501
    %5669 = vmatprep.subr.bf16.mxu0 0
    %5670 = vmatpush2.bf16.msra.mxu0 %v5500
    %5671 = vmatprep.subr.bf16.mxu0 0
    %5672 = vmatpush2.bf16.msra.mxu0 %v5499
    %5673 = vmatprep.subr.bf16.mxu0 0
    %5674 = vmatpush2.bf16.msra.mxu0 %v5498
    %5675 = vmatprep.mubr.bf16.mxu0 %v2996
    %5676 = vmatmul.mubr.bf16.gmra.mxu0 %v2995
    %v5677 = vpop.f32.mrf.mxu0
    %v5678 = vadd.f32 %v5637, %v5677
    %v5679 = vpop.f32.mrf.mxu0
    %v5680 = vpop.f32.mrf.mxu0
    %v5681 = vadd.f32 %v5640, %v5680
    %v5682 = vpop.f32.mrf.mxu0
    %5683 = vdwg.mxu0
    %5684 = vmatprep.subr.bf16.mxu0 0
    %5685 = vmatpush1.bf16.msra.mxu0 %v5513
    %5686 = vmatprep.subr.bf16.mxu0 0
    %5687 = vmatpush1.bf16.msra.mxu0 %v5512
    %5688 = vmatprep.subr.bf16.mxu0 0
    %5689 = vmatpush1.bf16.msra.mxu0 %v5511
    %5690 = vmatprep.subr.bf16.mxu0 0
    %5691 = vmatpush1.bf16.msra.mxu0 %v5510
    %5692 = vmatprep.subr.bf16.mxu0 0
    %5693 = vmatpush1.bf16.msra.mxu0 %v5509
    %5694 = vmatprep.subr.bf16.mxu0 0
    %5695 = vmatpush1.bf16.msra.mxu0 %v5508
    %5696 = vmatprep.subr.bf16.mxu0 0
    %5697 = vmatpush1.bf16.msra.mxu0 %v5507
    %5698 = vmatprep.subr.bf16.mxu0 0
    %5699 = vmatpush1.bf16.msra.mxu0 %v5506
    %5700 = vmatprep.subr.bf16.mxu0 0
    %5701 = vmatpush2.bf16.msra.mxu0 %v5521
    %5702 = vmatprep.subr.bf16.mxu0 0
    %5703 = vmatpush2.bf16.msra.mxu0 %v5520
    %5704 = vmatprep.subr.bf16.mxu0 0
    %5705 = vmatpush2.bf16.msra.mxu0 %v5519
    %5706 = vmatprep.subr.bf16.mxu0 0
    %5707 = vmatpush2.bf16.msra.mxu0 %v5518
    %5708 = vmatprep.subr.bf16.mxu0 0
    %5709 = vmatpush2.bf16.msra.mxu0 %v5517
    %5710 = vmatprep.subr.bf16.mxu0 0
    %5711 = vmatpush2.bf16.msra.mxu0 %v5516
    %5712 = vmatprep.subr.bf16.mxu0 0
    %5713 = vmatpush2.bf16.msra.mxu0 %v5515
    %5714 = vmatprep.subr.bf16.mxu0 0
    %5715 = vmatpush2.bf16.msra.mxu0 %v5514
    %5716 = vmatprep.mubr.bf16.mxu0 %v2998
    %5717 = vmatmul.mubr.bf16.gmra.mxu0 %v2997
    %v5718 = vpop.f32.mrf.mxu0
    %v5719 = vadd.f32 %v5678, %v5718
    %v5720 = vpop.f32.mrf.mxu0
    %v5721 = vpop.f32.mrf.mxu0
    %v5722 = vadd.f32 %v5681, %v5721
    %v5723 = vpop.f32.mrf.mxu0
    %5724 = vdwg.mxu0
    %5725 = vmatprep.subr.bf16.mxu0 0
    %5726 = vmatpush1.bf16.msra.mxu0 %v5529
    %5727 = vmatprep.subr.bf16.mxu0 0
    %5728 = vmatpush1.bf16.msra.mxu0 %v5528
    %5729 = vmatprep.subr.bf16.mxu0 0
    %5730 = vmatpush1.bf16.msra.mxu0 %v5527
    %5731 = vmatprep.subr.bf16.mxu0 0
    %5732 = vmatpush1.bf16.msra.mxu0 %v5526
    %5733 = vmatprep.subr.bf16.mxu0 0
    %5734 = vmatpush1.bf16.msra.mxu0 %v5525
    %5735 = vmatprep.subr.bf16.mxu0 0
    %5736 = vmatpush1.bf16.msra.mxu0 %v5524
    %5737 = vmatprep.subr.bf16.mxu0 0
    %5738 = vmatpush1.bf16.msra.mxu0 %v5523
    %5739 = vmatprep.subr.bf16.mxu0 0
    %5740 = vmatpush1.bf16.msra.mxu0 %v5522
    %5741 = vmatprep.subr.bf16.mxu0 0
    %5742 = vmatpush2.bf16.msra.mxu0 %v5537
    %5743 = vmatprep.subr.bf16.mxu0 0
    %5744 = vmatpush2.bf16.msra.mxu0 %v5536
    %5745 = vmatprep.subr.bf16.mxu0 0
    %5746 = vmatpush2.bf16.msra.mxu0 %v5535
    %5747 = vmatprep.subr.bf16.mxu0 0
    %5748 = vmatpush2.bf16.msra.mxu0 %v5534
    %5749 = vmatprep.subr.bf16.mxu0 0
    %5750 = vmatpush2.bf16.msra.mxu0 %v5533
    %5751 = vmatprep.subr.bf16.mxu0 0
    %5752 = vmatpush2.bf16.msra.mxu0 %v5532
    %5753 = vmatprep.subr.bf16.mxu0 0
    %5754 = vmatpush2.bf16.msra.mxu0 %v5531
    %5755 = vmatprep.subr.bf16.mxu0 0
    %5756 = vmatpush2.bf16.msra.mxu0 %v5530
    %5757 = vmatprep.mubr.bf16.mxu0 %v3000
    %5758 = vmatmul.mubr.bf16.gmra.mxu0 %v2999
    %v5759 = vpop.f32.mrf.mxu0
    %v5760 = vadd.f32 %v5719, %v5759
    %v5761 = vpop.f32.mrf.mxu0
    %v5762 = vpop.f32.mrf.mxu0
    %v5763 = vadd.f32 %v5722, %v5762
    %v5764 = vpop.f32.mrf.mxu0
    %5765 = vdwg.mxu0
    %v5766 = vpack.c.bf16 %v5763, %v5760
    %v5767 = vtanh.bf16.pop %v5766
    %v5769 = vunpack.c.l.b16 %v5767
    %v5770 = vunpack.c.h.b16 %v5767
    %v5771 = vpack.c.b16 %v5769, %v5769
    %v5772 = vpack.c.b16 %v5770, %v5770
    %5775 = vst [vmem:[%s9 + $0xc] sm:$0xf] %v5771
    %5776 = vst [vmem:[%s9 + $0x28] sm:$0xf] %v5772
    %v5777 = vld [vmem:[#allocation12 + $0x10] sm:$0xf]
    %v5778 = vld [vmem:[#allocation12 + $0x2c] sm:$0xf]
    %v5779 = vld [vmem:[#allocation12 + $0x48] sm:$0xf]
    %v5780 = vld [vmem:[#allocation12 + $0x64] sm:$0xf]
    %v5781 = vld [vmem:[#allocation12 + $0x80] sm:$0xf]
    %v5782 = vld [vmem:[#allocation12 + $0x9c] sm:$0xf]
    %v5783 = vld [vmem:[#allocation12 + $0xb8] sm:$0xf]
    %v5784 = vld [vmem:[#allocation12 + $0xd4] sm:$0xf]
    %v5785 = vld [vmem:[#allocation12 + $0xf0] sm:$0xf]
    %v5786 = vld [vmem:[#allocation12 + $0x10c] sm:$0xf]
    %v5787 = vld [vmem:[#allocation12 + $0x128] sm:$0xf]
    %v5788 = vld [vmem:[#allocation12 + $0x144] sm:$0xf]
    %v5789 = vld [vmem:[#allocation12 + $0x160] sm:$0xf]
    %v5790 = vld [vmem:[#allocation12 + $0x17c] sm:$0xf]
    %v5791 = vld [vmem:[#allocation12 + $0x198] sm:$0xf]
    %v5792 = vld [vmem:[#allocation12 + $0x1b4] sm:$0xf]
    %v5793 = vld [vmem:[#allocation12 + $0x1d0] sm:$0xf]
    %v5794 = vld [vmem:[#allocation12 + $0x1ec] sm:$0xf]
    %v5795 = vld [vmem:[#allocation12 + $0x208] sm:$0xf]
    %v5796 = vld [vmem:[#allocation12 + $0x224] sm:$0xf]
    %v5797 = vld [vmem:[#allocation12 + $0x240] sm:$0xf]
    %v5798 = vld [vmem:[#allocation12 + $0x25c] sm:$0xf]
    %v5799 = vld [vmem:[#allocation12 + $0x278] sm:$0xf]
    %v5800 = vld [vmem:[#allocation12 + $0x294] sm:$0xf]
    %v5801 = vld [vmem:[#allocation12 + $0x2b0] sm:$0xf]
    %v5802 = vld [vmem:[#allocation12 + $0x2cc] sm:$0xf]
    %v5803 = vld [vmem:[#allocation12 + $0x2e8] sm:$0xf]
    %v5804 = vld [vmem:[#allocation12 + $0x304] sm:$0xf]
    %v5805 = vld [vmem:[#allocation12 + $0x320] sm:$0xf]
    %v5806 = vld [vmem:[#allocation12 + $0x33c] sm:$0xf]
    %v5807 = vld [vmem:[#allocation12 + $0x358] sm:$0xf]
    %v5808 = vld [vmem:[#allocation12 + $0x374] sm:$0xf]
    %v5809 = vld [vmem:[#allocation12 + $0x390] sm:$0xf]
    %v5810 = vld [vmem:[#allocation12 + $0x3ac] sm:$0xf]
    %v5811 = vld [vmem:[#allocation12 + $0x3c8] sm:$0xf]
    %v5812 = vld [vmem:[#allocation12 + $0x3e4] sm:$0xf]
    %v5813 = vld [vmem:[#allocation12 + $0x400] sm:$0xf]
    %v5814 = vld [vmem:[#allocation12 + $0x41c] sm:$0xf]
    %v5815 = vld [vmem:[#allocation12 + $0x438] sm:$0xf]
    %v5816 = vld [vmem:[#allocation12 + $0x454] sm:$0xf]
    %v5817 = vld [vmem:[#allocation12 + $0x470] sm:$0xf]
    %v5818 = vld [vmem:[#allocation12 + $0x48c] sm:$0xf]
    %v5819 = vld [vmem:[#allocation12 + $0x4a8] sm:$0xf]
    %v5820 = vld [vmem:[#allocation12 + $0x4c4] sm:$0xf]
    %v5821 = vld [vmem:[#allocation12 + $0x4e0] sm:$0xf]
    %v5822 = vld [vmem:[#allocation12 + $0x4fc] sm:$0xf]
    %v5823 = vld [vmem:[#allocation12 + $0x518] sm:$0xf]
    %v5824 = vld [vmem:[#allocation12 + $0x534] sm:$0xf]
    %v5825 = vld [vmem:[#allocation12 + $0x550] sm:$0xf]
    %v5826 = vld [vmem:[#allocation12 + $0x56c] sm:$0xf]
    %v5827 = vld [vmem:[#allocation12 + $0x588] sm:$0xf]
    %v5828 = vld [vmem:[#allocation12 + $0x5a4] sm:$0xf]
    %v5829 = vld [vmem:[#allocation12 + $0x5c0] sm:$0xf]
    %v5830 = vld [vmem:[#allocation12 + $0x5dc] sm:$0xf]
    %v5831 = vld [vmem:[#allocation12 + $0x5f8] sm:$0xf]
    %v5832 = vld [vmem:[#allocation12 + $0x614] sm:$0xf]
    %v5833 = vld [vmem:[#allocation12 + $0x630] sm:$0xf]
    %v5834 = vld [vmem:[#allocation12 + $0x64c] sm:$0xf]
    %v5835 = vld [vmem:[#allocation12 + $0x668] sm:$0xf]
    %v5836 = vld [vmem:[#allocation12 + $0x684] sm:$0xf]
    %v5837 = vld [vmem:[#allocation12 + $0x6a0] sm:$0xf]
    %v5838 = vld [vmem:[#allocation12 + $0x6bc] sm:$0xf]
    %v5839 = vld [vmem:[#allocation12 + $0x6d8] sm:$0xf]
    %v5840 = vld [vmem:[#allocation12 + $0x6f4] sm:$0xf]
    %v5841 = vld [vmem:[#allocation12 + $0x710] sm:$0xf]
    %v5842 = vld [vmem:[#allocation12 + $0x72c] sm:$0xf]
    %v5843 = vld [vmem:[#allocation12 + $0x748] sm:$0xf]
    %v5844 = vld [vmem:[#allocation12 + $0x764] sm:$0xf]
    %v5845 = vld [vmem:[#allocation12 + $0x780] sm:$0xf]
    %v5846 = vld [vmem:[#allocation12 + $0x79c] sm:$0xf]
    %v5847 = vld [vmem:[#allocation12 + $0x7b8] sm:$0xf]
    %v5848 = vld [vmem:[#allocation12 + $0x7d4] sm:$0xf]
    %v5849 = vld [vmem:[#allocation12 + $0x7f0] sm:$0xf]
    %v5850 = vld [vmem:[#allocation12 + $0x80c] sm:$0xf]
    %v5851 = vld [vmem:[#allocation12 + $0x828] sm:$0xf]
    %v5852 = vld [vmem:[#allocation12 + $0x844] sm:$0xf]
    %v5853 = vld [vmem:[#allocation12 + $0x860] sm:$0xf]
    %v5854 = vld [vmem:[#allocation12 + $0x87c] sm:$0xf]
    %v5855 = vld [vmem:[#allocation12 + $0x898] sm:$0xf]
    %v5856 = vld [vmem:[#allocation12 + $0x8b4] sm:$0xf]
    %v5857 = vld [vmem:[#allocation12 + $0x8d0] sm:$0xf]
    %v5858 = vld [vmem:[#allocation12 + $0x8ec] sm:$0xf]
    %v5859 = vld [vmem:[#allocation12 + $0x908] sm:$0xf]
    %v5860 = vld [vmem:[#allocation12 + $0x924] sm:$0xf]
    %v5861 = vld [vmem:[#allocation12 + $0x940] sm:$0xf]
    %v5862 = vld [vmem:[#allocation12 + $0x95c] sm:$0xf]
    %v5863 = vld [vmem:[#allocation12 + $0x978] sm:$0xf]
    %v5864 = vld [vmem:[#allocation12 + $0x994] sm:$0xf]
    %v5865 = vld [vmem:[#allocation12 + $0x9b0] sm:$0xf]
    %v5866 = vld [vmem:[#allocation12 + $0x9cc] sm:$0xf]
    %v5867 = vld [vmem:[#allocation12 + $0x9e8] sm:$0xf]
    %v5868 = vld [vmem:[#allocation12 + $0xa04] sm:$0xf]
    %v5869 = vld [vmem:[#allocation12 + $0xa20] sm:$0xf]
    %v5870 = vld [vmem:[#allocation12 + $0xa3c] sm:$0xf]
    %v5871 = vld [vmem:[#allocation12 + $0xa58] sm:$0xf]
    %v5872 = vld [vmem:[#allocation12 + $0xa74] sm:$0xf]
    %v5873 = vld [vmem:[#allocation12 + $0xa90] sm:$0xf]
    %v5874 = vld [vmem:[#allocation12 + $0xaac] sm:$0xf]
    %v5875 = vld [vmem:[#allocation12 + $0xac8] sm:$0xf]
    %v5876 = vld [vmem:[#allocation12 + $0xae4] sm:$0xf]
    %v5877 = vld [vmem:[#allocation12 + $0xb00] sm:$0xf]
    %v5878 = vld [vmem:[#allocation12 + $0xb1c] sm:$0xf]
    %v5879 = vld [vmem:[#allocation12 + $0xb38] sm:$0xf]
    %v5880 = vld [vmem:[#allocation12 + $0xb54] sm:$0xf]
    %v5881 = vld [vmem:[#allocation12 + $0xb70] sm:$0xf]
    %v5882 = vld [vmem:[#allocation12 + $0xb8c] sm:$0xf]
    %v5883 = vld [vmem:[#allocation12 + $0xba8] sm:$0xf]
    %v5884 = vld [vmem:[#allocation12 + $0xbc4] sm:$0xf]
    %v5885 = vld [vmem:[#allocation12 + $0xbe0] sm:$0xf]
    %v5886 = vld [vmem:[#allocation12 + $0xbfc] sm:$0xf]
    %v5887 = vld [vmem:[#allocation12 + $0xc18] sm:$0xf]
    %v5888 = vld [vmem:[#allocation12 + $0xc34] sm:$0xf]
    %v5889 = vld [vmem:[#allocation12 + $0xc50] sm:$0xf]
    %v5890 = vld [vmem:[#allocation12 + $0xc6c] sm:$0xf]
    %v5891 = vld [vmem:[#allocation12 + $0xc88] sm:$0xf]
    %v5892 = vld [vmem:[#allocation12 + $0xca4] sm:$0xf]
    %v5893 = vld [vmem:[#allocation12 + $0xcc0] sm:$0xf]
    %v5894 = vld [vmem:[#allocation12 + $0xcdc] sm:$0xf]
    %v5895 = vld [vmem:[#allocation12 + $0xcf8] sm:$0xf]
    %v5896 = vld [vmem:[#allocation12 + $0xd14] sm:$0xf]
    %v5897 = vld [vmem:[#allocation12 + $0xd30] sm:$0xf]
    %v5898 = vld [vmem:[#allocation12 + $0xd4c] sm:$0xf]
    %v5899 = vld [vmem:[#allocation12 + $0xd68] sm:$0xf]
    %v5900 = vld [vmem:[#allocation12 + $0xd84] sm:$0xf]
    %v5901 = vld [vmem:[#allocation12 + $0xda0] sm:$0xf]
    %v5902 = vld [vmem:[#allocation12 + $0xdbc] sm:$0xf]
    %v5903 = vld [vmem:[#allocation12 + $0xdd8] sm:$0xf]
    %v5904 = vld [vmem:[#allocation12 + $0xdf4] sm:$0xf]
    %v5905 = vld [vmem:[#allocation13 + $0x4] sm:$0x1]
    %v5907 = vlaneseq
    %v5908 = vshrl.u32 %v5907, 7
    %v5909 = vsub.s32 0, %v5908
    %v5910 = vrot.slane %v5905, %v5909
    %v6040 = vunpack.c.l.b16 %v5777
    %v6041 = vunpack.c.l.b16 %v5778
    %v6042 = vunpack.c.l.b16 %v5779
    %v6043 = vunpack.c.l.b16 %v5780
    %v6044 = vunpack.c.l.b16 %v5781
    %v6045 = vunpack.c.l.b16 %v5782
    %v6046 = vunpack.c.l.b16 %v5783
    %v6047 = vunpack.c.l.b16 %v5784
    %v6048 = vunpack.c.l.b16 %v5785
    %v6049 = vunpack.c.l.b16 %v5786
    %v6050 = vunpack.c.l.b16 %v5787
    %v6051 = vunpack.c.l.b16 %v5788
    %v6052 = vunpack.c.l.b16 %v5789
    %v6053 = vunpack.c.l.b16 %v5790
    %v6054 = vunpack.c.l.b16 %v5791
    %v6055 = vunpack.c.l.b16 %v5792
    %v6056 = vunpack.c.l.b16 %v5793
    %v6057 = vunpack.c.l.b16 %v5794
    %v6058 = vunpack.c.l.b16 %v5795
    %v6059 = vunpack.c.l.b16 %v5796
    %v6060 = vunpack.c.l.b16 %v5797
    %v6061 = vunpack.c.l.b16 %v5798
    %v6062 = vunpack.c.l.b16 %v5799
    %v6063 = vunpack.c.l.b16 %v5800
    %v6064 = vunpack.c.l.b16 %v5801
    %v6065 = vunpack.c.l.b16 %v5802
    %v6066 = vunpack.c.l.b16 %v5803
    %v6067 = vunpack.c.l.b16 %v5804
    %v6068 = vunpack.c.l.b16 %v5805
    %v6069 = vunpack.c.l.b16 %v5806
    %v6070 = vunpack.c.l.b16 %v5807
    %v6071 = vunpack.c.l.b16 %v5808
    %v6072 = vunpack.c.l.b16 %v5809
    %v6073 = vunpack.c.l.b16 %v5810
    %v6074 = vunpack.c.l.b16 %v5811
    %v6075 = vunpack.c.l.b16 %v5812
    %v6076 = vunpack.c.l.b16 %v5813
    %v6077 = vunpack.c.l.b16 %v5814
    %v6078 = vunpack.c.l.b16 %v5815
    %v6079 = vunpack.c.l.b16 %v5816
    %v6080 = vunpack.c.l.b16 %v5817
    %v6081 = vunpack.c.l.b16 %v5818
    %v6082 = vunpack.c.l.b16 %v5819
    %v6083 = vunpack.c.l.b16 %v5820
    %v6084 = vunpack.c.l.b16 %v5821
    %v6085 = vunpack.c.l.b16 %v5822
    %v6086 = vunpack.c.l.b16 %v5823
    %v6087 = vunpack.c.l.b16 %v5824
    %v6088 = vunpack.c.l.b16 %v5825
    %v6089 = vunpack.c.l.b16 %v5826
    %v6090 = vunpack.c.l.b16 %v5827
    %v6091 = vunpack.c.l.b16 %v5828
    %v6092 = vunpack.c.l.b16 %v5829
    %v6093 = vunpack.c.l.b16 %v5830
    %v6094 = vunpack.c.l.b16 %v5831
    %v6095 = vunpack.c.l.b16 %v5832
    %v6096 = vunpack.c.l.b16 %v5833
    %v6097 = vunpack.c.l.b16 %v5834
    %v6098 = vunpack.c.l.b16 %v5835
    %v6099 = vunpack.c.l.b16 %v5836
    %v6100 = vunpack.c.l.b16 %v5837
    %v6101 = vunpack.c.l.b16 %v5838
    %v6102 = vunpack.c.l.b16 %v5839
    %v6103 = vunpack.c.l.b16 %v5840
    %v6104 = vunpack.c.l.b16 %v5841
    %v6105 = vunpack.c.l.b16 %v5842
    %v6106 = vunpack.c.l.b16 %v5843
    %v6107 = vunpack.c.l.b16 %v5844
    %v6108 = vunpack.c.l.b16 %v5845
    %v6109 = vunpack.c.l.b16 %v5846
    %v6110 = vunpack.c.l.b16 %v5847
    %v6111 = vunpack.c.l.b16 %v5848
    %v6112 = vunpack.c.l.b16 %v5849
    %v6113 = vunpack.c.l.b16 %v5850
    %v6114 = vunpack.c.l.b16 %v5851
    %v6115 = vunpack.c.l.b16 %v5852
    %v6116 = vunpack.c.l.b16 %v5853
    %v6117 = vunpack.c.l.b16 %v5854
    %v6118 = vunpack.c.l.b16 %v5855
    %v6119 = vunpack.c.l.b16 %v5856
    %v6120 = vunpack.c.l.b16 %v5857
    %v6121 = vunpack.c.l.b16 %v5858
    %v6122 = vunpack.c.l.b16 %v5859
    %v6123 = vunpack.c.l.b16 %v5860
    %v6124 = vunpack.c.l.b16 %v5861
    %v6125 = vunpack.c.l.b16 %v5862
    %v6126 = vunpack.c.l.b16 %v5863
    %v6127 = vunpack.c.l.b16 %v5864
    %v6128 = vunpack.c.l.b16 %v5865
    %v6129 = vunpack.c.l.b16 %v5866
    %v6130 = vunpack.c.l.b16 %v5867
    %v6131 = vunpack.c.l.b16 %v5868
    %v6132 = vunpack.c.l.b16 %v5869
    %v6133 = vunpack.c.l.b16 %v5870
    %v6134 = vunpack.c.l.b16 %v5871
    %v6135 = vunpack.c.l.b16 %v5872
    %v6136 = vunpack.c.l.b16 %v5873
    %v6137 = vunpack.c.l.b16 %v5874
    %v6138 = vunpack.c.l.b16 %v5875
    %v6139 = vunpack.c.l.b16 %v5876
    %v6140 = vunpack.c.l.b16 %v5877
    %v6141 = vunpack.c.l.b16 %v5878
    %v6142 = vunpack.c.l.b16 %v5879
    %v6143 = vunpack.c.l.b16 %v5880
    %v6144 = vunpack.c.l.b16 %v5881
    %v6145 = vunpack.c.l.b16 %v5882
    %v6146 = vunpack.c.l.b16 %v5883
    %v6147 = vunpack.c.l.b16 %v5884
    %v6148 = vunpack.c.l.b16 %v5885
    %v6149 = vunpack.c.l.b16 %v5886
    %v6150 = vunpack.c.l.b16 %v5887
    %v6151 = vunpack.c.l.b16 %v5888
    %v6152 = vunpack.c.l.b16 %v5889
    %v6153 = vunpack.c.l.b16 %v5890
    %v6154 = vunpack.c.l.b16 %v5891
    %v6155 = vunpack.c.l.b16 %v5892
    %v6156 = vunpack.c.l.b16 %v5893
    %v6157 = vunpack.c.l.b16 %v5894
    %v6158 = vunpack.c.l.b16 %v5895
    %v6159 = vunpack.c.l.b16 %v5896
    %v6160 = vunpack.c.l.b16 %v5897
    %v6161 = vunpack.c.l.b16 %v5898
    %v6162 = vunpack.c.l.b16 %v5899
    %v6163 = vunpack.c.l.b16 %v5900
    %v6164 = vunpack.c.l.b16 %v5901
    %v6165 = vunpack.c.l.b16 %v5902
    %v6166 = vunpack.c.l.b16 %v5903
    %v6167 = vunpack.c.l.b16 %v5904
    %v6168 = vpack.c.b16 %v6041, %v6040
    %v6169 = vpack.c.b16 %v6043, %v6042
    %v6170 = vpack.c.b16 %v6045, %v6044
    %v6171 = vpack.c.b16 %v6047, %v6046
    %v6172 = vpack.c.b16 %v6049, %v6048
    %v6173 = vpack.c.b16 %v6051, %v6050
    %v6174 = vpack.c.b16 %v6053, %v6052
    %v6175 = vpack.c.b16 %v6055, %v6054
    %v6176 = vpack.c.b16 %v6057, %v6056
    %v6177 = vpack.c.b16 %v6059, %v6058
    %v6178 = vpack.c.b16 %v6061, %v6060
    %v6179 = vpack.c.b16 %v6063, %v6062
    %v6180 = vpack.c.b16 %v6065, %v6064
    %v6181 = vpack.c.b16 %v6067, %v6066
    %v6182 = vpack.c.b16 %v6069, %v6068
    %v6183 = vpack.c.b16 %v6071, %v6070
    %v6184 = vpack.c.b16 %v6073, %v6072
    %v6185 = vpack.c.b16 %v6075, %v6074
    %v6186 = vpack.c.b16 %v6077, %v6076
    %v6187 = vpack.c.b16 %v6079, %v6078
    %v6188 = vpack.c.b16 %v6081, %v6080
    %v6189 = vpack.c.b16 %v6083, %v6082
    %v6190 = vpack.c.b16 %v6085, %v6084
    %v6191 = vpack.c.b16 %v6087, %v6086
    %v6192 = vpack.c.b16 %v6089, %v6088
    %v6193 = vpack.c.b16 %v6091, %v6090
    %v6194 = vpack.c.b16 %v6093, %v6092
    %v6195 = vpack.c.b16 %v6095, %v6094
    %v6196 = vpack.c.b16 %v6097, %v6096
    %v6197 = vpack.c.b16 %v6099, %v6098
    %v6198 = vpack.c.b16 %v6101, %v6100
    %v6199 = vpack.c.b16 %v6103, %v6102
    %v6200 = vpack.c.b16 %v6105, %v6104
    %v6201 = vpack.c.b16 %v6107, %v6106
    %v6202 = vpack.c.b16 %v6109, %v6108
    %v6203 = vpack.c.b16 %v6111, %v6110
    %v6204 = vpack.c.b16 %v6113, %v6112
    %v6205 = vpack.c.b16 %v6115, %v6114
    %v6206 = vpack.c.b16 %v6117, %v6116
    %v6207 = vpack.c.b16 %v6119, %v6118
    %v6208 = vpack.c.b16 %v6121, %v6120
    %v6209 = vpack.c.b16 %v6123, %v6122
    %v6210 = vpack.c.b16 %v6125, %v6124
    %v6211 = vpack.c.b16 %v6127, %v6126
    %v6212 = vpack.c.b16 %v6129, %v6128
    %v6213 = vpack.c.b16 %v6131, %v6130
    %v6214 = vpack.c.b16 %v6133, %v6132
    %v6215 = vpack.c.b16 %v6135, %v6134
    %v6216 = vpack.c.b16 %v6137, %v6136
    %v6217 = vpack.c.b16 %v6139, %v6138
    %v6218 = vpack.c.b16 %v6141, %v6140
    %v6219 = vpack.c.b16 %v6143, %v6142
    %v6220 = vpack.c.b16 %v6145, %v6144
    %v6221 = vpack.c.b16 %v6147, %v6146
    %v6222 = vpack.c.b16 %v6149, %v6148
    %v6223 = vpack.c.b16 %v6151, %v6150
    %v6224 = vpack.c.b16 %v6153, %v6152
    %v6225 = vpack.c.b16 %v6155, %v6154
    %v6226 = vpack.c.b16 %v6157, %v6156
    %v6227 = vpack.c.b16 %v6159, %v6158
    %v6228 = vpack.c.b16 %v6161, %v6160
    %v6229 = vpack.c.b16 %v6163, %v6162
    %v6230 = vpack.c.b16 %v6165, %v6164
    %v6231 = vpack.c.b16 %v6167, %v6166
    %6296 = vmatprep.subr.bf16.mxu0 0
    %6297 = vmatpush1.bf16.msra.mxu0 %v6175
    %6298 = vmatprep.subr.bf16.mxu0 0
    %6299 = vmatpush1.bf16.msra.mxu0 %v6174
    %6300 = vmatprep.subr.bf16.mxu0 0
    %6301 = vmatpush1.bf16.msra.mxu0 %v6173
    %6302 = vmatprep.subr.bf16.mxu0 0
    %6303 = vmatpush1.bf16.msra.mxu0 %v6172
    %6304 = vmatprep.subr.bf16.mxu0 0
    %6305 = vmatpush1.bf16.msra.mxu0 %v6171
    %6306 = vmatprep.subr.bf16.mxu0 0
    %6307 = vmatpush1.bf16.msra.mxu0 %v6170
    %6308 = vmatprep.subr.bf16.mxu0 0
    %6309 = vmatpush1.bf16.msra.mxu0 %v6169
    %6310 = vmatprep.subr.bf16.mxu0 0
    %6311 = vmatpush1.bf16.msra.mxu0 %v6168
    %6312 = vmatprep.subr.bf16.mxu0 0
    %6313 = vmatpush2.bf16.msra.mxu0 %v6183
    %6314 = vmatprep.subr.bf16.mxu0 0
    %6315 = vmatpush2.bf16.msra.mxu0 %v6182
    %6316 = vmatprep.subr.bf16.mxu0 0
    %6317 = vmatpush2.bf16.msra.mxu0 %v6181
    %6318 = vmatprep.subr.bf16.mxu0 0
    %6319 = vmatpush2.bf16.msra.mxu0 %v6180
    %6320 = vmatprep.subr.bf16.mxu0 0
    %6321 = vmatpush2.bf16.msra.mxu0 %v6179
    %6322 = vmatprep.subr.bf16.mxu0 0
    %6323 = vmatpush2.bf16.msra.mxu0 %v6178
    %6324 = vmatprep.subr.bf16.mxu0 0
    %6325 = vmatpush2.bf16.msra.mxu0 %v6177
    %6326 = vmatprep.subr.bf16.mxu0 0
    %6327 = vmatpush2.bf16.msra.mxu0 %v6176
    %6328 = vmatprep.mubr.bf16.mxu0 %v2994
    %6329 = vmatmul.mubr.bf16.gmra.mxu0 %v2993
    %v6330 = vpop.f32.mrf.mxu0
    %v6331 = vadd.f32 %v5910, %v6330
    %v6332 = vpop.f32.mrf.mxu0
    %v6333 = vpop.f32.mrf.mxu0
    %v6334 = vadd.f32 %v5910, %v6333
    %v6335 = vpop.f32.mrf.mxu0
    %6336 = vdwg.mxu0
    %6337 = vmatprep.subr.bf16.mxu0 0
    %6338 = vmatpush1.bf16.msra.mxu0 %v6191
    %6339 = vmatprep.subr.bf16.mxu0 0
    %6340 = vmatpush1.bf16.msra.mxu0 %v6190
    %6341 = vmatprep.subr.bf16.mxu0 0
    %6342 = vmatpush1.bf16.msra.mxu0 %v6189
    %6343 = vmatprep.subr.bf16.mxu0 0
    %6344 = vmatpush1.bf16.msra.mxu0 %v6188
    %6345 = vmatprep.subr.bf16.mxu0 0
    %6346 = vmatpush1.bf16.msra.mxu0 %v6187
    %6347 = vmatprep.subr.bf16.mxu0 0
    %6348 = vmatpush1.bf16.msra.mxu0 %v6186
    %6349 = vmatprep.subr.bf16.mxu0 0
    %6350 = vmatpush1.bf16.msra.mxu0 %v6185
    %6351 = vmatprep.subr.bf16.mxu0 0
    %6352 = vmatpush1.bf16.msra.mxu0 %v6184
    %6353 = vmatprep.subr.bf16.mxu0 0
    %6354 = vmatpush2.bf16.msra.mxu0 %v6199
    %6355 = vmatprep.subr.bf16.mxu0 0
    %6356 = vmatpush2.bf16.msra.mxu0 %v6198
    %6357 = vmatprep.subr.bf16.mxu0 0
    %6358 = vmatpush2.bf16.msra.mxu0 %v6197
    %6359 = vmatprep.subr.bf16.mxu0 0
    %6360 = vmatpush2.bf16.msra.mxu0 %v6196
    %6361 = vmatprep.subr.bf16.mxu0 0
    %6362 = vmatpush2.bf16.msra.mxu0 %v6195
    %6363 = vmatprep.subr.bf16.mxu0 0
    %6364 = vmatpush2.bf16.msra.mxu0 %v6194
    %6365 = vmatprep.subr.bf16.mxu0 0
    %6366 = vmatpush2.bf16.msra.mxu0 %v6193
    %6367 = vmatprep.subr.bf16.mxu0 0
    %6368 = vmatpush2.bf16.msra.mxu0 %v6192
    %6369 = vmatprep.mubr.bf16.mxu0 %v2996
    %6370 = vmatmul.mubr.bf16.gmra.mxu0 %v2995
    %v6371 = vpop.f32.mrf.mxu0
    %v6372 = vadd.f32 %v6331, %v6371
    %v6373 = vpop.f32.mrf.mxu0
    %v6374 = vpop.f32.mrf.mxu0
    %v6375 = vadd.f32 %v6334, %v6374
    %v6376 = vpop.f32.mrf.mxu0
    %6377 = vdwg.mxu0
    %6378 = vmatprep.subr.bf16.mxu0 0
    %6379 = vmatpush1.bf16.msra.mxu0 %v6207
    %6380 = vmatprep.subr.bf16.mxu0 0
    %6381 = vmatpush1.bf16.msra.mxu0 %v6206
    %6382 = vmatprep.subr.bf16.mxu0 0
    %6383 = vmatpush1.bf16.msra.mxu0 %v6205
    %6384 = vmatprep.subr.bf16.mxu0 0
    %6385 = vmatpush1.bf16.msra.mxu0 %v6204
    %6386 = vmatprep.subr.bf16.mxu0 0
    %6387 = vmatpush1.bf16.msra.mxu0 %v6203
    %6388 = vmatprep.subr.bf16.mxu0 0
    %6389 = vmatpush1.bf16.msra.mxu0 %v6202
    %6390 = vmatprep.subr.bf16.mxu0 0
    %6391 = vmatpush1.bf16.msra.mxu0 %v6201
    %6392 = vmatprep.subr.bf16.mxu0 0
    %6393 = vmatpush1.bf16.msra.mxu0 %v6200
    %6394 = vmatprep.subr.bf16.mxu0 0
    %6395 = vmatpush2.bf16.msra.mxu0 %v6215
    %6396 = vmatprep.subr.bf16.mxu0 0
    %6397 = vmatpush2.bf16.msra.mxu0 %v6214
    %6398 = vmatprep.subr.bf16.mxu0 0
    %6399 = vmatpush2.bf16.msra.mxu0 %v6213
    %6400 = vmatprep.subr.bf16.mxu0 0
    %6401 = vmatpush2.bf16.msra.mxu0 %v6212
    %6402 = vmatprep.subr.bf16.mxu0 0
    %6403 = vmatpush2.bf16.msra.mxu0 %v6211
    %6404 = vmatprep.subr.bf16.mxu0 0
    %6405 = vmatpush2.bf16.msra.mxu0 %v6210
    %6406 = vmatprep.subr.bf16.mxu0 0
    %6407 = vmatpush2.bf16.msra.mxu0 %v6209
    %6408 = vmatprep.subr.bf16.mxu0 0
    %6409 = vmatpush2.bf16.msra.mxu0 %v6208
    %6410 = vmatprep.mubr.bf16.mxu0 %v2998
    %6411 = vmatmul.mubr.bf16.gmra.mxu0 %v2997
    %v6412 = vpop.f32.mrf.mxu0
    %v6413 = vadd.f32 %v6372, %v6412
    %v6414 = vpop.f32.mrf.mxu0
    %v6415 = vpop.f32.mrf.mxu0
    %v6416 = vadd.f32 %v6375, %v6415
    %v6417 = vpop.f32.mrf.mxu0
    %6418 = vdwg.mxu0
    %6419 = vmatprep.subr.bf16.mxu0 0
    %6420 = vmatpush1.bf16.msra.mxu0 %v6223
    %6421 = vmatprep.subr.bf16.mxu0 0
    %6422 = vmatpush1.bf16.msra.mxu0 %v6222
    %6423 = vmatprep.subr.bf16.mxu0 0
    %6424 = vmatpush1.bf16.msra.mxu0 %v6221
    %6425 = vmatprep.subr.bf16.mxu0 0
    %6426 = vmatpush1.bf16.msra.mxu0 %v6220
    %6427 = vmatprep.subr.bf16.mxu0 0
    %6428 = vmatpush1.bf16.msra.mxu0 %v6219
    %6429 = vmatprep.subr.bf16.mxu0 0
    %6430 = vmatpush1.bf16.msra.mxu0 %v6218
    %6431 = vmatprep.subr.bf16.mxu0 0
    %6432 = vmatpush1.bf16.msra.mxu0 %v6217
    %6433 = vmatprep.subr.bf16.mxu0 0
    %6434 = vmatpush1.bf16.msra.mxu0 %v6216
    %6435 = vmatprep.subr.bf16.mxu0 0
    %6436 = vmatpush2.bf16.msra.mxu0 %v6231
    %6437 = vmatprep.subr.bf16.mxu0 0
    %6438 = vmatpush2.bf16.msra.mxu0 %v6230
    %6439 = vmatprep.subr.bf16.mxu0 0
    %6440 = vmatpush2.bf16.msra.mxu0 %v6229
    %6441 = vmatprep.subr.bf16.mxu0 0
    %6442 = vmatpush2.bf16.msra.mxu0 %v6228
    %6443 = vmatprep.subr.bf16.mxu0 0
    %6444 = vmatpush2.bf16.msra.mxu0 %v6227
    %6445 = vmatprep.subr.bf16.mxu0 0
    %6446 = vmatpush2.bf16.msra.mxu0 %v6226
    %6447 = vmatprep.subr.bf16.mxu0 0
    %6448 = vmatpush2.bf16.msra.mxu0 %v6225
    %6449 = vmatprep.subr.bf16.mxu0 0
    %6450 = vmatpush2.bf16.msra.mxu0 %v6224
    %6451 = vmatprep.mubr.bf16.mxu0 %v3000
    %6452 = vmatmul.mubr.bf16.gmra.mxu0 %v2999
    %v6453 = vpop.f32.mrf.mxu0
    %v6454 = vadd.f32 %v6413, %v6453
    %v6455 = vpop.f32.mrf.mxu0
    %v6456 = vpop.f32.mrf.mxu0
    %v6457 = vadd.f32 %v6416, %v6456
    %v6458 = vpop.f32.mrf.mxu0
    %6459 = vdwg.mxu0
    %v6460 = vpack.c.bf16 %v6457, %v6454
    %v6461 = vtanh.bf16.pop %v6460
    %v6463 = vunpack.c.l.b16 %v6461
    %v6464 = vunpack.c.h.b16 %v6461
    %v6465 = vpack.c.b16 %v6463, %v6463
    %v6466 = vpack.c.b16 %v6464, %v6464
    %6469 = vst [vmem:[%s9 + $0x10] sm:$0xf] %v6465
    %6470 = vst [vmem:[%s9 + $0x2c] sm:$0xf] %v6466
    %v6471 = vld [vmem:[#allocation12 + $0x14] sm:$0xf]
    %v6472 = vld [vmem:[#allocation12 + $0x30] sm:$0xf]
    %v6473 = vld [vmem:[#allocation12 + $0x4c] sm:$0xf]
    %v6474 = vld [vmem:[#allocation12 + $0x68] sm:$0xf]
    %v6475 = vld [vmem:[#allocation12 + $0x84] sm:$0xf]
    %v6476 = vld [vmem:[#allocation12 + $0xa0] sm:$0xf]
    %v6477 = vld [vmem:[#allocation12 + $0xbc] sm:$0xf]
    %v6478 = vld [vmem:[#allocation12 + $0xd8] sm:$0xf]
    %v6479 = vld [vmem:[#allocation12 + $0xf4] sm:$0xf]
    %v6480 = vld [vmem:[#allocation12 + $0x110] sm:$0xf]
    %v6481 = vld [vmem:[#allocation12 + $0x12c] sm:$0xf]
    %v6482 = vld [vmem:[#allocation12 + $0x148] sm:$0xf]
    %v6483 = vld [vmem:[#allocation12 + $0x164] sm:$0xf]
    %v6484 = vld [vmem:[#allocation12 + $0x180] sm:$0xf]
    %v6485 = vld [vmem:[#allocation12 + $0x19c] sm:$0xf]
    %v6486 = vld [vmem:[#allocation12 + $0x1b8] sm:$0xf]
    %v6487 = vld [vmem:[#allocation12 + $0x1d4] sm:$0xf]
    %v6488 = vld [vmem:[#allocation12 + $0x1f0] sm:$0xf]
    %v6489 = vld [vmem:[#allocation12 + $0x20c] sm:$0xf]
    %v6490 = vld [vmem:[#allocation12 + $0x228] sm:$0xf]
    %v6491 = vld [vmem:[#allocation12 + $0x244] sm:$0xf]
    %v6492 = vld [vmem:[#allocation12 + $0x260] sm:$0xf]
    %v6493 = vld [vmem:[#allocation12 + $0x27c] sm:$0xf]
    %v6494 = vld [vmem:[#allocation12 + $0x298] sm:$0xf]
    %v6495 = vld [vmem:[#allocation12 + $0x2b4] sm:$0xf]
    %v6496 = vld [vmem:[#allocation12 + $0x2d0] sm:$0xf]
    %v6497 = vld [vmem:[#allocation12 + $0x2ec] sm:$0xf]
    %v6498 = vld [vmem:[#allocation12 + $0x308] sm:$0xf]
    %v6499 = vld [vmem:[#allocation12 + $0x324] sm:$0xf]
    %v6500 = vld [vmem:[#allocation12 + $0x340] sm:$0xf]
    %v6501 = vld [vmem:[#allocation12 + $0x35c] sm:$0xf]
    %v6502 = vld [vmem:[#allocation12 + $0x378] sm:$0xf]
    %v6503 = vld [vmem:[#allocation12 + $0x394] sm:$0xf]
    %v6504 = vld [vmem:[#allocation12 + $0x3b0] sm:$0xf]
    %v6505 = vld [vmem:[#allocation12 + $0x3cc] sm:$0xf]
    %v6506 = vld [vmem:[#allocation12 + $0x3e8] sm:$0xf]
    %v6507 = vld [vmem:[#allocation12 + $0x404] sm:$0xf]
    %v6508 = vld [vmem:[#allocation12 + $0x420] sm:$0xf]
    %v6509 = vld [vmem:[#allocation12 + $0x43c] sm:$0xf]
    %v6510 = vld [vmem:[#allocation12 + $0x458] sm:$0xf]
    %v6511 = vld [vmem:[#allocation12 + $0x474] sm:$0xf]
    %v6512 = vld [vmem:[#allocation12 + $0x490] sm:$0xf]
    %v6513 = vld [vmem:[#allocation12 + $0x4ac] sm:$0xf]
    %v6514 = vld [vmem:[#allocation12 + $0x4c8] sm:$0xf]
    %v6515 = vld [vmem:[#allocation12 + $0x4e4] sm:$0xf]
    %v6516 = vld [vmem:[#allocation12 + $0x500] sm:$0xf]
    %v6517 = vld [vmem:[#allocation12 + $0x51c] sm:$0xf]
    %v6518 = vld [vmem:[#allocation12 + $0x538] sm:$0xf]
    %v6519 = vld [vmem:[#allocation12 + $0x554] sm:$0xf]
    %v6520 = vld [vmem:[#allocation12 + $0x570] sm:$0xf]
    %v6521 = vld [vmem:[#allocation12 + $0x58c] sm:$0xf]
    %v6522 = vld [vmem:[#allocation12 + $0x5a8] sm:$0xf]
    %v6523 = vld [vmem:[#allocation12 + $0x5c4] sm:$0xf]
    %v6524 = vld [vmem:[#allocation12 + $0x5e0] sm:$0xf]
    %v6525 = vld [vmem:[#allocation12 + $0x5fc] sm:$0xf]
    %v6526 = vld [vmem:[#allocation12 + $0x618] sm:$0xf]
    %v6527 = vld [vmem:[#allocation12 + $0x634] sm:$0xf]
    %v6528 = vld [vmem:[#allocation12 + $0x650] sm:$0xf]
    %v6529 = vld [vmem:[#allocation12 + $0x66c] sm:$0xf]
    %v6530 = vld [vmem:[#allocation12 + $0x688] sm:$0xf]
    %v6531 = vld [vmem:[#allocation12 + $0x6a4] sm:$0xf]
    %v6532 = vld [vmem:[#allocation12 + $0x6c0] sm:$0xf]
    %v6533 = vld [vmem:[#allocation12 + $0x6dc] sm:$0xf]
    %v6534 = vld [vmem:[#allocation12 + $0x6f8] sm:$0xf]
    %v6535 = vld [vmem:[#allocation12 + $0x714] sm:$0xf]
    %v6536 = vld [vmem:[#allocation12 + $0x730] sm:$0xf]
    %v6537 = vld [vmem:[#allocation12 + $0x74c] sm:$0xf]
    %v6538 = vld [vmem:[#allocation12 + $0x768] sm:$0xf]
    %v6539 = vld [vmem:[#allocation12 + $0x784] sm:$0xf]
    %v6540 = vld [vmem:[#allocation12 + $0x7a0] sm:$0xf]
    %v6541 = vld [vmem:[#allocation12 + $0x7bc] sm:$0xf]
    %v6542 = vld [vmem:[#allocation12 + $0x7d8] sm:$0xf]
    %v6543 = vld [vmem:[#allocation12 + $0x7f4] sm:$0xf]
    %v6544 = vld [vmem:[#allocation12 + $0x810] sm:$0xf]
    %v6545 = vld [vmem:[#allocation12 + $0x82c] sm:$0xf]
    %v6546 = vld [vmem:[#allocation12 + $0x848] sm:$0xf]
    %v6547 = vld [vmem:[#allocation12 + $0x864] sm:$0xf]
    %v6548 = vld [vmem:[#allocation12 + $0x880] sm:$0xf]
    %v6549 = vld [vmem:[#allocation12 + $0x89c] sm:$0xf]
    %v6550 = vld [vmem:[#allocation12 + $0x8b8] sm:$0xf]
    %v6551 = vld [vmem:[#allocation12 + $0x8d4] sm:$0xf]
    %v6552 = vld [vmem:[#allocation12 + $0x8f0] sm:$0xf]
    %v6553 = vld [vmem:[#allocation12 + $0x90c] sm:$0xf]
    %v6554 = vld [vmem:[#allocation12 + $0x928] sm:$0xf]
    %v6555 = vld [vmem:[#allocation12 + $0x944] sm:$0xf]
    %v6556 = vld [vmem:[#allocation12 + $0x960] sm:$0xf]
    %v6557 = vld [vmem:[#allocation12 + $0x97c] sm:$0xf]
    %v6558 = vld [vmem:[#allocation12 + $0x998] sm:$0xf]
    %v6559 = vld [vmem:[#allocation12 + $0x9b4] sm:$0xf]
    %v6560 = vld [vmem:[#allocation12 + $0x9d0] sm:$0xf]
    %v6561 = vld [vmem:[#allocation12 + $0x9ec] sm:$0xf]
    %v6562 = vld [vmem:[#allocation12 + $0xa08] sm:$0xf]
    %v6563 = vld [vmem:[#allocation12 + $0xa24] sm:$0xf]
    %v6564 = vld [vmem:[#allocation12 + $0xa40] sm:$0xf]
    %v6565 = vld [vmem:[#allocation12 + $0xa5c] sm:$0xf]
    %v6566 = vld [vmem:[#allocation12 + $0xa78] sm:$0xf]
    %v6567 = vld [vmem:[#allocation12 + $0xa94] sm:$0xf]
    %v6568 = vld [vmem:[#allocation12 + $0xab0] sm:$0xf]
    %v6569 = vld [vmem:[#allocation12 + $0xacc] sm:$0xf]
    %v6570 = vld [vmem:[#allocation12 + $0xae8] sm:$0xf]
    %v6571 = vld [vmem:[#allocation12 + $0xb04] sm:$0xf]
    %v6572 = vld [vmem:[#allocation12 + $0xb20] sm:$0xf]
    %v6573 = vld [vmem:[#allocation12 + $0xb3c] sm:$0xf]
    %v6574 = vld [vmem:[#allocation12 + $0xb58] sm:$0xf]
    %v6575 = vld [vmem:[#allocation12 + $0xb74] sm:$0xf]
    %v6576 = vld [vmem:[#allocation12 + $0xb90] sm:$0xf]
    %v6577 = vld [vmem:[#allocation12 + $0xbac] sm:$0xf]
    %v6578 = vld [vmem:[#allocation12 + $0xbc8] sm:$0xf]
    %v6579 = vld [vmem:[#allocation12 + $0xbe4] sm:$0xf]
    %v6580 = vld [vmem:[#allocation12 + $0xc00] sm:$0xf]
    %v6581 = vld [vmem:[#allocation12 + $0xc1c] sm:$0xf]
    %v6582 = vld [vmem:[#allocation12 + $0xc38] sm:$0xf]
    %v6583 = vld [vmem:[#allocation12 + $0xc54] sm:$0xf]
    %v6584 = vld [vmem:[#allocation12 + $0xc70] sm:$0xf]
    %v6585 = vld [vmem:[#allocation12 + $0xc8c] sm:$0xf]
    %v6586 = vld [vmem:[#allocation12 + $0xca8] sm:$0xf]
    %v6587 = vld [vmem:[#allocation12 + $0xcc4] sm:$0xf]
    %v6588 = vld [vmem:[#allocation12 + $0xce0] sm:$0xf]
    %v6589 = vld [vmem:[#allocation12 + $0xcfc] sm:$0xf]
    %v6590 = vld [vmem:[#allocation12 + $0xd18] sm:$0xf]
    %v6591 = vld [vmem:[#allocation12 + $0xd34] sm:$0xf]
    %v6592 = vld [vmem:[#allocation12 + $0xd50] sm:$0xf]
    %v6593 = vld [vmem:[#allocation12 + $0xd6c] sm:$0xf]
    %v6594 = vld [vmem:[#allocation12 + $0xd88] sm:$0xf]
    %v6595 = vld [vmem:[#allocation12 + $0xda4] sm:$0xf]
    %v6596 = vld [vmem:[#allocation12 + $0xdc0] sm:$0xf]
    %v6597 = vld [vmem:[#allocation12 + $0xddc] sm:$0xf]
    %v6598 = vld [vmem:[#allocation12 + $0xdf8] sm:$0xf]
    %v6599 = vld [vmem:[#allocation13 + $0x5] sm:$0x1]
    %v6601 = vlaneseq
    %v6602 = vshrl.u32 %v6601, 7
    %v6603 = vsub.s32 0, %v6602
    %v6604 = vrot.slane %v6599, %v6603
    %v6734 = vunpack.c.l.b16 %v6471
    %v6735 = vunpack.c.l.b16 %v6472
    %v6736 = vunpack.c.l.b16 %v6473
    %v6737 = vunpack.c.l.b16 %v6474
    %v6738 = vunpack.c.l.b16 %v6475
    %v6739 = vunpack.c.l.b16 %v6476
    %v6740 = vunpack.c.l.b16 %v6477
    %v6741 = vunpack.c.l.b16 %v6478
    %v6742 = vunpack.c.l.b16 %v6479
    %v6743 = vunpack.c.l.b16 %v6480
    %v6744 = vunpack.c.l.b16 %v6481
    %v6745 = vunpack.c.l.b16 %v6482
    %v6746 = vunpack.c.l.b16 %v6483
    %v6747 = vunpack.c.l.b16 %v6484
    %v6748 = vunpack.c.l.b16 %v6485
    %v6749 = vunpack.c.l.b16 %v6486
    %v6750 = vunpack.c.l.b16 %v6487
    %v6751 = vunpack.c.l.b16 %v6488
    %v6752 = vunpack.c.l.b16 %v6489
    %v6753 = vunpack.c.l.b16 %v6490
    %v6754 = vunpack.c.l.b16 %v6491
    %v6755 = vunpack.c.l.b16 %v6492
    %v6756 = vunpack.c.l.b16 %v6493
    %v6757 = vunpack.c.l.b16 %v6494
    %v6758 = vunpack.c.l.b16 %v6495
    %v6759 = vunpack.c.l.b16 %v6496
    %v6760 = vunpack.c.l.b16 %v6497
    %v6761 = vunpack.c.l.b16 %v6498
    %v6762 = vunpack.c.l.b16 %v6499
    %v6763 = vunpack.c.l.b16 %v6500
    %v6764 = vunpack.c.l.b16 %v6501
    %v6765 = vunpack.c.l.b16 %v6502
    %v6766 = vunpack.c.l.b16 %v6503
    %v6767 = vunpack.c.l.b16 %v6504
    %v6768 = vunpack.c.l.b16 %v6505
    %v6769 = vunpack.c.l.b16 %v6506
    %v6770 = vunpack.c.l.b16 %v6507
    %v6771 = vunpack.c.l.b16 %v6508
    %v6772 = vunpack.c.l.b16 %v6509
    %v6773 = vunpack.c.l.b16 %v6510
    %v6774 = vunpack.c.l.b16 %v6511
    %v6775 = vunpack.c.l.b16 %v6512
    %v6776 = vunpack.c.l.b16 %v6513
    %v6777 = vunpack.c.l.b16 %v6514
    %v6778 = vunpack.c.l.b16 %v6515
    %v6779 = vunpack.c.l.b16 %v6516
    %v6780 = vunpack.c.l.b16 %v6517
    %v6781 = vunpack.c.l.b16 %v6518
    %v6782 = vunpack.c.l.b16 %v6519
    %v6783 = vunpack.c.l.b16 %v6520
    %v6784 = vunpack.c.l.b16 %v6521
    %v6785 = vunpack.c.l.b16 %v6522
    %v6786 = vunpack.c.l.b16 %v6523
    %v6787 = vunpack.c.l.b16 %v6524
    %v6788 = vunpack.c.l.b16 %v6525
    %v6789 = vunpack.c.l.b16 %v6526
    %v6790 = vunpack.c.l.b16 %v6527
    %v6791 = vunpack.c.l.b16 %v6528
    %v6792 = vunpack.c.l.b16 %v6529
    %v6793 = vunpack.c.l.b16 %v6530
    %v6794 = vunpack.c.l.b16 %v6531
    %v6795 = vunpack.c.l.b16 %v6532
    %v6796 = vunpack.c.l.b16 %v6533
    %v6797 = vunpack.c.l.b16 %v6534
    %v6798 = vunpack.c.l.b16 %v6535
    %v6799 = vunpack.c.l.b16 %v6536
    %v6800 = vunpack.c.l.b16 %v6537
    %v6801 = vunpack.c.l.b16 %v6538
    %v6802 = vunpack.c.l.b16 %v6539
    %v6803 = vunpack.c.l.b16 %v6540
    %v6804 = vunpack.c.l.b16 %v6541
    %v6805 = vunpack.c.l.b16 %v6542
    %v6806 = vunpack.c.l.b16 %v6543
    %v6807 = vunpack.c.l.b16 %v6544
    %v6808 = vunpack.c.l.b16 %v6545
    %v6809 = vunpack.c.l.b16 %v6546
    %v6810 = vunpack.c.l.b16 %v6547
    %v6811 = vunpack.c.l.b16 %v6548
    %v6812 = vunpack.c.l.b16 %v6549
    %v6813 = vunpack.c.l.b16 %v6550
    %v6814 = vunpack.c.l.b16 %v6551
    %v6815 = vunpack.c.l.b16 %v6552
    %v6816 = vunpack.c.l.b16 %v6553
    %v6817 = vunpack.c.l.b16 %v6554
    %v6818 = vunpack.c.l.b16 %v6555
    %v6819 = vunpack.c.l.b16 %v6556
    %v6820 = vunpack.c.l.b16 %v6557
    %v6821 = vunpack.c.l.b16 %v6558
    %v6822 = vunpack.c.l.b16 %v6559
    %v6823 = vunpack.c.l.b16 %v6560
    %v6824 = vunpack.c.l.b16 %v6561
    %v6825 = vunpack.c.l.b16 %v6562
    %v6826 = vunpack.c.l.b16 %v6563
    %v6827 = vunpack.c.l.b16 %v6564
    %v6828 = vunpack.c.l.b16 %v6565
    %v6829 = vunpack.c.l.b16 %v6566
    %v6830 = vunpack.c.l.b16 %v6567
    %v6831 = vunpack.c.l.b16 %v6568
    %v6832 = vunpack.c.l.b16 %v6569
    %v6833 = vunpack.c.l.b16 %v6570
    %v6834 = vunpack.c.l.b16 %v6571
    %v6835 = vunpack.c.l.b16 %v6572
    %v6836 = vunpack.c.l.b16 %v6573
    %v6837 = vunpack.c.l.b16 %v6574
    %v6838 = vunpack.c.l.b16 %v6575
    %v6839 = vunpack.c.l.b16 %v6576
    %v6840 = vunpack.c.l.b16 %v6577
    %v6841 = vunpack.c.l.b16 %v6578
    %v6842 = vunpack.c.l.b16 %v6579
    %v6843 = vunpack.c.l.b16 %v6580
    %v6844 = vunpack.c.l.b16 %v6581
    %v6845 = vunpack.c.l.b16 %v6582
    %v6846 = vunpack.c.l.b16 %v6583
    %v6847 = vunpack.c.l.b16 %v6584
    %v6848 = vunpack.c.l.b16 %v6585
    %v6849 = vunpack.c.l.b16 %v6586
    %v6850 = vunpack.c.l.b16 %v6587
    %v6851 = vunpack.c.l.b16 %v6588
    %v6852 = vunpack.c.l.b16 %v6589
    %v6853 = vunpack.c.l.b16 %v6590
    %v6854 = vunpack.c.l.b16 %v6591
    %v6855 = vunpack.c.l.b16 %v6592
    %v6856 = vunpack.c.l.b16 %v6593
    %v6857 = vunpack.c.l.b16 %v6594
    %v6858 = vunpack.c.l.b16 %v6595
    %v6859 = vunpack.c.l.b16 %v6596
    %v6860 = vunpack.c.l.b16 %v6597
    %v6861 = vunpack.c.l.b16 %v6598
    %v6862 = vpack.c.b16 %v6735, %v6734
    %v6863 = vpack.c.b16 %v6737, %v6736
    %v6864 = vpack.c.b16 %v6739, %v6738
    %v6865 = vpack.c.b16 %v6741, %v6740
    %v6866 = vpack.c.b16 %v6743, %v6742
    %v6867 = vpack.c.b16 %v6745, %v6744
    %v6868 = vpack.c.b16 %v6747, %v6746
    %v6869 = vpack.c.b16 %v6749, %v6748
    %v6870 = vpack.c.b16 %v6751, %v6750
    %v6871 = vpack.c.b16 %v6753, %v6752
    %v6872 = vpack.c.b16 %v6755, %v6754
    %v6873 = vpack.c.b16 %v6757, %v6756
    %v6874 = vpack.c.b16 %v6759, %v6758
    %v6875 = vpack.c.b16 %v6761, %v6760
    %v6876 = vpack.c.b16 %v6763, %v6762
    %v6877 = vpack.c.b16 %v6765, %v6764
    %v6878 = vpack.c.b16 %v6767, %v6766
    %v6879 = vpack.c.b16 %v6769, %v6768
    %v6880 = vpack.c.b16 %v6771, %v6770
    %v6881 = vpack.c.b16 %v6773, %v6772
    %v6882 = vpack.c.b16 %v6775, %v6774
    %v6883 = vpack.c.b16 %v6777, %v6776
    %v6884 = vpack.c.b16 %v6779, %v6778
    %v6885 = vpack.c.b16 %v6781, %v6780
    %v6886 = vpack.c.b16 %v6783, %v6782
    %v6887 = vpack.c.b16 %v6785, %v6784
    %v6888 = vpack.c.b16 %v6787, %v6786
    %v6889 = vpack.c.b16 %v6789, %v6788
    %v6890 = vpack.c.b16 %v6791, %v6790
    %v6891 = vpack.c.b16 %v6793, %v6792
    %v6892 = vpack.c.b16 %v6795, %v6794
    %v6893 = vpack.c.b16 %v6797, %v6796
    %v6894 = vpack.c.b16 %v6799, %v6798
    %v6895 = vpack.c.b16 %v6801, %v6800
    %v6896 = vpack.c.b16 %v6803, %v6802
    %v6897 = vpack.c.b16 %v6805, %v6804
    %v6898 = vpack.c.b16 %v6807, %v6806
    %v6899 = vpack.c.b16 %v6809, %v6808
    %v6900 = vpack.c.b16 %v6811, %v6810
    %v6901 = vpack.c.b16 %v6813, %v6812
    %v6902 = vpack.c.b16 %v6815, %v6814
    %v6903 = vpack.c.b16 %v6817, %v6816
    %v6904 = vpack.c.b16 %v6819, %v6818
    %v6905 = vpack.c.b16 %v6821, %v6820
    %v6906 = vpack.c.b16 %v6823, %v6822
    %v6907 = vpack.c.b16 %v6825, %v6824
    %v6908 = vpack.c.b16 %v6827, %v6826
    %v6909 = vpack.c.b16 %v6829, %v6828
    %v6910 = vpack.c.b16 %v6831, %v6830
    %v6911 = vpack.c.b16 %v6833, %v6832
    %v6912 = vpack.c.b16 %v6835, %v6834
    %v6913 = vpack.c.b16 %v6837, %v6836
    %v6914 = vpack.c.b16 %v6839, %v6838
    %v6915 = vpack.c.b16 %v6841, %v6840
    %v6916 = vpack.c.b16 %v6843, %v6842
    %v6917 = vpack.c.b16 %v6845, %v6844
    %v6918 = vpack.c.b16 %v6847, %v6846
    %v6919 = vpack.c.b16 %v6849, %v6848
    %v6920 = vpack.c.b16 %v6851, %v6850
    %v6921 = vpack.c.b16 %v6853, %v6852
    %v6922 = vpack.c.b16 %v6855, %v6854
    %v6923 = vpack.c.b16 %v6857, %v6856
    %v6924 = vpack.c.b16 %v6859, %v6858
    %v6925 = vpack.c.b16 %v6861, %v6860
    %6990 = vmatprep.subr.bf16.mxu0 0
    %6991 = vmatpush1.bf16.msra.mxu0 %v6869
    %6992 = vmatprep.subr.bf16.mxu0 0
    %6993 = vmatpush1.bf16.msra.mxu0 %v6868
    %6994 = vmatprep.subr.bf16.mxu0 0
    %6995 = vmatpush1.bf16.msra.mxu0 %v6867
    %6996 = vmatprep.subr.bf16.mxu0 0
    %6997 = vmatpush1.bf16.msra.mxu0 %v6866
    %6998 = vmatprep.subr.bf16.mxu0 0
    %6999 = vmatpush1.bf16.msra.mxu0 %v6865
    %7000 = vmatprep.subr.bf16.mxu0 0
    %7001 = vmatpush1.bf16.msra.mxu0 %v6864
    %7002 = vmatprep.subr.bf16.mxu0 0
    %7003 = vmatpush1.bf16.msra.mxu0 %v6863
    %7004 = vmatprep.subr.bf16.mxu0 0
    %7005 = vmatpush1.bf16.msra.mxu0 %v6862
    %7006 = vmatprep.subr.bf16.mxu0 0
    %7007 = vmatpush2.bf16.msra.mxu0 %v6877
    %7008 = vmatprep.subr.bf16.mxu0 0
    %7009 = vmatpush2.bf16.msra.mxu0 %v6876
    %7010 = vmatprep.subr.bf16.mxu0 0
    %7011 = vmatpush2.bf16.msra.mxu0 %v6875
    %7012 = vmatprep.subr.bf16.mxu0 0
    %7013 = vmatpush2.bf16.msra.mxu0 %v6874
    %7014 = vmatprep.subr.bf16.mxu0 0
    %7015 = vmatpush2.bf16.msra.mxu0 %v6873
    %7016 = vmatprep.subr.bf16.mxu0 0
    %7017 = vmatpush2.bf16.msra.mxu0 %v6872
    %7018 = vmatprep.subr.bf16.mxu0 0
    %7019 = vmatpush2.bf16.msra.mxu0 %v6871
    %7020 = vmatprep.subr.bf16.mxu0 0
    %7021 = vmatpush2.bf16.msra.mxu0 %v6870
    %7022 = vmatprep.mubr.bf16.mxu0 %v2994
    %7023 = vmatmul.mubr.bf16.gmra.mxu0 %v2993
    %v7024 = vpop.f32.mrf.mxu0
    %v7025 = vadd.f32 %v6604, %v7024
    %v7026 = vpop.f32.mrf.mxu0
    %v7027 = vpop.f32.mrf.mxu0
    %v7028 = vadd.f32 %v6604, %v7027
    %v7029 = vpop.f32.mrf.mxu0
    %7030 = vdwg.mxu0
    %7031 = vmatprep.subr.bf16.mxu0 0
    %7032 = vmatpush1.bf16.msra.mxu0 %v6885
    %7033 = vmatprep.subr.bf16.mxu0 0
    %7034 = vmatpush1.bf16.msra.mxu0 %v6884
    %7035 = vmatprep.subr.bf16.mxu0 0
    %7036 = vmatpush1.bf16.msra.mxu0 %v6883
    %7037 = vmatprep.subr.bf16.mxu0 0
    %7038 = vmatpush1.bf16.msra.mxu0 %v6882
    %7039 = vmatprep.subr.bf16.mxu0 0
    %7040 = vmatpush1.bf16.msra.mxu0 %v6881
    %7041 = vmatprep.subr.bf16.mxu0 0
    %7042 = vmatpush1.bf16.msra.mxu0 %v6880
    %7043 = vmatprep.subr.bf16.mxu0 0
    %7044 = vmatpush1.bf16.msra.mxu0 %v6879
    %7045 = vmatprep.subr.bf16.mxu0 0
    %7046 = vmatpush1.bf16.msra.mxu0 %v6878
    %7047 = vmatprep.subr.bf16.mxu0 0
    %7048 = vmatpush2.bf16.msra.mxu0 %v6893
    %7049 = vmatprep.subr.bf16.mxu0 0
    %7050 = vmatpush2.bf16.msra.mxu0 %v6892
    %7051 = vmatprep.subr.bf16.mxu0 0
    %7052 = vmatpush2.bf16.msra.mxu0 %v6891
    %7053 = vmatprep.subr.bf16.mxu0 0
    %7054 = vmatpush2.bf16.msra.mxu0 %v6890
    %7055 = vmatprep.subr.bf16.mxu0 0
    %7056 = vmatpush2.bf16.msra.mxu0 %v6889
    %7057 = vmatprep.subr.bf16.mxu0 0
    %7058 = vmatpush2.bf16.msra.mxu0 %v6888
    %7059 = vmatprep.subr.bf16.mxu0 0
    %7060 = vmatpush2.bf16.msra.mxu0 %v6887
    %7061 = vmatprep.subr.bf16.mxu0 0
    %7062 = vmatpush2.bf16.msra.mxu0 %v6886
    %7063 = vmatprep.mubr.bf16.mxu0 %v2996
    %7064 = vmatmul.mubr.bf16.gmra.mxu0 %v2995
    %v7065 = vpop.f32.mrf.mxu0
    %v7066 = vadd.f32 %v7025, %v7065
    %v7067 = vpop.f32.mrf.mxu0
    %v7068 = vpop.f32.mrf.mxu0
    %v7069 = vadd.f32 %v7028, %v7068
    %v7070 = vpop.f32.mrf.mxu0
    %7071 = vdwg.mxu0
    %7072 = vmatprep.subr.bf16.mxu0 0
    %7073 = vmatpush1.bf16.msra.mxu0 %v6901
    %7074 = vmatprep.subr.bf16.mxu0 0
    %7075 = vmatpush1.bf16.msra.mxu0 %v6900
    %7076 = vmatprep.subr.bf16.mxu0 0
    %7077 = vmatpush1.bf16.msra.mxu0 %v6899
    %7078 = vmatprep.subr.bf16.mxu0 0
    %7079 = vmatpush1.bf16.msra.mxu0 %v6898
    %7080 = vmatprep.subr.bf16.mxu0 0
    %7081 = vmatpush1.bf16.msra.mxu0 %v6897
    %7082 = vmatprep.subr.bf16.mxu0 0
    %7083 = vmatpush1.bf16.msra.mxu0 %v6896
    %7084 = vmatprep.subr.bf16.mxu0 0
    %7085 = vmatpush1.bf16.msra.mxu0 %v6895
    %7086 = vmatprep.subr.bf16.mxu0 0
    %7087 = vmatpush1.bf16.msra.mxu0 %v6894
    %7088 = vmatprep.subr.bf16.mxu0 0
    %7089 = vmatpush2.bf16.msra.mxu0 %v6909
    %7090 = vmatprep.subr.bf16.mxu0 0
    %7091 = vmatpush2.bf16.msra.mxu0 %v6908
    %7092 = vmatprep.subr.bf16.mxu0 0
    %7093 = vmatpush2.bf16.msra.mxu0 %v6907
    %7094 = vmatprep.subr.bf16.mxu0 0
    %7095 = vmatpush2.bf16.msra.mxu0 %v6906
    %7096 = vmatprep.subr.bf16.mxu0 0
    %7097 = vmatpush2.bf16.msra.mxu0 %v6905
    %7098 = vmatprep.subr.bf16.mxu0 0
    %7099 = vmatpush2.bf16.msra.mxu0 %v6904
    %7100 = vmatprep.subr.bf16.mxu0 0
    %7101 = vmatpush2.bf16.msra.mxu0 %v6903
    %7102 = vmatprep.subr.bf16.mxu0 0
    %7103 = vmatpush2.bf16.msra.mxu0 %v6902
    %7104 = vmatprep.mubr.bf16.mxu0 %v2998
    %7105 = vmatmul.mubr.bf16.gmra.mxu0 %v2997
    %v7106 = vpop.f32.mrf.mxu0
    %v7107 = vadd.f32 %v7066, %v7106
    %v7108 = vpop.f32.mrf.mxu0
    %v7109 = vpop.f32.mrf.mxu0
    %v7110 = vadd.f32 %v7069, %v7109
    %v7111 = vpop.f32.mrf.mxu0
    %7112 = vdwg.mxu0
    %7113 = vmatprep.subr.bf16.mxu0 0
    %7114 = vmatpush1.bf16.msra.mxu0 %v6917
    %7115 = vmatprep.subr.bf16.mxu0 0
    %7116 = vmatpush1.bf16.msra.mxu0 %v6916
    %7117 = vmatprep.subr.bf16.mxu0 0
    %7118 = vmatpush1.bf16.msra.mxu0 %v6915
    %7119 = vmatprep.subr.bf16.mxu0 0
    %7120 = vmatpush1.bf16.msra.mxu0 %v6914
    %7121 = vmatprep.subr.bf16.mxu0 0
    %7122 = vmatpush1.bf16.msra.mxu0 %v6913
    %7123 = vmatprep.subr.bf16.mxu0 0
    %7124 = vmatpush1.bf16.msra.mxu0 %v6912
    %7125 = vmatprep.subr.bf16.mxu0 0
    %7126 = vmatpush1.bf16.msra.mxu0 %v6911
    %7127 = vmatprep.subr.bf16.mxu0 0
    %7128 = vmatpush1.bf16.msra.mxu0 %v6910
    %7129 = vmatprep.subr.bf16.mxu0 0
    %7130 = vmatpush2.bf16.msra.mxu0 %v6925
    %7131 = vmatprep.subr.bf16.mxu0 0
    %7132 = vmatpush2.bf16.msra.mxu0 %v6924
    %7133 = vmatprep.subr.bf16.mxu0 0
    %7134 = vmatpush2.bf16.msra.mxu0 %v6923
    %7135 = vmatprep.subr.bf16.mxu0 0
    %7136 = vmatpush2.bf16.msra.mxu0 %v6922
    %7137 = vmatprep.subr.bf16.mxu0 0
    %7138 = vmatpush2.bf16.msra.mxu0 %v6921
    %7139 = vmatprep.subr.bf16.mxu0 0
    %7140 = vmatpush2.bf16.msra.mxu0 %v6920
    %7141 = vmatprep.subr.bf16.mxu0 0
    %7142 = vmatpush2.bf16.msra.mxu0 %v6919
    %7143 = vmatprep.subr.bf16.mxu0 0
    %7144 = vmatpush2.bf16.msra.mxu0 %v6918
    %7145 = vmatprep.mubr.bf16.mxu0 %v3000
    %7146 = vmatmul.mubr.bf16.gmra.mxu0 %v2999
    %v7147 = vpop.f32.mrf.mxu0
    %v7148 = vadd.f32 %v7107, %v7147
    %v7149 = vpop.f32.mrf.mxu0
    %v7150 = vpop.f32.mrf.mxu0
    %v7151 = vadd.f32 %v7110, %v7150
    %v7152 = vpop.f32.mrf.mxu0
    %7153 = vdwg.mxu0
    %v7154 = vpack.c.bf16 %v7151, %v7148
    %v7155 = vtanh.bf16.pop %v7154
    %v7157 = vunpack.c.l.b16 %v7155
    %v7158 = vunpack.c.h.b16 %v7155
    %v7159 = vpack.c.b16 %v7157, %v7157
    %v7160 = vpack.c.b16 %v7158, %v7158
    %7163 = vst [vmem:[%s9 + $0x14] sm:$0xf] %v7159
    %7164 = vst [vmem:[%s9 + $0x30] sm:$0xf] %v7160
    %v7165 = vld [vmem:[#allocation12 + $0x18] sm:$0xf]
    %v7166 = vld [vmem:[#allocation12 + $0x34] sm:$0xf]
    %v7167 = vld [vmem:[#allocation12 + $0x50] sm:$0xf]
    %v7168 = vld [vmem:[#allocation12 + $0x6c] sm:$0xf]
    %v7169 = vld [vmem:[#allocation12 + $0x88] sm:$0xf]
    %v7170 = vld [vmem:[#allocation12 + $0xa4] sm:$0xf]
    %v7171 = vld [vmem:[#allocation12 + $0xc0] sm:$0xf]
    %v7172 = vld [vmem:[#allocation12 + $0xdc] sm:$0xf]
    %v7173 = vld [vmem:[#allocation12 + $0xf8] sm:$0xf]
    %v7174 = vld [vmem:[#allocation12 + $0x114] sm:$0xf]
    %v7175 = vld [vmem:[#allocation12 + $0x130] sm:$0xf]
    %v7176 = vld [vmem:[#allocation12 + $0x14c] sm:$0xf]
    %v7177 = vld [vmem:[#allocation12 + $0x168] sm:$0xf]
    %v7178 = vld [vmem:[#allocation12 + $0x184] sm:$0xf]
    %v7179 = vld [vmem:[#allocation12 + $0x1a0] sm:$0xf]
    %v7180 = vld [vmem:[#allocation12 + $0x1bc] sm:$0xf]
    %v7181 = vld [vmem:[#allocation12 + $0x1d8] sm:$0xf]
    %v7182 = vld [vmem:[#allocation12 + $0x1f4] sm:$0xf]
    %v7183 = vld [vmem:[#allocation12 + $0x210] sm:$0xf]
    %v7184 = vld [vmem:[#allocation12 + $0x22c] sm:$0xf]
    %v7185 = vld [vmem:[#allocation12 + $0x248] sm:$0xf]
    %v7186 = vld [vmem:[#allocation12 + $0x264] sm:$0xf]
    %v7187 = vld [vmem:[#allocation12 + $0x280] sm:$0xf]
    %v7188 = vld [vmem:[#allocation12 + $0x29c] sm:$0xf]
    %v7189 = vld [vmem:[#allocation12 + $0x2b8] sm:$0xf]
    %v7190 = vld [vmem:[#allocation12 + $0x2d4] sm:$0xf]
    %v7191 = vld [vmem:[#allocation12 + $0x2f0] sm:$0xf]
    %v7192 = vld [vmem:[#allocation12 + $0x30c] sm:$0xf]
    %v7193 = vld [vmem:[#allocation12 + $0x328] sm:$0xf]
    %v7194 = vld [vmem:[#allocation12 + $0x344] sm:$0xf]
    %v7195 = vld [vmem:[#allocation12 + $0x360] sm:$0xf]
    %v7196 = vld [vmem:[#allocation12 + $0x37c] sm:$0xf]
    %v7197 = vld [vmem:[#allocation12 + $0x398] sm:$0xf]
    %v7198 = vld [vmem:[#allocation12 + $0x3b4] sm:$0xf]
    %v7199 = vld [vmem:[#allocation12 + $0x3d0] sm:$0xf]
    %v7200 = vld [vmem:[#allocation12 + $0x3ec] sm:$0xf]
    %v7201 = vld [vmem:[#allocation12 + $0x408] sm:$0xf]
    %v7202 = vld [vmem:[#allocation12 + $0x424] sm:$0xf]
    %v7203 = vld [vmem:[#allocation12 + $0x440] sm:$0xf]
    %v7204 = vld [vmem:[#allocation12 + $0x45c] sm:$0xf]
    %v7205 = vld [vmem:[#allocation12 + $0x478] sm:$0xf]
    %v7206 = vld [vmem:[#allocation12 + $0x494] sm:$0xf]
    %v7207 = vld [vmem:[#allocation12 + $0x4b0] sm:$0xf]
    %v7208 = vld [vmem:[#allocation12 + $0x4cc] sm:$0xf]
    %v7209 = vld [vmem:[#allocation12 + $0x4e8] sm:$0xf]
    %v7210 = vld [vmem:[#allocation12 + $0x504] sm:$0xf]
    %v7211 = vld [vmem:[#allocation12 + $0x520] sm:$0xf]
    %v7212 = vld [vmem:[#allocation12 + $0x53c] sm:$0xf]
    %v7213 = vld [vmem:[#allocation12 + $0x558] sm:$0xf]
    %v7214 = vld [vmem:[#allocation12 + $0x574] sm:$0xf]
    %v7215 = vld [vmem:[#allocation12 + $0x590] sm:$0xf]
    %v7216 = vld [vmem:[#allocation12 + $0x5ac] sm:$0xf]
    %v7217 = vld [vmem:[#allocation12 + $0x5c8] sm:$0xf]
    %v7218 = vld [vmem:[#allocation12 + $0x5e4] sm:$0xf]
    %v7219 = vld [vmem:[#allocation12 + $0x600] sm:$0xf]
    %v7220 = vld [vmem:[#allocation12 + $0x61c] sm:$0xf]
    %v7221 = vld [vmem:[#allocation12 + $0x638] sm:$0xf]
    %v7222 = vld [vmem:[#allocation12 + $0x654] sm:$0xf]
    %v7223 = vld [vmem:[#allocation12 + $0x670] sm:$0xf]
    %v7224 = vld [vmem:[#allocation12 + $0x68c] sm:$0xf]
    %v7225 = vld [vmem:[#allocation12 + $0x6a8] sm:$0xf]
    %v7226 = vld [vmem:[#allocation12 + $0x6c4] sm:$0xf]
    %v7227 = vld [vmem:[#allocation12 + $0x6e0] sm:$0xf]
    %v7228 = vld [vmem:[#allocation12 + $0x6fc] sm:$0xf]
    %v7229 = vld [vmem:[#allocation12 + $0x718] sm:$0xf]
    %v7230 = vld [vmem:[#allocation12 + $0x734] sm:$0xf]
    %v7231 = vld [vmem:[#allocation12 + $0x750] sm:$0xf]
    %v7232 = vld [vmem:[#allocation12 + $0x76c] sm:$0xf]
    %v7233 = vld [vmem:[#allocation12 + $0x788] sm:$0xf]
    %v7234 = vld [vmem:[#allocation12 + $0x7a4] sm:$0xf]
    %v7235 = vld [vmem:[#allocation12 + $0x7c0] sm:$0xf]
    %v7236 = vld [vmem:[#allocation12 + $0x7dc] sm:$0xf]
    %v7237 = vld [vmem:[#allocation12 + $0x7f8] sm:$0xf]
    %v7238 = vld [vmem:[#allocation12 + $0x814] sm:$0xf]
    %v7239 = vld [vmem:[#allocation12 + $0x830] sm:$0xf]
    %v7240 = vld [vmem:[#allocation12 + $0x84c] sm:$0xf]
    %v7241 = vld [vmem:[#allocation12 + $0x868] sm:$0xf]
    %v7242 = vld [vmem:[#allocation12 + $0x884] sm:$0xf]
    %v7243 = vld [vmem:[#allocation12 + $0x8a0] sm:$0xf]
    %v7244 = vld [vmem:[#allocation12 + $0x8bc] sm:$0xf]
    %v7245 = vld [vmem:[#allocation12 + $0x8d8] sm:$0xf]
    %v7246 = vld [vmem:[#allocation12 + $0x8f4] sm:$0xf]
    %v7247 = vld [vmem:[#allocation12 + $0x910] sm:$0xf]
    %v7248 = vld [vmem:[#allocation12 + $0x92c] sm:$0xf]
    %v7249 = vld [vmem:[#allocation12 + $0x948] sm:$0xf]
    %v7250 = vld [vmem:[#allocation12 + $0x964] sm:$0xf]
    %v7251 = vld [vmem:[#allocation12 + $0x980] sm:$0xf]
    %v7252 = vld [vmem:[#allocation12 + $0x99c] sm:$0xf]
    %v7253 = vld [vmem:[#allocation12 + $0x9b8] sm:$0xf]
    %v7254 = vld [vmem:[#allocation12 + $0x9d4] sm:$0xf]
    %v7255 = vld [vmem:[#allocation12 + $0x9f0] sm:$0xf]
    %v7256 = vld [vmem:[#allocation12 + $0xa0c] sm:$0xf]
    %v7257 = vld [vmem:[#allocation12 + $0xa28] sm:$0xf]
    %v7258 = vld [vmem:[#allocation12 + $0xa44] sm:$0xf]
    %v7259 = vld [vmem:[#allocation12 + $0xa60] sm:$0xf]
    %v7260 = vld [vmem:[#allocation12 + $0xa7c] sm:$0xf]
    %v7261 = vld [vmem:[#allocation12 + $0xa98] sm:$0xf]
    %v7262 = vld [vmem:[#allocation12 + $0xab4] sm:$0xf]
    %v7263 = vld [vmem:[#allocation12 + $0xad0] sm:$0xf]
    %v7264 = vld [vmem:[#allocation12 + $0xaec] sm:$0xf]
    %v7265 = vld [vmem:[#allocation12 + $0xb08] sm:$0xf]
    %v7266 = vld [vmem:[#allocation12 + $0xb24] sm:$0xf]
    %v7267 = vld [vmem:[#allocation12 + $0xb40] sm:$0xf]
    %v7268 = vld [vmem:[#allocation12 + $0xb5c] sm:$0xf]
    %v7269 = vld [vmem:[#allocation12 + $0xb78] sm:$0xf]
    %v7270 = vld [vmem:[#allocation12 + $0xb94] sm:$0xf]
    %v7271 = vld [vmem:[#allocation12 + $0xbb0] sm:$0xf]
    %v7272 = vld [vmem:[#allocation12 + $0xbcc] sm:$0xf]
    %v7273 = vld [vmem:[#allocation12 + $0xbe8] sm:$0xf]
    %v7274 = vld [vmem:[#allocation12 + $0xc04] sm:$0xf]
    %v7275 = vld [vmem:[#allocation12 + $0xc20] sm:$0xf]
    %v7276 = vld [vmem:[#allocation12 + $0xc3c] sm:$0xf]
    %v7277 = vld [vmem:[#allocation12 + $0xc58] sm:$0xf]
    %v7278 = vld [vmem:[#allocation12 + $0xc74] sm:$0xf]
    %v7279 = vld [vmem:[#allocation12 + $0xc90] sm:$0xf]
    %v7280 = vld [vmem:[#allocation12 + $0xcac] sm:$0xf]
    %v7281 = vld [vmem:[#allocation12 + $0xcc8] sm:$0xf]
    %v7282 = vld [vmem:[#allocation12 + $0xce4] sm:$0xf]
    %v7283 = vld [vmem:[#allocation12 + $0xd00] sm:$0xf]
    %v7284 = vld [vmem:[#allocation12 + $0xd1c] sm:$0xf]
    %v7285 = vld [vmem:[#allocation12 + $0xd38] sm:$0xf]
    %v7286 = vld [vmem:[#allocation12 + $0xd54] sm:$0xf]
    %v7287 = vld [vmem:[#allocation12 + $0xd70] sm:$0xf]
    %v7288 = vld [vmem:[#allocation12 + $0xd8c] sm:$0xf]
    %v7289 = vld [vmem:[#allocation12 + $0xda8] sm:$0xf]
    %v7290 = vld [vmem:[#allocation12 + $0xdc4] sm:$0xf]
    %v7291 = vld [vmem:[#allocation12 + $0xde0] sm:$0xf]
    %v7292 = vld [vmem:[#allocation12 + $0xdfc] sm:$0xf]
    %v7293 = vld [vmem:[#allocation13 + $0x6] sm:$0x1]
    %v7295 = vlaneseq
    %v7296 = vshrl.u32 %v7295, 7
    %v7297 = vsub.s32 0, %v7296
    %v7298 = vrot.slane %v7293, %v7297
    %v7428 = vunpack.c.l.b16 %v7165
    %v7429 = vunpack.c.l.b16 %v7166
    %v7430 = vunpack.c.l.b16 %v7167
    %v7431 = vunpack.c.l.b16 %v7168
    %v7432 = vunpack.c.l.b16 %v7169
    %v7433 = vunpack.c.l.b16 %v7170
    %v7434 = vunpack.c.l.b16 %v7171
    %v7435 = vunpack.c.l.b16 %v7172
    %v7436 = vunpack.c.l.b16 %v7173
    %v7437 = vunpack.c.l.b16 %v7174
    %v7438 = vunpack.c.l.b16 %v7175
    %v7439 = vunpack.c.l.b16 %v7176
    %v7440 = vunpack.c.l.b16 %v7177
    %v7441 = vunpack.c.l.b16 %v7178
    %v7442 = vunpack.c.l.b16 %v7179
    %v7443 = vunpack.c.l.b16 %v7180
    %v7444 = vunpack.c.l.b16 %v7181
    %v7445 = vunpack.c.l.b16 %v7182
    %v7446 = vunpack.c.l.b16 %v7183
    %v7447 = vunpack.c.l.b16 %v7184
    %v7448 = vunpack.c.l.b16 %v7185
    %v7449 = vunpack.c.l.b16 %v7186
    %v7450 = vunpack.c.l.b16 %v7187
    %v7451 = vunpack.c.l.b16 %v7188
    %v7452 = vunpack.c.l.b16 %v7189
    %v7453 = vunpack.c.l.b16 %v7190
    %v7454 = vunpack.c.l.b16 %v7191
    %v7455 = vunpack.c.l.b16 %v7192
    %v7456 = vunpack.c.l.b16 %v7193
    %v7457 = vunpack.c.l.b16 %v7194
    %v7458 = vunpack.c.l.b16 %v7195
    %v7459 = vunpack.c.l.b16 %v7196
    %v7460 = vunpack.c.l.b16 %v7197
    %v7461 = vunpack.c.l.b16 %v7198
    %v7462 = vunpack.c.l.b16 %v7199
    %v7463 = vunpack.c.l.b16 %v7200
    %v7464 = vunpack.c.l.b16 %v7201
    %v7465 = vunpack.c.l.b16 %v7202
    %v7466 = vunpack.c.l.b16 %v7203
    %v7467 = vunpack.c.l.b16 %v7204
    %v7468 = vunpack.c.l.b16 %v7205
    %v7469 = vunpack.c.l.b16 %v7206
    %v7470 = vunpack.c.l.b16 %v7207
    %v7471 = vunpack.c.l.b16 %v7208
    %v7472 = vunpack.c.l.b16 %v7209
    %v7473 = vunpack.c.l.b16 %v7210
    %v7474 = vunpack.c.l.b16 %v7211
    %v7475 = vunpack.c.l.b16 %v7212
    %v7476 = vunpack.c.l.b16 %v7213
    %v7477 = vunpack.c.l.b16 %v7214
    %v7478 = vunpack.c.l.b16 %v7215
    %v7479 = vunpack.c.l.b16 %v7216
    %v7480 = vunpack.c.l.b16 %v7217
    %v7481 = vunpack.c.l.b16 %v7218
    %v7482 = vunpack.c.l.b16 %v7219
    %v7483 = vunpack.c.l.b16 %v7220
    %v7484 = vunpack.c.l.b16 %v7221
    %v7485 = vunpack.c.l.b16 %v7222
    %v7486 = vunpack.c.l.b16 %v7223
    %v7487 = vunpack.c.l.b16 %v7224
    %v7488 = vunpack.c.l.b16 %v7225
    %v7489 = vunpack.c.l.b16 %v7226
    %v7490 = vunpack.c.l.b16 %v7227
    %v7491 = vunpack.c.l.b16 %v7228
    %v7492 = vunpack.c.l.b16 %v7229
    %v7493 = vunpack.c.l.b16 %v7230
    %v7494 = vunpack.c.l.b16 %v7231
    %v7495 = vunpack.c.l.b16 %v7232
    %v7496 = vunpack.c.l.b16 %v7233
    %v7497 = vunpack.c.l.b16 %v7234
    %v7498 = vunpack.c.l.b16 %v7235
    %v7499 = vunpack.c.l.b16 %v7236
    %v7500 = vunpack.c.l.b16 %v7237
    %v7501 = vunpack.c.l.b16 %v7238
    %v7502 = vunpack.c.l.b16 %v7239
    %v7503 = vunpack.c.l.b16 %v7240
    %v7504 = vunpack.c.l.b16 %v7241
    %v7505 = vunpack.c.l.b16 %v7242
    %v7506 = vunpack.c.l.b16 %v7243
    %v7507 = vunpack.c.l.b16 %v7244
    %v7508 = vunpack.c.l.b16 %v7245
    %v7509 = vunpack.c.l.b16 %v7246
    %v7510 = vunpack.c.l.b16 %v7247
    %v7511 = vunpack.c.l.b16 %v7248
    %v7512 = vunpack.c.l.b16 %v7249
    %v7513 = vunpack.c.l.b16 %v7250
    %v7514 = vunpack.c.l.b16 %v7251
    %v7515 = vunpack.c.l.b16 %v7252
    %v7516 = vunpack.c.l.b16 %v7253
    %v7517 = vunpack.c.l.b16 %v7254
    %v7518 = vunpack.c.l.b16 %v7255
    %v7519 = vunpack.c.l.b16 %v7256
    %v7520 = vunpack.c.l.b16 %v7257
    %v7521 = vunpack.c.l.b16 %v7258
    %v7522 = vunpack.c.l.b16 %v7259
    %v7523 = vunpack.c.l.b16 %v7260
    %v7524 = vunpack.c.l.b16 %v7261
    %v7525 = vunpack.c.l.b16 %v7262
    %v7526 = vunpack.c.l.b16 %v7263
    %v7527 = vunpack.c.l.b16 %v7264
    %v7528 = vunpack.c.l.b16 %v7265
    %v7529 = vunpack.c.l.b16 %v7266
    %v7530 = vunpack.c.l.b16 %v7267
    %v7531 = vunpack.c.l.b16 %v7268
    %v7532 = vunpack.c.l.b16 %v7269
    %v7533 = vunpack.c.l.b16 %v7270
    %v7534 = vunpack.c.l.b16 %v7271
    %v7535 = vunpack.c.l.b16 %v7272
    %v7536 = vunpack.c.l.b16 %v7273
    %v7537 = vunpack.c.l.b16 %v7274
    %v7538 = vunpack.c.l.b16 %v7275
    %v7539 = vunpack.c.l.b16 %v7276
    %v7540 = vunpack.c.l.b16 %v7277
    %v7541 = vunpack.c.l.b16 %v7278
    %v7542 = vunpack.c.l.b16 %v7279
    %v7543 = vunpack.c.l.b16 %v7280
    %v7544 = vunpack.c.l.b16 %v7281
    %v7545 = vunpack.c.l.b16 %v7282
    %v7546 = vunpack.c.l.b16 %v7283
    %v7547 = vunpack.c.l.b16 %v7284
    %v7548 = vunpack.c.l.b16 %v7285
    %v7549 = vunpack.c.l.b16 %v7286
    %v7550 = vunpack.c.l.b16 %v7287
    %v7551 = vunpack.c.l.b16 %v7288
    %v7552 = vunpack.c.l.b16 %v7289
    %v7553 = vunpack.c.l.b16 %v7290
    %v7554 = vunpack.c.l.b16 %v7291
    %v7555 = vunpack.c.l.b16 %v7292
    %v7556 = vpack.c.b16 %v7429, %v7428
    %v7557 = vpack.c.b16 %v7431, %v7430
    %v7558 = vpack.c.b16 %v7433, %v7432
    %v7559 = vpack.c.b16 %v7435, %v7434
    %v7560 = vpack.c.b16 %v7437, %v7436
    %v7561 = vpack.c.b16 %v7439, %v7438
    %v7562 = vpack.c.b16 %v7441, %v7440
    %v7563 = vpack.c.b16 %v7443, %v7442
    %v7564 = vpack.c.b16 %v7445, %v7444
    %v7565 = vpack.c.b16 %v7447, %v7446
    %v7566 = vpack.c.b16 %v7449, %v7448
    %v7567 = vpack.c.b16 %v7451, %v7450
    %v7568 = vpack.c.b16 %v7453, %v7452
    %v7569 = vpack.c.b16 %v7455, %v7454
    %v7570 = vpack.c.b16 %v7457, %v7456
    %v7571 = vpack.c.b16 %v7459, %v7458
    %v7572 = vpack.c.b16 %v7461, %v7460
    %v7573 = vpack.c.b16 %v7463, %v7462
    %v7574 = vpack.c.b16 %v7465, %v7464
    %v7575 = vpack.c.b16 %v7467, %v7466
    %v7576 = vpack.c.b16 %v7469, %v7468
    %v7577 = vpack.c.b16 %v7471, %v7470
    %v7578 = vpack.c.b16 %v7473, %v7472
    %v7579 = vpack.c.b16 %v7475, %v7474
    %v7580 = vpack.c.b16 %v7477, %v7476
    %v7581 = vpack.c.b16 %v7479, %v7478
    %v7582 = vpack.c.b16 %v7481, %v7480
    %v7583 = vpack.c.b16 %v7483, %v7482
    %v7584 = vpack.c.b16 %v7485, %v7484
    %v7585 = vpack.c.b16 %v7487, %v7486
    %v7586 = vpack.c.b16 %v7489, %v7488
    %v7587 = vpack.c.b16 %v7491, %v7490
    %v7588 = vpack.c.b16 %v7493, %v7492
    %v7589 = vpack.c.b16 %v7495, %v7494
    %v7590 = vpack.c.b16 %v7497, %v7496
    %v7591 = vpack.c.b16 %v7499, %v7498
    %v7592 = vpack.c.b16 %v7501, %v7500
    %v7593 = vpack.c.b16 %v7503, %v7502
    %v7594 = vpack.c.b16 %v7505, %v7504
    %v7595 = vpack.c.b16 %v7507, %v7506
    %v7596 = vpack.c.b16 %v7509, %v7508
    %v7597 = vpack.c.b16 %v7511, %v7510
    %v7598 = vpack.c.b16 %v7513, %v7512
    %v7599 = vpack.c.b16 %v7515, %v7514
    %v7600 = vpack.c.b16 %v7517, %v7516
    %v7601 = vpack.c.b16 %v7519, %v7518
    %v7602 = vpack.c.b16 %v7521, %v7520
    %v7603 = vpack.c.b16 %v7523, %v7522
    %v7604 = vpack.c.b16 %v7525, %v7524
    %v7605 = vpack.c.b16 %v7527, %v7526
    %v7606 = vpack.c.b16 %v7529, %v7528
    %v7607 = vpack.c.b16 %v7531, %v7530
    %v7608 = vpack.c.b16 %v7533, %v7532
    %v7609 = vpack.c.b16 %v7535, %v7534
    %v7610 = vpack.c.b16 %v7537, %v7536
    %v7611 = vpack.c.b16 %v7539, %v7538
    %v7612 = vpack.c.b16 %v7541, %v7540
    %v7613 = vpack.c.b16 %v7543, %v7542
    %v7614 = vpack.c.b16 %v7545, %v7544
    %v7615 = vpack.c.b16 %v7547, %v7546
    %v7616 = vpack.c.b16 %v7549, %v7548
    %v7617 = vpack.c.b16 %v7551, %v7550
    %v7618 = vpack.c.b16 %v7553, %v7552
    %v7619 = vpack.c.b16 %v7555, %v7554
    %7684 = vmatprep.subr.bf16.mxu0 0
    %7685 = vmatpush1.bf16.msra.mxu0 %v7563
    %7686 = vmatprep.subr.bf16.mxu0 0
    %7687 = vmatpush1.bf16.msra.mxu0 %v7562
    %7688 = vmatprep.subr.bf16.mxu0 0
    %7689 = vmatpush1.bf16.msra.mxu0 %v7561
    %7690 = vmatprep.subr.bf16.mxu0 0
    %7691 = vmatpush1.bf16.msra.mxu0 %v7560
    %7692 = vmatprep.subr.bf16.mxu0 0
    %7693 = vmatpush1.bf16.msra.mxu0 %v7559
    %7694 = vmatprep.subr.bf16.mxu0 0
    %7695 = vmatpush1.bf16.msra.mxu0 %v7558
    %7696 = vmatprep.subr.bf16.mxu0 0
    %7697 = vmatpush1.bf16.msra.mxu0 %v7557
    %7698 = vmatprep.subr.bf16.mxu0 0
    %7699 = vmatpush1.bf16.msra.mxu0 %v7556
    %7700 = vmatprep.subr.bf16.mxu0 0
    %7701 = vmatpush2.bf16.msra.mxu0 %v7571
    %7702 = vmatprep.subr.bf16.mxu0 0
    %7703 = vmatpush2.bf16.msra.mxu0 %v7570
    %7704 = vmatprep.subr.bf16.mxu0 0
    %7705 = vmatpush2.bf16.msra.mxu0 %v7569
    %7706 = vmatprep.subr.bf16.mxu0 0
    %7707 = vmatpush2.bf16.msra.mxu0 %v7568
    %7708 = vmatprep.subr.bf16.mxu0 0
    %7709 = vmatpush2.bf16.msra.mxu0 %v7567
    %7710 = vmatprep.subr.bf16.mxu0 0
    %7711 = vmatpush2.bf16.msra.mxu0 %v7566
    %7712 = vmatprep.subr.bf16.mxu0 0
    %7713 = vmatpush2.bf16.msra.mxu0 %v7565
    %7714 = vmatprep.subr.bf16.mxu0 0
    %7715 = vmatpush2.bf16.msra.mxu0 %v7564
    %7716 = vmatprep.mubr.bf16.mxu0 %v2994
    %7717 = vmatmul.mubr.bf16.gmra.mxu0 %v2993
    %v7718 = vpop.f32.mrf.mxu0
    %v7719 = vadd.f32 %v7298, %v7718
    %v7720 = vpop.f32.mrf.mxu0
    %v7721 = vpop.f32.mrf.mxu0
    %v7722 = vadd.f32 %v7298, %v7721
    %v7723 = vpop.f32.mrf.mxu0
    %7724 = vdwg.mxu0
    %7725 = vmatprep.subr.bf16.mxu0 0
    %7726 = vmatpush1.bf16.msra.mxu0 %v7579
    %7727 = vmatprep.subr.bf16.mxu0 0
    %7728 = vmatpush1.bf16.msra.mxu0 %v7578
    %7729 = vmatprep.subr.bf16.mxu0 0
    %7730 = vmatpush1.bf16.msra.mxu0 %v7577
    %7731 = vmatprep.subr.bf16.mxu0 0
    %7732 = vmatpush1.bf16.msra.mxu0 %v7576
    %7733 = vmatprep.subr.bf16.mxu0 0
    %7734 = vmatpush1.bf16.msra.mxu0 %v7575
    %7735 = vmatprep.subr.bf16.mxu0 0
    %7736 = vmatpush1.bf16.msra.mxu0 %v7574
    %7737 = vmatprep.subr.bf16.mxu0 0
    %7738 = vmatpush1.bf16.msra.mxu0 %v7573
    %7739 = vmatprep.subr.bf16.mxu0 0
    %7740 = vmatpush1.bf16.msra.mxu0 %v7572
    %7741 = vmatprep.subr.bf16.mxu0 0
    %7742 = vmatpush2.bf16.msra.mxu0 %v7587
    %7743 = vmatprep.subr.bf16.mxu0 0
    %7744 = vmatpush2.bf16.msra.mxu0 %v7586
    %7745 = vmatprep.subr.bf16.mxu0 0
    %7746 = vmatpush2.bf16.msra.mxu0 %v7585
    %7747 = vmatprep.subr.bf16.mxu0 0
    %7748 = vmatpush2.bf16.msra.mxu0 %v7584
    %7749 = vmatprep.subr.bf16.mxu0 0
    %7750 = vmatpush2.bf16.msra.mxu0 %v7583
    %7751 = vmatprep.subr.bf16.mxu0 0
    %7752 = vmatpush2.bf16.msra.mxu0 %v7582
    %7753 = vmatprep.subr.bf16.mxu0 0
    %7754 = vmatpush2.bf16.msra.mxu0 %v7581
    %7755 = vmatprep.subr.bf16.mxu0 0
    %7756 = vmatpush2.bf16.msra.mxu0 %v7580
    %7757 = vmatprep.mubr.bf16.mxu0 %v2996
    %7758 = vmatmul.mubr.bf16.gmra.mxu0 %v2995
    %v7759 = vpop.f32.mrf.mxu0
    %v7760 = vadd.f32 %v7719, %v7759
    %v7761 = vpop.f32.mrf.mxu0
    %v7762 = vpop.f32.mrf.mxu0
    %v7763 = vadd.f32 %v7722, %v7762
    %v7764 = vpop.f32.mrf.mxu0
    %7765 = vdwg.mxu0
    %7766 = vmatprep.subr.bf16.mxu0 0
    %7767 = vmatpush1.bf16.msra.mxu0 %v7595
    %7768 = vmatprep.subr.bf16.mxu0 0
    %7769 = vmatpush1.bf16.msra.mxu0 %v7594
    %7770 = vmatprep.subr.bf16.mxu0 0
    %7771 = vmatpush1.bf16.msra.mxu0 %v7593
    %7772 = vmatprep.subr.bf16.mxu0 0
    %7773 = vmatpush1.bf16.msra.mxu0 %v7592
    %7774 = vmatprep.subr.bf16.mxu0 0
    %7775 = vmatpush1.bf16.msra.mxu0 %v7591
    %7776 = vmatprep.subr.bf16.mxu0 0
    %7777 = vmatpush1.bf16.msra.mxu0 %v7590
    %7778 = vmatprep.subr.bf16.mxu0 0
    %7779 = vmatpush1.bf16.msra.mxu0 %v7589
    %7780 = vmatprep.subr.bf16.mxu0 0
    %7781 = vmatpush1.bf16.msra.mxu0 %v7588
    %7782 = vmatprep.subr.bf16.mxu0 0
    %7783 = vmatpush2.bf16.msra.mxu0 %v7603
    %7784 = vmatprep.subr.bf16.mxu0 0
    %7785 = vmatpush2.bf16.msra.mxu0 %v7602
    %7786 = vmatprep.subr.bf16.mxu0 0
    %7787 = vmatpush2.bf16.msra.mxu0 %v7601
    %7788 = vmatprep.subr.bf16.mxu0 0
    %7789 = vmatpush2.bf16.msra.mxu0 %v7600
    %7790 = vmatprep.subr.bf16.mxu0 0
    %7791 = vmatpush2.bf16.msra.mxu0 %v7599
    %7792 = vmatprep.subr.bf16.mxu0 0
    %7793 = vmatpush2.bf16.msra.mxu0 %v7598
    %7794 = vmatprep.subr.bf16.mxu0 0
    %7795 = vmatpush2.bf16.msra.mxu0 %v7597
    %7796 = vmatprep.subr.bf16.mxu0 0
    %7797 = vmatpush2.bf16.msra.mxu0 %v7596
    %7798 = vmatprep.mubr.bf16.mxu0 %v2998
    %7799 = vmatmul.mubr.bf16.gmra.mxu0 %v2997
    %v7800 = vpop.f32.mrf.mxu0
    %v7801 = vadd.f32 %v7760, %v7800
    %v7802 = vpop.f32.mrf.mxu0
    %v7803 = vpop.f32.mrf.mxu0
    %v7804 = vadd.f32 %v7763, %v7803
    %v7805 = vpop.f32.mrf.mxu0
    %7806 = vdwg.mxu0
    %7807 = vmatprep.subr.bf16.mxu0 0
    %7808 = vmatpush1.bf16.msra.mxu0 %v7611
    %7809 = vmatprep.subr.bf16.mxu0 0
    %7810 = vmatpush1.bf16.msra.mxu0 %v7610
    %7811 = vmatprep.subr.bf16.mxu0 0
    %7812 = vmatpush1.bf16.msra.mxu0 %v7609
    %7813 = vmatprep.subr.bf16.mxu0 0
    %7814 = vmatpush1.bf16.msra.mxu0 %v7608
    %7815 = vmatprep.subr.bf16.mxu0 0
    %7816 = vmatpush1.bf16.msra.mxu0 %v7607
    %7817 = vmatprep.subr.bf16.mxu0 0
    %7818 = vmatpush1.bf16.msra.mxu0 %v7606
    %7819 = vmatprep.subr.bf16.mxu0 0
    %7820 = vmatpush1.bf16.msra.mxu0 %v7605
    %7821 = vmatprep.subr.bf16.mxu0 0
    %7822 = vmatpush1.bf16.msra.mxu0 %v7604
    %7823 = vmatprep.subr.bf16.mxu0 0
    %7824 = vmatpush2.bf16.msra.mxu0 %v7619
    %7825 = vmatprep.subr.bf16.mxu0 0
    %7826 = vmatpush2.bf16.msra.mxu0 %v7618
    %7827 = vmatprep.subr.bf16.mxu0 0
    %7828 = vmatpush2.bf16.msra.mxu0 %v7617
    %7829 = vmatprep.subr.bf16.mxu0 0
    %7830 = vmatpush2.bf16.msra.mxu0 %v7616
    %7831 = vmatprep.subr.bf16.mxu0 0
    %7832 = vmatpush2.bf16.msra.mxu0 %v7615
    %7833 = vmatprep.subr.bf16.mxu0 0
    %7834 = vmatpush2.bf16.msra.mxu0 %v7614
    %7835 = vmatprep.subr.bf16.mxu0 0
    %7836 = vmatpush2.bf16.msra.mxu0 %v7613
    %7837 = vmatprep.subr.bf16.mxu0 0
    %7838 = vmatpush2.bf16.msra.mxu0 %v7612
    %7839 = vmatprep.mubr.bf16.mxu0 %v3000
    %7840 = vmatmul.mubr.bf16.gmra.mxu0 %v2999
    %v7841 = vpop.f32.mrf.mxu0
    %v7842 = vadd.f32 %v7801, %v7841
    %v7843 = vpop.f32.mrf.mxu0
    %v7844 = vpop.f32.mrf.mxu0
    %v7845 = vadd.f32 %v7804, %v7844
    %v7846 = vpop.f32.mrf.mxu0
    %7847 = vdwg.mxu0
    %v7848 = vpack.c.bf16 %v7845, %v7842
    %v7849 = vtanh.bf16.pop %v7848
    %v7851 = vunpack.c.l.b16 %v7849
    %v7852 = vunpack.c.h.b16 %v7849
    %v7853 = vpack.c.b16 %v7851, %v7851
    %v7854 = vpack.c.b16 %v7852, %v7852
    %7857 = vst [vmem:[%s9 + $0x18] sm:$0xf] %v7853
    %7858 = vst [vmem:[%s9 + $0x34] sm:$0xf] %v7854
    // Predicated region
    $region70: #{ac_generator_forward.1} parent=1 // pred_check
      _
    $region71: #{ac_generator_forward.1} parent=1 // pred_check_branch
      %7860 = sbr.rel (0) target = $region73
    $region72: #{ac_generator_forward.1} parent=1 // pred_region
      _
    $region73: #{ac_generator_forward.1} parent=1 // pred_fallthru
      _
    // Predicated region
    $region74: #{ac_generator_forward.1} parent=1 // pred_check
      _
    $region75: #{ac_generator_forward.1} parent=1 // pred_check_branch
      %7862 = sbr.rel (0) target = $region77
    $region76: #{ac_generator_forward.1} parent=1 // pred_region
      _
    $region77: #{ac_generator_forward.1} parent=1 // pred_fallthru
      _
    %7863 = vsyncpa [#allocation3], 1
    %7864 = vsyncpa [#allocation5], 1
    %7865 = vsyncpa [#allocation8], 1
    %7866 = vsyncpa [#allocation11], 1
    %7867 = vsyncpa [#allocation14], 1

</llo_original>
